<compile_context>
chip_gen: v6e
topology: v6e:2x2x1
jax: 0.10.0
libtpu: 0.0.40
codegen_flags: <defaults>
</compile_context>

<pallas_src>
import math
from functools import partial

import jax
import jax.numpy as jnp
from jax import lax
from jax.experimental import pallas as pl
from jax.experimental.pallas import tpu as pltpu

# ---------------- model dimensions (small, synthetic) ----------------
N = 2          # batch
CIN = 3        # input channels
HW = 16        # input spatial
C1 = 8         # conv1 out channels
C2 = 16        # conv2 out channels
FLAT = C2 * (HW // 4) * (HW // 4)   # 256  (plays the role of 25088)
HID = 32       # classifier hidden (plays the role of 4096)
HASH_BIT = 16

INIT_SCALE = 1.0
GAMMA = 0.005
POWER = 0.5
# eval mode: iter_num stays 0, 0 % step_size == 0 -> scale = 1.0
SCALE = INIT_SCALE * math.pow(1.0 + GAMMA * 0, POWER)

# Sublane-aligned column offset of the first "real" image column inside the
# zero-initialised padded VMEM scratch (keeps the interior store tile-aligned;
# the left halo column sits at COL0-1, the right halo at COL0+W).
COL0 = 8


# ---------------- in-kernel helpers ----------------
def _maxpool2x2(x, n, h, w, c):
    """2x2 / stride-2 max pool.  x: (n*h*w, c) with rows ordered (n, h, w).
    Pure pairwise jnp.maximum on lane-preserving reshapes (VPU work only).
    Returns (n, h//2, w//2, c)."""
    xh = x.reshape(n, h // 2, 2, w, c)
    xh = jnp.maximum(xh[:, :, 0, :, :], xh[:, :, 1, :, :])      # (n, h/2, w, c)
    xw = xh.reshape(n, h // 2, w // 2, 2, c)
    return jnp.maximum(xw[:, :, :, 0, :], xw[:, :, :, 1, :])    # (n, h/2, w/2, c)


def _conv3x3_relu(pad_ref, im_ref, w_ref, b_ref, n, hout, cin):
    """3x3 SAME conv + ReLU as ONE im2col matmul (K = 9*cin).
    pad_ref holds the zero-padded input (real columns start at COL0);
    im_ref is the (n*hout*hout, 9*cin) im2col staging scratch.
    MXU operands are bf16, accumulation is f32."""
    for kh in range(3):
        for kw in range(3):
            t = kh * 3 + kw
            patch = pad_ref[:, kh:kh + hout,
                            COL0 - 1 + kw:COL0 - 1 + kw + hout, :]
            im_ref[:, t * cin:(t + 1) * cin] = patch.reshape(n * hout * hout, cin)
    acc = jnp.dot(im_ref[...].astype(jnp.bfloat16), w_ref[...],
                  preferred_element_type=jnp.float32)
    return jnp.maximum(acc + b_ref[...], 0.0)           # (n*hout*hout, cout) f32


# ---------------- the fused Pallas kernel ----------------
def vggfc_kernel(x_ref, w1_ref, b1_ref, w2_ref, b2_ref,
                 fc1w_ref, fc1b_ref, fc2w_ref, fc2b_ref, hw_ref, hb_ref,
                 o_ref,
                 pad1_ref, im1_ref, pad2_ref, im2_ref, flat_ref, *, scale):
    n, H, _, cin = x_ref.shape
    c1 = b1_ref.shape[1]
    c2 = b2_ref.shape[1]
    h2, h4 = H // 2, H // 4
    bf16, f32 = jnp.bfloat16, jnp.float32

    # ---- conv1 halo: zero-init padded scratch in VMEM (no host-side pad) ----
    pad1_ref[...] = jnp.zeros(pad1_ref.shape, f32)
    pad1_ref[:, 1:H + 1, COL0:COL0 + H, :] = x_ref[...]

    # ---- features: conv3x3+ReLU -> maxpool2 -> conv3x3+ReLU -> maxpool2 ----
    a = _conv3x3_relu(pad1_ref, im1_ref, w1_ref, b1_ref, n, H, cin)   # (n*H*H, c1)
    p1 = _maxpool2x2(a, n, H, H, c1)                                  # (n, h2, h2, c1)

    pad2_ref[...] = jnp.zeros(pad2_ref.shape, f32)
    pad2_ref[:, 1:h2 + 1, COL0:COL0 + h2, :] = p1

    a = _conv3x3_relu(pad2_ref, im2_ref, w2_ref, b2_ref, n, h2, c1)   # (n*h2*h2, c2)
    p2 = _maxpool2x2(a, n, h2, h2, c2)                                # (n, h4, h4, c2)

    # ---- flatten in NHWC order (PyTorch CHW order folded into fc1_w rows) ----
    for i in range(h4):
        for j in range(h4):
            s = i * h4 + j
            flat_ref[:, s * c2:(s + 1) * c2] = p2[:, i, j, :]

    # ---- classifier (Dropout = identity in eval) + hash layer + tanh ----
    a = jnp.dot(flat_ref[...].astype(bf16), fc1w_ref[...],
                preferred_element_type=f32) + fc1b_ref[...]
    a = jnp.maximum(a, 0.0)
    a = jnp.dot(a.astype(bf16), fc2w_ref[...],
                preferred_element_type=f32) + fc2b_ref[...]
    a = jnp.maximum(a, 0.0)
    y = jnp.dot(a.astype(bf16), hw_ref[...],
                preferred_element_type=f32) + hb_ref[...]
    o_ref[...] = jnp.tanh(scale * y)


# ---------------- host wrapper: one pallas_call for the whole forward ----------------
def vggfc_forward(kp, x_nchw):
    n = x_nchw.shape[0]
    H, h2 = HW, HW // 2
    # layout: accept NCHW (PyTorch); kernels run on NHWC so channels sit on lanes.
    x = jnp.transpose(x_nchw, (0, 2, 3, 1)).astype(jnp.float32)

    def full(shape):
        return pl.BlockSpec(shape, lambda i: (0,) * len(shape))

    in_specs = [
        full(x.shape),
        full(kp["w1"].shape), full(kp["b1"].shape),
        full(kp["w2"].shape), full(kp["b2"].shape),
        full(kp["fc1_w"].shape), full(kp["fc1_b"].shape),
        full(kp["fc2_w"].shape), full(kp["fc2_b"].shape),
        full(kp["hash_w"].shape), full(kp["hash_b"].shape),
    ]
    scratch_shapes = [
        pltpu.VMEM((n, H + 2, COL0 + H + 8, CIN), jnp.float32),    # padded conv1 input
        pltpu.VMEM((n * H * H, 9 * CIN), jnp.float32),             # conv1 im2col
        pltpu.VMEM((n, h2 + 2, COL0 + h2 + 8, C1), jnp.float32),   # padded conv2 input
        pltpu.VMEM((n * h2 * h2, 9 * C1), jnp.float32),            # conv2 im2col
        pltpu.VMEM((n, FLAT), jnp.float32),                        # flattened features
    ]
    return pl.pallas_call(
        partial(vggfc_kernel, scale=SCALE),
        out_shape=jax.ShapeDtypeStruct((n, HASH_BIT), jnp.float32),
        grid_spec=pltpu.PrefetchScalarGridSpec(
            num_scalar_prefetch=0,
            grid=(1,),
            in_specs=in_specs,
            out_specs=full((n, HASH_BIT)),
            scratch_shapes=scratch_shapes),
        compiler_params=pltpu.CompilerParams(
            dimension_semantics=("arbitrary",)),   # single step; no cross-core split
    )(x, kp["w1"], kp["b1"], kp["w2"], kp["b2"],
      kp["fc1_w"], kp["fc1_b"], kp["fc2_w"], kp["fc2_b"],
      kp["hash_w"], kp["hash_b"])


vggfc_forward = jax.jit(vggfc_forward)


# ---------------- parameter init (deterministic, synthetic) ----------------
def init_params(key):
    ks = jax.random.split(key, 9)
    p = {}
    p["conv1_w"] = 0.20 * jax.random.normal(ks[0], (3, 3, CIN, C1), jnp.float32)
    p["conv1_b"] = 0.05 * jax.random.normal(ks[1], (1, C1), jnp.float32)
    p["conv2_w"] = 0.10 * jax.random.normal(ks[2], (3, 3, C1, C2), jnp.float32)
    p["conv2_b"] = 0.05 * jax.random.normal(ks[3], (1, C2), jnp.float32)
    p["fc1_w"] = 0.05 * jax.random.normal(ks[4], (FLAT, HID), jnp.float32)
    p["fc1_b"] = 0.05 * jax.random.normal(ks[5], (1, HID), jnp.float32)
    p["fc2_w"] = 0.05 * jax.random.normal(ks[6], (HID, HID), jnp.float32)
    p["fc2_b"] = 0.05 * jax.random.normal(ks[7], (1, HID), jnp.float32)
    # hash_layer: weight ~ N(0, 0.01), bias = 0 (matches __init__)
    p["hash_w"] = 0.01 * jax.random.normal(ks[8], (HID, HASH_BIT), jnp.float32)
    p["hash_b"] = jnp.zeros((1, HASH_BIT), jnp.float32)
    return p


def pack_params(p):
    """One-time host-side weight prep: im2col-reshape the conv kernels, fold the
    PyTorch (C,H,W) flatten order into fc1's rows, cast MXU operands to bf16."""
    bf16 = jnp.bfloat16
    s2 = HW // 4                      # spatial size after the two pools (=4)
    return {
        "w1": p["conv1_w"].reshape(9 * CIN, C1).astype(bf16),
        "b1": p["conv1_b"],
        "w2": p["conv2_w"].reshape(9 * C1, C2).astype(bf16),
        "b2": p["conv2_b"],
        # PyTorch fc1 row index is c*(s2*s2) + s; reorder rows to s*C2 + c so the
        # NHWC-flattened activation feeds fc1 directly (no runtime relayout).
        "fc1_w": p["fc1_w"].reshape(C2, s2 * s2, HID)
                           .transpose(1, 0, 2).reshape(FLAT, HID).astype(bf16),
        "fc1_b": p["fc1_b"],
        "fc2_w": p["fc2_w"].astype(bf16),
        "fc2_b": p["fc2_b"],
        "hash_w": p["hash_w"].astype(bf16),
        "hash_b": p["hash_b"],
    }


# ---------------- pure-JAX reference for correctness ----------------
def reference_forward(params, x_nchw, mxu_dtype=jnp.float32):
    """Reference in PyTorch layout/order.  mxu_dtype=bfloat16 mirrors the
    kernel's MXU operand casts (f32 accumulation) for a tight comparison."""
    f32 = jnp.float32
    x = jnp.transpose(x_nchw, (0, 2, 3, 1)).astype(f32)
    dn = ("NHWC", "HWIO", "NHWC")

    def conv(x, w, b):
        y = lax.conv_general_dilated(
            x.astype(mxu_dtype), w.astype(mxu_dtype), (1, 1), "SAME",
            dimension_numbers=dn, preferred_element_type=f32)
        return jnp.maximum(y + b[0], 0.0)

    def pool(x):
        return lax.reduce_window(x, -jnp.inf, lax.max,
                                 (1, 2, 2, 1), (1, 2, 2, 1), "VALID")

    def dense(x, w, b):
        return jnp.dot(x.astype(mxu_dtype), w.astype(mxu_dtype),
                       preferred_element_type=f32) + b

    x = pool(conv(x, params["conv1_w"], params["conv1_b"]))
    x = pool(conv(x, params["conv2_w"], params["conv2_b"]))
    # flatten in PyTorch (C, H, W) order: x.view(N, -1) on NCHW features
    x = jnp.transpose(x, (0, 3, 1, 2)).reshape(x.shape[0], FLAT)
    x = jnp.maximum(dense(x, params["fc1_w"], params["fc1_b"]), 0.0)
    x = jnp.maximum(dense(x, params["fc2_w"], params["fc2_b"]), 0.0)
    return jnp.tanh(SCALE * dense(x, params["hash_w"], params["hash_b"]))


if __name__ == "__main__":
    key = jax.random.PRNGKey(0)
    kx, kparam = jax.random.split(key)
    x = jax.random.normal(kx, (N, CIN, HW, HW), jnp.float32)
    params = init_params(kparam)
    kp = pack_params(params)          # one-time host-side weight preprocessing

    y = jax.block_until_ready(vggfc_forward(kp, x))
    assert y.shape == (N, HASH_BIT), y.shape

    # tight check: reference with the same bf16-operand / f32-accumulate math
    y_bf16 = reference_forward(params, x, mxu_dtype=jnp.bfloat16)
    assert jnp.allclose(y, y_bf16, atol=5e-4, rtol=1e-3), (
        float(jnp.max(jnp.abs(y - y_bf16))))

    # sanity check against pure-f32 semantics (bf16 MXU operands => looser tol)
    y_f32 = reference_forward(params, x, mxu_dtype=jnp.float32)
    assert jnp.allclose(y, y_f32, atol=5e-3, rtol=5e-2), (
        float(jnp.max(jnp.abs(y - y_f32))))

    print("KERNEL_OK")
</pallas_src>

<mosaic_0001>
module attributes {stable_mosaic.version = 11 : i64} {
  func.func @vggfc_kernel(%arg0: i32, %arg1: memref<2x16x16x3xf32, #tpu.memory_space<vmem>>, %arg2: memref<27x8xbf16, #tpu.memory_space<vmem>>, %arg3: memref<1x8xf32, #tpu.memory_space<vmem>>, %arg4: memref<72x16xbf16, #tpu.memory_space<vmem>>, %arg5: memref<1x16xf32, #tpu.memory_space<vmem>>, %arg6: memref<256x32xbf16, #tpu.memory_space<vmem>>, %arg7: memref<1x32xf32, #tpu.memory_space<vmem>>, %arg8: memref<32x32xbf16, #tpu.memory_space<vmem>>, %arg9: memref<1x32xf32, #tpu.memory_space<vmem>>, %arg10: memref<32x16xbf16, #tpu.memory_space<vmem>>, %arg11: memref<1x16xf32, #tpu.memory_space<vmem>>, %arg12: memref<2x16xf32, #tpu.memory_space<vmem>>, %arg13: memref<2x18x32x3xf32, #tpu.memory_space<vmem>>, %arg14: memref<512x27xf32, #tpu.memory_space<vmem>>, %arg15: memref<2x10x24x8xf32, #tpu.memory_space<vmem>>, %arg16: memref<128x72xf32, #tpu.memory_space<vmem>>, %arg17: memref<2x256xf32, #tpu.memory_space<vmem>>) attributes {dimension_semantics = [#tpu.dimension_semantics<arbitrary>], iteration_bounds = array<i64: 1>, scalar_prefetch = 0 : i64, scratch_operands = 5 : i64, tpu.core_type = #tpu.core_type<tc>, window_params = [{pipeline_mode = #tpu.pipeline_mode<synchronous>, transform_indices = @transform_0, window_bounds = array<i64: 2, 16, 16, 3>}, {pipeline_mode = #tpu.pipeline_mode<synchronous>, transform_indices = @transform_1, window_bounds = array<i64: 27, 8>}, {pipeline_mode = #tpu.pipeline_mode<synchronous>, transform_indices = @transform_2, window_bounds = array<i64: 1, 8>}, {pipeline_mode = #tpu.pipeline_mode<synchronous>, transform_indices = @transform_3, window_bounds = array<i64: 72, 16>}, {pipeline_mode = #tpu.pipeline_mode<synchronous>, transform_indices = @transform_4, window_bounds = array<i64: 1, 16>}, {pipeline_mode = #tpu.pipeline_mode<synchronous>, transform_indices = @transform_5, window_bounds = array<i64: 256, 32>}, {pipeline_mode = #tpu.pipeline_mode<synchronous>, transform_indices = @transform_6, window_bounds = array<i64: 1, 32>}, {pipeline_mode = #tpu.pipeline_mode<synchronous>, transform_indices = @transform_7, window_bounds = array<i64: 32, 32>}, {pipeline_mode = #tpu.pipeline_mode<synchronous>, transform_indices = @transform_8, window_bounds = array<i64: 1, 32>}, {pipeline_mode = #tpu.pipeline_mode<synchronous>, transform_indices = @transform_9, window_bounds = array<i64: 32, 16>}, {pipeline_mode = #tpu.pipeline_mode<synchronous>, transform_indices = @transform_10, window_bounds = array<i64: 1, 16>}, {pipeline_mode = #tpu.pipeline_mode<synchronous>, transform_indices = @transform_11, window_bounds = array<i64: 2, 16>}]} {
    %cst = arith.constant 0.000000e+00 : f32
    %0 = vector.broadcast %cst : f32 to vector<2x18x32x3xf32>
    %c0 = arith.constant 0 : index
    %c0_0 = arith.constant 0 : index
    %c0_1 = arith.constant 0 : index
    %c0_2 = arith.constant 0 : index
    %1 = vector.load %arg13[%c0, %c0_0, %c0_1, %c0_2] : memref<2x18x32x3xf32, #tpu.memory_space<vmem>>, vector<2x18x32x3xf32>
    tpu.vector_store %arg13[%c0, %c0_0, %c0_1, %c0_2], %0 {strides = array<i32>} : memref<2x18x32x3xf32, #tpu.memory_space<vmem>>, vector<2x18x32x3xf32>,
    %c0_3 = arith.constant 0 : index
    %c0_4 = arith.constant 0 : index
    %c0_5 = arith.constant 0 : index
    %c0_6 = arith.constant 0 : index
    %2 = vector.load %arg1[%c0_3, %c0_4, %c0_5, %c0_6] : memref<2x16x16x3xf32, #tpu.memory_space<vmem>>, vector<2x16x16x3xf32>
    %c0_7 = arith.constant 0 : index
    %c1 = arith.constant 1 : index
    %c8 = arith.constant 8 : index
    %c0_8 = arith.constant 0 : index
    %3 = vector.load %arg13[%c0_7, %c1, %c8, %c0_8] : memref<2x18x32x3xf32, #tpu.memory_space<vmem>>, vector<2x16x16x3xf32>
    tpu.vector_store %arg13[%c0_7, %c1, %c8, %c0_8], %2 {strides = array<i32>} : memref<2x18x32x3xf32, #tpu.memory_space<vmem>>, vector<2x16x16x3xf32>,
    %c0_9 = arith.constant 0 : index
    %c0_10 = arith.constant 0 : index
    %c7 = arith.constant 7 : index
    %c0_11 = arith.constant 0 : index
    %4 = vector.load %arg13[%c0_9, %c0_10, %c7, %c0_11] : memref<2x18x32x3xf32, #tpu.memory_space<vmem>>, vector<2x16x16x3xf32>
    %5 = vector.shape_cast %4 : vector<2x16x16x3xf32> to vector<512x3xf32>
    %c0_12 = arith.constant 0 : index
    %c0_13 = arith.constant 0 : index
    %6 = vector.load %arg14[%c0_12, %c0_13] : memref<512x27xf32, #tpu.memory_space<vmem>>, vector<512x3xf32>
    tpu.vector_store %arg14[%c0_12, %c0_13], %5 {strides = array<i32>} : memref<512x27xf32, #tpu.memory_space<vmem>>, vector<512x3xf32>,
    %c0_14 = arith.constant 0 : index
    %c0_15 = arith.constant 0 : index
    %c8_16 = arith.constant 8 : index
    %c0_17 = arith.constant 0 : index
    %7 = vector.load %arg13[%c0_14, %c0_15, %c8_16, %c0_17] : memref<2x18x32x3xf32, #tpu.memory_space<vmem>>, vector<2x16x16x3xf32>
    %8 = vector.shape_cast %7 : vector<2x16x16x3xf32> to vector<512x3xf32>
    %c0_18 = arith.constant 0 : index
    %c3 = arith.constant 3 : index
    %9 = vector.load %arg14[%c0_18, %c3] : memref<512x27xf32, #tpu.memory_space<vmem>>, vector<512x3xf32>
    tpu.vector_store %arg14[%c0_18, %c3], %8 {strides = array<i32>} : memref<512x27xf32, #tpu.memory_space<vmem>>, vector<512x3xf32>,
    %c0_19 = arith.constant 0 : index
    %c0_20 = arith.constant 0 : index
    %c9 = arith.constant 9 : index
    %c0_21 = arith.constant 0 : index
    %10 = vector.load %arg13[%c0_19, %c0_20, %c9, %c0_21] : memref<2x18x32x3xf32, #tpu.memory_space<vmem>>, vector<2x16x16x3xf32>
    %11 = vector.shape_cast %10 : vector<2x16x16x3xf32> to vector<512x3xf32>
    %c0_22 = arith.constant 0 : index
    %c6 = arith.constant 6 : index
    %12 = vector.load %arg14[%c0_22, %c6] : memref<512x27xf32, #tpu.memory_space<vmem>>, vector<512x3xf32>
    tpu.vector_store %arg14[%c0_22, %c6], %11 {strides = array<i32>} : memref<512x27xf32, #tpu.memory_space<vmem>>, vector<512x3xf32>,
    %c0_23 = arith.constant 0 : index
    %c1_24 = arith.constant 1 : index
    %c7_25 = arith.constant 7 : index
    %c0_26 = arith.constant 0 : index
    %13 = vector.load %arg13[%c0_23, %c1_24, %c7_25, %c0_26] : memref<2x18x32x3xf32, #tpu.memory_space<vmem>>, vector<2x16x16x3xf32>
    %14 = vector.shape_cast %13 : vector<2x16x16x3xf32> to vector<512x3xf32>
    %c0_27 = arith.constant 0 : index
    %c9_28 = arith.constant 9 : index
    %15 = vector.load %arg14[%c0_27, %c9_28] : memref<512x27xf32, #tpu.memory_space<vmem>>, vector<512x3xf32>
    tpu.vector_store %arg14[%c0_27, %c9_28], %14 {strides = array<i32>} : memref<512x27xf32, #tpu.memory_space<vmem>>, vector<512x3xf32>,
    %c0_29 = arith.constant 0 : index
    %c1_30 = arith.constant 1 : index
    %c8_31 = arith.constant 8 : index
    %c0_32 = arith.constant 0 : index
    %16 = vector.load %arg13[%c0_29, %c1_30, %c8_31, %c0_32] : memref<2x18x32x3xf32, #tpu.memory_space<vmem>>, vector<2x16x16x3xf32>
    %17 = vector.shape_cast %16 : vector<2x16x16x3xf32> to vector<512x3xf32>
    %c0_33 = arith.constant 0 : index
    %c12 = arith.constant 12 : index
    %18 = vector.load %arg14[%c0_33, %c12] : memref<512x27xf32, #tpu.memory_space<vmem>>, vector<512x3xf32>
    tpu.vector_store %arg14[%c0_33, %c12], %17 {strides = array<i32>} : memref<512x27xf32, #tpu.memory_space<vmem>>, vector<512x3xf32>,
    %c0_34 = arith.constant 0 : index
    %c1_35 = arith.constant 1 : index
    %c9_36 = arith.constant 9 : index
    %c0_37 = arith.constant 0 : index
    %19 = vector.load %arg13[%c0_34, %c1_35, %c9_36, %c0_37] : memref<2x18x32x3xf32, #tpu.memory_space<vmem>>, vector<2x16x16x3xf32>
    %20 = vector.shape_cast %19 : vector<2x16x16x3xf32> to vector<512x3xf32>
    %c0_38 = arith.constant 0 : index
    %c15 = arith.constant 15 : index
    %21 = vector.load %arg14[%c0_38, %c15] : memref<512x27xf32, #tpu.memory_space<vmem>>, vector<512x3xf32>
    tpu.vector_store %arg14[%c0_38, %c15], %20 {strides = array<i32>} : memref<512x27xf32, #tpu.memory_space<vmem>>, vector<512x3xf32>,
    %c0_39 = arith.constant 0 : index
    %c2 = arith.constant 2 : index
    %c7_40 = arith.constant 7 : index
    %c0_41 = arith.constant 0 : index
    %22 = vector.load %arg13[%c0_39, %c2, %c7_40, %c0_41] : memref<2x18x32x3xf32, #tpu.memory_space<vmem>>, vector<2x16x16x3xf32>
    %23 = vector.shape_cast %22 : vector<2x16x16x3xf32> to vector<512x3xf32>
    %c0_42 = arith.constant 0 : index
    %c18 = arith.constant 18 : index
    %24 = vector.load %arg14[%c0_42, %c18] : memref<512x27xf32, #tpu.memory_space<vmem>>, vector<512x3xf32>
    tpu.vector_store %arg14[%c0_42, %c18], %23 {strides = array<i32>} : memref<512x27xf32, #tpu.memory_space<vmem>>, vector<512x3xf32>,
    %c0_43 = arith.constant 0 : index
    %c2_44 = arith.constant 2 : index
    %c8_45 = arith.constant 8 : index
    %c0_46 = arith.constant 0 : index
    %25 = vector.load %arg13[%c0_43, %c2_44, %c8_45, %c0_46] : memref<2x18x32x3xf32, #tpu.memory_space<vmem>>, vector<2x16x16x3xf32>
    %26 = vector.shape_cast %25 : vector<2x16x16x3xf32> to vector<512x3xf32>
    %c0_47 = arith.constant 0 : index
    %c21 = arith.constant 21 : index
    %27 = vector.load %arg14[%c0_47, %c21] : memref<512x27xf32, #tpu.memory_space<vmem>>, vector<512x3xf32>
    tpu.vector_store %arg14[%c0_47, %c21], %26 {strides = array<i32>} : memref<512x27xf32, #tpu.memory_space<vmem>>, vector<512x3xf32>,
    %c0_48 = arith.constant 0 : index
    %c2_49 = arith.constant 2 : index
    %c9_50 = arith.constant 9 : index
    %c0_51 = arith.constant 0 : index
    %28 = vector.load %arg13[%c0_48, %c2_49, %c9_50, %c0_51] : memref<2x18x32x3xf32, #tpu.memory_space<vmem>>, vector<2x16x16x3xf32>
    %29 = vector.shape_cast %28 : vector<2x16x16x3xf32> to vector<512x3xf32>
    %c0_52 = arith.constant 0 : index
    %c24 = arith.constant 24 : index
    %30 = vector.load %arg14[%c0_52, %c24] : memref<512x27xf32, #tpu.memory_space<vmem>>, vector<512x3xf32>
    tpu.vector_store %arg14[%c0_52, %c24], %29 {strides = array<i32>} : memref<512x27xf32, #tpu.memory_space<vmem>>, vector<512x3xf32>,
    %c0_53 = arith.constant 0 : index
    %c0_54 = arith.constant 0 : index
    %31 = vector.load %arg14[%c0_53, %c0_54] : memref<512x27xf32, #tpu.memory_space<vmem>>, vector<512x27xf32>
    %32 = arith.truncf %31 : vector<512x27xf32> to vector<512x27xbf16>
    %c0_55 = arith.constant 0 : index
    %c0_56 = arith.constant 0 : index
    %33 = vector.load %arg2[%c0_55, %c0_56] : memref<27x8xbf16, #tpu.memory_space<vmem>>, vector<27x8xbf16>
    %cst_57 = arith.constant dense<0.000000e+00> : vector<512x8xf32>
    %34 = tpu.matmul %32, %33, %cst_57 {dimension_numbers = #tpu.dot_dimension_numbers<[1], [0], [0], [1], [0, 0, 1, 1], [], []>} : vector<512x27xbf16>, vector<27x8xbf16>, vector<512x8xf32> -> vector<512x8xf32>
    %c0_58 = arith.constant 0 : index
    %c0_59 = arith.constant 0 : index
    %35 = vector.load %arg3[%c0_58, %c0_59] : memref<1x8xf32, #tpu.memory_space<vmem>>, vector<1x8xf32>
    %36 = vector.broadcast %35 : vector<1x8xf32> to vector<512x8xf32>
    %37 = arith.addf %34, %36 : vector<512x8xf32>
    %cst_60 = arith.constant 0.000000e+00 : f32
    %38 = vector.broadcast %cst_60 : f32 to vector<512x8xf32>
    %39 = arith.maximumf %37, %38 : vector<512x8xf32>
    %40 = vector.shape_cast %39 : vector<512x8xf32> to vector<2x8x2x16x8xf32>
    %41 = vector.extract_strided_slice %40 {offsets = [0, 0, 0, 0, 0], sizes = [2, 8, 1, 16, 8], strides = [1, 1, 1, 1, 1]} : vector<2x8x2x16x8xf32> to vector<2x8x1x16x8xf32>
    %42 = vector.shape_cast %41 : vector<2x8x1x16x8xf32> to vector<2x8x16x8xf32>
    %43 = vector.extract_strided_slice %40 {offsets = [0, 0, 1, 0, 0], sizes = [2, 8, 1, 16, 8], strides = [1, 1, 1, 1, 1]} : vector<2x8x2x16x8xf32> to vector<2x8x1x16x8xf32>
    %44 = vector.shape_cast %43 : vector<2x8x1x16x8xf32> to vector<2x8x16x8xf32>
    %45 = arith.maximumf %42, %44 : vector<2x8x16x8xf32>
    %46 = vector.shape_cast %45 : vector<2x8x16x8xf32> to vector<2x8x8x2x8xf32>
    %47 = vector.extract_strided_slice %46 {offsets = [0, 0, 0, 0, 0], sizes = [2, 8, 8, 1, 8], strides = [1, 1, 1, 1, 1]} : vector<2x8x8x2x8xf32> to vector<2x8x8x1x8xf32>
    %48 = vector.shape_cast %47 : vector<2x8x8x1x8xf32> to vector<2x8x8x8xf32>
    %49 = vector.extract_strided_slice %46 {offsets = [0, 0, 0, 1, 0], sizes = [2, 8, 8, 1, 8], strides = [1, 1, 1, 1, 1]} : vector<2x8x8x2x8xf32> to vector<2x8x8x1x8xf32>
    %50 = vector.shape_cast %49 : vector<2x8x8x1x8xf32> to vector<2x8x8x8xf32>
    %51 = arith.maximumf %48, %50 : vector<2x8x8x8xf32>
    %cst_61 = arith.constant 0.000000e+00 : f32
    %52 = vector.broadcast %cst_61 : f32 to vector<2x10x24x8xf32>
    %c0_62 = arith.constant 0 : index
    %c0_63 = arith.constant 0 : index
    %c0_64 = arith.constant 0 : index
    %c0_65 = arith.constant 0 : index
    %53 = vector.load %arg15[%c0_62, %c0_63, %c0_64, %c0_65] : memref<2x10x24x8xf32, #tpu.memory_space<vmem>>, vector<2x10x24x8xf32>
    tpu.vector_store %arg15[%c0_62, %c0_63, %c0_64, %c0_65], %52 {strides = array<i32>} : memref<2x10x24x8xf32, #tpu.memory_space<vmem>>, vector<2x10x24x8xf32>,
    %c0_66 = arith.constant 0 : index
    %c1_67 = arith.constant 1 : index
    %c8_68 = arith.constant 8 : index
    %c0_69 = arith.constant 0 : index
    %54 = vector.load %arg15[%c0_66, %c1_67, %c8_68, %c0_69] : memref<2x10x24x8xf32, #tpu.memory_space<vmem>>, vector<2x8x8x8xf32>
    tpu.vector_store %arg15[%c0_66, %c1_67, %c8_68, %c0_69], %51 {strides = array<i32>} : memref<2x10x24x8xf32, #tpu.memory_space<vmem>>, vector<2x8x8x8xf32>,
    %c0_70 = arith.constant 0 : index
    %c0_71 = arith.constant 0 : index
    %c7_72 = arith.constant 7 : index
    %c0_73 = arith.constant 0 : index
    %55 = vector.load %arg15[%c0_70, %c0_71, %c7_72, %c0_73] : memref<2x10x24x8xf32, #tpu.memory_space<vmem>>, vector<2x8x8x8xf32>
    %56 = vector.shape_cast %55 : vector<2x8x8x8xf32> to vector<128x8xf32>
    %c0_74 = arith.constant 0 : index
    %c0_75 = arith.constant 0 : index
    %57 = vector.load %arg16[%c0_74, %c0_75] : memref<128x72xf32, #tpu.memory_space<vmem>>, vector<128x8xf32>
    tpu.vector_store %arg16[%c0_74, %c0_75], %56 {strides = array<i32>} : memref<128x72xf32, #tpu.memory_space<vmem>>, vector<128x8xf32>,
    %c0_76 = arith.constant 0 : index
    %c0_77 = arith.constant 0 : index
    %c8_78 = arith.constant 8 : index
    %c0_79 = arith.constant 0 : index
    %58 = vector.load %arg15[%c0_76, %c0_77, %c8_78, %c0_79] : memref<2x10x24x8xf32, #tpu.memory_space<vmem>>, vector<2x8x8x8xf32>
    %59 = vector.shape_cast %58 : vector<2x8x8x8xf32> to vector<128x8xf32>
    %c0_80 = arith.constant 0 : index
    %c8_81 = arith.constant 8 : index
    %60 = vector.load %arg16[%c0_80, %c8_81] : memref<128x72xf32, #tpu.memory_space<vmem>>, vector<128x8xf32>
    tpu.vector_store %arg16[%c0_80, %c8_81], %59 {strides = array<i32>} : memref<128x72xf32, #tpu.memory_space<vmem>>, vector<128x8xf32>,
    %c0_82 = arith.constant 0 : index
    %c0_83 = arith.constant 0 : index
    %c9_84 = arith.constant 9 : index
    %c0_85 = arith.constant 0 : index
    %61 = vector.load %arg15[%c0_82, %c0_83, %c9_84, %c0_85] : memref<2x10x24x8xf32, #tpu.memory_space<vmem>>, vector<2x8x8x8xf32>
    %62 = vector.shape_cast %61 : vector<2x8x8x8xf32> to vector<128x8xf32>
    %c0_86 = arith.constant 0 : index
    %c16 = arith.constant 16 : index
    %63 = vector.load %arg16[%c0_86, %c16] : memref<128x72xf32, #tpu.memory_space<vmem>>, vector<128x8xf32>
    tpu.vector_store %arg16[%c0_86, %c16], %62 {strides = array<i32>} : memref<128x72xf32, #tpu.memory_space<vmem>>, vector<128x8xf32>,
    %c0_87 = arith.constant 0 : index
    %c1_88 = arith.constant 1 : index
    %c7_89 = arith.constant 7 : index
    %c0_90 = arith.constant 0 : index
    %64 = vector.load %arg15[%c0_87, %c1_88, %c7_89, %c0_90] : memref<2x10x24x8xf32, #tpu.memory_space<vmem>>, vector<2x8x8x8xf32>
    %65 = vector.shape_cast %64 : vector<2x8x8x8xf32> to vector<128x8xf32>
    %c0_91 = arith.constant 0 : index
    %c24_92 = arith.constant 24 : index
    %66 = vector.load %arg16[%c0_91, %c24_92] : memref<128x72xf32, #tpu.memory_space<vmem>>, vector<128x8xf32>
    tpu.vector_store %arg16[%c0_91, %c24_92], %65 {strides = array<i32>} : memref<128x72xf32, #tpu.memory_space<vmem>>, vector<128x8xf32>,
    %c0_93 = arith.constant 0 : index
    %c1_94 = arith.constant 1 : index
    %c8_95 = arith.constant 8 : index
    %c0_96 = arith.constant 0 : index
    %67 = vector.load %arg15[%c0_93, %c1_94, %c8_95, %c0_96] : memref<2x10x24x8xf32, #tpu.memory_space<vmem>>, vector<2x8x8x8xf32>
    %68 = vector.shape_cast %67 : vector<2x8x8x8xf32> to vector<128x8xf32>
    %c0_97 = arith.constant 0 : index
    %c32 = arith.constant 32 : index
    %69 = vector.load %arg16[%c0_97, %c32] : memref<128x72xf32, #tpu.memory_space<vmem>>, vector<128x8xf32>
    tpu.vector_store %arg16[%c0_97, %c32], %68 {strides = array<i32>} : memref<128x72xf32, #tpu.memory_space<vmem>>, vector<128x8xf32>,
    %c0_98 = arith.constant 0 : index
    %c1_99 = arith.constant 1 : index
    %c9_100 = arith.constant 9 : index
    %c0_101 = arith.constant 0 : index
    %70 = vector.load %arg15[%c0_98, %c1_99, %c9_100, %c0_101] : memref<2x10x24x8xf32, #tpu.memory_space<vmem>>, vector<2x8x8x8xf32>
    %71 = vector.shape_cast %70 : vector<2x8x8x8xf32> to vector<128x8xf32>
    %c0_102 = arith.constant 0 : index
    %c40 = arith.constant 40 : index
    %72 = vector.load %arg16[%c0_102, %c40] : memref<128x72xf32, #tpu.memory_space<vmem>>, vector<128x8xf32>
    tpu.vector_store %arg16[%c0_102, %c40], %71 {strides = array<i32>} : memref<128x72xf32, #tpu.memory_space<vmem>>, vector<128x8xf32>,
    %c0_103 = arith.constant 0 : index
    %c2_104 = arith.constant 2 : index
    %c7_105 = arith.constant 7 : index
    %c0_106 = arith.constant 0 : index
    %73 = vector.load %arg15[%c0_103, %c2_104, %c7_105, %c0_106] : memref<2x10x24x8xf32, #tpu.memory_space<vmem>>, vector<2x8x8x8xf32>
    %74 = vector.shape_cast %73 : vector<2x8x8x8xf32> to vector<128x8xf32>
    %c0_107 = arith.constant 0 : index
    %c48 = arith.constant 48 : index
    %75 = vector.load %arg16[%c0_107, %c48] : memref<128x72xf32, #tpu.memory_space<vmem>>, vector<128x8xf32>
    tpu.vector_store %arg16[%c0_107, %c48], %74 {strides = array<i32>} : memref<128x72xf32, #tpu.memory_space<vmem>>, vector<128x8xf32>,
    %c0_108 = arith.constant 0 : index
    %c2_109 = arith.constant 2 : index
    %c8_110 = arith.constant 8 : index
    %c0_111 = arith.constant 0 : index
    %76 = vector.load %arg15[%c0_108, %c2_109, %c8_110, %c0_111] : memref<2x10x24x8xf32, #tpu.memory_space<vmem>>, vector<2x8x8x8xf32>
    %77 = vector.shape_cast %76 : vector<2x8x8x8xf32> to vector<128x8xf32>
    %c0_112 = arith.constant 0 : index
    %c56 = arith.constant 56 : index
    %78 = vector.load %arg16[%c0_112, %c56] : memref<128x72xf32, #tpu.memory_space<vmem>>, vector<128x8xf32>
    tpu.vector_store %arg16[%c0_112, %c56], %77 {strides = array<i32>} : memref<128x72xf32, #tpu.memory_space<vmem>>, vector<128x8xf32>,
    %c0_113 = arith.constant 0 : index
    %c2_114 = arith.constant 2 : index
    %c9_115 = arith.constant 9 : index
    %c0_116 = arith.constant 0 : index
    %79 = vector.load %arg15[%c0_113, %c2_114, %c9_115, %c0_116] : memref<2x10x24x8xf32, #tpu.memory_space<vmem>>, vector<2x8x8x8xf32>
    %80 = vector.shape_cast %79 : vector<2x8x8x8xf32> to vector<128x8xf32>
    %c0_117 = arith.constant 0 : index
    %c64 = arith.constant 64 : index
    %81 = vector.load %arg16[%c0_117, %c64] : memref<128x72xf32, #tpu.memory_space<vmem>>, vector<128x8xf32>
    tpu.vector_store %arg16[%c0_117, %c64], %80 {strides = array<i32>} : memref<128x72xf32, #tpu.memory_space<vmem>>, vector<128x8xf32>,
    %c0_118 = arith.constant 0 : index
    %c0_119 = arith.constant 0 : index
    %82 = vector.load %arg16[%c0_118, %c0_119] : memref<128x72xf32, #tpu.memory_space<vmem>>, vector<128x72xf32>
    %83 = arith.truncf %82 : vector<128x72xf32> to vector<128x72xbf16>
    %c0_120 = arith.constant 0 : index
    %c0_121 = arith.constant 0 : index
    %84 = vector.load %arg4[%c0_120, %c0_121] : memref<72x16xbf16, #tpu.memory_space<vmem>>, vector<72x16xbf16>
    %cst_122 = arith.constant dense<0.000000e+00> : vector<128x16xf32>
    %85 = tpu.matmul %83, %84, %cst_122 {dimension_numbers = #tpu.dot_dimension_numbers<[1], [0], [0], [1], [0, 0, 1, 1], [], []>} : vector<128x72xbf16>, vector<72x16xbf16>, vector<128x16xf32> -> vector<128x16xf32>
    %c0_123 = arith.constant 0 : index
    %c0_124 = arith.constant 0 : index
    %86 = vector.load %arg5[%c0_123, %c0_124] : memref<1x16xf32, #tpu.memory_space<vmem>>, vector<1x16xf32>
    %87 = vector.broadcast %86 : vector<1x16xf32> to vector<128x16xf32>
    %88 = arith.addf %85, %87 : vector<128x16xf32>
    %cst_125 = arith.constant 0.000000e+00 : f32
    %89 = vector.broadcast %cst_125 : f32 to vector<128x16xf32>
    %90 = arith.maximumf %88, %89 : vector<128x16xf32>
    %91 = vector.shape_cast %90 : vector<128x16xf32> to vector<2x4x2x8x16xf32>
    %92 = vector.extract_strided_slice %91 {offsets = [0, 0, 0, 0, 0], sizes = [2, 4, 1, 8, 16], strides = [1, 1, 1, 1, 1]} : vector<2x4x2x8x16xf32> to vector<2x4x1x8x16xf32>
    %93 = vector.shape_cast %92 : vector<2x4x1x8x16xf32> to vector<2x4x8x16xf32>
    %94 = vector.extract_strided_slice %91 {offsets = [0, 0, 1, 0, 0], sizes = [2, 4, 1, 8, 16], strides = [1, 1, 1, 1, 1]} : vector<2x4x2x8x16xf32> to vector<2x4x1x8x16xf32>
    %95 = vector.shape_cast %94 : vector<2x4x1x8x16xf32> to vector<2x4x8x16xf32>
    %96 = arith.maximumf %93, %95 : vector<2x4x8x16xf32>
    %97 = vector.shape_cast %96 : vector<2x4x8x16xf32> to vector<2x4x4x2x16xf32>
    %98 = vector.extract_strided_slice %97 {offsets = [0, 0, 0, 0, 0], sizes = [2, 4, 4, 1, 16], strides = [1, 1, 1, 1, 1]} : vector<2x4x4x2x16xf32> to vector<2x4x4x1x16xf32>
    %99 = vector.shape_cast %98 : vector<2x4x4x1x16xf32> to vector<2x4x4x16xf32>
    %100 = vector.extract_strided_slice %97 {offsets = [0, 0, 0, 1, 0], sizes = [2, 4, 4, 1, 16], strides = [1, 1, 1, 1, 1]} : vector<2x4x4x2x16xf32> to vector<2x4x4x1x16xf32>
    %101 = vector.shape_cast %100 : vector<2x4x4x1x16xf32> to vector<2x4x4x16xf32>
    %102 = arith.maximumf %99, %101 : vector<2x4x4x16xf32>
    %103 = vector.extract_strided_slice %102 {offsets = [0, 0, 0, 0], sizes = [2, 1, 1, 16], strides = [1, 1, 1, 1]} : vector<2x4x4x16xf32> to vector<2x1x1x16xf32>
    %104 = vector.shape_cast %103 : vector<2x1x1x16xf32> to vector<2x16xf32>
    %c0_126 = arith.constant 0 : index
    %c0_127 = arith.constant 0 : index
    %105 = vector.load %arg17[%c0_126, %c0_127] : memref<2x256xf32, #tpu.memory_space<vmem>>, vector<2x16xf32>
    tpu.vector_store %arg17[%c0_126, %c0_127], %104 {strides = array<i32>} : memref<2x256xf32, #tpu.memory_space<vmem>>, vector<2x16xf32>,
    %106 = vector.extract_strided_slice %102 {offsets = [0, 0, 1, 0], sizes = [2, 1, 1, 16], strides = [1, 1, 1, 1]} : vector<2x4x4x16xf32> to vector<2x1x1x16xf32>
    %107 = vector.shape_cast %106 : vector<2x1x1x16xf32> to vector<2x16xf32>
    %c0_128 = arith.constant 0 : index
    %c16_129 = arith.constant 16 : index
    %108 = vector.load %arg17[%c0_128, %c16_129] : memref<2x256xf32, #tpu.memory_space<vmem>>, vector<2x16xf32>
    tpu.vector_store %arg17[%c0_128, %c16_129], %107 {strides = array<i32>} : memref<2x256xf32, #tpu.memory_space<vmem>>, vector<2x16xf32>,
    %109 = vector.extract_strided_slice %102 {offsets = [0, 0, 2, 0], sizes = [2, 1, 1, 16], strides = [1, 1, 1, 1]} : vector<2x4x4x16xf32> to vector<2x1x1x16xf32>
    %110 = vector.shape_cast %109 : vector<2x1x1x16xf32> to vector<2x16xf32>
    %c0_130 = arith.constant 0 : index
    %c32_131 = arith.constant 32 : index
    %111 = vector.load %arg17[%c0_130, %c32_131] : memref<2x256xf32, #tpu.memory_space<vmem>>, vector<2x16xf32>
    tpu.vector_store %arg17[%c0_130, %c32_131], %110 {strides = array<i32>} : memref<2x256xf32, #tpu.memory_space<vmem>>, vector<2x16xf32>,
    %112 = vector.extract_strided_slice %102 {offsets = [0, 0, 3, 0], sizes = [2, 1, 1, 16], strides = [1, 1, 1, 1]} : vector<2x4x4x16xf32> to vector<2x1x1x16xf32>
    %113 = vector.shape_cast %112 : vector<2x1x1x16xf32> to vector<2x16xf32>
    %c0_132 = arith.constant 0 : index
    %c48_133 = arith.constant 48 : index
    %114 = vector.load %arg17[%c0_132, %c48_133] : memref<2x256xf32, #tpu.memory_space<vmem>>, vector<2x16xf32>
    tpu.vector_store %arg17[%c0_132, %c48_133], %113 {strides = array<i32>} : memref<2x256xf32, #tpu.memory_space<vmem>>, vector<2x16xf32>,
    %115 = vector.extract_strided_slice %102 {offsets = [0, 1, 0, 0], sizes = [2, 1, 1, 16], strides = [1, 1, 1, 1]} : vector<2x4x4x16xf32> to vector<2x1x1x16xf32>
    %116 = vector.shape_cast %115 : vector<2x1x1x16xf32> to vector<2x16xf32>
    %c0_134 = arith.constant 0 : index
    %c64_135 = arith.constant 64 : index
    %117 = vector.load %arg17[%c0_134, %c64_135] : memref<2x256xf32, #tpu.memory_space<vmem>>, vector<2x16xf32>
    tpu.vector_store %arg17[%c0_134, %c64_135], %116 {strides = array<i32>} : memref<2x256xf32, #tpu.memory_space<vmem>>, vector<2x16xf32>,
    %118 = vector.extract_strided_slice %102 {offsets = [0, 1, 1, 0], sizes = [2, 1, 1, 16], strides = [1, 1, 1, 1]} : vector<2x4x4x16xf32> to vector<2x1x1x16xf32>
    %119 = vector.shape_cast %118 : vector<2x1x1x16xf32> to vector<2x16xf32>
    %c0_136 = arith.constant 0 : index
    %c80 = arith.constant 80 : index
    %120 = vector.load %arg17[%c0_136, %c80] : memref<2x256xf32, #tpu.memory_space<vmem>>, vector<2x16xf32>
    tpu.vector_store %arg17[%c0_136, %c80], %119 {strides = array<i32>} : memref<2x256xf32, #tpu.memory_space<vmem>>, vector<2x16xf32>,
    %121 = vector.extract_strided_slice %102 {offsets = [0, 1, 2, 0], sizes = [2, 1, 1, 16], strides = [1, 1, 1, 1]} : vector<2x4x4x16xf32> to vector<2x1x1x16xf32>
    %122 = vector.shape_cast %121 : vector<2x1x1x16xf32> to vector<2x16xf32>
    %c0_137 = arith.constant 0 : index
    %c96 = arith.constant 96 : index
    %123 = vector.load %arg17[%c0_137, %c96] : memref<2x256xf32, #tpu.memory_space<vmem>>, vector<2x16xf32>
    tpu.vector_store %arg17[%c0_137, %c96], %122 {strides = array<i32>} : memref<2x256xf32, #tpu.memory_space<vmem>>, vector<2x16xf32>,
    %124 = vector.extract_strided_slice %102 {offsets = [0, 1, 3, 0], sizes = [2, 1, 1, 16], strides = [1, 1, 1, 1]} : vector<2x4x4x16xf32> to vector<2x1x1x16xf32>
    %125 = vector.shape_cast %124 : vector<2x1x1x16xf32> to vector<2x16xf32>
    %c0_138 = arith.constant 0 : index
    %c112 = arith.constant 112 : index
    %126 = vector.load %arg17[%c0_138, %c112] : memref<2x256xf32, #tpu.memory_space<vmem>>, vector<2x16xf32>
    tpu.vector_store %arg17[%c0_138, %c112], %125 {strides = array<i32>} : memref<2x256xf32, #tpu.memory_space<vmem>>, vector<2x16xf32>,
    %127 = vector.extract_strided_slice %102 {offsets = [0, 2, 0, 0], sizes = [2, 1, 1, 16], strides = [1, 1, 1, 1]} : vector<2x4x4x16xf32> to vector<2x1x1x16xf32>
    %128 = vector.shape_cast %127 : vector<2x1x1x16xf32> to vector<2x16xf32>
    %c0_139 = arith.constant 0 : index
    %c128 = arith.constant 128 : index
    %129 = vector.load %arg17[%c0_139, %c128] : memref<2x256xf32, #tpu.memory_space<vmem>>, vector<2x16xf32>
    tpu.vector_store %arg17[%c0_139, %c128], %128 {strides = array<i32>} : memref<2x256xf32, #tpu.memory_space<vmem>>, vector<2x16xf32>,
    %130 = vector.extract_strided_slice %102 {offsets = [0, 2, 1, 0], sizes = [2, 1, 1, 16], strides = [1, 1, 1, 1]} : vector<2x4x4x16xf32> to vector<2x1x1x16xf32>
    %131 = vector.shape_cast %130 : vector<2x1x1x16xf32> to vector<2x16xf32>
    %c0_140 = arith.constant 0 : index
    %c144 = arith.constant 144 : index
    %132 = vector.load %arg17[%c0_140, %c144] : memref<2x256xf32, #tpu.memory_space<vmem>>, vector<2x16xf32>
    tpu.vector_store %arg17[%c0_140, %c144], %131 {strides = array<i32>} : memref<2x256xf32, #tpu.memory_space<vmem>>, vector<2x16xf32>,
    %133 = vector.extract_strided_slice %102 {offsets = [0, 2, 2, 0], sizes = [2, 1, 1, 16], strides = [1, 1, 1, 1]} : vector<2x4x4x16xf32> to vector<2x1x1x16xf32>
    %134 = vector.shape_cast %133 : vector<2x1x1x16xf32> to vector<2x16xf32>
    %c0_141 = arith.constant 0 : index
    %c160 = arith.constant 160 : index
    %135 = vector.load %arg17[%c0_141, %c160] : memref<2x256xf32, #tpu.memory_space<vmem>>, vector<2x16xf32>
    tpu.vector_store %arg17[%c0_141, %c160], %134 {strides = array<i32>} : memref<2x256xf32, #tpu.memory_space<vmem>>, vector<2x16xf32>,
    %136 = vector.extract_strided_slice %102 {offsets = [0, 2, 3, 0], sizes = [2, 1, 1, 16], strides = [1, 1, 1, 1]} : vector<2x4x4x16xf32> to vector<2x1x1x16xf32>
    %137 = vector.shape_cast %136 : vector<2x1x1x16xf32> to vector<2x16xf32>
    %c0_142 = arith.constant 0 : index
    %c176 = arith.constant 176 : index
    %138 = vector.load %arg17[%c0_142, %c176] : memref<2x256xf32, #tpu.memory_space<vmem>>, vector<2x16xf32>
    tpu.vector_store %arg17[%c0_142, %c176], %137 {strides = array<i32>} : memref<2x256xf32, #tpu.memory_space<vmem>>, vector<2x16xf32>,
    %139 = vector.extract_strided_slice %102 {offsets = [0, 3, 0, 0], sizes = [2, 1, 1, 16], strides = [1, 1, 1, 1]} : vector<2x4x4x16xf32> to vector<2x1x1x16xf32>
    %140 = vector.shape_cast %139 : vector<2x1x1x16xf32> to vector<2x16xf32>
    %c0_143 = arith.constant 0 : index
    %c192 = arith.constant 192 : index
    %141 = vector.load %arg17[%c0_143, %c192] : memref<2x256xf32, #tpu.memory_space<vmem>>, vector<2x16xf32>
    tpu.vector_store %arg17[%c0_143, %c192], %140 {strides = array<i32>} : memref<2x256xf32, #tpu.memory_space<vmem>>, vector<2x16xf32>,
    %142 = vector.extract_strided_slice %102 {offsets = [0, 3, 1, 0], sizes = [2, 1, 1, 16], strides = [1, 1, 1, 1]} : vector<2x4x4x16xf32> to vector<2x1x1x16xf32>
    %143 = vector.shape_cast %142 : vector<2x1x1x16xf32> to vector<2x16xf32>
    %c0_144 = arith.constant 0 : index
    %c208 = arith.constant 208 : index
    %144 = vector.load %arg17[%c0_144, %c208] : memref<2x256xf32, #tpu.memory_space<vmem>>, vector<2x16xf32>
    tpu.vector_store %arg17[%c0_144, %c208], %143 {strides = array<i32>} : memref<2x256xf32, #tpu.memory_space<vmem>>, vector<2x16xf32>,
    %145 = vector.extract_strided_slice %102 {offsets = [0, 3, 2, 0], sizes = [2, 1, 1, 16], strides = [1, 1, 1, 1]} : vector<2x4x4x16xf32> to vector<2x1x1x16xf32>
    %146 = vector.shape_cast %145 : vector<2x1x1x16xf32> to vector<2x16xf32>
    %c0_145 = arith.constant 0 : index
    %c224 = arith.constant 224 : index
    %147 = vector.load %arg17[%c0_145, %c224] : memref<2x256xf32, #tpu.memory_space<vmem>>, vector<2x16xf32>
    tpu.vector_store %arg17[%c0_145, %c224], %146 {strides = array<i32>} : memref<2x256xf32, #tpu.memory_space<vmem>>, vector<2x16xf32>,
    %148 = vector.extract_strided_slice %102 {offsets = [0, 3, 3, 0], sizes = [2, 1, 1, 16], strides = [1, 1, 1, 1]} : vector<2x4x4x16xf32> to vector<2x1x1x16xf32>
    %149 = vector.shape_cast %148 : vector<2x1x1x16xf32> to vector<2x16xf32>
    %c0_146 = arith.constant 0 : index
    %c240 = arith.constant 240 : index
    %150 = vector.load %arg17[%c0_146, %c240] : memref<2x256xf32, #tpu.memory_space<vmem>>, vector<2x16xf32>
    tpu.vector_store %arg17[%c0_146, %c240], %149 {strides = array<i32>} : memref<2x256xf32, #tpu.memory_space<vmem>>, vector<2x16xf32>,
    %c0_147 = arith.constant 0 : index
    %c0_148 = arith.constant 0 : index
    %151 = vector.load %arg17[%c0_147, %c0_148] : memref<2x256xf32, #tpu.memory_space<vmem>>, vector<2x256xf32>
    %152 = arith.truncf %151 : vector<2x256xf32> to vector<2x256xbf16>
    %c0_149 = arith.constant 0 : index
    %c0_150 = arith.constant 0 : index
    %153 = vector.load %arg6[%c0_149, %c0_150] : memref<256x32xbf16, #tpu.memory_space<vmem>>, vector<256x32xbf16>
    %cst_151 = arith.constant dense<0.000000e+00> : vector<2x32xf32>
    %154 = tpu.matmul %152, %153, %cst_151 {dimension_numbers = #tpu.dot_dimension_numbers<[1], [0], [0], [1], [0, 0, 1, 1], [], []>} : vector<2x256xbf16>, vector<256x32xbf16>, vector<2x32xf32> -> vector<2x32xf32>
    %c0_152 = arith.constant 0 : index
    %c0_153 = arith.constant 0 : index
    %155 = vector.load %arg7[%c0_152, %c0_153] : memref<1x32xf32, #tpu.memory_space<vmem>>, vector<1x32xf32>
    %156 = vector.broadcast %155 : vector<1x32xf32> to vector<2x32xf32>
    %157 = arith.addf %154, %156 : vector<2x32xf32>
    %cst_154 = arith.constant 0.000000e+00 : f32
    %158 = vector.broadcast %cst_154 : f32 to vector<2x32xf32>
    %159 = arith.maximumf %157, %158 : vector<2x32xf32>
    %160 = arith.truncf %159 : vector<2x32xf32> to vector<2x32xbf16>
    %c0_155 = arith.constant 0 : index
    %c0_156 = arith.constant 0 : index
    %161 = vector.load %arg8[%c0_155, %c0_156] : memref<32x32xbf16, #tpu.memory_space<vmem>>, vector<32x32xbf16>
    %cst_157 = arith.constant dense<0.000000e+00> : vector<2x32xf32>
    %162 = tpu.matmul %160, %161, %cst_157 {dimension_numbers = #tpu.dot_dimension_numbers<[1], [0], [0], [1], [0, 0, 1, 1], [], []>} : vector<2x32xbf16>, vector<32x32xbf16>, vector<2x32xf32> -> vector<2x32xf32>
    %c0_158 = arith.constant 0 : index
    %c0_159 = arith.constant 0 : index
    %163 = vector.load %arg9[%c0_158, %c0_159] : memref<1x32xf32, #tpu.memory_space<vmem>>, vector<1x32xf32>
    %164 = vector.broadcast %163 : vector<1x32xf32> to vector<2x32xf32>
    %165 = arith.addf %162, %164 : vector<2x32xf32>
    %cst_160 = arith.constant 0.000000e+00 : f32
    %166 = vector.broadcast %cst_160 : f32 to vector<2x32xf32>
    %167 = arith.maximumf %165, %166 : vector<2x32xf32>
    %168 = arith.truncf %167 : vector<2x32xf32> to vector<2x32xbf16>
    %c0_161 = arith.constant 0 : index
    %c0_162 = arith.constant 0 : index
    %169 = vector.load %arg10[%c0_161, %c0_162] : memref<32x16xbf16, #tpu.memory_space<vmem>>, vector<32x16xbf16>
    %cst_163 = arith.constant dense<0.000000e+00> : vector<2x16xf32>
    %170 = tpu.matmul %168, %169, %cst_163 {dimension_numbers = #tpu.dot_dimension_numbers<[1], [0], [0], [1], [0, 0, 1, 1], [], []>} : vector<2x32xbf16>, vector<32x16xbf16>, vector<2x16xf32> -> vector<2x16xf32>
    %c0_164 = arith.constant 0 : index
    %c0_165 = arith.constant 0 : index
    %171 = vector.load %arg11[%c0_164, %c0_165] : memref<1x16xf32, #tpu.memory_space<vmem>>, vector<1x16xf32>
    %172 = vector.broadcast %171 : vector<1x16xf32> to vector<2x16xf32>
    %173 = arith.addf %170, %172 : vector<2x16xf32>
    %cst_166 = arith.constant 1.000000e+00 : f32
    %174 = vector.broadcast %cst_166 : f32 to vector<2x16xf32>
    %175 = arith.mulf %174, %173 : vector<2x16xf32>
    %176 = math.tanh %175 : vector<2x16xf32>
    %c0_167 = arith.constant 0 : index
    %c0_168 = arith.constant 0 : index
    %177 = vector.load %arg12[%c0_167, %c0_168] : memref<2x16xf32, #tpu.memory_space<vmem>>, vector<2x16xf32>
    tpu.vector_store %arg12[%c0_167, %c0_168], %176 {strides = array<i32>} : memref<2x16xf32, #tpu.memory_space<vmem>>, vector<2x16xf32>,
    return
  }
  func.func @transform_0(%arg0: i32) -> (i32, i32, i32, i32) {
    %c0_i32 = arith.constant 0 : i32
    %c0_i32_0 = arith.constant 0 : i32
    %c0_i32_1 = arith.constant 0 : i32
    %c0_i32_2 = arith.constant 0 : i32
    %c0_i32_3 = arith.constant 0 : i32
    return %c0_i32, %c0_i32_0, %c0_i32_1, %c0_i32_2 : i32, i32, i32, i32
  }
  func.func @transform_1(%arg0: i32) -> (i32, i32) {
    %c0_i32 = arith.constant 0 : i32
    %c0_i32_0 = arith.constant 0 : i32
    %c0_i32_1 = arith.constant 0 : i32
    return %c0_i32, %c0_i32_0 : i32, i32
  }
  func.func @transform_2(%arg0: i32) -> (i32, i32) {
    %c0_i32 = arith.constant 0 : i32
    %c0_i32_0 = arith.constant 0 : i32
    %c0_i32_1 = arith.constant 0 : i32
    return %c0_i32, %c0_i32_0 : i32, i32
  }
  func.func @transform_3(%arg0: i32) -> (i32, i32) {
    %c0_i32 = arith.constant 0 : i32
    %c0_i32_0 = arith.constant 0 : i32
    %c0_i32_1 = arith.constant 0 : i32
    return %c0_i32, %c0_i32_0 : i32, i32
  }
  func.func @transform_4(%arg0: i32) -> (i32, i32) {
    %c0_i32 = arith.constant 0 : i32
    %c0_i32_0 = arith.constant 0 : i32
    %c0_i32_1 = arith.constant 0 : i32
    return %c0_i32, %c0_i32_0 : i32, i32
  }
  func.func @transform_5(%arg0: i32) -> (i32, i32) {
    %c0_i32 = arith.constant 0 : i32
    %c0_i32_0 = arith.constant 0 : i32
    %c0_i32_1 = arith.constant 0 : i32
    return %c0_i32, %c0_i32_0 : i32, i32
  }
  func.func @transform_6(%arg0: i32) -> (i32, i32) {
    %c0_i32 = arith.constant 0 : i32
    %c0_i32_0 = arith.constant 0 : i32
    %c0_i32_1 = arith.constant 0 : i32
    return %c0_i32, %c0_i32_0 : i32, i32
  }
  func.func @transform_7(%arg0: i32) -> (i32, i32) {
    %c0_i32 = arith.constant 0 : i32
    %c0_i32_0 = arith.constant 0 : i32
    %c0_i32_1 = arith.constant 0 : i32
    return %c0_i32, %c0_i32_0 : i32, i32
  }
  func.func @transform_8(%arg0: i32) -> (i32, i32) {
    %c0_i32 = arith.constant 0 : i32
    %c0_i32_0 = arith.constant 0 : i32
    %c0_i32_1 = arith.constant 0 : i32
    return %c0_i32, %c0_i32_0 : i32, i32
  }
  func.func @transform_9(%arg0: i32) -> (i32, i32) {
    %c0_i32 = arith.constant 0 : i32
    %c0_i32_0 = arith.constant 0 : i32
    %c0_i32_1 = arith.constant 0 : i32
    return %c0_i32, %c0_i32_0 : i32, i32
  }
  func.func @transform_10(%arg0: i32) -> (i32, i32) {
    %c0_i32 = arith.constant 0 : i32
    %c0_i32_0 = arith.constant 0 : i32
    %c0_i32_1 = arith.constant 0 : i32
    return %c0_i32, %c0_i32_0 : i32, i32
  }
  func.func @transform_11(%arg0: i32) -> (i32, i32) {
    %c0_i32 = arith.constant 0 : i32
    %c0_i32_0 = arith.constant 0 : i32
    %c0_i32_1 = arith.constant 0 : i32
    return %c0_i32, %c0_i32_0 : i32, i32
  }
}

</mosaic_0001>

<llo_original>
// kernel: vggfc_forward.1
$region0: #{vggfc_forward.1}
  #allocation0 [shape = 'u32[]', space=smem, size = 0x4, offset = 0x4, fixed_abs, tag = 'smem constant byte address 0x4 - core index']
  #allocation1 [shape = 'u32[144,128]{1,0:T(1,128)}', space=vmem, size = 0x12000, scoped, tag = 'internal scratch']
  #allocation2 [shape = 'f32[2,18,32,3]{3,2,1,0:T(8,128)}', space=vmem, size = 0x90000, scoped, tag = 'scratch operand']
  #allocation3 [shape = 'f32[512,27]{1,0:T(8,128)}', space=vmem, size = 0x40000, scoped, tag = 'scratch operand']
  #allocation4 [shape = 'f32[2,10,24,8]{3,2,1,0:T(8,128)}', space=vmem, size = 0x3c000, scoped, tag = 'scratch operand']
  #allocation5 [shape = 'f32[128,72]{1,0:T(8,128)}', space=vmem, size = 0x10000, scoped, tag = 'scratch operand']
  #allocation6 [shape = 'f32[2,256]{1,0:T(2,128)}', space=vmem, size = 0x800, scoped, tag = 'scratch operand']
  %s0 = inlined_call_operand.vmem [shape: f32[2,16,16,3], index: 0, kind: input, shape index: {}]
  %s1 = inlined_call_operand.vmem [shape: bf16[27,8], index: 1, kind: input, shape index: {}]
  %s2 = inlined_call_operand.vmem [shape: f32[1,8], index: 2, kind: input, shape index: {}]
  %s3 = inlined_call_operand.vmem [shape: bf16[72,16], index: 3, kind: input, shape index: {}]
  %s4 = inlined_call_operand.vmem [shape: f32[1,16], index: 4, kind: input, shape index: {}]
  %s5 = inlined_call_operand.vmem [shape: bf16[256,32], index: 5, kind: input, shape index: {}]
  %s6 = inlined_call_operand.vmem [shape: f32[1,32], index: 6, kind: input, shape index: {}]
  %s7 = inlined_call_operand.vmem [shape: bf16[32,32], index: 7, kind: input, shape index: {}]
  %s8 = inlined_call_operand.vmem [shape: f32[1,32], index: 8, kind: input, shape index: {}]
  %s9 = inlined_call_operand.vmem [shape: bf16[32,16], index: 9, kind: input, shape index: {}]
  %s10 = inlined_call_operand.vmem [shape: f32[1,16], index: 10, kind: input, shape index: {}]
  %s11 = inlined_call_operand.hbm [shape: f32[2,16], index: 11, kind: output, shape index: {}]
  %s12 = sld [smem:[#allocation0]]
  $region54: #{vggfc_forward.1} parent=0
    _
  %s14 = ssub.s32 1, %s12
  %s15 = scalar_select 0, %s14, %s12
  $region1: #{vggfc_forward.1} parent=0
    #allocation7 [shape = 'u8[1024]{0}', space=vmem, size = 0x400, scoped, tag = 'output window, operand 0, single buffered']
    #allocation8 [shape = 's32[1]{0}', space=sflag, size = 0x4, scoped, tag = 'scoped memory for vggfc_forward.1']
    %16 = vsyncpa [#allocation8], 0
    // Predicated region
    $region2: #{vggfc_forward.1} parent=1 // pred_check
      _
    $region3: #{vggfc_forward.1} parent=1 // pred_check_branch
      %18 = sbr.rel (0) target = $region5
    $region4: #{vggfc_forward.1} parent=1 // pred_region
      _
    $region5: #{vggfc_forward.1} parent=1 // pred_fallthru
      _
    // Predicated region
    $region6: #{vggfc_forward.1} parent=1 // pred_check
      _
    $region7: #{vggfc_forward.1} parent=1 // pred_check_branch
      %20 = sbr.rel (0) target = $region9
    $region8: #{vggfc_forward.1} parent=1 // pred_region
      _
    $region9: #{vggfc_forward.1} parent=1 // pred_fallthru
      _
    // Predicated region
    $region10: #{vggfc_forward.1} parent=1 // pred_check
      _
    $region11: #{vggfc_forward.1} parent=1 // pred_check_branch
      %22 = sbr.rel (0) target = $region13
    $region12: #{vggfc_forward.1} parent=1 // pred_region
      _
    $region13: #{vggfc_forward.1} parent=1 // pred_fallthru
      _
    // Predicated region
    $region14: #{vggfc_forward.1} parent=1 // pred_check
      _
    $region15: #{vggfc_forward.1} parent=1 // pred_check_branch
      %24 = sbr.rel (0) target = $region17
    $region16: #{vggfc_forward.1} parent=1 // pred_region
      _
    $region17: #{vggfc_forward.1} parent=1 // pred_fallthru
      _
    // Predicated region
    $region18: #{vggfc_forward.1} parent=1 // pred_check
      _
    $region19: #{vggfc_forward.1} parent=1 // pred_check_branch
      %26 = sbr.rel (0) target = $region21
    $region20: #{vggfc_forward.1} parent=1 // pred_region
      _
    $region21: #{vggfc_forward.1} parent=1 // pred_fallthru
      _
    // Predicated region
    $region22: #{vggfc_forward.1} parent=1 // pred_check
      _
    $region23: #{vggfc_forward.1} parent=1 // pred_check_branch
      %28 = sbr.rel (0) target = $region25
    $region24: #{vggfc_forward.1} parent=1 // pred_region
      _
    $region25: #{vggfc_forward.1} parent=1 // pred_fallthru
      _
    // Predicated region
    $region26: #{vggfc_forward.1} parent=1 // pred_check
      _
    $region27: #{vggfc_forward.1} parent=1 // pred_check_branch
      %30 = sbr.rel (0) target = $region29
    $region28: #{vggfc_forward.1} parent=1 // pred_region
      _
    $region29: #{vggfc_forward.1} parent=1 // pred_fallthru
      _
    // Predicated region
    $region30: #{vggfc_forward.1} parent=1 // pred_check
      _
    $region31: #{vggfc_forward.1} parent=1 // pred_check_branch
      %32 = sbr.rel (0) target = $region33
    $region32: #{vggfc_forward.1} parent=1 // pred_region
      _
    $region33: #{vggfc_forward.1} parent=1 // pred_fallthru
      _
    // Predicated region
    $region34: #{vggfc_forward.1} parent=1 // pred_check
      _
    $region35: #{vggfc_forward.1} parent=1 // pred_check_branch
      %34 = sbr.rel (0) target = $region37
    $region36: #{vggfc_forward.1} parent=1 // pred_region
      _
    $region37: #{vggfc_forward.1} parent=1 // pred_fallthru
      _
    // Predicated region
    $region38: #{vggfc_forward.1} parent=1 // pred_check
      _
    $region39: #{vggfc_forward.1} parent=1 // pred_check_branch
      %36 = sbr.rel (0) target = $region41
    $region40: #{vggfc_forward.1} parent=1 // pred_region
      _
    $region41: #{vggfc_forward.1} parent=1 // pred_fallthru
      _
    // Predicated region
    $region42: #{vggfc_forward.1} parent=1 // pred_check
      _
    $region43: #{vggfc_forward.1} parent=1 // pred_check_branch
      %38 = sbr.rel (0) target = $region45
    $region44: #{vggfc_forward.1} parent=1 // pred_region
      _
    $region45: #{vggfc_forward.1} parent=1 // pred_fallthru
      _
    %vm40 = vcmask 23552
    %41 = vst.msk [vmem:[#allocation2] sm:$0xff] %vm40, 0.0
    %42 = vst.msk [vmem:[#allocation2 + $0x8] sm:$0xff] %vm40, 0.0
    %43 = vst.msk [vmem:[#allocation2 + $0x10] sm:$0xff] %vm40, 0.0
    %44 = vst.msk [vmem:[#allocation2 + $0x18] sm:$0xff] %vm40, 0.0
    %45 = vst.msk [vmem:[#allocation2 + $0x20] sm:$0xff] %vm40, 0.0
    %46 = vst.msk [vmem:[#allocation2 + $0x28] sm:$0xff] %vm40, 0.0
    %47 = vst.msk [vmem:[#allocation2 + $0x30] sm:$0xff] %vm40, 0.0
    %48 = vst.msk [vmem:[#allocation2 + $0x38] sm:$0xff] %vm40, 0.0
    %49 = vst.msk [vmem:[#allocation2 + $0x40] sm:$0xff] %vm40, 0.0
    %50 = vst.msk [vmem:[#allocation2 + $0x48] sm:$0xff] %vm40, 0.0
    %51 = vst.msk [vmem:[#allocation2 + $0x50] sm:$0xff] %vm40, 0.0
    %52 = vst.msk [vmem:[#allocation2 + $0x58] sm:$0xff] %vm40, 0.0
    %53 = vst.msk [vmem:[#allocation2 + $0x60] sm:$0xff] %vm40, 0.0
    %54 = vst.msk [vmem:[#allocation2 + $0x68] sm:$0xff] %vm40, 0.0
    %55 = vst.msk [vmem:[#allocation2 + $0x70] sm:$0xff] %vm40, 0.0
    %56 = vst.msk [vmem:[#allocation2 + $0x78] sm:$0xff] %vm40, 0.0
    %57 = vst.msk [vmem:[#allocation2 + $0x80] sm:$0xff] %vm40, 0.0
    %58 = vst.msk [vmem:[#allocation2 + $0x88] sm:$0xff] %vm40, 0.0
    %59 = vst.msk [vmem:[#allocation2 + $0x90] sm:$0xff] %vm40, 0.0
    %60 = vst.msk [vmem:[#allocation2 + $0x98] sm:$0xff] %vm40, 0.0
    %61 = vst.msk [vmem:[#allocation2 + $0xa0] sm:$0xff] %vm40, 0.0
    %62 = vst.msk [vmem:[#allocation2 + $0xa8] sm:$0xff] %vm40, 0.0
    %63 = vst.msk [vmem:[#allocation2 + $0xb0] sm:$0xff] %vm40, 0.0
    %64 = vst.msk [vmem:[#allocation2 + $0xb8] sm:$0xff] %vm40, 0.0
    %65 = vst.msk [vmem:[#allocation2 + $0xc0] sm:$0xff] %vm40, 0.0
    %66 = vst.msk [vmem:[#allocation2 + $0xc8] sm:$0xff] %vm40, 0.0
    %67 = vst.msk [vmem:[#allocation2 + $0xd0] sm:$0xff] %vm40, 0.0
    %68 = vst.msk [vmem:[#allocation2 + $0xd8] sm:$0xff] %vm40, 0.0
    %69 = vst.msk [vmem:[#allocation2 + $0xe0] sm:$0xff] %vm40, 0.0
    %70 = vst.msk [vmem:[#allocation2 + $0xe8] sm:$0xff] %vm40, 0.0
    %71 = vst.msk [vmem:[#allocation2 + $0xf0] sm:$0xff] %vm40, 0.0
    %72 = vst.msk [vmem:[#allocation2 + $0xf8] sm:$0xff] %vm40, 0.0
    %73 = vst.msk [vmem:[#allocation2 + $0x100] sm:$0xff] %vm40, 0.0
    %74 = vst.msk [vmem:[#allocation2 + $0x108] sm:$0xff] %vm40, 0.0
    %75 = vst.msk [vmem:[#allocation2 + $0x110] sm:$0xff] %vm40, 0.0
    %76 = vst.msk [vmem:[#allocation2 + $0x118] sm:$0xff] %vm40, 0.0
    %77 = vst.msk [vmem:[#allocation2 + $0x120] sm:$0xff] %vm40, 0.0
    %78 = vst.msk [vmem:[#allocation2 + $0x128] sm:$0xff] %vm40, 0.0
    %79 = vst.msk [vmem:[#allocation2 + $0x130] sm:$0xff] %vm40, 0.0
    %80 = vst.msk [vmem:[#allocation2 + $0x138] sm:$0xff] %vm40, 0.0
    %81 = vst.msk [vmem:[#allocation2 + $0x140] sm:$0xff] %vm40, 0.0
    %82 = vst.msk [vmem:[#allocation2 + $0x148] sm:$0xff] %vm40, 0.0
    %83 = vst.msk [vmem:[#allocation2 + $0x150] sm:$0xff] %vm40, 0.0
    %84 = vst.msk [vmem:[#allocation2 + $0x158] sm:$0xff] %vm40, 0.0
    %85 = vst.msk [vmem:[#allocation2 + $0x160] sm:$0xff] %vm40, 0.0
    %86 = vst.msk [vmem:[#allocation2 + $0x168] sm:$0xff] %vm40, 0.0
    %87 = vst.msk [vmem:[#allocation2 + $0x170] sm:$0xff] %vm40, 0.0
    %88 = vst.msk [vmem:[#allocation2 + $0x178] sm:$0xff] %vm40, 0.0
    %89 = vst.msk [vmem:[#allocation2 + $0x180] sm:$0xff] %vm40, 0.0
    %90 = vst.msk [vmem:[#allocation2 + $0x188] sm:$0xff] %vm40, 0.0
    %91 = vst.msk [vmem:[#allocation2 + $0x190] sm:$0xff] %vm40, 0.0
    %92 = vst.msk [vmem:[#allocation2 + $0x198] sm:$0xff] %vm40, 0.0
    %93 = vst.msk [vmem:[#allocation2 + $0x1a0] sm:$0xff] %vm40, 0.0
    %94 = vst.msk [vmem:[#allocation2 + $0x1a8] sm:$0xff] %vm40, 0.0
    %95 = vst.msk [vmem:[#allocation2 + $0x1b0] sm:$0xff] %vm40, 0.0
    %96 = vst.msk [vmem:[#allocation2 + $0x1b8] sm:$0xff] %vm40, 0.0
    %97 = vst.msk [vmem:[#allocation2 + $0x1c0] sm:$0xff] %vm40, 0.0
    %98 = vst.msk [vmem:[#allocation2 + $0x1c8] sm:$0xff] %vm40, 0.0
    %99 = vst.msk [vmem:[#allocation2 + $0x1d0] sm:$0xff] %vm40, 0.0
    %100 = vst.msk [vmem:[#allocation2 + $0x1d8] sm:$0xff] %vm40, 0.0
    %101 = vst.msk [vmem:[#allocation2 + $0x1e0] sm:$0xff] %vm40, 0.0
    %102 = vst.msk [vmem:[#allocation2 + $0x1e8] sm:$0xff] %vm40, 0.0
    %103 = vst.msk [vmem:[#allocation2 + $0x1f0] sm:$0xff] %vm40, 0.0
    %104 = vst.msk [vmem:[#allocation2 + $0x1f8] sm:$0xff] %vm40, 0.0
    %105 = vst.msk [vmem:[#allocation2 + $0x200] sm:$0xff] %vm40, 0.0
    %106 = vst.msk [vmem:[#allocation2 + $0x208] sm:$0xff] %vm40, 0.0
    %107 = vst.msk [vmem:[#allocation2 + $0x210] sm:$0xff] %vm40, 0.0
    %108 = vst.msk [vmem:[#allocation2 + $0x218] sm:$0xff] %vm40, 0.0
    %109 = vst.msk [vmem:[#allocation2 + $0x220] sm:$0xff] %vm40, 0.0
    %110 = vst.msk [vmem:[#allocation2 + $0x228] sm:$0xff] %vm40, 0.0
    %111 = vst.msk [vmem:[#allocation2 + $0x230] sm:$0xff] %vm40, 0.0
    %112 = vst.msk [vmem:[#allocation2 + $0x238] sm:$0xff] %vm40, 0.0
    %113 = vst.msk [vmem:[#allocation2 + $0x240] sm:$0xff] %vm40, 0.0
    %114 = vst.msk [vmem:[#allocation2 + $0x248] sm:$0xff] %vm40, 0.0
    %115 = vst.msk [vmem:[#allocation2 + $0x250] sm:$0xff] %vm40, 0.0
    %116 = vst.msk [vmem:[#allocation2 + $0x258] sm:$0xff] %vm40, 0.0
    %117 = vst.msk [vmem:[#allocation2 + $0x260] sm:$0xff] %vm40, 0.0
    %118 = vst.msk [vmem:[#allocation2 + $0x268] sm:$0xff] %vm40, 0.0
    %119 = vst.msk [vmem:[#allocation2 + $0x270] sm:$0xff] %vm40, 0.0
    %120 = vst.msk [vmem:[#allocation2 + $0x278] sm:$0xff] %vm40, 0.0
    %121 = vst.msk [vmem:[#allocation2 + $0x280] sm:$0xff] %vm40, 0.0
    %122 = vst.msk [vmem:[#allocation2 + $0x288] sm:$0xff] %vm40, 0.0
    %123 = vst.msk [vmem:[#allocation2 + $0x290] sm:$0xff] %vm40, 0.0
    %124 = vst.msk [vmem:[#allocation2 + $0x298] sm:$0xff] %vm40, 0.0
    %125 = vst.msk [vmem:[#allocation2 + $0x2a0] sm:$0xff] %vm40, 0.0
    %126 = vst.msk [vmem:[#allocation2 + $0x2a8] sm:$0xff] %vm40, 0.0
    %127 = vst.msk [vmem:[#allocation2 + $0x2b0] sm:$0xff] %vm40, 0.0
    %128 = vst.msk [vmem:[#allocation2 + $0x2b8] sm:$0xff] %vm40, 0.0
    %129 = vst.msk [vmem:[#allocation2 + $0x2c0] sm:$0xff] %vm40, 0.0
    %130 = vst.msk [vmem:[#allocation2 + $0x2c8] sm:$0xff] %vm40, 0.0
    %131 = vst.msk [vmem:[#allocation2 + $0x2d0] sm:$0xff] %vm40, 0.0
    %132 = vst.msk [vmem:[#allocation2 + $0x2d8] sm:$0xff] %vm40, 0.0
    %133 = vst.msk [vmem:[#allocation2 + $0x2e0] sm:$0xff] %vm40, 0.0
    %134 = vst.msk [vmem:[#allocation2 + $0x2e8] sm:$0xff] %vm40, 0.0
    %135 = vst.msk [vmem:[#allocation2 + $0x2f0] sm:$0xff] %vm40, 0.0
    %136 = vst.msk [vmem:[#allocation2 + $0x2f8] sm:$0xff] %vm40, 0.0
    %137 = vst.msk [vmem:[#allocation2 + $0x300] sm:$0xff] %vm40, 0.0
    %138 = vst.msk [vmem:[#allocation2 + $0x308] sm:$0xff] %vm40, 0.0
    %139 = vst.msk [vmem:[#allocation2 + $0x310] sm:$0xff] %vm40, 0.0
    %140 = vst.msk [vmem:[#allocation2 + $0x318] sm:$0xff] %vm40, 0.0
    %141 = vst.msk [vmem:[#allocation2 + $0x320] sm:$0xff] %vm40, 0.0
    %142 = vst.msk [vmem:[#allocation2 + $0x328] sm:$0xff] %vm40, 0.0
    %143 = vst.msk [vmem:[#allocation2 + $0x330] sm:$0xff] %vm40, 0.0
    %144 = vst.msk [vmem:[#allocation2 + $0x338] sm:$0xff] %vm40, 0.0
    %145 = vst.msk [vmem:[#allocation2 + $0x340] sm:$0xff] %vm40, 0.0
    %146 = vst.msk [vmem:[#allocation2 + $0x348] sm:$0xff] %vm40, 0.0
    %147 = vst.msk [vmem:[#allocation2 + $0x350] sm:$0xff] %vm40, 0.0
    %148 = vst.msk [vmem:[#allocation2 + $0x358] sm:$0xff] %vm40, 0.0
    %149 = vst.msk [vmem:[#allocation2 + $0x360] sm:$0xff] %vm40, 0.0
    %150 = vst.msk [vmem:[#allocation2 + $0x368] sm:$0xff] %vm40, 0.0
    %151 = vst.msk [vmem:[#allocation2 + $0x370] sm:$0xff] %vm40, 0.0
    %152 = vst.msk [vmem:[#allocation2 + $0x378] sm:$0xff] %vm40, 0.0
    %153 = vst.msk [vmem:[#allocation2 + $0x380] sm:$0xff] %vm40, 0.0
    %154 = vst.msk [vmem:[#allocation2 + $0x388] sm:$0xff] %vm40, 0.0
    %155 = vst.msk [vmem:[#allocation2 + $0x390] sm:$0xff] %vm40, 0.0
    %156 = vst.msk [vmem:[#allocation2 + $0x398] sm:$0xff] %vm40, 0.0
    %157 = vst.msk [vmem:[#allocation2 + $0x3a0] sm:$0xff] %vm40, 0.0
    %158 = vst.msk [vmem:[#allocation2 + $0x3a8] sm:$0xff] %vm40, 0.0
    %159 = vst.msk [vmem:[#allocation2 + $0x3b0] sm:$0xff] %vm40, 0.0
    %160 = vst.msk [vmem:[#allocation2 + $0x3b8] sm:$0xff] %vm40, 0.0
    %161 = vst.msk [vmem:[#allocation2 + $0x3c0] sm:$0xff] %vm40, 0.0
    %162 = vst.msk [vmem:[#allocation2 + $0x3c8] sm:$0xff] %vm40, 0.0
    %163 = vst.msk [vmem:[#allocation2 + $0x3d0] sm:$0xff] %vm40, 0.0
    %164 = vst.msk [vmem:[#allocation2 + $0x3d8] sm:$0xff] %vm40, 0.0
    %165 = vst.msk [vmem:[#allocation2 + $0x3e0] sm:$0xff] %vm40, 0.0
    %166 = vst.msk [vmem:[#allocation2 + $0x3e8] sm:$0xff] %vm40, 0.0
    %167 = vst.msk [vmem:[#allocation2 + $0x3f0] sm:$0xff] %vm40, 0.0
    %168 = vst.msk [vmem:[#allocation2 + $0x3f8] sm:$0xff] %vm40, 0.0
    %169 = vst.msk [vmem:[#allocation2 + $0x400] sm:$0xff] %vm40, 0.0
    %170 = vst.msk [vmem:[#allocation2 + $0x408] sm:$0xff] %vm40, 0.0
    %171 = vst.msk [vmem:[#allocation2 + $0x410] sm:$0xff] %vm40, 0.0
    %172 = vst.msk [vmem:[#allocation2 + $0x418] sm:$0xff] %vm40, 0.0
    %173 = vst.msk [vmem:[#allocation2 + $0x420] sm:$0xff] %vm40, 0.0
    %174 = vst.msk [vmem:[#allocation2 + $0x428] sm:$0xff] %vm40, 0.0
    %175 = vst.msk [vmem:[#allocation2 + $0x430] sm:$0xff] %vm40, 0.0
    %176 = vst.msk [vmem:[#allocation2 + $0x438] sm:$0xff] %vm40, 0.0
    %177 = vst.msk [vmem:[#allocation2 + $0x440] sm:$0xff] %vm40, 0.0
    %178 = vst.msk [vmem:[#allocation2 + $0x448] sm:$0xff] %vm40, 0.0
    %179 = vst.msk [vmem:[#allocation2 + $0x450] sm:$0xff] %vm40, 0.0
    %180 = vst.msk [vmem:[#allocation2 + $0x458] sm:$0xff] %vm40, 0.0
    %181 = vst.msk [vmem:[#allocation2 + $0x460] sm:$0xff] %vm40, 0.0
    %182 = vst.msk [vmem:[#allocation2 + $0x468] sm:$0xff] %vm40, 0.0
    %183 = vst.msk [vmem:[#allocation2 + $0x470] sm:$0xff] %vm40, 0.0
    %184 = vst.msk [vmem:[#allocation2 + $0x478] sm:$0xff] %vm40, 0.0
    %v185 = vld [vmem:[%s0] sm:$0xff]
    %v186 = vld [vmem:[%s0 + $0x8] sm:$0xff]
    %v187 = vld [vmem:[%s0 + $0x10] sm:$0xff]
    %v188 = vld [vmem:[%s0 + $0x18] sm:$0xff]
    %v189 = vld [vmem:[%s0 + $0x20] sm:$0xff]
    %v190 = vld [vmem:[%s0 + $0x28] sm:$0xff]
    %v191 = vld [vmem:[%s0 + $0x30] sm:$0xff]
    %v192 = vld [vmem:[%s0 + $0x38] sm:$0xff]
    %v193 = vld [vmem:[%s0 + $0x40] sm:$0xff]
    %v194 = vld [vmem:[%s0 + $0x48] sm:$0xff]
    %v195 = vld [vmem:[%s0 + $0x50] sm:$0xff]
    %v196 = vld [vmem:[%s0 + $0x58] sm:$0xff]
    %v197 = vld [vmem:[%s0 + $0x60] sm:$0xff]
    %v198 = vld [vmem:[%s0 + $0x68] sm:$0xff]
    %v199 = vld [vmem:[%s0 + $0x70] sm:$0xff]
    %v200 = vld [vmem:[%s0 + $0x78] sm:$0xff]
    %v201 = vld [vmem:[%s0 + $0x80] sm:$0xff]
    %v202 = vld [vmem:[%s0 + $0x88] sm:$0xff]
    %v203 = vld [vmem:[%s0 + $0x90] sm:$0xff]
    %v204 = vld [vmem:[%s0 + $0x98] sm:$0xff]
    %v205 = vld [vmem:[%s0 + $0xa0] sm:$0xff]
    %v206 = vld [vmem:[%s0 + $0xa8] sm:$0xff]
    %v207 = vld [vmem:[%s0 + $0xb0] sm:$0xff]
    %v208 = vld [vmem:[%s0 + $0xb8] sm:$0xff]
    %v209 = vld [vmem:[%s0 + $0xc0] sm:$0xff]
    %v210 = vld [vmem:[%s0 + $0xc8] sm:$0xff]
    %v211 = vld [vmem:[%s0 + $0xd0] sm:$0xff]
    %v212 = vld [vmem:[%s0 + $0xd8] sm:$0xff]
    %v213 = vld [vmem:[%s0 + $0xe0] sm:$0xff]
    %v214 = vld [vmem:[%s0 + $0xe8] sm:$0xff]
    %v215 = vld [vmem:[%s0 + $0xf0] sm:$0xff]
    %v216 = vld [vmem:[%s0 + $0xf8] sm:$0xff]
    %v217 = vld [vmem:[%s0 + $0x100] sm:$0xff]
    %v218 = vld [vmem:[%s0 + $0x108] sm:$0xff]
    %v219 = vld [vmem:[%s0 + $0x110] sm:$0xff]
    %v220 = vld [vmem:[%s0 + $0x118] sm:$0xff]
    %v221 = vld [vmem:[%s0 + $0x120] sm:$0xff]
    %v222 = vld [vmem:[%s0 + $0x128] sm:$0xff]
    %v223 = vld [vmem:[%s0 + $0x130] sm:$0xff]
    %v224 = vld [vmem:[%s0 + $0x138] sm:$0xff]
    %v225 = vld [vmem:[%s0 + $0x140] sm:$0xff]
    %v226 = vld [vmem:[%s0 + $0x148] sm:$0xff]
    %v227 = vld [vmem:[%s0 + $0x150] sm:$0xff]
    %v228 = vld [vmem:[%s0 + $0x158] sm:$0xff]
    %v229 = vld [vmem:[%s0 + $0x160] sm:$0xff]
    %v230 = vld [vmem:[%s0 + $0x168] sm:$0xff]
    %v231 = vld [vmem:[%s0 + $0x170] sm:$0xff]
    %v232 = vld [vmem:[%s0 + $0x178] sm:$0xff]
    %v233 = vld [vmem:[%s0 + $0x180] sm:$0xff]
    %v234 = vld [vmem:[%s0 + $0x188] sm:$0xff]
    %v235 = vld [vmem:[%s0 + $0x190] sm:$0xff]
    %v236 = vld [vmem:[%s0 + $0x198] sm:$0xff]
    %v237 = vld [vmem:[%s0 + $0x1a0] sm:$0xff]
    %v238 = vld [vmem:[%s0 + $0x1a8] sm:$0xff]
    %v239 = vld [vmem:[%s0 + $0x1b0] sm:$0xff]
    %v240 = vld [vmem:[%s0 + $0x1b8] sm:$0xff]
    %v241 = vld [vmem:[%s0 + $0x1c0] sm:$0xff]
    %v242 = vld [vmem:[%s0 + $0x1c8] sm:$0xff]
    %v243 = vld [vmem:[%s0 + $0x1d0] sm:$0xff]
    %v244 = vld [vmem:[%s0 + $0x1d8] sm:$0xff]
    %v245 = vld [vmem:[%s0 + $0x1e0] sm:$0xff]
    %v246 = vld [vmem:[%s0 + $0x1e8] sm:$0xff]
    %v247 = vld [vmem:[%s0 + $0x1f0] sm:$0xff]
    %v248 = vld [vmem:[%s0 + $0x1f8] sm:$0xff]
    %s249 = scalar_lea.vmem [#allocation2], 32
    %250 = vst.msk [vmem:[%s249 + $0x8] sm:$0xff] %vm40, %v185
    %251 = vst.msk [vmem:[%s249 + $0x10] sm:$0xff] %vm40, %v186
    %252 = vst.msk [vmem:[%s249 + $0x28] sm:$0xff] %vm40, %v187
    %253 = vst.msk [vmem:[%s249 + $0x30] sm:$0xff] %vm40, %v188
    %254 = vst.msk [vmem:[%s249 + $0x48] sm:$0xff] %vm40, %v189
    %255 = vst.msk [vmem:[%s249 + $0x50] sm:$0xff] %vm40, %v190
    %256 = vst.msk [vmem:[%s249 + $0x68] sm:$0xff] %vm40, %v191
    %257 = vst.msk [vmem:[%s249 + $0x70] sm:$0xff] %vm40, %v192
    %258 = vst.msk [vmem:[%s249 + $0x88] sm:$0xff] %vm40, %v193
    %259 = vst.msk [vmem:[%s249 + $0x90] sm:$0xff] %vm40, %v194
    %260 = vst.msk [vmem:[%s249 + $0xa8] sm:$0xff] %vm40, %v195
    %261 = vst.msk [vmem:[%s249 + $0xb0] sm:$0xff] %vm40, %v196
    %262 = vst.msk [vmem:[%s249 + $0xc8] sm:$0xff] %vm40, %v197
    %263 = vst.msk [vmem:[%s249 + $0xd0] sm:$0xff] %vm40, %v198
    %264 = vst.msk [vmem:[%s249 + $0xe8] sm:$0xff] %vm40, %v199
    %265 = vst.msk [vmem:[%s249 + $0xf0] sm:$0xff] %vm40, %v200
    %266 = vst.msk [vmem:[%s249 + $0x108] sm:$0xff] %vm40, %v201
    %267 = vst.msk [vmem:[%s249 + $0x110] sm:$0xff] %vm40, %v202
    %268 = vst.msk [vmem:[%s249 + $0x128] sm:$0xff] %vm40, %v203
    %269 = vst.msk [vmem:[%s249 + $0x130] sm:$0xff] %vm40, %v204
    %270 = vst.msk [vmem:[%s249 + $0x148] sm:$0xff] %vm40, %v205
    %271 = vst.msk [vmem:[%s249 + $0x150] sm:$0xff] %vm40, %v206
    %272 = vst.msk [vmem:[%s249 + $0x168] sm:$0xff] %vm40, %v207
    %273 = vst.msk [vmem:[%s249 + $0x170] sm:$0xff] %vm40, %v208
    %274 = vst.msk [vmem:[%s249 + $0x188] sm:$0xff] %vm40, %v209
    %275 = vst.msk [vmem:[%s249 + $0x190] sm:$0xff] %vm40, %v210
    %276 = vst.msk [vmem:[%s249 + $0x1a8] sm:$0xff] %vm40, %v211
    %277 = vst.msk [vmem:[%s249 + $0x1b0] sm:$0xff] %vm40, %v212
    %278 = vst.msk [vmem:[%s249 + $0x1c8] sm:$0xff] %vm40, %v213
    %279 = vst.msk [vmem:[%s249 + $0x1d0] sm:$0xff] %vm40, %v214
    %280 = vst.msk [vmem:[%s249 + $0x1e8] sm:$0xff] %vm40, %v215
    %281 = vst.msk [vmem:[%s249 + $0x1f0] sm:$0xff] %vm40, %v216
    %282 = vst.msk [vmem:[%s249 + $0x248] sm:$0xff] %vm40, %v217
    %283 = vst.msk [vmem:[%s249 + $0x250] sm:$0xff] %vm40, %v218
    %284 = vst.msk [vmem:[%s249 + $0x268] sm:$0xff] %vm40, %v219
    %285 = vst.msk [vmem:[%s249 + $0x270] sm:$0xff] %vm40, %v220
    %286 = vst.msk [vmem:[%s249 + $0x288] sm:$0xff] %vm40, %v221
    %287 = vst.msk [vmem:[%s249 + $0x290] sm:$0xff] %vm40, %v222
    %288 = vst.msk [vmem:[%s249 + $0x2a8] sm:$0xff] %vm40, %v223
    %289 = vst.msk [vmem:[%s249 + $0x2b0] sm:$0xff] %vm40, %v224
    %290 = vst.msk [vmem:[%s249 + $0x2c8] sm:$0xff] %vm40, %v225
    %291 = vst.msk [vmem:[%s249 + $0x2d0] sm:$0xff] %vm40, %v226
    %292 = vst.msk [vmem:[%s249 + $0x2e8] sm:$0xff] %vm40, %v227
    %293 = vst.msk [vmem:[%s249 + $0x2f0] sm:$0xff] %vm40, %v228
    %294 = vst.msk [vmem:[%s249 + $0x308] sm:$0xff] %vm40, %v229
    %295 = vst.msk [vmem:[%s249 + $0x310] sm:$0xff] %vm40, %v230
    %296 = vst.msk [vmem:[%s249 + $0x328] sm:$0xff] %vm40, %v231
    %297 = vst.msk [vmem:[%s249 + $0x330] sm:$0xff] %vm40, %v232
    %298 = vst.msk [vmem:[%s249 + $0x348] sm:$0xff] %vm40, %v233
    %299 = vst.msk [vmem:[%s249 + $0x350] sm:$0xff] %vm40, %v234
    %300 = vst.msk [vmem:[%s249 + $0x368] sm:$0xff] %vm40, %v235
    %301 = vst.msk [vmem:[%s249 + $0x370] sm:$0xff] %vm40, %v236
    %302 = vst.msk [vmem:[%s249 + $0x388] sm:$0xff] %vm40, %v237
    %303 = vst.msk [vmem:[%s249 + $0x390] sm:$0xff] %vm40, %v238
    %304 = vst.msk [vmem:[%s249 + $0x3a8] sm:$0xff] %vm40, %v239
    %305 = vst.msk [vmem:[%s249 + $0x3b0] sm:$0xff] %vm40, %v240
    %306 = vst.msk [vmem:[%s249 + $0x3c8] sm:$0xff] %vm40, %v241
    %307 = vst.msk [vmem:[%s249 + $0x3d0] sm:$0xff] %vm40, %v242
    %308 = vst.msk [vmem:[%s249 + $0x3e8] sm:$0xff] %vm40, %v243
    %309 = vst.msk [vmem:[%s249 + $0x3f0] sm:$0xff] %vm40, %v244
    %310 = vst.msk [vmem:[%s249 + $0x408] sm:$0xff] %vm40, %v245
    %311 = vst.msk [vmem:[%s249 + $0x410] sm:$0xff] %vm40, %v246
    %312 = vst.msk [vmem:[%s249 + $0x428] sm:$0xff] %vm40, %v247
    %313 = vst.msk [vmem:[%s249 + $0x430] sm:$0xff] %vm40, %v248
    %v314 = vld [vmem:[#allocation2 + $0x7] sm:$0xff]
    %v315 = vld [vmem:[#allocation2 + $0xf] sm:$0xff]
    %v316 = vld [vmem:[#allocation2 + $0x27] sm:$0xff]
    %v317 = vld [vmem:[#allocation2 + $0x2f] sm:$0xff]
    %v318 = vld [vmem:[#allocation2 + $0x47] sm:$0xff]
    %v319 = vld [vmem:[#allocation2 + $0x4f] sm:$0xff]
    %v320 = vld [vmem:[#allocation2 + $0x67] sm:$0xff]
    %v321 = vld [vmem:[#allocation2 + $0x6f] sm:$0xff]
    %v322 = vld [vmem:[#allocation2 + $0x87] sm:$0xff]
    %v323 = vld [vmem:[#allocation2 + $0x8f] sm:$0xff]
    %v324 = vld [vmem:[#allocation2 + $0xa7] sm:$0xff]
    %v325 = vld [vmem:[#allocation2 + $0xaf] sm:$0xff]
    %v326 = vld [vmem:[#allocation2 + $0xc7] sm:$0xff]
    %v327 = vld [vmem:[#allocation2 + $0xcf] sm:$0xff]
    %v328 = vld [vmem:[#allocation2 + $0xe7] sm:$0xff]
    %v329 = vld [vmem:[#allocation2 + $0xef] sm:$0xff]
    %v330 = vld [vmem:[#allocation2 + $0x107] sm:$0xff]
    %v331 = vld [vmem:[#allocation2 + $0x10f] sm:$0xff]
    %v332 = vld [vmem:[#allocation2 + $0x127] sm:$0xff]
    %v333 = vld [vmem:[#allocation2 + $0x12f] sm:$0xff]
    %v334 = vld [vmem:[#allocation2 + $0x147] sm:$0xff]
    %v335 = vld [vmem:[#allocation2 + $0x14f] sm:$0xff]
    %v336 = vld [vmem:[#allocation2 + $0x167] sm:$0xff]
    %v337 = vld [vmem:[#allocation2 + $0x16f] sm:$0xff]
    %v338 = vld [vmem:[#allocation2 + $0x187] sm:$0xff]
    %v339 = vld [vmem:[#allocation2 + $0x18f] sm:$0xff]
    %v340 = vld [vmem:[#allocation2 + $0x1a7] sm:$0xff]
    %v341 = vld [vmem:[#allocation2 + $0x1af] sm:$0xff]
    %v342 = vld [vmem:[#allocation2 + $0x1c7] sm:$0xff]
    %v343 = vld [vmem:[#allocation2 + $0x1cf] sm:$0xff]
    %v344 = vld [vmem:[#allocation2 + $0x1e7] sm:$0xff]
    %v345 = vld [vmem:[#allocation2 + $0x1ef] sm:$0xff]
    %v346 = vld [vmem:[#allocation2 + $0x247] sm:$0xff]
    %v347 = vld [vmem:[#allocation2 + $0x24f] sm:$0xff]
    %v348 = vld [vmem:[#allocation2 + $0x267] sm:$0xff]
    %v349 = vld [vmem:[#allocation2 + $0x26f] sm:$0xff]
    %v350 = vld [vmem:[#allocation2 + $0x287] sm:$0xff]
    %v351 = vld [vmem:[#allocation2 + $0x28f] sm:$0xff]
    %v352 = vld [vmem:[#allocation2 + $0x2a7] sm:$0xff]
    %v353 = vld [vmem:[#allocation2 + $0x2af] sm:$0xff]
    %v354 = vld [vmem:[#allocation2 + $0x2c7] sm:$0xff]
    %v355 = vld [vmem:[#allocation2 + $0x2cf] sm:$0xff]
    %v356 = vld [vmem:[#allocation2 + $0x2e7] sm:$0xff]
    %v357 = vld [vmem:[#allocation2 + $0x2ef] sm:$0xff]
    %v358 = vld [vmem:[#allocation2 + $0x307] sm:$0xff]
    %v359 = vld [vmem:[#allocation2 + $0x30f] sm:$0xff]
    %v360 = vld [vmem:[#allocation2 + $0x327] sm:$0xff]
    %v361 = vld [vmem:[#allocation2 + $0x32f] sm:$0xff]
    %v362 = vld [vmem:[#allocation2 + $0x347] sm:$0xff]
    %v363 = vld [vmem:[#allocation2 + $0x34f] sm:$0xff]
    %v364 = vld [vmem:[#allocation2 + $0x367] sm:$0xff]
    %v365 = vld [vmem:[#allocation2 + $0x36f] sm:$0xff]
    %v366 = vld [vmem:[#allocation2 + $0x387] sm:$0xff]
    %v367 = vld [vmem:[#allocation2 + $0x38f] sm:$0xff]
    %v368 = vld [vmem:[#allocation2 + $0x3a7] sm:$0xff]
    %v369 = vld [vmem:[#allocation2 + $0x3af] sm:$0xff]
    %v370 = vld [vmem:[#allocation2 + $0x3c7] sm:$0xff]
    %v371 = vld [vmem:[#allocation2 + $0x3cf] sm:$0xff]
    %v372 = vld [vmem:[#allocation2 + $0x3e7] sm:$0xff]
    %v373 = vld [vmem:[#allocation2 + $0x3ef] sm:$0xff]
    %v374 = vld [vmem:[#allocation2 + $0x407] sm:$0xff]
    %v375 = vld [vmem:[#allocation2 + $0x40f] sm:$0xff]
    %v376 = vld [vmem:[#allocation2 + $0x427] sm:$0xff]
    %v377 = vld [vmem:[#allocation2 + $0x42f] sm:$0xff]
    %378 = vst.msk [vmem:[#allocation3] sm:$0xff] %vm40, %v314
    %379 = vst.msk [vmem:[#allocation3 + $0x8] sm:$0xff] %vm40, %v315
    %380 = vst.msk [vmem:[#allocation3 + $0x10] sm:$0xff] %vm40, %v316
    %381 = vst.msk [vmem:[#allocation3 + $0x18] sm:$0xff] %vm40, %v317
    %382 = vst.msk [vmem:[#allocation3 + $0x20] sm:$0xff] %vm40, %v318
    %383 = vst.msk [vmem:[#allocation3 + $0x28] sm:$0xff] %vm40, %v319
    %384 = vst.msk [vmem:[#allocation3 + $0x30] sm:$0xff] %vm40, %v320
    %385 = vst.msk [vmem:[#allocation3 + $0x38] sm:$0xff] %vm40, %v321
    %386 = vst.msk [vmem:[#allocation3 + $0x40] sm:$0xff] %vm40, %v322
    %387 = vst.msk [vmem:[#allocation3 + $0x48] sm:$0xff] %vm40, %v323
    %388 = vst.msk [vmem:[#allocation3 + $0x50] sm:$0xff] %vm40, %v324
    %389 = vst.msk [vmem:[#allocation3 + $0x58] sm:$0xff] %vm40, %v325
    %390 = vst.msk [vmem:[#allocation3 + $0x60] sm:$0xff] %vm40, %v326
    %391 = vst.msk [vmem:[#allocation3 + $0x68] sm:$0xff] %vm40, %v327
    %392 = vst.msk [vmem:[#allocation3 + $0x70] sm:$0xff] %vm40, %v328
    %393 = vst.msk [vmem:[#allocation3 + $0x78] sm:$0xff] %vm40, %v329
    %394 = vst.msk [vmem:[#allocation3 + $0x80] sm:$0xff] %vm40, %v330
    %395 = vst.msk [vmem:[#allocation3 + $0x88] sm:$0xff] %vm40, %v331
    %396 = vst.msk [vmem:[#allocation3 + $0x90] sm:$0xff] %vm40, %v332
    %397 = vst.msk [vmem:[#allocation3 + $0x98] sm:$0xff] %vm40, %v333
    %398 = vst.msk [vmem:[#allocation3 + $0xa0] sm:$0xff] %vm40, %v334
    %399 = vst.msk [vmem:[#allocation3 + $0xa8] sm:$0xff] %vm40, %v335
    %400 = vst.msk [vmem:[#allocation3 + $0xb0] sm:$0xff] %vm40, %v336
    %401 = vst.msk [vmem:[#allocation3 + $0xb8] sm:$0xff] %vm40, %v337
    %402 = vst.msk [vmem:[#allocation3 + $0xc0] sm:$0xff] %vm40, %v338
    %403 = vst.msk [vmem:[#allocation3 + $0xc8] sm:$0xff] %vm40, %v339
    %404 = vst.msk [vmem:[#allocation3 + $0xd0] sm:$0xff] %vm40, %v340
    %405 = vst.msk [vmem:[#allocation3 + $0xd8] sm:$0xff] %vm40, %v341
    %406 = vst.msk [vmem:[#allocation3 + $0xe0] sm:$0xff] %vm40, %v342
    %407 = vst.msk [vmem:[#allocation3 + $0xe8] sm:$0xff] %vm40, %v343
    %408 = vst.msk [vmem:[#allocation3 + $0xf0] sm:$0xff] %vm40, %v344
    %409 = vst.msk [vmem:[#allocation3 + $0xf8] sm:$0xff] %vm40, %v345
    %410 = vst.msk [vmem:[#allocation3 + $0x100] sm:$0xff] %vm40, %v346
    %411 = vst.msk [vmem:[#allocation3 + $0x108] sm:$0xff] %vm40, %v347
    %412 = vst.msk [vmem:[#allocation3 + $0x110] sm:$0xff] %vm40, %v348
    %413 = vst.msk [vmem:[#allocation3 + $0x118] sm:$0xff] %vm40, %v349
    %414 = vst.msk [vmem:[#allocation3 + $0x120] sm:$0xff] %vm40, %v350
    %415 = vst.msk [vmem:[#allocation3 + $0x128] sm:$0xff] %vm40, %v351
    %416 = vst.msk [vmem:[#allocation3 + $0x130] sm:$0xff] %vm40, %v352
    %417 = vst.msk [vmem:[#allocation3 + $0x138] sm:$0xff] %vm40, %v353
    %418 = vst.msk [vmem:[#allocation3 + $0x140] sm:$0xff] %vm40, %v354
    %419 = vst.msk [vmem:[#allocation3 + $0x148] sm:$0xff] %vm40, %v355
    %420 = vst.msk [vmem:[#allocation3 + $0x150] sm:$0xff] %vm40, %v356
    %421 = vst.msk [vmem:[#allocation3 + $0x158] sm:$0xff] %vm40, %v357
    %422 = vst.msk [vmem:[#allocation3 + $0x160] sm:$0xff] %vm40, %v358
    %423 = vst.msk [vmem:[#allocation3 + $0x168] sm:$0xff] %vm40, %v359
    %424 = vst.msk [vmem:[#allocation3 + $0x170] sm:$0xff] %vm40, %v360
    %425 = vst.msk [vmem:[#allocation3 + $0x178] sm:$0xff] %vm40, %v361
    %426 = vst.msk [vmem:[#allocation3 + $0x180] sm:$0xff] %vm40, %v362
    %427 = vst.msk [vmem:[#allocation3 + $0x188] sm:$0xff] %vm40, %v363
    %428 = vst.msk [vmem:[#allocation3 + $0x190] sm:$0xff] %vm40, %v364
    %429 = vst.msk [vmem:[#allocation3 + $0x198] sm:$0xff] %vm40, %v365
    %430 = vst.msk [vmem:[#allocation3 + $0x1a0] sm:$0xff] %vm40, %v366
    %431 = vst.msk [vmem:[#allocation3 + $0x1a8] sm:$0xff] %vm40, %v367
    %432 = vst.msk [vmem:[#allocation3 + $0x1b0] sm:$0xff] %vm40, %v368
    %433 = vst.msk [vmem:[#allocation3 + $0x1b8] sm:$0xff] %vm40, %v369
    %434 = vst.msk [vmem:[#allocation3 + $0x1c0] sm:$0xff] %vm40, %v370
    %435 = vst.msk [vmem:[#allocation3 + $0x1c8] sm:$0xff] %vm40, %v371
    %436 = vst.msk [vmem:[#allocation3 + $0x1d0] sm:$0xff] %vm40, %v372
    %437 = vst.msk [vmem:[#allocation3 + $0x1d8] sm:$0xff] %vm40, %v373
    %438 = vst.msk [vmem:[#allocation3 + $0x1e0] sm:$0xff] %vm40, %v374
    %439 = vst.msk [vmem:[#allocation3 + $0x1e8] sm:$0xff] %vm40, %v375
    %440 = vst.msk [vmem:[#allocation3 + $0x1f0] sm:$0xff] %vm40, %v376
    %441 = vst.msk [vmem:[#allocation3 + $0x1f8] sm:$0xff] %vm40, %v377
    %v442 = vld [vmem:[#allocation2 + $0x8] sm:$0xff]
    %v443 = vld [vmem:[#allocation2 + $0x10] sm:$0xff]
    %v444 = vld [vmem:[#allocation2 + $0x28] sm:$0xff]
    %v445 = vld [vmem:[#allocation2 + $0x30] sm:$0xff]
    %v446 = vld [vmem:[#allocation2 + $0x48] sm:$0xff]
    %v447 = vld [vmem:[#allocation2 + $0x50] sm:$0xff]
    %v448 = vld [vmem:[#allocation2 + $0x68] sm:$0xff]
    %v449 = vld [vmem:[#allocation2 + $0x70] sm:$0xff]
    %v450 = vld [vmem:[#allocation2 + $0x88] sm:$0xff]
    %v451 = vld [vmem:[#allocation2 + $0x90] sm:$0xff]
    %v452 = vld [vmem:[#allocation2 + $0xa8] sm:$0xff]
    %v453 = vld [vmem:[#allocation2 + $0xb0] sm:$0xff]
    %v454 = vld [vmem:[#allocation2 + $0xc8] sm:$0xff]
    %v455 = vld [vmem:[#allocation2 + $0xd0] sm:$0xff]
    %v456 = vld [vmem:[#allocation2 + $0xe8] sm:$0xff]
    %v457 = vld [vmem:[#allocation2 + $0xf0] sm:$0xff]
    %v458 = vld [vmem:[#allocation2 + $0x108] sm:$0xff]
    %v459 = vld [vmem:[#allocation2 + $0x110] sm:$0xff]
    %v460 = vld [vmem:[#allocation2 + $0x128] sm:$0xff]
    %v461 = vld [vmem:[#allocation2 + $0x130] sm:$0xff]
    %v462 = vld [vmem:[#allocation2 + $0x148] sm:$0xff]
    %v463 = vld [vmem:[#allocation2 + $0x150] sm:$0xff]
    %v464 = vld [vmem:[#allocation2 + $0x168] sm:$0xff]
    %v465 = vld [vmem:[#allocation2 + $0x170] sm:$0xff]
    %v466 = vld [vmem:[#allocation2 + $0x188] sm:$0xff]
    %v467 = vld [vmem:[#allocation2 + $0x190] sm:$0xff]
    %v468 = vld [vmem:[#allocation2 + $0x1a8] sm:$0xff]
    %v469 = vld [vmem:[#allocation2 + $0x1b0] sm:$0xff]
    %v470 = vld [vmem:[#allocation2 + $0x1c8] sm:$0xff]
    %v471 = vld [vmem:[#allocation2 + $0x1d0] sm:$0xff]
    %v472 = vld [vmem:[#allocation2 + $0x1e8] sm:$0xff]
    %v473 = vld [vmem:[#allocation2 + $0x1f0] sm:$0xff]
    %v474 = vld [vmem:[#allocation2 + $0x248] sm:$0xff]
    %v475 = vld [vmem:[#allocation2 + $0x250] sm:$0xff]
    %v476 = vld [vmem:[#allocation2 + $0x268] sm:$0xff]
    %v477 = vld [vmem:[#allocation2 + $0x270] sm:$0xff]
    %v478 = vld [vmem:[#allocation2 + $0x288] sm:$0xff]
    %v479 = vld [vmem:[#allocation2 + $0x290] sm:$0xff]
    %v480 = vld [vmem:[#allocation2 + $0x2a8] sm:$0xff]
    %v481 = vld [vmem:[#allocation2 + $0x2b0] sm:$0xff]
    %v482 = vld [vmem:[#allocation2 + $0x2c8] sm:$0xff]
    %v483 = vld [vmem:[#allocation2 + $0x2d0] sm:$0xff]
    %v484 = vld [vmem:[#allocation2 + $0x2e8] sm:$0xff]
    %v485 = vld [vmem:[#allocation2 + $0x2f0] sm:$0xff]
    %v486 = vld [vmem:[#allocation2 + $0x308] sm:$0xff]
    %v487 = vld [vmem:[#allocation2 + $0x310] sm:$0xff]
    %v488 = vld [vmem:[#allocation2 + $0x328] sm:$0xff]
    %v489 = vld [vmem:[#allocation2 + $0x330] sm:$0xff]
    %v490 = vld [vmem:[#allocation2 + $0x348] sm:$0xff]
    %v491 = vld [vmem:[#allocation2 + $0x350] sm:$0xff]
    %v492 = vld [vmem:[#allocation2 + $0x368] sm:$0xff]
    %v493 = vld [vmem:[#allocation2 + $0x370] sm:$0xff]
    %v494 = vld [vmem:[#allocation2 + $0x388] sm:$0xff]
    %v495 = vld [vmem:[#allocation2 + $0x390] sm:$0xff]
    %v496 = vld [vmem:[#allocation2 + $0x3a8] sm:$0xff]
    %v497 = vld [vmem:[#allocation2 + $0x3b0] sm:$0xff]
    %v498 = vld [vmem:[#allocation2 + $0x3c8] sm:$0xff]
    %v499 = vld [vmem:[#allocation2 + $0x3d0] sm:$0xff]
    %v500 = vld [vmem:[#allocation2 + $0x3e8] sm:$0xff]
    %v501 = vld [vmem:[#allocation2 + $0x3f0] sm:$0xff]
    %v502 = vld [vmem:[#allocation2 + $0x408] sm:$0xff]
    %v503 = vld [vmem:[#allocation2 + $0x410] sm:$0xff]
    %v504 = vld [vmem:[#allocation2 + $0x428] sm:$0xff]
    %v505 = vld [vmem:[#allocation2 + $0x430] sm:$0xff]
    %570 = vrot.lane.b32.xlu0 %v442, 3
    %v571 = vpop.permute.xlu0 %570
    %572 = vrot.lane.b32.xlu0 %v443, 3
    %v573 = vpop.permute.xlu0 %572
    %574 = vrot.lane.b32.xlu0 %v444, 3
    %v575 = vpop.permute.xlu0 %574
    %576 = vrot.lane.b32.xlu0 %v445, 3
    %v577 = vpop.permute.xlu0 %576
    %578 = vrot.lane.b32.xlu0 %v446, 3
    %v579 = vpop.permute.xlu0 %578
    %580 = vrot.lane.b32.xlu0 %v447, 3
    %v581 = vpop.permute.xlu0 %580
    %582 = vrot.lane.b32.xlu0 %v448, 3
    %v583 = vpop.permute.xlu0 %582
    %584 = vrot.lane.b32.xlu0 %v449, 3
    %v585 = vpop.permute.xlu0 %584
    %586 = vrot.lane.b32.xlu0 %v450, 3
    %v587 = vpop.permute.xlu0 %586
    %588 = vrot.lane.b32.xlu0 %v451, 3
    %v589 = vpop.permute.xlu0 %588
    %590 = vrot.lane.b32.xlu0 %v452, 3
    %v591 = vpop.permute.xlu0 %590
    %592 = vrot.lane.b32.xlu0 %v453, 3
    %v593 = vpop.permute.xlu0 %592
    %594 = vrot.lane.b32.xlu0 %v454, 3
    %v595 = vpop.permute.xlu0 %594
    %596 = vrot.lane.b32.xlu0 %v455, 3
    %v597 = vpop.permute.xlu0 %596
    %598 = vrot.lane.b32.xlu0 %v456, 3
    %v599 = vpop.permute.xlu0 %598
    %600 = vrot.lane.b32.xlu0 %v457, 3
    %v601 = vpop.permute.xlu0 %600
    %602 = vrot.lane.b32.xlu0 %v458, 3
    %v603 = vpop.permute.xlu0 %602
    %604 = vrot.lane.b32.xlu0 %v459, 3
    %v605 = vpop.permute.xlu0 %604
    %606 = vrot.lane.b32.xlu0 %v460, 3
    %v607 = vpop.permute.xlu0 %606
    %608 = vrot.lane.b32.xlu0 %v461, 3
    %v609 = vpop.permute.xlu0 %608
    %610 = vrot.lane.b32.xlu0 %v462, 3
    %v611 = vpop.permute.xlu0 %610
    %612 = vrot.lane.b32.xlu0 %v463, 3
    %v613 = vpop.permute.xlu0 %612
    %614 = vrot.lane.b32.xlu0 %v464, 3
    %v615 = vpop.permute.xlu0 %614
    %616 = vrot.lane.b32.xlu0 %v465, 3
    %v617 = vpop.permute.xlu0 %616
    %618 = vrot.lane.b32.xlu0 %v466, 3
    %v619 = vpop.permute.xlu0 %618
    %620 = vrot.lane.b32.xlu0 %v467, 3
    %v621 = vpop.permute.xlu0 %620
    %622 = vrot.lane.b32.xlu0 %v468, 3
    %v623 = vpop.permute.xlu0 %622
    %624 = vrot.lane.b32.xlu0 %v469, 3
    %v625 = vpop.permute.xlu0 %624
    %626 = vrot.lane.b32.xlu0 %v470, 3
    %v627 = vpop.permute.xlu0 %626
    %628 = vrot.lane.b32.xlu0 %v471, 3
    %v629 = vpop.permute.xlu0 %628
    %630 = vrot.lane.b32.xlu0 %v472, 3
    %v631 = vpop.permute.xlu0 %630
    %632 = vrot.lane.b32.xlu0 %v473, 3
    %v633 = vpop.permute.xlu0 %632
    %634 = vrot.lane.b32.xlu0 %v474, 3
    %v635 = vpop.permute.xlu0 %634
    %636 = vrot.lane.b32.xlu0 %v475, 3
    %v637 = vpop.permute.xlu0 %636
    %638 = vrot.lane.b32.xlu0 %v476, 3
    %v639 = vpop.permute.xlu0 %638
    %640 = vrot.lane.b32.xlu0 %v477, 3
    %v641 = vpop.permute.xlu0 %640
    %642 = vrot.lane.b32.xlu0 %v478, 3
    %v643 = vpop.permute.xlu0 %642
    %644 = vrot.lane.b32.xlu0 %v479, 3
    %v645 = vpop.permute.xlu0 %644
    %646 = vrot.lane.b32.xlu0 %v480, 3
    %v647 = vpop.permute.xlu0 %646
    %648 = vrot.lane.b32.xlu0 %v481, 3
    %v649 = vpop.permute.xlu0 %648
    %650 = vrot.lane.b32.xlu0 %v482, 3
    %v651 = vpop.permute.xlu0 %650
    %652 = vrot.lane.b32.xlu0 %v483, 3
    %v653 = vpop.permute.xlu0 %652
    %654 = vrot.lane.b32.xlu0 %v484, 3
    %v655 = vpop.permute.xlu0 %654
    %656 = vrot.lane.b32.xlu0 %v485, 3
    %v657 = vpop.permute.xlu0 %656
    %658 = vrot.lane.b32.xlu0 %v486, 3
    %v659 = vpop.permute.xlu0 %658
    %660 = vrot.lane.b32.xlu0 %v487, 3
    %v661 = vpop.permute.xlu0 %660
    %662 = vrot.lane.b32.xlu0 %v488, 3
    %v663 = vpop.permute.xlu0 %662
    %664 = vrot.lane.b32.xlu0 %v489, 3
    %v665 = vpop.permute.xlu0 %664
    %666 = vrot.lane.b32.xlu0 %v490, 3
    %v667 = vpop.permute.xlu0 %666
    %668 = vrot.lane.b32.xlu0 %v491, 3
    %v669 = vpop.permute.xlu0 %668
    %670 = vrot.lane.b32.xlu0 %v492, 3
    %v671 = vpop.permute.xlu0 %670
    %672 = vrot.lane.b32.xlu0 %v493, 3
    %v673 = vpop.permute.xlu0 %672
    %674 = vrot.lane.b32.xlu0 %v494, 3
    %v675 = vpop.permute.xlu0 %674
    %676 = vrot.lane.b32.xlu0 %v495, 3
    %v677 = vpop.permute.xlu0 %676
    %678 = vrot.lane.b32.xlu0 %v496, 3
    %v679 = vpop.permute.xlu0 %678
    %680 = vrot.lane.b32.xlu0 %v497, 3
    %v681 = vpop.permute.xlu0 %680
    %682 = vrot.lane.b32.xlu0 %v498, 3
    %v683 = vpop.permute.xlu0 %682
    %684 = vrot.lane.b32.xlu0 %v499, 3
    %v685 = vpop.permute.xlu0 %684
    %686 = vrot.lane.b32.xlu0 %v500, 3
    %v687 = vpop.permute.xlu0 %686
    %688 = vrot.lane.b32.xlu0 %v501, 3
    %v689 = vpop.permute.xlu0 %688
    %690 = vrot.lane.b32.xlu0 %v502, 3
    %v691 = vpop.permute.xlu0 %690
    %692 = vrot.lane.b32.xlu0 %v503, 3
    %v693 = vpop.permute.xlu0 %692
    %694 = vrot.lane.b32.xlu0 %v504, 3
    %v695 = vpop.permute.xlu0 %694
    %696 = vrot.lane.b32.xlu0 %v505, 3
    %v697 = vpop.permute.xlu0 %696
    %vm762 = vcmask 48152
    %763 = vst.msk [vmem:[#allocation3] sm:$0xff] %vm762, %v571
    %764 = vst.msk [vmem:[#allocation3 + $0x8] sm:$0xff] %vm762, %v573
    %765 = vst.msk [vmem:[#allocation3 + $0x10] sm:$0xff] %vm762, %v575
    %766 = vst.msk [vmem:[#allocation3 + $0x18] sm:$0xff] %vm762, %v577
    %767 = vst.msk [vmem:[#allocation3 + $0x20] sm:$0xff] %vm762, %v579
    %768 = vst.msk [vmem:[#allocation3 + $0x28] sm:$0xff] %vm762, %v581
    %769 = vst.msk [vmem:[#allocation3 + $0x30] sm:$0xff] %vm762, %v583
    %770 = vst.msk [vmem:[#allocation3 + $0x38] sm:$0xff] %vm762, %v585
    %771 = vst.msk [vmem:[#allocation3 + $0x40] sm:$0xff] %vm762, %v587
    %772 = vst.msk [vmem:[#allocation3 + $0x48] sm:$0xff] %vm762, %v589
    %773 = vst.msk [vmem:[#allocation3 + $0x50] sm:$0xff] %vm762, %v591
    %774 = vst.msk [vmem:[#allocation3 + $0x58] sm:$0xff] %vm762, %v593
    %775 = vst.msk [vmem:[#allocation3 + $0x60] sm:$0xff] %vm762, %v595
    %776 = vst.msk [vmem:[#allocation3 + $0x68] sm:$0xff] %vm762, %v597
    %777 = vst.msk [vmem:[#allocation3 + $0x70] sm:$0xff] %vm762, %v599
    %778 = vst.msk [vmem:[#allocation3 + $0x78] sm:$0xff] %vm762, %v601
    %779 = vst.msk [vmem:[#allocation3 + $0x80] sm:$0xff] %vm762, %v603
    %780 = vst.msk [vmem:[#allocation3 + $0x88] sm:$0xff] %vm762, %v605
    %781 = vst.msk [vmem:[#allocation3 + $0x90] sm:$0xff] %vm762, %v607
    %782 = vst.msk [vmem:[#allocation3 + $0x98] sm:$0xff] %vm762, %v609
    %783 = vst.msk [vmem:[#allocation3 + $0xa0] sm:$0xff] %vm762, %v611
    %784 = vst.msk [vmem:[#allocation3 + $0xa8] sm:$0xff] %vm762, %v613
    %785 = vst.msk [vmem:[#allocation3 + $0xb0] sm:$0xff] %vm762, %v615
    %786 = vst.msk [vmem:[#allocation3 + $0xb8] sm:$0xff] %vm762, %v617
    %787 = vst.msk [vmem:[#allocation3 + $0xc0] sm:$0xff] %vm762, %v619
    %788 = vst.msk [vmem:[#allocation3 + $0xc8] sm:$0xff] %vm762, %v621
    %789 = vst.msk [vmem:[#allocation3 + $0xd0] sm:$0xff] %vm762, %v623
    %790 = vst.msk [vmem:[#allocation3 + $0xd8] sm:$0xff] %vm762, %v625
    %791 = vst.msk [vmem:[#allocation3 + $0xe0] sm:$0xff] %vm762, %v627
    %792 = vst.msk [vmem:[#allocation3 + $0xe8] sm:$0xff] %vm762, %v629
    %793 = vst.msk [vmem:[#allocation3 + $0xf0] sm:$0xff] %vm762, %v631
    %794 = vst.msk [vmem:[#allocation3 + $0xf8] sm:$0xff] %vm762, %v633
    %795 = vst.msk [vmem:[#allocation3 + $0x100] sm:$0xff] %vm762, %v635
    %796 = vst.msk [vmem:[#allocation3 + $0x108] sm:$0xff] %vm762, %v637
    %797 = vst.msk [vmem:[#allocation3 + $0x110] sm:$0xff] %vm762, %v639
    %798 = vst.msk [vmem:[#allocation3 + $0x118] sm:$0xff] %vm762, %v641
    %799 = vst.msk [vmem:[#allocation3 + $0x120] sm:$0xff] %vm762, %v643
    %800 = vst.msk [vmem:[#allocation3 + $0x128] sm:$0xff] %vm762, %v645
    %801 = vst.msk [vmem:[#allocation3 + $0x130] sm:$0xff] %vm762, %v647
    %802 = vst.msk [vmem:[#allocation3 + $0x138] sm:$0xff] %vm762, %v649
    %803 = vst.msk [vmem:[#allocation3 + $0x140] sm:$0xff] %vm762, %v651
    %804 = vst.msk [vmem:[#allocation3 + $0x148] sm:$0xff] %vm762, %v653
    %805 = vst.msk [vmem:[#allocation3 + $0x150] sm:$0xff] %vm762, %v655
    %806 = vst.msk [vmem:[#allocation3 + $0x158] sm:$0xff] %vm762, %v657
    %807 = vst.msk [vmem:[#allocation3 + $0x160] sm:$0xff] %vm762, %v659
    %808 = vst.msk [vmem:[#allocation3 + $0x168] sm:$0xff] %vm762, %v661
    %809 = vst.msk [vmem:[#allocation3 + $0x170] sm:$0xff] %vm762, %v663
    %810 = vst.msk [vmem:[#allocation3 + $0x178] sm:$0xff] %vm762, %v665
    %811 = vst.msk [vmem:[#allocation3 + $0x180] sm:$0xff] %vm762, %v667
    %812 = vst.msk [vmem:[#allocation3 + $0x188] sm:$0xff] %vm762, %v669
    %813 = vst.msk [vmem:[#allocation3 + $0x190] sm:$0xff] %vm762, %v671
    %814 = vst.msk [vmem:[#allocation3 + $0x198] sm:$0xff] %vm762, %v673
    %815 = vst.msk [vmem:[#allocation3 + $0x1a0] sm:$0xff] %vm762, %v675
    %816 = vst.msk [vmem:[#allocation3 + $0x1a8] sm:$0xff] %vm762, %v677
    %817 = vst.msk [vmem:[#allocation3 + $0x1b0] sm:$0xff] %vm762, %v679
    %818 = vst.msk [vmem:[#allocation3 + $0x1b8] sm:$0xff] %vm762, %v681
    %819 = vst.msk [vmem:[#allocation3 + $0x1c0] sm:$0xff] %vm762, %v683
    %820 = vst.msk [vmem:[#allocation3 + $0x1c8] sm:$0xff] %vm762, %v685
    %821 = vst.msk [vmem:[#allocation3 + $0x1d0] sm:$0xff] %vm762, %v687
    %822 = vst.msk [vmem:[#allocation3 + $0x1d8] sm:$0xff] %vm762, %v689
    %823 = vst.msk [vmem:[#allocation3 + $0x1e0] sm:$0xff] %vm762, %v691
    %824 = vst.msk [vmem:[#allocation3 + $0x1e8] sm:$0xff] %vm762, %v693
    %825 = vst.msk [vmem:[#allocation3 + $0x1f0] sm:$0xff] %vm762, %v695
    %826 = vst.msk [vmem:[#allocation3 + $0x1f8] sm:$0xff] %vm762, %v697
    %v827 = vld [vmem:[#allocation2 + $0x9] sm:$0xff]
    %v828 = vld [vmem:[#allocation2 + $0x11] sm:$0xff]
    %v829 = vld [vmem:[#allocation2 + $0x29] sm:$0xff]
    %v830 = vld [vmem:[#allocation2 + $0x31] sm:$0xff]
    %v831 = vld [vmem:[#allocation2 + $0x49] sm:$0xff]
    %v832 = vld [vmem:[#allocation2 + $0x51] sm:$0xff]
    %v833 = vld [vmem:[#allocation2 + $0x69] sm:$0xff]
    %v834 = vld [vmem:[#allocation2 + $0x71] sm:$0xff]
    %v835 = vld [vmem:[#allocation2 + $0x89] sm:$0xff]
    %v836 = vld [vmem:[#allocation2 + $0x91] sm:$0xff]
    %v837 = vld [vmem:[#allocation2 + $0xa9] sm:$0xff]
    %v838 = vld [vmem:[#allocation2 + $0xb1] sm:$0xff]
    %v839 = vld [vmem:[#allocation2 + $0xc9] sm:$0xff]
    %v840 = vld [vmem:[#allocation2 + $0xd1] sm:$0xff]
    %v841 = vld [vmem:[#allocation2 + $0xe9] sm:$0xff]
    %v842 = vld [vmem:[#allocation2 + $0xf1] sm:$0xff]
    %v843 = vld [vmem:[#allocation2 + $0x109] sm:$0xff]
    %v844 = vld [vmem:[#allocation2 + $0x111] sm:$0xff]
    %v845 = vld [vmem:[#allocation2 + $0x129] sm:$0xff]
    %v846 = vld [vmem:[#allocation2 + $0x131] sm:$0xff]
    %v847 = vld [vmem:[#allocation2 + $0x149] sm:$0xff]
    %v848 = vld [vmem:[#allocation2 + $0x151] sm:$0xff]
    %v849 = vld [vmem:[#allocation2 + $0x169] sm:$0xff]
    %v850 = vld [vmem:[#allocation2 + $0x171] sm:$0xff]
    %v851 = vld [vmem:[#allocation2 + $0x189] sm:$0xff]
    %v852 = vld [vmem:[#allocation2 + $0x191] sm:$0xff]
    %v853 = vld [vmem:[#allocation2 + $0x1a9] sm:$0xff]
    %v854 = vld [vmem:[#allocation2 + $0x1b1] sm:$0xff]
    %v855 = vld [vmem:[#allocation2 + $0x1c9] sm:$0xff]
    %v856 = vld [vmem:[#allocation2 + $0x1d1] sm:$0xff]
    %v857 = vld [vmem:[#allocation2 + $0x1e9] sm:$0xff]
    %v858 = vld [vmem:[#allocation2 + $0x1f1] sm:$0xff]
    %v859 = vld [vmem:[#allocation2 + $0x249] sm:$0xff]
    %v860 = vld [vmem:[#allocation2 + $0x251] sm:$0xff]
    %v861 = vld [vmem:[#allocation2 + $0x269] sm:$0xff]
    %v862 = vld [vmem:[#allocation2 + $0x271] sm:$0xff]
    %v863 = vld [vmem:[#allocation2 + $0x289] sm:$0xff]
    %v864 = vld [vmem:[#allocation2 + $0x291] sm:$0xff]
    %v865 = vld [vmem:[#allocation2 + $0x2a9] sm:$0xff]
    %v866 = vld [vmem:[#allocation2 + $0x2b1] sm:$0xff]
    %v867 = vld [vmem:[#allocation2 + $0x2c9] sm:$0xff]
    %v868 = vld [vmem:[#allocation2 + $0x2d1] sm:$0xff]
    %v869 = vld [vmem:[#allocation2 + $0x2e9] sm:$0xff]
    %v870 = vld [vmem:[#allocation2 + $0x2f1] sm:$0xff]
    %v871 = vld [vmem:[#allocation2 + $0x309] sm:$0xff]
    %v872 = vld [vmem:[#allocation2 + $0x311] sm:$0xff]
    %v873 = vld [vmem:[#allocation2 + $0x329] sm:$0xff]
    %v874 = vld [vmem:[#allocation2 + $0x331] sm:$0xff]
    %v875 = vld [vmem:[#allocation2 + $0x349] sm:$0xff]
    %v876 = vld [vmem:[#allocation2 + $0x351] sm:$0xff]
    %v877 = vld [vmem:[#allocation2 + $0x369] sm:$0xff]
    %v878 = vld [vmem:[#allocation2 + $0x371] sm:$0xff]
    %v879 = vld [vmem:[#allocation2 + $0x389] sm:$0xff]
    %v880 = vld [vmem:[#allocation2 + $0x391] sm:$0xff]
    %v881 = vld [vmem:[#allocation2 + $0x3a9] sm:$0xff]
    %v882 = vld [vmem:[#allocation2 + $0x3b1] sm:$0xff]
    %v883 = vld [vmem:[#allocation2 + $0x3c9] sm:$0xff]
    %v884 = vld [vmem:[#allocation2 + $0x3d1] sm:$0xff]
    %v885 = vld [vmem:[#allocation2 + $0x3e9] sm:$0xff]
    %v886 = vld [vmem:[#allocation2 + $0x3f1] sm:$0xff]
    %v887 = vld [vmem:[#allocation2 + $0x409] sm:$0xff]
    %v888 = vld [vmem:[#allocation2 + $0x411] sm:$0xff]
    %v889 = vld [vmem:[#allocation2 + $0x429] sm:$0xff]
    %v890 = vld [vmem:[#allocation2 + $0x431] sm:$0xff]
    %955 = vrot.lane.b32.xlu0 %v827, 6
    %v956 = vpop.permute.xlu0 %955
    %957 = vrot.lane.b32.xlu0 %v828, 6
    %v958 = vpop.permute.xlu0 %957
    %959 = vrot.lane.b32.xlu0 %v829, 6
    %v960 = vpop.permute.xlu0 %959
    %961 = vrot.lane.b32.xlu0 %v830, 6
    %v962 = vpop.permute.xlu0 %961
    %963 = vrot.lane.b32.xlu0 %v831, 6
    %v964 = vpop.permute.xlu0 %963
    %965 = vrot.lane.b32.xlu0 %v832, 6
    %v966 = vpop.permute.xlu0 %965
    %967 = vrot.lane.b32.xlu0 %v833, 6
    %v968 = vpop.permute.xlu0 %967
    %969 = vrot.lane.b32.xlu0 %v834, 6
    %v970 = vpop.permute.xlu0 %969
    %971 = vrot.lane.b32.xlu0 %v835, 6
    %v972 = vpop.permute.xlu0 %971
    %973 = vrot.lane.b32.xlu0 %v836, 6
    %v974 = vpop.permute.xlu0 %973
    %975 = vrot.lane.b32.xlu0 %v837, 6
    %v976 = vpop.permute.xlu0 %975
    %977 = vrot.lane.b32.xlu0 %v838, 6
    %v978 = vpop.permute.xlu0 %977
    %979 = vrot.lane.b32.xlu0 %v839, 6
    %v980 = vpop.permute.xlu0 %979
    %981 = vrot.lane.b32.xlu0 %v840, 6
    %v982 = vpop.permute.xlu0 %981
    %983 = vrot.lane.b32.xlu0 %v841, 6
    %v984 = vpop.permute.xlu0 %983
    %985 = vrot.lane.b32.xlu0 %v842, 6
    %v986 = vpop.permute.xlu0 %985
    %987 = vrot.lane.b32.xlu0 %v843, 6
    %v988 = vpop.permute.xlu0 %987
    %989 = vrot.lane.b32.xlu0 %v844, 6
    %v990 = vpop.permute.xlu0 %989
    %991 = vrot.lane.b32.xlu0 %v845, 6
    %v992 = vpop.permute.xlu0 %991
    %993 = vrot.lane.b32.xlu0 %v846, 6
    %v994 = vpop.permute.xlu0 %993
    %995 = vrot.lane.b32.xlu0 %v847, 6
    %v996 = vpop.permute.xlu0 %995
    %997 = vrot.lane.b32.xlu0 %v848, 6
    %v998 = vpop.permute.xlu0 %997
    %999 = vrot.lane.b32.xlu0 %v849, 6
    %v1000 = vpop.permute.xlu0 %999
    %1001 = vrot.lane.b32.xlu0 %v850, 6
    %v1002 = vpop.permute.xlu0 %1001
    %1003 = vrot.lane.b32.xlu0 %v851, 6
    %v1004 = vpop.permute.xlu0 %1003
    %1005 = vrot.lane.b32.xlu0 %v852, 6
    %v1006 = vpop.permute.xlu0 %1005
    %1007 = vrot.lane.b32.xlu0 %v853, 6
    %v1008 = vpop.permute.xlu0 %1007
    %1009 = vrot.lane.b32.xlu0 %v854, 6
    %v1010 = vpop.permute.xlu0 %1009
    %1011 = vrot.lane.b32.xlu0 %v855, 6
    %v1012 = vpop.permute.xlu0 %1011
    %1013 = vrot.lane.b32.xlu0 %v856, 6
    %v1014 = vpop.permute.xlu0 %1013
    %1015 = vrot.lane.b32.xlu0 %v857, 6
    %v1016 = vpop.permute.xlu0 %1015
    %1017 = vrot.lane.b32.xlu0 %v858, 6
    %v1018 = vpop.permute.xlu0 %1017
    %1019 = vrot.lane.b32.xlu0 %v859, 6
    %v1020 = vpop.permute.xlu0 %1019
    %1021 = vrot.lane.b32.xlu0 %v860, 6
    %v1022 = vpop.permute.xlu0 %1021
    %1023 = vrot.lane.b32.xlu0 %v861, 6
    %v1024 = vpop.permute.xlu0 %1023
    %1025 = vrot.lane.b32.xlu0 %v862, 6
    %v1026 = vpop.permute.xlu0 %1025
    %1027 = vrot.lane.b32.xlu0 %v863, 6
    %v1028 = vpop.permute.xlu0 %1027
    %1029 = vrot.lane.b32.xlu0 %v864, 6
    %v1030 = vpop.permute.xlu0 %1029
    %1031 = vrot.lane.b32.xlu0 %v865, 6
    %v1032 = vpop.permute.xlu0 %1031
    %1033 = vrot.lane.b32.xlu0 %v866, 6
    %v1034 = vpop.permute.xlu0 %1033
    %1035 = vrot.lane.b32.xlu0 %v867, 6
    %v1036 = vpop.permute.xlu0 %1035
    %1037 = vrot.lane.b32.xlu0 %v868, 6
    %v1038 = vpop.permute.xlu0 %1037
    %1039 = vrot.lane.b32.xlu0 %v869, 6
    %v1040 = vpop.permute.xlu0 %1039
    %1041 = vrot.lane.b32.xlu0 %v870, 6
    %v1042 = vpop.permute.xlu0 %1041
    %1043 = vrot.lane.b32.xlu0 %v871, 6
    %v1044 = vpop.permute.xlu0 %1043
    %1045 = vrot.lane.b32.xlu0 %v872, 6
    %v1046 = vpop.permute.xlu0 %1045
    %1047 = vrot.lane.b32.xlu0 %v873, 6
    %v1048 = vpop.permute.xlu0 %1047
    %1049 = vrot.lane.b32.xlu0 %v874, 6
    %v1050 = vpop.permute.xlu0 %1049
    %1051 = vrot.lane.b32.xlu0 %v875, 6
    %v1052 = vpop.permute.xlu0 %1051
    %1053 = vrot.lane.b32.xlu0 %v876, 6
    %v1054 = vpop.permute.xlu0 %1053
    %1055 = vrot.lane.b32.xlu0 %v877, 6
    %v1056 = vpop.permute.xlu0 %1055
    %1057 = vrot.lane.b32.xlu0 %v878, 6
    %v1058 = vpop.permute.xlu0 %1057
    %1059 = vrot.lane.b32.xlu0 %v879, 6
    %v1060 = vpop.permute.xlu0 %1059
    %1061 = vrot.lane.b32.xlu0 %v880, 6
    %v1062 = vpop.permute.xlu0 %1061
    %1063 = vrot.lane.b32.xlu0 %v881, 6
    %v1064 = vpop.permute.xlu0 %1063
    %1065 = vrot.lane.b32.xlu0 %v882, 6
    %v1066 = vpop.permute.xlu0 %1065
    %1067 = vrot.lane.b32.xlu0 %v883, 6
    %v1068 = vpop.permute.xlu0 %1067
    %1069 = vrot.lane.b32.xlu0 %v884, 6
    %v1070 = vpop.permute.xlu0 %1069
    %1071 = vrot.lane.b32.xlu0 %v885, 6
    %v1072 = vpop.permute.xlu0 %1071
    %1073 = vrot.lane.b32.xlu0 %v886, 6
    %v1074 = vpop.permute.xlu0 %1073
    %1075 = vrot.lane.b32.xlu0 %v887, 6
    %v1076 = vpop.permute.xlu0 %1075
    %1077 = vrot.lane.b32.xlu0 %v888, 6
    %v1078 = vpop.permute.xlu0 %1077
    %1079 = vrot.lane.b32.xlu0 %v889, 6
    %v1080 = vpop.permute.xlu0 %1079
    %1081 = vrot.lane.b32.xlu0 %v890, 6
    %v1082 = vpop.permute.xlu0 %1081
    %vm1147 = vcmask 72752
    %1148 = vst.msk [vmem:[#allocation3] sm:$0xff] %vm1147, %v956
    %1149 = vst.msk [vmem:[#allocation3 + $0x8] sm:$0xff] %vm1147, %v958
    %1150 = vst.msk [vmem:[#allocation3 + $0x10] sm:$0xff] %vm1147, %v960
    %1151 = vst.msk [vmem:[#allocation3 + $0x18] sm:$0xff] %vm1147, %v962
    %1152 = vst.msk [vmem:[#allocation3 + $0x20] sm:$0xff] %vm1147, %v964
    %1153 = vst.msk [vmem:[#allocation3 + $0x28] sm:$0xff] %vm1147, %v966
    %1154 = vst.msk [vmem:[#allocation3 + $0x30] sm:$0xff] %vm1147, %v968
    %1155 = vst.msk [vmem:[#allocation3 + $0x38] sm:$0xff] %vm1147, %v970
    %1156 = vst.msk [vmem:[#allocation3 + $0x40] sm:$0xff] %vm1147, %v972
    %1157 = vst.msk [vmem:[#allocation3 + $0x48] sm:$0xff] %vm1147, %v974
    %1158 = vst.msk [vmem:[#allocation3 + $0x50] sm:$0xff] %vm1147, %v976
    %1159 = vst.msk [vmem:[#allocation3 + $0x58] sm:$0xff] %vm1147, %v978
    %1160 = vst.msk [vmem:[#allocation3 + $0x60] sm:$0xff] %vm1147, %v980
    %1161 = vst.msk [vmem:[#allocation3 + $0x68] sm:$0xff] %vm1147, %v982
    %1162 = vst.msk [vmem:[#allocation3 + $0x70] sm:$0xff] %vm1147, %v984
    %1163 = vst.msk [vmem:[#allocation3 + $0x78] sm:$0xff] %vm1147, %v986
    %1164 = vst.msk [vmem:[#allocation3 + $0x80] sm:$0xff] %vm1147, %v988
    %1165 = vst.msk [vmem:[#allocation3 + $0x88] sm:$0xff] %vm1147, %v990
    %1166 = vst.msk [vmem:[#allocation3 + $0x90] sm:$0xff] %vm1147, %v992
    %1167 = vst.msk [vmem:[#allocation3 + $0x98] sm:$0xff] %vm1147, %v994
    %1168 = vst.msk [vmem:[#allocation3 + $0xa0] sm:$0xff] %vm1147, %v996
    %1169 = vst.msk [vmem:[#allocation3 + $0xa8] sm:$0xff] %vm1147, %v998
    %1170 = vst.msk [vmem:[#allocation3 + $0xb0] sm:$0xff] %vm1147, %v1000
    %1171 = vst.msk [vmem:[#allocation3 + $0xb8] sm:$0xff] %vm1147, %v1002
    %1172 = vst.msk [vmem:[#allocation3 + $0xc0] sm:$0xff] %vm1147, %v1004
    %1173 = vst.msk [vmem:[#allocation3 + $0xc8] sm:$0xff] %vm1147, %v1006
    %1174 = vst.msk [vmem:[#allocation3 + $0xd0] sm:$0xff] %vm1147, %v1008
    %1175 = vst.msk [vmem:[#allocation3 + $0xd8] sm:$0xff] %vm1147, %v1010
    %1176 = vst.msk [vmem:[#allocation3 + $0xe0] sm:$0xff] %vm1147, %v1012
    %1177 = vst.msk [vmem:[#allocation3 + $0xe8] sm:$0xff] %vm1147, %v1014
    %1178 = vst.msk [vmem:[#allocation3 + $0xf0] sm:$0xff] %vm1147, %v1016
    %1179 = vst.msk [vmem:[#allocation3 + $0xf8] sm:$0xff] %vm1147, %v1018
    %1180 = vst.msk [vmem:[#allocation3 + $0x100] sm:$0xff] %vm1147, %v1020
    %1181 = vst.msk [vmem:[#allocation3 + $0x108] sm:$0xff] %vm1147, %v1022
    %1182 = vst.msk [vmem:[#allocation3 + $0x110] sm:$0xff] %vm1147, %v1024
    %1183 = vst.msk [vmem:[#allocation3 + $0x118] sm:$0xff] %vm1147, %v1026
    %1184 = vst.msk [vmem:[#allocation3 + $0x120] sm:$0xff] %vm1147, %v1028
    %1185 = vst.msk [vmem:[#allocation3 + $0x128] sm:$0xff] %vm1147, %v1030
    %1186 = vst.msk [vmem:[#allocation3 + $0x130] sm:$0xff] %vm1147, %v1032
    %1187 = vst.msk [vmem:[#allocation3 + $0x138] sm:$0xff] %vm1147, %v1034
    %1188 = vst.msk [vmem:[#allocation3 + $0x140] sm:$0xff] %vm1147, %v1036
    %1189 = vst.msk [vmem:[#allocation3 + $0x148] sm:$0xff] %vm1147, %v1038
    %1190 = vst.msk [vmem:[#allocation3 + $0x150] sm:$0xff] %vm1147, %v1040
    %1191 = vst.msk [vmem:[#allocation3 + $0x158] sm:$0xff] %vm1147, %v1042
    %1192 = vst.msk [vmem:[#allocation3 + $0x160] sm:$0xff] %vm1147, %v1044
    %1193 = vst.msk [vmem:[#allocation3 + $0x168] sm:$0xff] %vm1147, %v1046
    %1194 = vst.msk [vmem:[#allocation3 + $0x170] sm:$0xff] %vm1147, %v1048
    %1195 = vst.msk [vmem:[#allocation3 + $0x178] sm:$0xff] %vm1147, %v1050
    %1196 = vst.msk [vmem:[#allocation3 + $0x180] sm:$0xff] %vm1147, %v1052
    %1197 = vst.msk [vmem:[#allocation3 + $0x188] sm:$0xff] %vm1147, %v1054
    %1198 = vst.msk [vmem:[#allocation3 + $0x190] sm:$0xff] %vm1147, %v1056
    %1199 = vst.msk [vmem:[#allocation3 + $0x198] sm:$0xff] %vm1147, %v1058
    %1200 = vst.msk [vmem:[#allocation3 + $0x1a0] sm:$0xff] %vm1147, %v1060
    %1201 = vst.msk [vmem:[#allocation3 + $0x1a8] sm:$0xff] %vm1147, %v1062
    %1202 = vst.msk [vmem:[#allocation3 + $0x1b0] sm:$0xff] %vm1147, %v1064
    %1203 = vst.msk [vmem:[#allocation3 + $0x1b8] sm:$0xff] %vm1147, %v1066
    %1204 = vst.msk [vmem:[#allocation3 + $0x1c0] sm:$0xff] %vm1147, %v1068
    %1205 = vst.msk [vmem:[#allocation3 + $0x1c8] sm:$0xff] %vm1147, %v1070
    %1206 = vst.msk [vmem:[#allocation3 + $0x1d0] sm:$0xff] %vm1147, %v1072
    %1207 = vst.msk [vmem:[#allocation3 + $0x1d8] sm:$0xff] %vm1147, %v1074
    %1208 = vst.msk [vmem:[#allocation3 + $0x1e0] sm:$0xff] %vm1147, %v1076
    %1209 = vst.msk [vmem:[#allocation3 + $0x1e8] sm:$0xff] %vm1147, %v1078
    %1210 = vst.msk [vmem:[#allocation3 + $0x1f0] sm:$0xff] %vm1147, %v1080
    %1211 = vst.msk [vmem:[#allocation3 + $0x1f8] sm:$0xff] %vm1147, %v1082
    %v1212 = vld [vmem:[%s249 + $0x7] sm:$0xff]
    %v1213 = vld [vmem:[%s249 + $0xf] sm:$0xff]
    %v1214 = vld [vmem:[%s249 + $0x27] sm:$0xff]
    %v1215 = vld [vmem:[%s249 + $0x2f] sm:$0xff]
    %v1216 = vld [vmem:[%s249 + $0x47] sm:$0xff]
    %v1217 = vld [vmem:[%s249 + $0x4f] sm:$0xff]
    %v1218 = vld [vmem:[%s249 + $0x67] sm:$0xff]
    %v1219 = vld [vmem:[%s249 + $0x6f] sm:$0xff]
    %v1220 = vld [vmem:[%s249 + $0x87] sm:$0xff]
    %v1221 = vld [vmem:[%s249 + $0x8f] sm:$0xff]
    %v1222 = vld [vmem:[%s249 + $0xa7] sm:$0xff]
    %v1223 = vld [vmem:[%s249 + $0xaf] sm:$0xff]
    %v1224 = vld [vmem:[%s249 + $0xc7] sm:$0xff]
    %v1225 = vld [vmem:[%s249 + $0xcf] sm:$0xff]
    %v1226 = vld [vmem:[%s249 + $0xe7] sm:$0xff]
    %v1227 = vld [vmem:[%s249 + $0xef] sm:$0xff]
    %v1228 = vld [vmem:[%s249 + $0x107] sm:$0xff]
    %v1229 = vld [vmem:[%s249 + $0x10f] sm:$0xff]
    %v1230 = vld [vmem:[%s249 + $0x127] sm:$0xff]
    %v1231 = vld [vmem:[%s249 + $0x12f] sm:$0xff]
    %v1232 = vld [vmem:[%s249 + $0x147] sm:$0xff]
    %v1233 = vld [vmem:[%s249 + $0x14f] sm:$0xff]
    %v1234 = vld [vmem:[%s249 + $0x167] sm:$0xff]
    %v1235 = vld [vmem:[%s249 + $0x16f] sm:$0xff]
    %v1236 = vld [vmem:[%s249 + $0x187] sm:$0xff]
    %v1237 = vld [vmem:[%s249 + $0x18f] sm:$0xff]
    %v1238 = vld [vmem:[%s249 + $0x1a7] sm:$0xff]
    %v1239 = vld [vmem:[%s249 + $0x1af] sm:$0xff]
    %v1240 = vld [vmem:[%s249 + $0x1c7] sm:$0xff]
    %v1241 = vld [vmem:[%s249 + $0x1cf] sm:$0xff]
    %v1242 = vld [vmem:[%s249 + $0x1e7] sm:$0xff]
    %v1243 = vld [vmem:[%s249 + $0x1ef] sm:$0xff]
    %v1244 = vld [vmem:[%s249 + $0x247] sm:$0xff]
    %v1245 = vld [vmem:[%s249 + $0x24f] sm:$0xff]
    %v1246 = vld [vmem:[%s249 + $0x267] sm:$0xff]
    %v1247 = vld [vmem:[%s249 + $0x26f] sm:$0xff]
    %v1248 = vld [vmem:[%s249 + $0x287] sm:$0xff]
    %v1249 = vld [vmem:[%s249 + $0x28f] sm:$0xff]
    %v1250 = vld [vmem:[%s249 + $0x2a7] sm:$0xff]
    %v1251 = vld [vmem:[%s249 + $0x2af] sm:$0xff]
    %v1252 = vld [vmem:[%s249 + $0x2c7] sm:$0xff]
    %v1253 = vld [vmem:[%s249 + $0x2cf] sm:$0xff]
    %v1254 = vld [vmem:[%s249 + $0x2e7] sm:$0xff]
    %v1255 = vld [vmem:[%s249 + $0x2ef] sm:$0xff]
    %v1256 = vld [vmem:[%s249 + $0x307] sm:$0xff]
    %v1257 = vld [vmem:[%s249 + $0x30f] sm:$0xff]
    %v1258 = vld [vmem:[%s249 + $0x327] sm:$0xff]
    %v1259 = vld [vmem:[%s249 + $0x32f] sm:$0xff]
    %v1260 = vld [vmem:[%s249 + $0x347] sm:$0xff]
    %v1261 = vld [vmem:[%s249 + $0x34f] sm:$0xff]
    %v1262 = vld [vmem:[%s249 + $0x367] sm:$0xff]
    %v1263 = vld [vmem:[%s249 + $0x36f] sm:$0xff]
    %v1264 = vld [vmem:[%s249 + $0x387] sm:$0xff]
    %v1265 = vld [vmem:[%s249 + $0x38f] sm:$0xff]
    %v1266 = vld [vmem:[%s249 + $0x3a7] sm:$0xff]
    %v1267 = vld [vmem:[%s249 + $0x3af] sm:$0xff]
    %v1268 = vld [vmem:[%s249 + $0x3c7] sm:$0xff]
    %v1269 = vld [vmem:[%s249 + $0x3cf] sm:$0xff]
    %v1270 = vld [vmem:[%s249 + $0x3e7] sm:$0xff]
    %v1271 = vld [vmem:[%s249 + $0x3ef] sm:$0xff]
    %v1272 = vld [vmem:[%s249 + $0x407] sm:$0xff]
    %v1273 = vld [vmem:[%s249 + $0x40f] sm:$0xff]
    %v1274 = vld [vmem:[%s249 + $0x427] sm:$0xff]
    %v1275 = vld [vmem:[%s249 + $0x42f] sm:$0xff]
    %1340 = vrot.lane.b32.xlu0 %v1212, 9
    %v1341 = vpop.permute.xlu0 %1340
    %1342 = vrot.lane.b32.xlu0 %v1213, 9
    %v1343 = vpop.permute.xlu0 %1342
    %1344 = vrot.lane.b32.xlu0 %v1214, 9
    %v1345 = vpop.permute.xlu0 %1344
    %1346 = vrot.lane.b32.xlu0 %v1215, 9
    %v1347 = vpop.permute.xlu0 %1346
    %1348 = vrot.lane.b32.xlu0 %v1216, 9
    %v1349 = vpop.permute.xlu0 %1348
    %1350 = vrot.lane.b32.xlu0 %v1217, 9
    %v1351 = vpop.permute.xlu0 %1350
    %1352 = vrot.lane.b32.xlu0 %v1218, 9
    %v1353 = vpop.permute.xlu0 %1352
    %1354 = vrot.lane.b32.xlu0 %v1219, 9
    %v1355 = vpop.permute.xlu0 %1354
    %1356 = vrot.lane.b32.xlu0 %v1220, 9
    %v1357 = vpop.permute.xlu0 %1356
    %1358 = vrot.lane.b32.xlu0 %v1221, 9
    %v1359 = vpop.permute.xlu0 %1358
    %1360 = vrot.lane.b32.xlu0 %v1222, 9
    %v1361 = vpop.permute.xlu0 %1360
    %1362 = vrot.lane.b32.xlu0 %v1223, 9
    %v1363 = vpop.permute.xlu0 %1362
    %1364 = vrot.lane.b32.xlu0 %v1224, 9
    %v1365 = vpop.permute.xlu0 %1364
    %1366 = vrot.lane.b32.xlu0 %v1225, 9
    %v1367 = vpop.permute.xlu0 %1366
    %1368 = vrot.lane.b32.xlu0 %v1226, 9
    %v1369 = vpop.permute.xlu0 %1368
    %1370 = vrot.lane.b32.xlu0 %v1227, 9
    %v1371 = vpop.permute.xlu0 %1370
    %1372 = vrot.lane.b32.xlu0 %v1228, 9
    %v1373 = vpop.permute.xlu0 %1372
    %1374 = vrot.lane.b32.xlu0 %v1229, 9
    %v1375 = vpop.permute.xlu0 %1374
    %1376 = vrot.lane.b32.xlu0 %v1230, 9
    %v1377 = vpop.permute.xlu0 %1376
    %1378 = vrot.lane.b32.xlu0 %v1231, 9
    %v1379 = vpop.permute.xlu0 %1378
    %1380 = vrot.lane.b32.xlu0 %v1232, 9
    %v1381 = vpop.permute.xlu0 %1380
    %1382 = vrot.lane.b32.xlu0 %v1233, 9
    %v1383 = vpop.permute.xlu0 %1382
    %1384 = vrot.lane.b32.xlu0 %v1234, 9
    %v1385 = vpop.permute.xlu0 %1384
    %1386 = vrot.lane.b32.xlu0 %v1235, 9
    %v1387 = vpop.permute.xlu0 %1386
    %1388 = vrot.lane.b32.xlu0 %v1236, 9
    %v1389 = vpop.permute.xlu0 %1388
    %1390 = vrot.lane.b32.xlu0 %v1237, 9
    %v1391 = vpop.permute.xlu0 %1390
    %1392 = vrot.lane.b32.xlu0 %v1238, 9
    %v1393 = vpop.permute.xlu0 %1392
    %1394 = vrot.lane.b32.xlu0 %v1239, 9
    %v1395 = vpop.permute.xlu0 %1394
    %1396 = vrot.lane.b32.xlu0 %v1240, 9
    %v1397 = vpop.permute.xlu0 %1396
    %1398 = vrot.lane.b32.xlu0 %v1241, 9
    %v1399 = vpop.permute.xlu0 %1398
    %1400 = vrot.lane.b32.xlu0 %v1242, 9
    %v1401 = vpop.permute.xlu0 %1400
    %1402 = vrot.lane.b32.xlu0 %v1243, 9
    %v1403 = vpop.permute.xlu0 %1402
    %1404 = vrot.lane.b32.xlu0 %v1244, 9
    %v1405 = vpop.permute.xlu0 %1404
    %1406 = vrot.lane.b32.xlu0 %v1245, 9
    %v1407 = vpop.permute.xlu0 %1406
    %1408 = vrot.lane.b32.xlu0 %v1246, 9
    %v1409 = vpop.permute.xlu0 %1408
    %1410 = vrot.lane.b32.xlu0 %v1247, 9
    %v1411 = vpop.permute.xlu0 %1410
    %1412 = vrot.lane.b32.xlu0 %v1248, 9
    %v1413 = vpop.permute.xlu0 %1412
    %1414 = vrot.lane.b32.xlu0 %v1249, 9
    %v1415 = vpop.permute.xlu0 %1414
    %1416 = vrot.lane.b32.xlu0 %v1250, 9
    %v1417 = vpop.permute.xlu0 %1416
    %1418 = vrot.lane.b32.xlu0 %v1251, 9
    %v1419 = vpop.permute.xlu0 %1418
    %1420 = vrot.lane.b32.xlu0 %v1252, 9
    %v1421 = vpop.permute.xlu0 %1420
    %1422 = vrot.lane.b32.xlu0 %v1253, 9
    %v1423 = vpop.permute.xlu0 %1422
    %1424 = vrot.lane.b32.xlu0 %v1254, 9
    %v1425 = vpop.permute.xlu0 %1424
    %1426 = vrot.lane.b32.xlu0 %v1255, 9
    %v1427 = vpop.permute.xlu0 %1426
    %1428 = vrot.lane.b32.xlu0 %v1256, 9
    %v1429 = vpop.permute.xlu0 %1428
    %1430 = vrot.lane.b32.xlu0 %v1257, 9
    %v1431 = vpop.permute.xlu0 %1430
    %1432 = vrot.lane.b32.xlu0 %v1258, 9
    %v1433 = vpop.permute.xlu0 %1432
    %1434 = vrot.lane.b32.xlu0 %v1259, 9
    %v1435 = vpop.permute.xlu0 %1434
    %1436 = vrot.lane.b32.xlu0 %v1260, 9
    %v1437 = vpop.permute.xlu0 %1436
    %1438 = vrot.lane.b32.xlu0 %v1261, 9
    %v1439 = vpop.permute.xlu0 %1438
    %1440 = vrot.lane.b32.xlu0 %v1262, 9
    %v1441 = vpop.permute.xlu0 %1440
    %1442 = vrot.lane.b32.xlu0 %v1263, 9
    %v1443 = vpop.permute.xlu0 %1442
    %1444 = vrot.lane.b32.xlu0 %v1264, 9
    %v1445 = vpop.permute.xlu0 %1444
    %1446 = vrot.lane.b32.xlu0 %v1265, 9
    %v1447 = vpop.permute.xlu0 %1446
    %1448 = vrot.lane.b32.xlu0 %v1266, 9
    %v1449 = vpop.permute.xlu0 %1448
    %1450 = vrot.lane.b32.xlu0 %v1267, 9
    %v1451 = vpop.permute.xlu0 %1450
    %1452 = vrot.lane.b32.xlu0 %v1268, 9
    %v1453 = vpop.permute.xlu0 %1452
    %1454 = vrot.lane.b32.xlu0 %v1269, 9
    %v1455 = vpop.permute.xlu0 %1454
    %1456 = vrot.lane.b32.xlu0 %v1270, 9
    %v1457 = vpop.permute.xlu0 %1456
    %1458 = vrot.lane.b32.xlu0 %v1271, 9
    %v1459 = vpop.permute.xlu0 %1458
    %1460 = vrot.lane.b32.xlu0 %v1272, 9
    %v1461 = vpop.permute.xlu0 %1460
    %1462 = vrot.lane.b32.xlu0 %v1273, 9
    %v1463 = vpop.permute.xlu0 %1462
    %1464 = vrot.lane.b32.xlu0 %v1274, 9
    %v1465 = vpop.permute.xlu0 %1464
    %1466 = vrot.lane.b32.xlu0 %v1275, 9
    %v1467 = vpop.permute.xlu0 %1466
    %vm1532 = vcmask 97352
    %1533 = vst.msk [vmem:[#allocation3] sm:$0xff] %vm1532, %v1341
    %1534 = vst.msk [vmem:[#allocation3 + $0x8] sm:$0xff] %vm1532, %v1343
    %1535 = vst.msk [vmem:[#allocation3 + $0x10] sm:$0xff] %vm1532, %v1345
    %1536 = vst.msk [vmem:[#allocation3 + $0x18] sm:$0xff] %vm1532, %v1347
    %1537 = vst.msk [vmem:[#allocation3 + $0x20] sm:$0xff] %vm1532, %v1349
    %1538 = vst.msk [vmem:[#allocation3 + $0x28] sm:$0xff] %vm1532, %v1351
    %1539 = vst.msk [vmem:[#allocation3 + $0x30] sm:$0xff] %vm1532, %v1353
    %1540 = vst.msk [vmem:[#allocation3 + $0x38] sm:$0xff] %vm1532, %v1355
    %1541 = vst.msk [vmem:[#allocation3 + $0x40] sm:$0xff] %vm1532, %v1357
    %1542 = vst.msk [vmem:[#allocation3 + $0x48] sm:$0xff] %vm1532, %v1359
    %1543 = vst.msk [vmem:[#allocation3 + $0x50] sm:$0xff] %vm1532, %v1361
    %1544 = vst.msk [vmem:[#allocation3 + $0x58] sm:$0xff] %vm1532, %v1363
    %1545 = vst.msk [vmem:[#allocation3 + $0x60] sm:$0xff] %vm1532, %v1365
    %1546 = vst.msk [vmem:[#allocation3 + $0x68] sm:$0xff] %vm1532, %v1367
    %1547 = vst.msk [vmem:[#allocation3 + $0x70] sm:$0xff] %vm1532, %v1369
    %1548 = vst.msk [vmem:[#allocation3 + $0x78] sm:$0xff] %vm1532, %v1371
    %1549 = vst.msk [vmem:[#allocation3 + $0x80] sm:$0xff] %vm1532, %v1373
    %1550 = vst.msk [vmem:[#allocation3 + $0x88] sm:$0xff] %vm1532, %v1375
    %1551 = vst.msk [vmem:[#allocation3 + $0x90] sm:$0xff] %vm1532, %v1377
    %1552 = vst.msk [vmem:[#allocation3 + $0x98] sm:$0xff] %vm1532, %v1379
    %1553 = vst.msk [vmem:[#allocation3 + $0xa0] sm:$0xff] %vm1532, %v1381
    %1554 = vst.msk [vmem:[#allocation3 + $0xa8] sm:$0xff] %vm1532, %v1383
    %1555 = vst.msk [vmem:[#allocation3 + $0xb0] sm:$0xff] %vm1532, %v1385
    %1556 = vst.msk [vmem:[#allocation3 + $0xb8] sm:$0xff] %vm1532, %v1387
    %1557 = vst.msk [vmem:[#allocation3 + $0xc0] sm:$0xff] %vm1532, %v1389
    %1558 = vst.msk [vmem:[#allocation3 + $0xc8] sm:$0xff] %vm1532, %v1391
    %1559 = vst.msk [vmem:[#allocation3 + $0xd0] sm:$0xff] %vm1532, %v1393
    %1560 = vst.msk [vmem:[#allocation3 + $0xd8] sm:$0xff] %vm1532, %v1395
    %1561 = vst.msk [vmem:[#allocation3 + $0xe0] sm:$0xff] %vm1532, %v1397
    %1562 = vst.msk [vmem:[#allocation3 + $0xe8] sm:$0xff] %vm1532, %v1399
    %1563 = vst.msk [vmem:[#allocation3 + $0xf0] sm:$0xff] %vm1532, %v1401
    %1564 = vst.msk [vmem:[#allocation3 + $0xf8] sm:$0xff] %vm1532, %v1403
    %1565 = vst.msk [vmem:[#allocation3 + $0x100] sm:$0xff] %vm1532, %v1405
    %1566 = vst.msk [vmem:[#allocation3 + $0x108] sm:$0xff] %vm1532, %v1407
    %1567 = vst.msk [vmem:[#allocation3 + $0x110] sm:$0xff] %vm1532, %v1409
    %1568 = vst.msk [vmem:[#allocation3 + $0x118] sm:$0xff] %vm1532, %v1411
    %1569 = vst.msk [vmem:[#allocation3 + $0x120] sm:$0xff] %vm1532, %v1413
    %1570 = vst.msk [vmem:[#allocation3 + $0x128] sm:$0xff] %vm1532, %v1415
    %1571 = vst.msk [vmem:[#allocation3 + $0x130] sm:$0xff] %vm1532, %v1417
    %1572 = vst.msk [vmem:[#allocation3 + $0x138] sm:$0xff] %vm1532, %v1419
    %1573 = vst.msk [vmem:[#allocation3 + $0x140] sm:$0xff] %vm1532, %v1421
    %1574 = vst.msk [vmem:[#allocation3 + $0x148] sm:$0xff] %vm1532, %v1423
    %1575 = vst.msk [vmem:[#allocation3 + $0x150] sm:$0xff] %vm1532, %v1425
    %1576 = vst.msk [vmem:[#allocation3 + $0x158] sm:$0xff] %vm1532, %v1427
    %1577 = vst.msk [vmem:[#allocation3 + $0x160] sm:$0xff] %vm1532, %v1429
    %1578 = vst.msk [vmem:[#allocation3 + $0x168] sm:$0xff] %vm1532, %v1431
    %1579 = vst.msk [vmem:[#allocation3 + $0x170] sm:$0xff] %vm1532, %v1433
    %1580 = vst.msk [vmem:[#allocation3 + $0x178] sm:$0xff] %vm1532, %v1435
    %1581 = vst.msk [vmem:[#allocation3 + $0x180] sm:$0xff] %vm1532, %v1437
    %1582 = vst.msk [vmem:[#allocation3 + $0x188] sm:$0xff] %vm1532, %v1439
    %1583 = vst.msk [vmem:[#allocation3 + $0x190] sm:$0xff] %vm1532, %v1441
    %1584 = vst.msk [vmem:[#allocation3 + $0x198] sm:$0xff] %vm1532, %v1443
    %1585 = vst.msk [vmem:[#allocation3 + $0x1a0] sm:$0xff] %vm1532, %v1445
    %1586 = vst.msk [vmem:[#allocation3 + $0x1a8] sm:$0xff] %vm1532, %v1447
    %1587 = vst.msk [vmem:[#allocation3 + $0x1b0] sm:$0xff] %vm1532, %v1449
    %1588 = vst.msk [vmem:[#allocation3 + $0x1b8] sm:$0xff] %vm1532, %v1451
    %1589 = vst.msk [vmem:[#allocation3 + $0x1c0] sm:$0xff] %vm1532, %v1453
    %1590 = vst.msk [vmem:[#allocation3 + $0x1c8] sm:$0xff] %vm1532, %v1455
    %1591 = vst.msk [vmem:[#allocation3 + $0x1d0] sm:$0xff] %vm1532, %v1457
    %1592 = vst.msk [vmem:[#allocation3 + $0x1d8] sm:$0xff] %vm1532, %v1459
    %1593 = vst.msk [vmem:[#allocation3 + $0x1e0] sm:$0xff] %vm1532, %v1461
    %1594 = vst.msk [vmem:[#allocation3 + $0x1e8] sm:$0xff] %vm1532, %v1463
    %1595 = vst.msk [vmem:[#allocation3 + $0x1f0] sm:$0xff] %vm1532, %v1465
    %1596 = vst.msk [vmem:[#allocation3 + $0x1f8] sm:$0xff] %vm1532, %v1467
    %v1597 = vld [vmem:[%s249 + $0x8] sm:$0xff]
    %v1598 = vld [vmem:[%s249 + $0x10] sm:$0xff]
    %v1599 = vld [vmem:[%s249 + $0x28] sm:$0xff]
    %v1600 = vld [vmem:[%s249 + $0x30] sm:$0xff]
    %v1601 = vld [vmem:[%s249 + $0x48] sm:$0xff]
    %v1602 = vld [vmem:[%s249 + $0x50] sm:$0xff]
    %v1603 = vld [vmem:[%s249 + $0x68] sm:$0xff]
    %v1604 = vld [vmem:[%s249 + $0x70] sm:$0xff]
    %v1605 = vld [vmem:[%s249 + $0x88] sm:$0xff]
    %v1606 = vld [vmem:[%s249 + $0x90] sm:$0xff]
    %v1607 = vld [vmem:[%s249 + $0xa8] sm:$0xff]
    %v1608 = vld [vmem:[%s249 + $0xb0] sm:$0xff]
    %v1609 = vld [vmem:[%s249 + $0xc8] sm:$0xff]
    %v1610 = vld [vmem:[%s249 + $0xd0] sm:$0xff]
    %v1611 = vld [vmem:[%s249 + $0xe8] sm:$0xff]
    %v1612 = vld [vmem:[%s249 + $0xf0] sm:$0xff]
    %v1613 = vld [vmem:[%s249 + $0x108] sm:$0xff]
    %v1614 = vld [vmem:[%s249 + $0x110] sm:$0xff]
    %v1615 = vld [vmem:[%s249 + $0x128] sm:$0xff]
    %v1616 = vld [vmem:[%s249 + $0x130] sm:$0xff]
    %v1617 = vld [vmem:[%s249 + $0x148] sm:$0xff]
    %v1618 = vld [vmem:[%s249 + $0x150] sm:$0xff]
    %v1619 = vld [vmem:[%s249 + $0x168] sm:$0xff]
    %v1620 = vld [vmem:[%s249 + $0x170] sm:$0xff]
    %v1621 = vld [vmem:[%s249 + $0x188] sm:$0xff]
    %v1622 = vld [vmem:[%s249 + $0x190] sm:$0xff]
    %v1623 = vld [vmem:[%s249 + $0x1a8] sm:$0xff]
    %v1624 = vld [vmem:[%s249 + $0x1b0] sm:$0xff]
    %v1625 = vld [vmem:[%s249 + $0x1c8] sm:$0xff]
    %v1626 = vld [vmem:[%s249 + $0x1d0] sm:$0xff]
    %v1627 = vld [vmem:[%s249 + $0x1e8] sm:$0xff]
    %v1628 = vld [vmem:[%s249 + $0x1f0] sm:$0xff]
    %v1629 = vld [vmem:[%s249 + $0x248] sm:$0xff]
    %v1630 = vld [vmem:[%s249 + $0x250] sm:$0xff]
    %v1631 = vld [vmem:[%s249 + $0x268] sm:$0xff]
    %v1632 = vld [vmem:[%s249 + $0x270] sm:$0xff]
    %v1633 = vld [vmem:[%s249 + $0x288] sm:$0xff]
    %v1634 = vld [vmem:[%s249 + $0x290] sm:$0xff]
    %v1635 = vld [vmem:[%s249 + $0x2a8] sm:$0xff]
    %v1636 = vld [vmem:[%s249 + $0x2b0] sm:$0xff]
    %v1637 = vld [vmem:[%s249 + $0x2c8] sm:$0xff]
    %v1638 = vld [vmem:[%s249 + $0x2d0] sm:$0xff]
    %v1639 = vld [vmem:[%s249 + $0x2e8] sm:$0xff]
    %v1640 = vld [vmem:[%s249 + $0x2f0] sm:$0xff]
    %v1641 = vld [vmem:[%s249 + $0x308] sm:$0xff]
    %v1642 = vld [vmem:[%s249 + $0x310] sm:$0xff]
    %v1643 = vld [vmem:[%s249 + $0x328] sm:$0xff]
    %v1644 = vld [vmem:[%s249 + $0x330] sm:$0xff]
    %v1645 = vld [vmem:[%s249 + $0x348] sm:$0xff]
    %v1646 = vld [vmem:[%s249 + $0x350] sm:$0xff]
    %v1647 = vld [vmem:[%s249 + $0x368] sm:$0xff]
    %v1648 = vld [vmem:[%s249 + $0x370] sm:$0xff]
    %v1649 = vld [vmem:[%s249 + $0x388] sm:$0xff]
    %v1650 = vld [vmem:[%s249 + $0x390] sm:$0xff]
    %v1651 = vld [vmem:[%s249 + $0x3a8] sm:$0xff]
    %v1652 = vld [vmem:[%s249 + $0x3b0] sm:$0xff]
    %v1653 = vld [vmem:[%s249 + $0x3c8] sm:$0xff]
    %v1654 = vld [vmem:[%s249 + $0x3d0] sm:$0xff]
    %v1655 = vld [vmem:[%s249 + $0x3e8] sm:$0xff]
    %v1656 = vld [vmem:[%s249 + $0x3f0] sm:$0xff]
    %v1657 = vld [vmem:[%s249 + $0x408] sm:$0xff]
    %v1658 = vld [vmem:[%s249 + $0x410] sm:$0xff]
    %v1659 = vld [vmem:[%s249 + $0x428] sm:$0xff]
    %v1660 = vld [vmem:[%s249 + $0x430] sm:$0xff]
    %1725 = vrot.lane.b32.xlu0 %v1597, 12
    %v1726 = vpop.permute.xlu0 %1725
    %1727 = vrot.lane.b32.xlu0 %v1598, 12
    %v1728 = vpop.permute.xlu0 %1727
    %1729 = vrot.lane.b32.xlu0 %v1599, 12
    %v1730 = vpop.permute.xlu0 %1729
    %1731 = vrot.lane.b32.xlu0 %v1600, 12
    %v1732 = vpop.permute.xlu0 %1731
    %1733 = vrot.lane.b32.xlu0 %v1601, 12
    %v1734 = vpop.permute.xlu0 %1733
    %1735 = vrot.lane.b32.xlu0 %v1602, 12
    %v1736 = vpop.permute.xlu0 %1735
    %1737 = vrot.lane.b32.xlu0 %v1603, 12
    %v1738 = vpop.permute.xlu0 %1737
    %1739 = vrot.lane.b32.xlu0 %v1604, 12
    %v1740 = vpop.permute.xlu0 %1739
    %1741 = vrot.lane.b32.xlu0 %v1605, 12
    %v1742 = vpop.permute.xlu0 %1741
    %1743 = vrot.lane.b32.xlu0 %v1606, 12
    %v1744 = vpop.permute.xlu0 %1743
    %1745 = vrot.lane.b32.xlu0 %v1607, 12
    %v1746 = vpop.permute.xlu0 %1745
    %1747 = vrot.lane.b32.xlu0 %v1608, 12
    %v1748 = vpop.permute.xlu0 %1747
    %1749 = vrot.lane.b32.xlu0 %v1609, 12
    %v1750 = vpop.permute.xlu0 %1749
    %1751 = vrot.lane.b32.xlu0 %v1610, 12
    %v1752 = vpop.permute.xlu0 %1751
    %1753 = vrot.lane.b32.xlu0 %v1611, 12
    %v1754 = vpop.permute.xlu0 %1753
    %1755 = vrot.lane.b32.xlu0 %v1612, 12
    %v1756 = vpop.permute.xlu0 %1755
    %1757 = vrot.lane.b32.xlu0 %v1613, 12
    %v1758 = vpop.permute.xlu0 %1757
    %1759 = vrot.lane.b32.xlu0 %v1614, 12
    %v1760 = vpop.permute.xlu0 %1759
    %1761 = vrot.lane.b32.xlu0 %v1615, 12
    %v1762 = vpop.permute.xlu0 %1761
    %1763 = vrot.lane.b32.xlu0 %v1616, 12
    %v1764 = vpop.permute.xlu0 %1763
    %1765 = vrot.lane.b32.xlu0 %v1617, 12
    %v1766 = vpop.permute.xlu0 %1765
    %1767 = vrot.lane.b32.xlu0 %v1618, 12
    %v1768 = vpop.permute.xlu0 %1767
    %1769 = vrot.lane.b32.xlu0 %v1619, 12
    %v1770 = vpop.permute.xlu0 %1769
    %1771 = vrot.lane.b32.xlu0 %v1620, 12
    %v1772 = vpop.permute.xlu0 %1771
    %1773 = vrot.lane.b32.xlu0 %v1621, 12
    %v1774 = vpop.permute.xlu0 %1773
    %1775 = vrot.lane.b32.xlu0 %v1622, 12
    %v1776 = vpop.permute.xlu0 %1775
    %1777 = vrot.lane.b32.xlu0 %v1623, 12
    %v1778 = vpop.permute.xlu0 %1777
    %1779 = vrot.lane.b32.xlu0 %v1624, 12
    %v1780 = vpop.permute.xlu0 %1779
    %1781 = vrot.lane.b32.xlu0 %v1625, 12
    %v1782 = vpop.permute.xlu0 %1781
    %1783 = vrot.lane.b32.xlu0 %v1626, 12
    %v1784 = vpop.permute.xlu0 %1783
    %1785 = vrot.lane.b32.xlu0 %v1627, 12
    %v1786 = vpop.permute.xlu0 %1785
    %1787 = vrot.lane.b32.xlu0 %v1628, 12
    %v1788 = vpop.permute.xlu0 %1787
    %1789 = vrot.lane.b32.xlu0 %v1629, 12
    %v1790 = vpop.permute.xlu0 %1789
    %1791 = vrot.lane.b32.xlu0 %v1630, 12
    %v1792 = vpop.permute.xlu0 %1791
    %1793 = vrot.lane.b32.xlu0 %v1631, 12
    %v1794 = vpop.permute.xlu0 %1793
    %1795 = vrot.lane.b32.xlu0 %v1632, 12
    %v1796 = vpop.permute.xlu0 %1795
    %1797 = vrot.lane.b32.xlu0 %v1633, 12
    %v1798 = vpop.permute.xlu0 %1797
    %1799 = vrot.lane.b32.xlu0 %v1634, 12
    %v1800 = vpop.permute.xlu0 %1799
    %1801 = vrot.lane.b32.xlu0 %v1635, 12
    %v1802 = vpop.permute.xlu0 %1801
    %1803 = vrot.lane.b32.xlu0 %v1636, 12
    %v1804 = vpop.permute.xlu0 %1803
    %1805 = vrot.lane.b32.xlu0 %v1637, 12
    %v1806 = vpop.permute.xlu0 %1805
    %1807 = vrot.lane.b32.xlu0 %v1638, 12
    %v1808 = vpop.permute.xlu0 %1807
    %1809 = vrot.lane.b32.xlu0 %v1639, 12
    %v1810 = vpop.permute.xlu0 %1809
    %1811 = vrot.lane.b32.xlu0 %v1640, 12
    %v1812 = vpop.permute.xlu0 %1811
    %1813 = vrot.lane.b32.xlu0 %v1641, 12
    %v1814 = vpop.permute.xlu0 %1813
    %1815 = vrot.lane.b32.xlu0 %v1642, 12
    %v1816 = vpop.permute.xlu0 %1815
    %1817 = vrot.lane.b32.xlu0 %v1643, 12
    %v1818 = vpop.permute.xlu0 %1817
    %1819 = vrot.lane.b32.xlu0 %v1644, 12
    %v1820 = vpop.permute.xlu0 %1819
    %1821 = vrot.lane.b32.xlu0 %v1645, 12
    %v1822 = vpop.permute.xlu0 %1821
    %1823 = vrot.lane.b32.xlu0 %v1646, 12
    %v1824 = vpop.permute.xlu0 %1823
    %1825 = vrot.lane.b32.xlu0 %v1647, 12
    %v1826 = vpop.permute.xlu0 %1825
    %1827 = vrot.lane.b32.xlu0 %v1648, 12
    %v1828 = vpop.permute.xlu0 %1827
    %1829 = vrot.lane.b32.xlu0 %v1649, 12
    %v1830 = vpop.permute.xlu0 %1829
    %1831 = vrot.lane.b32.xlu0 %v1650, 12
    %v1832 = vpop.permute.xlu0 %1831
    %1833 = vrot.lane.b32.xlu0 %v1651, 12
    %v1834 = vpop.permute.xlu0 %1833
    %1835 = vrot.lane.b32.xlu0 %v1652, 12
    %v1836 = vpop.permute.xlu0 %1835
    %1837 = vrot.lane.b32.xlu0 %v1653, 12
    %v1838 = vpop.permute.xlu0 %1837
    %1839 = vrot.lane.b32.xlu0 %v1654, 12
    %v1840 = vpop.permute.xlu0 %1839
    %1841 = vrot.lane.b32.xlu0 %v1655, 12
    %v1842 = vpop.permute.xlu0 %1841
    %1843 = vrot.lane.b32.xlu0 %v1656, 12
    %v1844 = vpop.permute.xlu0 %1843
    %1845 = vrot.lane.b32.xlu0 %v1657, 12
    %v1846 = vpop.permute.xlu0 %1845
    %1847 = vrot.lane.b32.xlu0 %v1658, 12
    %v1848 = vpop.permute.xlu0 %1847
    %1849 = vrot.lane.b32.xlu0 %v1659, 12
    %v1850 = vpop.permute.xlu0 %1849
    %1851 = vrot.lane.b32.xlu0 %v1660, 12
    %v1852 = vpop.permute.xlu0 %1851
    %vm1917 = vcmask 121952
    %1918 = vst.msk [vmem:[#allocation3] sm:$0xff] %vm1917, %v1726
    %1919 = vst.msk [vmem:[#allocation3 + $0x8] sm:$0xff] %vm1917, %v1728
    %1920 = vst.msk [vmem:[#allocation3 + $0x10] sm:$0xff] %vm1917, %v1730
    %1921 = vst.msk [vmem:[#allocation3 + $0x18] sm:$0xff] %vm1917, %v1732
    %1922 = vst.msk [vmem:[#allocation3 + $0x20] sm:$0xff] %vm1917, %v1734
    %1923 = vst.msk [vmem:[#allocation3 + $0x28] sm:$0xff] %vm1917, %v1736
    %1924 = vst.msk [vmem:[#allocation3 + $0x30] sm:$0xff] %vm1917, %v1738
    %1925 = vst.msk [vmem:[#allocation3 + $0x38] sm:$0xff] %vm1917, %v1740
    %1926 = vst.msk [vmem:[#allocation3 + $0x40] sm:$0xff] %vm1917, %v1742
    %1927 = vst.msk [vmem:[#allocation3 + $0x48] sm:$0xff] %vm1917, %v1744
    %1928 = vst.msk [vmem:[#allocation3 + $0x50] sm:$0xff] %vm1917, %v1746
    %1929 = vst.msk [vmem:[#allocation3 + $0x58] sm:$0xff] %vm1917, %v1748
    %1930 = vst.msk [vmem:[#allocation3 + $0x60] sm:$0xff] %vm1917, %v1750
    %1931 = vst.msk [vmem:[#allocation3 + $0x68] sm:$0xff] %vm1917, %v1752
    %1932 = vst.msk [vmem:[#allocation3 + $0x70] sm:$0xff] %vm1917, %v1754
    %1933 = vst.msk [vmem:[#allocation3 + $0x78] sm:$0xff] %vm1917, %v1756
    %1934 = vst.msk [vmem:[#allocation3 + $0x80] sm:$0xff] %vm1917, %v1758
    %1935 = vst.msk [vmem:[#allocation3 + $0x88] sm:$0xff] %vm1917, %v1760
    %1936 = vst.msk [vmem:[#allocation3 + $0x90] sm:$0xff] %vm1917, %v1762
    %1937 = vst.msk [vmem:[#allocation3 + $0x98] sm:$0xff] %vm1917, %v1764
    %1938 = vst.msk [vmem:[#allocation3 + $0xa0] sm:$0xff] %vm1917, %v1766
    %1939 = vst.msk [vmem:[#allocation3 + $0xa8] sm:$0xff] %vm1917, %v1768
    %1940 = vst.msk [vmem:[#allocation3 + $0xb0] sm:$0xff] %vm1917, %v1770
    %1941 = vst.msk [vmem:[#allocation3 + $0xb8] sm:$0xff] %vm1917, %v1772
    %1942 = vst.msk [vmem:[#allocation3 + $0xc0] sm:$0xff] %vm1917, %v1774
    %1943 = vst.msk [vmem:[#allocation3 + $0xc8] sm:$0xff] %vm1917, %v1776
    %1944 = vst.msk [vmem:[#allocation3 + $0xd0] sm:$0xff] %vm1917, %v1778
    %1945 = vst.msk [vmem:[#allocation3 + $0xd8] sm:$0xff] %vm1917, %v1780
    %1946 = vst.msk [vmem:[#allocation3 + $0xe0] sm:$0xff] %vm1917, %v1782
    %1947 = vst.msk [vmem:[#allocation3 + $0xe8] sm:$0xff] %vm1917, %v1784
    %1948 = vst.msk [vmem:[#allocation3 + $0xf0] sm:$0xff] %vm1917, %v1786
    %1949 = vst.msk [vmem:[#allocation3 + $0xf8] sm:$0xff] %vm1917, %v1788
    %1950 = vst.msk [vmem:[#allocation3 + $0x100] sm:$0xff] %vm1917, %v1790
    %1951 = vst.msk [vmem:[#allocation3 + $0x108] sm:$0xff] %vm1917, %v1792
    %1952 = vst.msk [vmem:[#allocation3 + $0x110] sm:$0xff] %vm1917, %v1794
    %1953 = vst.msk [vmem:[#allocation3 + $0x118] sm:$0xff] %vm1917, %v1796
    %1954 = vst.msk [vmem:[#allocation3 + $0x120] sm:$0xff] %vm1917, %v1798
    %1955 = vst.msk [vmem:[#allocation3 + $0x128] sm:$0xff] %vm1917, %v1800
    %1956 = vst.msk [vmem:[#allocation3 + $0x130] sm:$0xff] %vm1917, %v1802
    %1957 = vst.msk [vmem:[#allocation3 + $0x138] sm:$0xff] %vm1917, %v1804
    %1958 = vst.msk [vmem:[#allocation3 + $0x140] sm:$0xff] %vm1917, %v1806
    %1959 = vst.msk [vmem:[#allocation3 + $0x148] sm:$0xff] %vm1917, %v1808
    %1960 = vst.msk [vmem:[#allocation3 + $0x150] sm:$0xff] %vm1917, %v1810
    %1961 = vst.msk [vmem:[#allocation3 + $0x158] sm:$0xff] %vm1917, %v1812
    %1962 = vst.msk [vmem:[#allocation3 + $0x160] sm:$0xff] %vm1917, %v1814
    %1963 = vst.msk [vmem:[#allocation3 + $0x168] sm:$0xff] %vm1917, %v1816
    %1964 = vst.msk [vmem:[#allocation3 + $0x170] sm:$0xff] %vm1917, %v1818
    %1965 = vst.msk [vmem:[#allocation3 + $0x178] sm:$0xff] %vm1917, %v1820
    %1966 = vst.msk [vmem:[#allocation3 + $0x180] sm:$0xff] %vm1917, %v1822
    %1967 = vst.msk [vmem:[#allocation3 + $0x188] sm:$0xff] %vm1917, %v1824
    %1968 = vst.msk [vmem:[#allocation3 + $0x190] sm:$0xff] %vm1917, %v1826
    %1969 = vst.msk [vmem:[#allocation3 + $0x198] sm:$0xff] %vm1917, %v1828
    %1970 = vst.msk [vmem:[#allocation3 + $0x1a0] sm:$0xff] %vm1917, %v1830
    %1971 = vst.msk [vmem:[#allocation3 + $0x1a8] sm:$0xff] %vm1917, %v1832
    %1972 = vst.msk [vmem:[#allocation3 + $0x1b0] sm:$0xff] %vm1917, %v1834
    %1973 = vst.msk [vmem:[#allocation3 + $0x1b8] sm:$0xff] %vm1917, %v1836
    %1974 = vst.msk [vmem:[#allocation3 + $0x1c0] sm:$0xff] %vm1917, %v1838
    %1975 = vst.msk [vmem:[#allocation3 + $0x1c8] sm:$0xff] %vm1917, %v1840
    %1976 = vst.msk [vmem:[#allocation3 + $0x1d0] sm:$0xff] %vm1917, %v1842
    %1977 = vst.msk [vmem:[#allocation3 + $0x1d8] sm:$0xff] %vm1917, %v1844
    %1978 = vst.msk [vmem:[#allocation3 + $0x1e0] sm:$0xff] %vm1917, %v1846
    %1979 = vst.msk [vmem:[#allocation3 + $0x1e8] sm:$0xff] %vm1917, %v1848
    %1980 = vst.msk [vmem:[#allocation3 + $0x1f0] sm:$0xff] %vm1917, %v1850
    %1981 = vst.msk [vmem:[#allocation3 + $0x1f8] sm:$0xff] %vm1917, %v1852
    %v1982 = vld [vmem:[%s249 + $0x9] sm:$0xff]
    %v1983 = vld [vmem:[%s249 + $0x11] sm:$0xff]
    %v1984 = vld [vmem:[%s249 + $0x29] sm:$0xff]
    %v1985 = vld [vmem:[%s249 + $0x31] sm:$0xff]
    %v1986 = vld [vmem:[%s249 + $0x49] sm:$0xff]
    %v1987 = vld [vmem:[%s249 + $0x51] sm:$0xff]
    %v1988 = vld [vmem:[%s249 + $0x69] sm:$0xff]
    %v1989 = vld [vmem:[%s249 + $0x71] sm:$0xff]
    %v1990 = vld [vmem:[%s249 + $0x89] sm:$0xff]
    %v1991 = vld [vmem:[%s249 + $0x91] sm:$0xff]
    %v1992 = vld [vmem:[%s249 + $0xa9] sm:$0xff]
    %v1993 = vld [vmem:[%s249 + $0xb1] sm:$0xff]
    %v1994 = vld [vmem:[%s249 + $0xc9] sm:$0xff]
    %v1995 = vld [vmem:[%s249 + $0xd1] sm:$0xff]
    %v1996 = vld [vmem:[%s249 + $0xe9] sm:$0xff]
    %v1997 = vld [vmem:[%s249 + $0xf1] sm:$0xff]
    %v1998 = vld [vmem:[%s249 + $0x109] sm:$0xff]
    %v1999 = vld [vmem:[%s249 + $0x111] sm:$0xff]
    %v2000 = vld [vmem:[%s249 + $0x129] sm:$0xff]
    %v2001 = vld [vmem:[%s249 + $0x131] sm:$0xff]
    %v2002 = vld [vmem:[%s249 + $0x149] sm:$0xff]
    %v2003 = vld [vmem:[%s249 + $0x151] sm:$0xff]
    %v2004 = vld [vmem:[%s249 + $0x169] sm:$0xff]
    %v2005 = vld [vmem:[%s249 + $0x171] sm:$0xff]
    %v2006 = vld [vmem:[%s249 + $0x189] sm:$0xff]
    %v2007 = vld [vmem:[%s249 + $0x191] sm:$0xff]
    %v2008 = vld [vmem:[%s249 + $0x1a9] sm:$0xff]
    %v2009 = vld [vmem:[%s249 + $0x1b1] sm:$0xff]
    %v2010 = vld [vmem:[%s249 + $0x1c9] sm:$0xff]
    %v2011 = vld [vmem:[%s249 + $0x1d1] sm:$0xff]
    %v2012 = vld [vmem:[%s249 + $0x1e9] sm:$0xff]
    %v2013 = vld [vmem:[%s249 + $0x1f1] sm:$0xff]
    %v2014 = vld [vmem:[%s249 + $0x249] sm:$0xff]
    %v2015 = vld [vmem:[%s249 + $0x251] sm:$0xff]
    %v2016 = vld [vmem:[%s249 + $0x269] sm:$0xff]
    %v2017 = vld [vmem:[%s249 + $0x271] sm:$0xff]
    %v2018 = vld [vmem:[%s249 + $0x289] sm:$0xff]
    %v2019 = vld [vmem:[%s249 + $0x291] sm:$0xff]
    %v2020 = vld [vmem:[%s249 + $0x2a9] sm:$0xff]
    %v2021 = vld [vmem:[%s249 + $0x2b1] sm:$0xff]
    %v2022 = vld [vmem:[%s249 + $0x2c9] sm:$0xff]
    %v2023 = vld [vmem:[%s249 + $0x2d1] sm:$0xff]
    %v2024 = vld [vmem:[%s249 + $0x2e9] sm:$0xff]
    %v2025 = vld [vmem:[%s249 + $0x2f1] sm:$0xff]
    %v2026 = vld [vmem:[%s249 + $0x309] sm:$0xff]
    %v2027 = vld [vmem:[%s249 + $0x311] sm:$0xff]
    %v2028 = vld [vmem:[%s249 + $0x329] sm:$0xff]
    %v2029 = vld [vmem:[%s249 + $0x331] sm:$0xff]
    %v2030 = vld [vmem:[%s249 + $0x349] sm:$0xff]
    %v2031 = vld [vmem:[%s249 + $0x351] sm:$0xff]
    %v2032 = vld [vmem:[%s249 + $0x369] sm:$0xff]
    %v2033 = vld [vmem:[%s249 + $0x371] sm:$0xff]
    %v2034 = vld [vmem:[%s249 + $0x389] sm:$0xff]
    %v2035 = vld [vmem:[%s249 + $0x391] sm:$0xff]
    %v2036 = vld [vmem:[%s249 + $0x3a9] sm:$0xff]
    %v2037 = vld [vmem:[%s249 + $0x3b1] sm:$0xff]
    %v2038 = vld [vmem:[%s249 + $0x3c9] sm:$0xff]
    %v2039 = vld [vmem:[%s249 + $0x3d1] sm:$0xff]
    %v2040 = vld [vmem:[%s249 + $0x3e9] sm:$0xff]
    %v2041 = vld [vmem:[%s249 + $0x3f1] sm:$0xff]
    %v2042 = vld [vmem:[%s249 + $0x409] sm:$0xff]
    %v2043 = vld [vmem:[%s249 + $0x411] sm:$0xff]
    %v2044 = vld [vmem:[%s249 + $0x429] sm:$0xff]
    %v2045 = vld [vmem:[%s249 + $0x431] sm:$0xff]
    %2110 = vrot.lane.b32.xlu0 %v1982, 15
    %v2111 = vpop.permute.xlu0 %2110
    %2112 = vrot.lane.b32.xlu0 %v1983, 15
    %v2113 = vpop.permute.xlu0 %2112
    %2114 = vrot.lane.b32.xlu0 %v1984, 15
    %v2115 = vpop.permute.xlu0 %2114
    %2116 = vrot.lane.b32.xlu0 %v1985, 15
    %v2117 = vpop.permute.xlu0 %2116
    %2118 = vrot.lane.b32.xlu0 %v1986, 15
    %v2119 = vpop.permute.xlu0 %2118
    %2120 = vrot.lane.b32.xlu0 %v1987, 15
    %v2121 = vpop.permute.xlu0 %2120
    %2122 = vrot.lane.b32.xlu0 %v1988, 15
    %v2123 = vpop.permute.xlu0 %2122
    %2124 = vrot.lane.b32.xlu0 %v1989, 15
    %v2125 = vpop.permute.xlu0 %2124
    %2126 = vrot.lane.b32.xlu0 %v1990, 15
    %v2127 = vpop.permute.xlu0 %2126
    %2128 = vrot.lane.b32.xlu0 %v1991, 15
    %v2129 = vpop.permute.xlu0 %2128
    %2130 = vrot.lane.b32.xlu0 %v1992, 15
    %v2131 = vpop.permute.xlu0 %2130
    %2132 = vrot.lane.b32.xlu0 %v1993, 15
    %v2133 = vpop.permute.xlu0 %2132
    %2134 = vrot.lane.b32.xlu0 %v1994, 15
    %v2135 = vpop.permute.xlu0 %2134
    %2136 = vrot.lane.b32.xlu0 %v1995, 15
    %v2137 = vpop.permute.xlu0 %2136
    %2138 = vrot.lane.b32.xlu0 %v1996, 15
    %v2139 = vpop.permute.xlu0 %2138
    %2140 = vrot.lane.b32.xlu0 %v1997, 15
    %v2141 = vpop.permute.xlu0 %2140
    %2142 = vrot.lane.b32.xlu0 %v1998, 15
    %v2143 = vpop.permute.xlu0 %2142
    %2144 = vrot.lane.b32.xlu0 %v1999, 15
    %v2145 = vpop.permute.xlu0 %2144
    %2146 = vrot.lane.b32.xlu0 %v2000, 15
    %v2147 = vpop.permute.xlu0 %2146
    %2148 = vrot.lane.b32.xlu0 %v2001, 15
    %v2149 = vpop.permute.xlu0 %2148
    %2150 = vrot.lane.b32.xlu0 %v2002, 15
    %v2151 = vpop.permute.xlu0 %2150
    %2152 = vrot.lane.b32.xlu0 %v2003, 15
    %v2153 = vpop.permute.xlu0 %2152
    %2154 = vrot.lane.b32.xlu0 %v2004, 15
    %v2155 = vpop.permute.xlu0 %2154
    %2156 = vrot.lane.b32.xlu0 %v2005, 15
    %v2157 = vpop.permute.xlu0 %2156
    %2158 = vrot.lane.b32.xlu0 %v2006, 15
    %v2159 = vpop.permute.xlu0 %2158
    %2160 = vrot.lane.b32.xlu0 %v2007, 15
    %v2161 = vpop.permute.xlu0 %2160
    %2162 = vrot.lane.b32.xlu0 %v2008, 15
    %v2163 = vpop.permute.xlu0 %2162
    %2164 = vrot.lane.b32.xlu0 %v2009, 15
    %v2165 = vpop.permute.xlu0 %2164
    %2166 = vrot.lane.b32.xlu0 %v2010, 15
    %v2167 = vpop.permute.xlu0 %2166
    %2168 = vrot.lane.b32.xlu0 %v2011, 15
    %v2169 = vpop.permute.xlu0 %2168
    %2170 = vrot.lane.b32.xlu0 %v2012, 15
    %v2171 = vpop.permute.xlu0 %2170
    %2172 = vrot.lane.b32.xlu0 %v2013, 15
    %v2173 = vpop.permute.xlu0 %2172
    %2174 = vrot.lane.b32.xlu0 %v2014, 15
    %v2175 = vpop.permute.xlu0 %2174
    %2176 = vrot.lane.b32.xlu0 %v2015, 15
    %v2177 = vpop.permute.xlu0 %2176
    %2178 = vrot.lane.b32.xlu0 %v2016, 15
    %v2179 = vpop.permute.xlu0 %2178
    %2180 = vrot.lane.b32.xlu0 %v2017, 15
    %v2181 = vpop.permute.xlu0 %2180
    %2182 = vrot.lane.b32.xlu0 %v2018, 15
    %v2183 = vpop.permute.xlu0 %2182
    %2184 = vrot.lane.b32.xlu0 %v2019, 15
    %v2185 = vpop.permute.xlu0 %2184
    %2186 = vrot.lane.b32.xlu0 %v2020, 15
    %v2187 = vpop.permute.xlu0 %2186
    %2188 = vrot.lane.b32.xlu0 %v2021, 15
    %v2189 = vpop.permute.xlu0 %2188
    %2190 = vrot.lane.b32.xlu0 %v2022, 15
    %v2191 = vpop.permute.xlu0 %2190
    %2192 = vrot.lane.b32.xlu0 %v2023, 15
    %v2193 = vpop.permute.xlu0 %2192
    %2194 = vrot.lane.b32.xlu0 %v2024, 15
    %v2195 = vpop.permute.xlu0 %2194
    %2196 = vrot.lane.b32.xlu0 %v2025, 15
    %v2197 = vpop.permute.xlu0 %2196
    %2198 = vrot.lane.b32.xlu0 %v2026, 15
    %v2199 = vpop.permute.xlu0 %2198
    %2200 = vrot.lane.b32.xlu0 %v2027, 15
    %v2201 = vpop.permute.xlu0 %2200
    %2202 = vrot.lane.b32.xlu0 %v2028, 15
    %v2203 = vpop.permute.xlu0 %2202
    %2204 = vrot.lane.b32.xlu0 %v2029, 15
    %v2205 = vpop.permute.xlu0 %2204
    %2206 = vrot.lane.b32.xlu0 %v2030, 15
    %v2207 = vpop.permute.xlu0 %2206
    %2208 = vrot.lane.b32.xlu0 %v2031, 15
    %v2209 = vpop.permute.xlu0 %2208
    %2210 = vrot.lane.b32.xlu0 %v2032, 15
    %v2211 = vpop.permute.xlu0 %2210
    %2212 = vrot.lane.b32.xlu0 %v2033, 15
    %v2213 = vpop.permute.xlu0 %2212
    %2214 = vrot.lane.b32.xlu0 %v2034, 15
    %v2215 = vpop.permute.xlu0 %2214
    %2216 = vrot.lane.b32.xlu0 %v2035, 15
    %v2217 = vpop.permute.xlu0 %2216
    %2218 = vrot.lane.b32.xlu0 %v2036, 15
    %v2219 = vpop.permute.xlu0 %2218
    %2220 = vrot.lane.b32.xlu0 %v2037, 15
    %v2221 = vpop.permute.xlu0 %2220
    %2222 = vrot.lane.b32.xlu0 %v2038, 15
    %v2223 = vpop.permute.xlu0 %2222
    %2224 = vrot.lane.b32.xlu0 %v2039, 15
    %v2225 = vpop.permute.xlu0 %2224
    %2226 = vrot.lane.b32.xlu0 %v2040, 15
    %v2227 = vpop.permute.xlu0 %2226
    %2228 = vrot.lane.b32.xlu0 %v2041, 15
    %v2229 = vpop.permute.xlu0 %2228
    %2230 = vrot.lane.b32.xlu0 %v2042, 15
    %v2231 = vpop.permute.xlu0 %2230
    %2232 = vrot.lane.b32.xlu0 %v2043, 15
    %v2233 = vpop.permute.xlu0 %2232
    %2234 = vrot.lane.b32.xlu0 %v2044, 15
    %v2235 = vpop.permute.xlu0 %2234
    %2236 = vrot.lane.b32.xlu0 %v2045, 15
    %v2237 = vpop.permute.xlu0 %2236
    %vm2302 = vcmask 146552
    %2303 = vst.msk [vmem:[#allocation3] sm:$0xff] %vm2302, %v2111
    %2304 = vst.msk [vmem:[#allocation3 + $0x8] sm:$0xff] %vm2302, %v2113
    %2305 = vst.msk [vmem:[#allocation3 + $0x10] sm:$0xff] %vm2302, %v2115
    %2306 = vst.msk [vmem:[#allocation3 + $0x18] sm:$0xff] %vm2302, %v2117
    %2307 = vst.msk [vmem:[#allocation3 + $0x20] sm:$0xff] %vm2302, %v2119
    %2308 = vst.msk [vmem:[#allocation3 + $0x28] sm:$0xff] %vm2302, %v2121
    %2309 = vst.msk [vmem:[#allocation3 + $0x30] sm:$0xff] %vm2302, %v2123
    %2310 = vst.msk [vmem:[#allocation3 + $0x38] sm:$0xff] %vm2302, %v2125
    %2311 = vst.msk [vmem:[#allocation3 + $0x40] sm:$0xff] %vm2302, %v2127
    %2312 = vst.msk [vmem:[#allocation3 + $0x48] sm:$0xff] %vm2302, %v2129
    %2313 = vst.msk [vmem:[#allocation3 + $0x50] sm:$0xff] %vm2302, %v2131
    %2314 = vst.msk [vmem:[#allocation3 + $0x58] sm:$0xff] %vm2302, %v2133
    %2315 = vst.msk [vmem:[#allocation3 + $0x60] sm:$0xff] %vm2302, %v2135
    %2316 = vst.msk [vmem:[#allocation3 + $0x68] sm:$0xff] %vm2302, %v2137
    %2317 = vst.msk [vmem:[#allocation3 + $0x70] sm:$0xff] %vm2302, %v2139
    %2318 = vst.msk [vmem:[#allocation3 + $0x78] sm:$0xff] %vm2302, %v2141
    %2319 = vst.msk [vmem:[#allocation3 + $0x80] sm:$0xff] %vm2302, %v2143
    %2320 = vst.msk [vmem:[#allocation3 + $0x88] sm:$0xff] %vm2302, %v2145
    %2321 = vst.msk [vmem:[#allocation3 + $0x90] sm:$0xff] %vm2302, %v2147
    %2322 = vst.msk [vmem:[#allocation3 + $0x98] sm:$0xff] %vm2302, %v2149
    %2323 = vst.msk [vmem:[#allocation3 + $0xa0] sm:$0xff] %vm2302, %v2151
    %2324 = vst.msk [vmem:[#allocation3 + $0xa8] sm:$0xff] %vm2302, %v2153
    %2325 = vst.msk [vmem:[#allocation3 + $0xb0] sm:$0xff] %vm2302, %v2155
    %2326 = vst.msk [vmem:[#allocation3 + $0xb8] sm:$0xff] %vm2302, %v2157
    %2327 = vst.msk [vmem:[#allocation3 + $0xc0] sm:$0xff] %vm2302, %v2159
    %2328 = vst.msk [vmem:[#allocation3 + $0xc8] sm:$0xff] %vm2302, %v2161
    %2329 = vst.msk [vmem:[#allocation3 + $0xd0] sm:$0xff] %vm2302, %v2163
    %2330 = vst.msk [vmem:[#allocation3 + $0xd8] sm:$0xff] %vm2302, %v2165
    %2331 = vst.msk [vmem:[#allocation3 + $0xe0] sm:$0xff] %vm2302, %v2167
    %2332 = vst.msk [vmem:[#allocation3 + $0xe8] sm:$0xff] %vm2302, %v2169
    %2333 = vst.msk [vmem:[#allocation3 + $0xf0] sm:$0xff] %vm2302, %v2171
    %2334 = vst.msk [vmem:[#allocation3 + $0xf8] sm:$0xff] %vm2302, %v2173
    %2335 = vst.msk [vmem:[#allocation3 + $0x100] sm:$0xff] %vm2302, %v2175
    %2336 = vst.msk [vmem:[#allocation3 + $0x108] sm:$0xff] %vm2302, %v2177
    %2337 = vst.msk [vmem:[#allocation3 + $0x110] sm:$0xff] %vm2302, %v2179
    %2338 = vst.msk [vmem:[#allocation3 + $0x118] sm:$0xff] %vm2302, %v2181
    %2339 = vst.msk [vmem:[#allocation3 + $0x120] sm:$0xff] %vm2302, %v2183
    %2340 = vst.msk [vmem:[#allocation3 + $0x128] sm:$0xff] %vm2302, %v2185
    %2341 = vst.msk [vmem:[#allocation3 + $0x130] sm:$0xff] %vm2302, %v2187
    %2342 = vst.msk [vmem:[#allocation3 + $0x138] sm:$0xff] %vm2302, %v2189
    %2343 = vst.msk [vmem:[#allocation3 + $0x140] sm:$0xff] %vm2302, %v2191
    %2344 = vst.msk [vmem:[#allocation3 + $0x148] sm:$0xff] %vm2302, %v2193
    %2345 = vst.msk [vmem:[#allocation3 + $0x150] sm:$0xff] %vm2302, %v2195
    %2346 = vst.msk [vmem:[#allocation3 + $0x158] sm:$0xff] %vm2302, %v2197
    %2347 = vst.msk [vmem:[#allocation3 + $0x160] sm:$0xff] %vm2302, %v2199
    %2348 = vst.msk [vmem:[#allocation3 + $0x168] sm:$0xff] %vm2302, %v2201
    %2349 = vst.msk [vmem:[#allocation3 + $0x170] sm:$0xff] %vm2302, %v2203
    %2350 = vst.msk [vmem:[#allocation3 + $0x178] sm:$0xff] %vm2302, %v2205
    %2351 = vst.msk [vmem:[#allocation3 + $0x180] sm:$0xff] %vm2302, %v2207
    %2352 = vst.msk [vmem:[#allocation3 + $0x188] sm:$0xff] %vm2302, %v2209
    %2353 = vst.msk [vmem:[#allocation3 + $0x190] sm:$0xff] %vm2302, %v2211
    %2354 = vst.msk [vmem:[#allocation3 + $0x198] sm:$0xff] %vm2302, %v2213
    %2355 = vst.msk [vmem:[#allocation3 + $0x1a0] sm:$0xff] %vm2302, %v2215
    %2356 = vst.msk [vmem:[#allocation3 + $0x1a8] sm:$0xff] %vm2302, %v2217
    %2357 = vst.msk [vmem:[#allocation3 + $0x1b0] sm:$0xff] %vm2302, %v2219
    %2358 = vst.msk [vmem:[#allocation3 + $0x1b8] sm:$0xff] %vm2302, %v2221
    %2359 = vst.msk [vmem:[#allocation3 + $0x1c0] sm:$0xff] %vm2302, %v2223
    %2360 = vst.msk [vmem:[#allocation3 + $0x1c8] sm:$0xff] %vm2302, %v2225
    %2361 = vst.msk [vmem:[#allocation3 + $0x1d0] sm:$0xff] %vm2302, %v2227
    %2362 = vst.msk [vmem:[#allocation3 + $0x1d8] sm:$0xff] %vm2302, %v2229
    %2363 = vst.msk [vmem:[#allocation3 + $0x1e0] sm:$0xff] %vm2302, %v2231
    %2364 = vst.msk [vmem:[#allocation3 + $0x1e8] sm:$0xff] %vm2302, %v2233
    %2365 = vst.msk [vmem:[#allocation3 + $0x1f0] sm:$0xff] %vm2302, %v2235
    %2366 = vst.msk [vmem:[#allocation3 + $0x1f8] sm:$0xff] %vm2302, %v2237
    %s2367 = scalar_lea.vmem [#allocation2], 64
    %v2368 = vld [vmem:[%s2367 + $0x7] sm:$0xff]
    %v2369 = vld [vmem:[%s2367 + $0xf] sm:$0xff]
    %v2370 = vld [vmem:[%s2367 + $0x27] sm:$0xff]
    %v2371 = vld [vmem:[%s2367 + $0x2f] sm:$0xff]
    %v2372 = vld [vmem:[%s2367 + $0x47] sm:$0xff]
    %v2373 = vld [vmem:[%s2367 + $0x4f] sm:$0xff]
    %v2374 = vld [vmem:[%s2367 + $0x67] sm:$0xff]
    %v2375 = vld [vmem:[%s2367 + $0x6f] sm:$0xff]
    %v2376 = vld [vmem:[%s2367 + $0x87] sm:$0xff]
    %v2377 = vld [vmem:[%s2367 + $0x8f] sm:$0xff]
    %v2378 = vld [vmem:[%s2367 + $0xa7] sm:$0xff]
    %v2379 = vld [vmem:[%s2367 + $0xaf] sm:$0xff]
    %v2380 = vld [vmem:[%s2367 + $0xc7] sm:$0xff]
    %v2381 = vld [vmem:[%s2367 + $0xcf] sm:$0xff]
    %v2382 = vld [vmem:[%s2367 + $0xe7] sm:$0xff]
    %v2383 = vld [vmem:[%s2367 + $0xef] sm:$0xff]
    %v2384 = vld [vmem:[%s2367 + $0x107] sm:$0xff]
    %v2385 = vld [vmem:[%s2367 + $0x10f] sm:$0xff]
    %v2386 = vld [vmem:[%s2367 + $0x127] sm:$0xff]
    %v2387 = vld [vmem:[%s2367 + $0x12f] sm:$0xff]
    %v2388 = vld [vmem:[%s2367 + $0x147] sm:$0xff]
    %v2389 = vld [vmem:[%s2367 + $0x14f] sm:$0xff]
    %v2390 = vld [vmem:[%s2367 + $0x167] sm:$0xff]
    %v2391 = vld [vmem:[%s2367 + $0x16f] sm:$0xff]
    %v2392 = vld [vmem:[%s2367 + $0x187] sm:$0xff]
    %v2393 = vld [vmem:[%s2367 + $0x18f] sm:$0xff]
    %v2394 = vld [vmem:[%s2367 + $0x1a7] sm:$0xff]
    %v2395 = vld [vmem:[%s2367 + $0x1af] sm:$0xff]
    %v2396 = vld [vmem:[%s2367 + $0x1c7] sm:$0xff]
    %v2397 = vld [vmem:[%s2367 + $0x1cf] sm:$0xff]
    %v2398 = vld [vmem:[%s2367 + $0x1e7] sm:$0xff]
    %v2399 = vld [vmem:[%s2367 + $0x1ef] sm:$0xff]
    %v2400 = vld [vmem:[%s2367 + $0x247] sm:$0xff]
    %v2401 = vld [vmem:[%s2367 + $0x24f] sm:$0xff]
    %v2402 = vld [vmem:[%s2367 + $0x267] sm:$0xff]
    %v2403 = vld [vmem:[%s2367 + $0x26f] sm:$0xff]
    %v2404 = vld [vmem:[%s2367 + $0x287] sm:$0xff]
    %v2405 = vld [vmem:[%s2367 + $0x28f] sm:$0xff]
    %v2406 = vld [vmem:[%s2367 + $0x2a7] sm:$0xff]
    %v2407 = vld [vmem:[%s2367 + $0x2af] sm:$0xff]
    %v2408 = vld [vmem:[%s2367 + $0x2c7] sm:$0xff]
    %v2409 = vld [vmem:[%s2367 + $0x2cf] sm:$0xff]
    %v2410 = vld [vmem:[%s2367 + $0x2e7] sm:$0xff]
    %v2411 = vld [vmem:[%s2367 + $0x2ef] sm:$0xff]
    %v2412 = vld [vmem:[%s2367 + $0x307] sm:$0xff]
    %v2413 = vld [vmem:[%s2367 + $0x30f] sm:$0xff]
    %v2414 = vld [vmem:[%s2367 + $0x327] sm:$0xff]
    %v2415 = vld [vmem:[%s2367 + $0x32f] sm:$0xff]
    %v2416 = vld [vmem:[%s2367 + $0x347] sm:$0xff]
    %v2417 = vld [vmem:[%s2367 + $0x34f] sm:$0xff]
    %v2418 = vld [vmem:[%s2367 + $0x367] sm:$0xff]
    %v2419 = vld [vmem:[%s2367 + $0x36f] sm:$0xff]
    %v2420 = vld [vmem:[%s2367 + $0x387] sm:$0xff]
    %v2421 = vld [vmem:[%s2367 + $0x38f] sm:$0xff]
    %v2422 = vld [vmem:[%s2367 + $0x3a7] sm:$0xff]
    %v2423 = vld [vmem:[%s2367 + $0x3af] sm:$0xff]
    %v2424 = vld [vmem:[%s2367 + $0x3c7] sm:$0xff]
    %v2425 = vld [vmem:[%s2367 + $0x3cf] sm:$0xff]
    %v2426 = vld [vmem:[%s2367 + $0x3e7] sm:$0xff]
    %v2427 = vld [vmem:[%s2367 + $0x3ef] sm:$0xff]
    %v2428 = vld [vmem:[%s2367 + $0x407] sm:$0xff]
    %v2429 = vld [vmem:[%s2367 + $0x40f] sm:$0xff]
    %v2430 = vld [vmem:[%s2367 + $0x427] sm:$0xff]
    %v2431 = vld [vmem:[%s2367 + $0x42f] sm:$0xff]
    %2496 = vrot.lane.b32.xlu0 %v2368, 18
    %v2497 = vpop.permute.xlu0 %2496
    %2498 = vrot.lane.b32.xlu0 %v2369, 18
    %v2499 = vpop.permute.xlu0 %2498
    %2500 = vrot.lane.b32.xlu0 %v2370, 18
    %v2501 = vpop.permute.xlu0 %2500
    %2502 = vrot.lane.b32.xlu0 %v2371, 18
    %v2503 = vpop.permute.xlu0 %2502
    %2504 = vrot.lane.b32.xlu0 %v2372, 18
    %v2505 = vpop.permute.xlu0 %2504
    %2506 = vrot.lane.b32.xlu0 %v2373, 18
    %v2507 = vpop.permute.xlu0 %2506
    %2508 = vrot.lane.b32.xlu0 %v2374, 18
    %v2509 = vpop.permute.xlu0 %2508
    %2510 = vrot.lane.b32.xlu0 %v2375, 18
    %v2511 = vpop.permute.xlu0 %2510
    %2512 = vrot.lane.b32.xlu0 %v2376, 18
    %v2513 = vpop.permute.xlu0 %2512
    %2514 = vrot.lane.b32.xlu0 %v2377, 18
    %v2515 = vpop.permute.xlu0 %2514
    %2516 = vrot.lane.b32.xlu0 %v2378, 18
    %v2517 = vpop.permute.xlu0 %2516
    %2518 = vrot.lane.b32.xlu0 %v2379, 18
    %v2519 = vpop.permute.xlu0 %2518
    %2520 = vrot.lane.b32.xlu0 %v2380, 18
    %v2521 = vpop.permute.xlu0 %2520
    %2522 = vrot.lane.b32.xlu0 %v2381, 18
    %v2523 = vpop.permute.xlu0 %2522
    %2524 = vrot.lane.b32.xlu0 %v2382, 18
    %v2525 = vpop.permute.xlu0 %2524
    %2526 = vrot.lane.b32.xlu0 %v2383, 18
    %v2527 = vpop.permute.xlu0 %2526
    %2528 = vrot.lane.b32.xlu0 %v2384, 18
    %v2529 = vpop.permute.xlu0 %2528
    %2530 = vrot.lane.b32.xlu0 %v2385, 18
    %v2531 = vpop.permute.xlu0 %2530
    %2532 = vrot.lane.b32.xlu0 %v2386, 18
    %v2533 = vpop.permute.xlu0 %2532
    %2534 = vrot.lane.b32.xlu0 %v2387, 18
    %v2535 = vpop.permute.xlu0 %2534
    %2536 = vrot.lane.b32.xlu0 %v2388, 18
    %v2537 = vpop.permute.xlu0 %2536
    %2538 = vrot.lane.b32.xlu0 %v2389, 18
    %v2539 = vpop.permute.xlu0 %2538
    %2540 = vrot.lane.b32.xlu0 %v2390, 18
    %v2541 = vpop.permute.xlu0 %2540
    %2542 = vrot.lane.b32.xlu0 %v2391, 18
    %v2543 = vpop.permute.xlu0 %2542
    %2544 = vrot.lane.b32.xlu0 %v2392, 18
    %v2545 = vpop.permute.xlu0 %2544
    %2546 = vrot.lane.b32.xlu0 %v2393, 18
    %v2547 = vpop.permute.xlu0 %2546
    %2548 = vrot.lane.b32.xlu0 %v2394, 18
    %v2549 = vpop.permute.xlu0 %2548
    %2550 = vrot.lane.b32.xlu0 %v2395, 18
    %v2551 = vpop.permute.xlu0 %2550
    %2552 = vrot.lane.b32.xlu0 %v2396, 18
    %v2553 = vpop.permute.xlu0 %2552
    %2554 = vrot.lane.b32.xlu0 %v2397, 18
    %v2555 = vpop.permute.xlu0 %2554
    %2556 = vrot.lane.b32.xlu0 %v2398, 18
    %v2557 = vpop.permute.xlu0 %2556
    %2558 = vrot.lane.b32.xlu0 %v2399, 18
    %v2559 = vpop.permute.xlu0 %2558
    %2560 = vrot.lane.b32.xlu0 %v2400, 18
    %v2561 = vpop.permute.xlu0 %2560
    %2562 = vrot.lane.b32.xlu0 %v2401, 18
    %v2563 = vpop.permute.xlu0 %2562
    %2564 = vrot.lane.b32.xlu0 %v2402, 18
    %v2565 = vpop.permute.xlu0 %2564
    %2566 = vrot.lane.b32.xlu0 %v2403, 18
    %v2567 = vpop.permute.xlu0 %2566
    %2568 = vrot.lane.b32.xlu0 %v2404, 18
    %v2569 = vpop.permute.xlu0 %2568
    %2570 = vrot.lane.b32.xlu0 %v2405, 18
    %v2571 = vpop.permute.xlu0 %2570
    %2572 = vrot.lane.b32.xlu0 %v2406, 18
    %v2573 = vpop.permute.xlu0 %2572
    %2574 = vrot.lane.b32.xlu0 %v2407, 18
    %v2575 = vpop.permute.xlu0 %2574
    %2576 = vrot.lane.b32.xlu0 %v2408, 18
    %v2577 = vpop.permute.xlu0 %2576
    %2578 = vrot.lane.b32.xlu0 %v2409, 18
    %v2579 = vpop.permute.xlu0 %2578
    %2580 = vrot.lane.b32.xlu0 %v2410, 18
    %v2581 = vpop.permute.xlu0 %2580
    %2582 = vrot.lane.b32.xlu0 %v2411, 18
    %v2583 = vpop.permute.xlu0 %2582
    %2584 = vrot.lane.b32.xlu0 %v2412, 18
    %v2585 = vpop.permute.xlu0 %2584
    %2586 = vrot.lane.b32.xlu0 %v2413, 18
    %v2587 = vpop.permute.xlu0 %2586
    %2588 = vrot.lane.b32.xlu0 %v2414, 18
    %v2589 = vpop.permute.xlu0 %2588
    %2590 = vrot.lane.b32.xlu0 %v2415, 18
    %v2591 = vpop.permute.xlu0 %2590
    %2592 = vrot.lane.b32.xlu0 %v2416, 18
    %v2593 = vpop.permute.xlu0 %2592
    %2594 = vrot.lane.b32.xlu0 %v2417, 18
    %v2595 = vpop.permute.xlu0 %2594
    %2596 = vrot.lane.b32.xlu0 %v2418, 18
    %v2597 = vpop.permute.xlu0 %2596
    %2598 = vrot.lane.b32.xlu0 %v2419, 18
    %v2599 = vpop.permute.xlu0 %2598
    %2600 = vrot.lane.b32.xlu0 %v2420, 18
    %v2601 = vpop.permute.xlu0 %2600
    %2602 = vrot.lane.b32.xlu0 %v2421, 18
    %v2603 = vpop.permute.xlu0 %2602
    %2604 = vrot.lane.b32.xlu0 %v2422, 18
    %v2605 = vpop.permute.xlu0 %2604
    %2606 = vrot.lane.b32.xlu0 %v2423, 18
    %v2607 = vpop.permute.xlu0 %2606
    %2608 = vrot.lane.b32.xlu0 %v2424, 18
    %v2609 = vpop.permute.xlu0 %2608
    %2610 = vrot.lane.b32.xlu0 %v2425, 18
    %v2611 = vpop.permute.xlu0 %2610
    %2612 = vrot.lane.b32.xlu0 %v2426, 18
    %v2613 = vpop.permute.xlu0 %2612
    %2614 = vrot.lane.b32.xlu0 %v2427, 18
    %v2615 = vpop.permute.xlu0 %2614
    %2616 = vrot.lane.b32.xlu0 %v2428, 18
    %v2617 = vpop.permute.xlu0 %2616
    %2618 = vrot.lane.b32.xlu0 %v2429, 18
    %v2619 = vpop.permute.xlu0 %2618
    %2620 = vrot.lane.b32.xlu0 %v2430, 18
    %v2621 = vpop.permute.xlu0 %2620
    %2622 = vrot.lane.b32.xlu0 %v2431, 18
    %v2623 = vpop.permute.xlu0 %2622
    %vm2688 = vcmask 171152
    %2689 = vst.msk [vmem:[#allocation3] sm:$0xff] %vm2688, %v2497
    %2690 = vst.msk [vmem:[#allocation3 + $0x8] sm:$0xff] %vm2688, %v2499
    %2691 = vst.msk [vmem:[#allocation3 + $0x10] sm:$0xff] %vm2688, %v2501
    %2692 = vst.msk [vmem:[#allocation3 + $0x18] sm:$0xff] %vm2688, %v2503
    %2693 = vst.msk [vmem:[#allocation3 + $0x20] sm:$0xff] %vm2688, %v2505
    %2694 = vst.msk [vmem:[#allocation3 + $0x28] sm:$0xff] %vm2688, %v2507
    %2695 = vst.msk [vmem:[#allocation3 + $0x30] sm:$0xff] %vm2688, %v2509
    %2696 = vst.msk [vmem:[#allocation3 + $0x38] sm:$0xff] %vm2688, %v2511
    %2697 = vst.msk [vmem:[#allocation3 + $0x40] sm:$0xff] %vm2688, %v2513
    %2698 = vst.msk [vmem:[#allocation3 + $0x48] sm:$0xff] %vm2688, %v2515
    %2699 = vst.msk [vmem:[#allocation3 + $0x50] sm:$0xff] %vm2688, %v2517
    %2700 = vst.msk [vmem:[#allocation3 + $0x58] sm:$0xff] %vm2688, %v2519
    %2701 = vst.msk [vmem:[#allocation3 + $0x60] sm:$0xff] %vm2688, %v2521
    %2702 = vst.msk [vmem:[#allocation3 + $0x68] sm:$0xff] %vm2688, %v2523
    %2703 = vst.msk [vmem:[#allocation3 + $0x70] sm:$0xff] %vm2688, %v2525
    %2704 = vst.msk [vmem:[#allocation3 + $0x78] sm:$0xff] %vm2688, %v2527
    %2705 = vst.msk [vmem:[#allocation3 + $0x80] sm:$0xff] %vm2688, %v2529
    %2706 = vst.msk [vmem:[#allocation3 + $0x88] sm:$0xff] %vm2688, %v2531
    %2707 = vst.msk [vmem:[#allocation3 + $0x90] sm:$0xff] %vm2688, %v2533
    %2708 = vst.msk [vmem:[#allocation3 + $0x98] sm:$0xff] %vm2688, %v2535
    %2709 = vst.msk [vmem:[#allocation3 + $0xa0] sm:$0xff] %vm2688, %v2537
    %2710 = vst.msk [vmem:[#allocation3 + $0xa8] sm:$0xff] %vm2688, %v2539
    %2711 = vst.msk [vmem:[#allocation3 + $0xb0] sm:$0xff] %vm2688, %v2541
    %2712 = vst.msk [vmem:[#allocation3 + $0xb8] sm:$0xff] %vm2688, %v2543
    %2713 = vst.msk [vmem:[#allocation3 + $0xc0] sm:$0xff] %vm2688, %v2545
    %2714 = vst.msk [vmem:[#allocation3 + $0xc8] sm:$0xff] %vm2688, %v2547
    %2715 = vst.msk [vmem:[#allocation3 + $0xd0] sm:$0xff] %vm2688, %v2549
    %2716 = vst.msk [vmem:[#allocation3 + $0xd8] sm:$0xff] %vm2688, %v2551
    %2717 = vst.msk [vmem:[#allocation3 + $0xe0] sm:$0xff] %vm2688, %v2553
    %2718 = vst.msk [vmem:[#allocation3 + $0xe8] sm:$0xff] %vm2688, %v2555
    %2719 = vst.msk [vmem:[#allocation3 + $0xf0] sm:$0xff] %vm2688, %v2557
    %2720 = vst.msk [vmem:[#allocation3 + $0xf8] sm:$0xff] %vm2688, %v2559
    %2721 = vst.msk [vmem:[#allocation3 + $0x100] sm:$0xff] %vm2688, %v2561
    %2722 = vst.msk [vmem:[#allocation3 + $0x108] sm:$0xff] %vm2688, %v2563
    %2723 = vst.msk [vmem:[#allocation3 + $0x110] sm:$0xff] %vm2688, %v2565
    %2724 = vst.msk [vmem:[#allocation3 + $0x118] sm:$0xff] %vm2688, %v2567
    %2725 = vst.msk [vmem:[#allocation3 + $0x120] sm:$0xff] %vm2688, %v2569
    %2726 = vst.msk [vmem:[#allocation3 + $0x128] sm:$0xff] %vm2688, %v2571
    %2727 = vst.msk [vmem:[#allocation3 + $0x130] sm:$0xff] %vm2688, %v2573
    %2728 = vst.msk [vmem:[#allocation3 + $0x138] sm:$0xff] %vm2688, %v2575
    %2729 = vst.msk [vmem:[#allocation3 + $0x140] sm:$0xff] %vm2688, %v2577
    %2730 = vst.msk [vmem:[#allocation3 + $0x148] sm:$0xff] %vm2688, %v2579
    %2731 = vst.msk [vmem:[#allocation3 + $0x150] sm:$0xff] %vm2688, %v2581
    %2732 = vst.msk [vmem:[#allocation3 + $0x158] sm:$0xff] %vm2688, %v2583
    %2733 = vst.msk [vmem:[#allocation3 + $0x160] sm:$0xff] %vm2688, %v2585
    %2734 = vst.msk [vmem:[#allocation3 + $0x168] sm:$0xff] %vm2688, %v2587
    %2735 = vst.msk [vmem:[#allocation3 + $0x170] sm:$0xff] %vm2688, %v2589
    %2736 = vst.msk [vmem:[#allocation3 + $0x178] sm:$0xff] %vm2688, %v2591
    %2737 = vst.msk [vmem:[#allocation3 + $0x180] sm:$0xff] %vm2688, %v2593
    %2738 = vst.msk [vmem:[#allocation3 + $0x188] sm:$0xff] %vm2688, %v2595
    %2739 = vst.msk [vmem:[#allocation3 + $0x190] sm:$0xff] %vm2688, %v2597
    %2740 = vst.msk [vmem:[#allocation3 + $0x198] sm:$0xff] %vm2688, %v2599
    %2741 = vst.msk [vmem:[#allocation3 + $0x1a0] sm:$0xff] %vm2688, %v2601
    %2742 = vst.msk [vmem:[#allocation3 + $0x1a8] sm:$0xff] %vm2688, %v2603
    %2743 = vst.msk [vmem:[#allocation3 + $0x1b0] sm:$0xff] %vm2688, %v2605
    %2744 = vst.msk [vmem:[#allocation3 + $0x1b8] sm:$0xff] %vm2688, %v2607
    %2745 = vst.msk [vmem:[#allocation3 + $0x1c0] sm:$0xff] %vm2688, %v2609
    %2746 = vst.msk [vmem:[#allocation3 + $0x1c8] sm:$0xff] %vm2688, %v2611
    %2747 = vst.msk [vmem:[#allocation3 + $0x1d0] sm:$0xff] %vm2688, %v2613
    %2748 = vst.msk [vmem:[#allocation3 + $0x1d8] sm:$0xff] %vm2688, %v2615
    %2749 = vst.msk [vmem:[#allocation3 + $0x1e0] sm:$0xff] %vm2688, %v2617
    %2750 = vst.msk [vmem:[#allocation3 + $0x1e8] sm:$0xff] %vm2688, %v2619
    %2751 = vst.msk [vmem:[#allocation3 + $0x1f0] sm:$0xff] %vm2688, %v2621
    %2752 = vst.msk [vmem:[#allocation3 + $0x1f8] sm:$0xff] %vm2688, %v2623
    %v2753 = vld [vmem:[%s2367 + $0x8] sm:$0xff]
    %v2754 = vld [vmem:[%s2367 + $0x10] sm:$0xff]
    %v2755 = vld [vmem:[%s2367 + $0x28] sm:$0xff]
    %v2756 = vld [vmem:[%s2367 + $0x30] sm:$0xff]
    %v2757 = vld [vmem:[%s2367 + $0x48] sm:$0xff]
    %v2758 = vld [vmem:[%s2367 + $0x50] sm:$0xff]
    %v2759 = vld [vmem:[%s2367 + $0x68] sm:$0xff]
    %v2760 = vld [vmem:[%s2367 + $0x70] sm:$0xff]
    %v2761 = vld [vmem:[%s2367 + $0x88] sm:$0xff]
    %v2762 = vld [vmem:[%s2367 + $0x90] sm:$0xff]
    %v2763 = vld [vmem:[%s2367 + $0xa8] sm:$0xff]
    %v2764 = vld [vmem:[%s2367 + $0xb0] sm:$0xff]
    %v2765 = vld [vmem:[%s2367 + $0xc8] sm:$0xff]
    %v2766 = vld [vmem:[%s2367 + $0xd0] sm:$0xff]
    %v2767 = vld [vmem:[%s2367 + $0xe8] sm:$0xff]
    %v2768 = vld [vmem:[%s2367 + $0xf0] sm:$0xff]
    %v2769 = vld [vmem:[%s2367 + $0x108] sm:$0xff]
    %v2770 = vld [vmem:[%s2367 + $0x110] sm:$0xff]
    %v2771 = vld [vmem:[%s2367 + $0x128] sm:$0xff]
    %v2772 = vld [vmem:[%s2367 + $0x130] sm:$0xff]
    %v2773 = vld [vmem:[%s2367 + $0x148] sm:$0xff]
    %v2774 = vld [vmem:[%s2367 + $0x150] sm:$0xff]
    %v2775 = vld [vmem:[%s2367 + $0x168] sm:$0xff]
    %v2776 = vld [vmem:[%s2367 + $0x170] sm:$0xff]
    %v2777 = vld [vmem:[%s2367 + $0x188] sm:$0xff]
    %v2778 = vld [vmem:[%s2367 + $0x190] sm:$0xff]
    %v2779 = vld [vmem:[%s2367 + $0x1a8] sm:$0xff]
    %v2780 = vld [vmem:[%s2367 + $0x1b0] sm:$0xff]
    %v2781 = vld [vmem:[%s2367 + $0x1c8] sm:$0xff]
    %v2782 = vld [vmem:[%s2367 + $0x1d0] sm:$0xff]
    %v2783 = vld [vmem:[%s2367 + $0x1e8] sm:$0xff]
    %v2784 = vld [vmem:[%s2367 + $0x1f0] sm:$0xff]
    %v2785 = vld [vmem:[%s2367 + $0x248] sm:$0xff]
    %v2786 = vld [vmem:[%s2367 + $0x250] sm:$0xff]
    %v2787 = vld [vmem:[%s2367 + $0x268] sm:$0xff]
    %v2788 = vld [vmem:[%s2367 + $0x270] sm:$0xff]
    %v2789 = vld [vmem:[%s2367 + $0x288] sm:$0xff]
    %v2790 = vld [vmem:[%s2367 + $0x290] sm:$0xff]
    %v2791 = vld [vmem:[%s2367 + $0x2a8] sm:$0xff]
    %v2792 = vld [vmem:[%s2367 + $0x2b0] sm:$0xff]
    %v2793 = vld [vmem:[%s2367 + $0x2c8] sm:$0xff]
    %v2794 = vld [vmem:[%s2367 + $0x2d0] sm:$0xff]
    %v2795 = vld [vmem:[%s2367 + $0x2e8] sm:$0xff]
    %v2796 = vld [vmem:[%s2367 + $0x2f0] sm:$0xff]
    %v2797 = vld [vmem:[%s2367 + $0x308] sm:$0xff]
    %v2798 = vld [vmem:[%s2367 + $0x310] sm:$0xff]
    %v2799 = vld [vmem:[%s2367 + $0x328] sm:$0xff]
    %v2800 = vld [vmem:[%s2367 + $0x330] sm:$0xff]
    %v2801 = vld [vmem:[%s2367 + $0x348] sm:$0xff]
    %v2802 = vld [vmem:[%s2367 + $0x350] sm:$0xff]
    %v2803 = vld [vmem:[%s2367 + $0x368] sm:$0xff]
    %v2804 = vld [vmem:[%s2367 + $0x370] sm:$0xff]
    %v2805 = vld [vmem:[%s2367 + $0x388] sm:$0xff]
    %v2806 = vld [vmem:[%s2367 + $0x390] sm:$0xff]
    %v2807 = vld [vmem:[%s2367 + $0x3a8] sm:$0xff]
    %v2808 = vld [vmem:[%s2367 + $0x3b0] sm:$0xff]
    %v2809 = vld [vmem:[%s2367 + $0x3c8] sm:$0xff]
    %v2810 = vld [vmem:[%s2367 + $0x3d0] sm:$0xff]
    %v2811 = vld [vmem:[%s2367 + $0x3e8] sm:$0xff]
    %v2812 = vld [vmem:[%s2367 + $0x3f0] sm:$0xff]
    %v2813 = vld [vmem:[%s2367 + $0x408] sm:$0xff]
    %v2814 = vld [vmem:[%s2367 + $0x410] sm:$0xff]
    %v2815 = vld [vmem:[%s2367 + $0x428] sm:$0xff]
    %v2816 = vld [vmem:[%s2367 + $0x430] sm:$0xff]
    %2881 = vrot.lane.b32.xlu0 %v2753, 21
    %v2882 = vpop.permute.xlu0 %2881
    %2883 = vrot.lane.b32.xlu0 %v2754, 21
    %v2884 = vpop.permute.xlu0 %2883
    %2885 = vrot.lane.b32.xlu0 %v2755, 21
    %v2886 = vpop.permute.xlu0 %2885
    %2887 = vrot.lane.b32.xlu0 %v2756, 21
    %v2888 = vpop.permute.xlu0 %2887
    %2889 = vrot.lane.b32.xlu0 %v2757, 21
    %v2890 = vpop.permute.xlu0 %2889
    %2891 = vrot.lane.b32.xlu0 %v2758, 21
    %v2892 = vpop.permute.xlu0 %2891
    %2893 = vrot.lane.b32.xlu0 %v2759, 21
    %v2894 = vpop.permute.xlu0 %2893
    %2895 = vrot.lane.b32.xlu0 %v2760, 21
    %v2896 = vpop.permute.xlu0 %2895
    %2897 = vrot.lane.b32.xlu0 %v2761, 21
    %v2898 = vpop.permute.xlu0 %2897
    %2899 = vrot.lane.b32.xlu0 %v2762, 21
    %v2900 = vpop.permute.xlu0 %2899
    %2901 = vrot.lane.b32.xlu0 %v2763, 21
    %v2902 = vpop.permute.xlu0 %2901
    %2903 = vrot.lane.b32.xlu0 %v2764, 21
    %v2904 = vpop.permute.xlu0 %2903
    %2905 = vrot.lane.b32.xlu0 %v2765, 21
    %v2906 = vpop.permute.xlu0 %2905
    %2907 = vrot.lane.b32.xlu0 %v2766, 21
    %v2908 = vpop.permute.xlu0 %2907
    %2909 = vrot.lane.b32.xlu0 %v2767, 21
    %v2910 = vpop.permute.xlu0 %2909
    %2911 = vrot.lane.b32.xlu0 %v2768, 21
    %v2912 = vpop.permute.xlu0 %2911
    %2913 = vrot.lane.b32.xlu0 %v2769, 21
    %v2914 = vpop.permute.xlu0 %2913
    %2915 = vrot.lane.b32.xlu0 %v2770, 21
    %v2916 = vpop.permute.xlu0 %2915
    %2917 = vrot.lane.b32.xlu0 %v2771, 21
    %v2918 = vpop.permute.xlu0 %2917
    %2919 = vrot.lane.b32.xlu0 %v2772, 21
    %v2920 = vpop.permute.xlu0 %2919
    %2921 = vrot.lane.b32.xlu0 %v2773, 21
    %v2922 = vpop.permute.xlu0 %2921
    %2923 = vrot.lane.b32.xlu0 %v2774, 21
    %v2924 = vpop.permute.xlu0 %2923
    %2925 = vrot.lane.b32.xlu0 %v2775, 21
    %v2926 = vpop.permute.xlu0 %2925
    %2927 = vrot.lane.b32.xlu0 %v2776, 21
    %v2928 = vpop.permute.xlu0 %2927
    %2929 = vrot.lane.b32.xlu0 %v2777, 21
    %v2930 = vpop.permute.xlu0 %2929
    %2931 = vrot.lane.b32.xlu0 %v2778, 21
    %v2932 = vpop.permute.xlu0 %2931
    %2933 = vrot.lane.b32.xlu0 %v2779, 21
    %v2934 = vpop.permute.xlu0 %2933
    %2935 = vrot.lane.b32.xlu0 %v2780, 21
    %v2936 = vpop.permute.xlu0 %2935
    %2937 = vrot.lane.b32.xlu0 %v2781, 21
    %v2938 = vpop.permute.xlu0 %2937
    %2939 = vrot.lane.b32.xlu0 %v2782, 21
    %v2940 = vpop.permute.xlu0 %2939
    %2941 = vrot.lane.b32.xlu0 %v2783, 21
    %v2942 = vpop.permute.xlu0 %2941
    %2943 = vrot.lane.b32.xlu0 %v2784, 21
    %v2944 = vpop.permute.xlu0 %2943
    %2945 = vrot.lane.b32.xlu0 %v2785, 21
    %v2946 = vpop.permute.xlu0 %2945
    %2947 = vrot.lane.b32.xlu0 %v2786, 21
    %v2948 = vpop.permute.xlu0 %2947
    %2949 = vrot.lane.b32.xlu0 %v2787, 21
    %v2950 = vpop.permute.xlu0 %2949
    %2951 = vrot.lane.b32.xlu0 %v2788, 21
    %v2952 = vpop.permute.xlu0 %2951
    %2953 = vrot.lane.b32.xlu0 %v2789, 21
    %v2954 = vpop.permute.xlu0 %2953
    %2955 = vrot.lane.b32.xlu0 %v2790, 21
    %v2956 = vpop.permute.xlu0 %2955
    %2957 = vrot.lane.b32.xlu0 %v2791, 21
    %v2958 = vpop.permute.xlu0 %2957
    %2959 = vrot.lane.b32.xlu0 %v2792, 21
    %v2960 = vpop.permute.xlu0 %2959
    %2961 = vrot.lane.b32.xlu0 %v2793, 21
    %v2962 = vpop.permute.xlu0 %2961
    %2963 = vrot.lane.b32.xlu0 %v2794, 21
    %v2964 = vpop.permute.xlu0 %2963
    %2965 = vrot.lane.b32.xlu0 %v2795, 21
    %v2966 = vpop.permute.xlu0 %2965
    %2967 = vrot.lane.b32.xlu0 %v2796, 21
    %v2968 = vpop.permute.xlu0 %2967
    %2969 = vrot.lane.b32.xlu0 %v2797, 21
    %v2970 = vpop.permute.xlu0 %2969
    %2971 = vrot.lane.b32.xlu0 %v2798, 21
    %v2972 = vpop.permute.xlu0 %2971
    %2973 = vrot.lane.b32.xlu0 %v2799, 21
    %v2974 = vpop.permute.xlu0 %2973
    %2975 = vrot.lane.b32.xlu0 %v2800, 21
    %v2976 = vpop.permute.xlu0 %2975
    %2977 = vrot.lane.b32.xlu0 %v2801, 21
    %v2978 = vpop.permute.xlu0 %2977
    %2979 = vrot.lane.b32.xlu0 %v2802, 21
    %v2980 = vpop.permute.xlu0 %2979
    %2981 = vrot.lane.b32.xlu0 %v2803, 21
    %v2982 = vpop.permute.xlu0 %2981
    %2983 = vrot.lane.b32.xlu0 %v2804, 21
    %v2984 = vpop.permute.xlu0 %2983
    %2985 = vrot.lane.b32.xlu0 %v2805, 21
    %v2986 = vpop.permute.xlu0 %2985
    %2987 = vrot.lane.b32.xlu0 %v2806, 21
    %v2988 = vpop.permute.xlu0 %2987
    %2989 = vrot.lane.b32.xlu0 %v2807, 21
    %v2990 = vpop.permute.xlu0 %2989
    %2991 = vrot.lane.b32.xlu0 %v2808, 21
    %v2992 = vpop.permute.xlu0 %2991
    %2993 = vrot.lane.b32.xlu0 %v2809, 21
    %v2994 = vpop.permute.xlu0 %2993
    %2995 = vrot.lane.b32.xlu0 %v2810, 21
    %v2996 = vpop.permute.xlu0 %2995
    %2997 = vrot.lane.b32.xlu0 %v2811, 21
    %v2998 = vpop.permute.xlu0 %2997
    %2999 = vrot.lane.b32.xlu0 %v2812, 21
    %v3000 = vpop.permute.xlu0 %2999
    %3001 = vrot.lane.b32.xlu0 %v2813, 21
    %v3002 = vpop.permute.xlu0 %3001
    %3003 = vrot.lane.b32.xlu0 %v2814, 21
    %v3004 = vpop.permute.xlu0 %3003
    %3005 = vrot.lane.b32.xlu0 %v2815, 21
    %v3006 = vpop.permute.xlu0 %3005
    %3007 = vrot.lane.b32.xlu0 %v2816, 21
    %v3008 = vpop.permute.xlu0 %3007
    %vm3073 = vcmask 195752
    %3074 = vst.msk [vmem:[#allocation3] sm:$0xff] %vm3073, %v2882
    %3075 = vst.msk [vmem:[#allocation3 + $0x8] sm:$0xff] %vm3073, %v2884
    %3076 = vst.msk [vmem:[#allocation3 + $0x10] sm:$0xff] %vm3073, %v2886
    %3077 = vst.msk [vmem:[#allocation3 + $0x18] sm:$0xff] %vm3073, %v2888
    %3078 = vst.msk [vmem:[#allocation3 + $0x20] sm:$0xff] %vm3073, %v2890
    %3079 = vst.msk [vmem:[#allocation3 + $0x28] sm:$0xff] %vm3073, %v2892
    %3080 = vst.msk [vmem:[#allocation3 + $0x30] sm:$0xff] %vm3073, %v2894
    %3081 = vst.msk [vmem:[#allocation3 + $0x38] sm:$0xff] %vm3073, %v2896
    %3082 = vst.msk [vmem:[#allocation3 + $0x40] sm:$0xff] %vm3073, %v2898
    %3083 = vst.msk [vmem:[#allocation3 + $0x48] sm:$0xff] %vm3073, %v2900
    %3084 = vst.msk [vmem:[#allocation3 + $0x50] sm:$0xff] %vm3073, %v2902
    %3085 = vst.msk [vmem:[#allocation3 + $0x58] sm:$0xff] %vm3073, %v2904
    %3086 = vst.msk [vmem:[#allocation3 + $0x60] sm:$0xff] %vm3073, %v2906
    %3087 = vst.msk [vmem:[#allocation3 + $0x68] sm:$0xff] %vm3073, %v2908
    %3088 = vst.msk [vmem:[#allocation3 + $0x70] sm:$0xff] %vm3073, %v2910
    %3089 = vst.msk [vmem:[#allocation3 + $0x78] sm:$0xff] %vm3073, %v2912
    %3090 = vst.msk [vmem:[#allocation3 + $0x80] sm:$0xff] %vm3073, %v2914
    %3091 = vst.msk [vmem:[#allocation3 + $0x88] sm:$0xff] %vm3073, %v2916
    %3092 = vst.msk [vmem:[#allocation3 + $0x90] sm:$0xff] %vm3073, %v2918
    %3093 = vst.msk [vmem:[#allocation3 + $0x98] sm:$0xff] %vm3073, %v2920
    %3094 = vst.msk [vmem:[#allocation3 + $0xa0] sm:$0xff] %vm3073, %v2922
    %3095 = vst.msk [vmem:[#allocation3 + $0xa8] sm:$0xff] %vm3073, %v2924
    %3096 = vst.msk [vmem:[#allocation3 + $0xb0] sm:$0xff] %vm3073, %v2926
    %3097 = vst.msk [vmem:[#allocation3 + $0xb8] sm:$0xff] %vm3073, %v2928
    %3098 = vst.msk [vmem:[#allocation3 + $0xc0] sm:$0xff] %vm3073, %v2930
    %3099 = vst.msk [vmem:[#allocation3 + $0xc8] sm:$0xff] %vm3073, %v2932
    %3100 = vst.msk [vmem:[#allocation3 + $0xd0] sm:$0xff] %vm3073, %v2934
    %3101 = vst.msk [vmem:[#allocation3 + $0xd8] sm:$0xff] %vm3073, %v2936
    %3102 = vst.msk [vmem:[#allocation3 + $0xe0] sm:$0xff] %vm3073, %v2938
    %3103 = vst.msk [vmem:[#allocation3 + $0xe8] sm:$0xff] %vm3073, %v2940
    %3104 = vst.msk [vmem:[#allocation3 + $0xf0] sm:$0xff] %vm3073, %v2942
    %3105 = vst.msk [vmem:[#allocation3 + $0xf8] sm:$0xff] %vm3073, %v2944
    %3106 = vst.msk [vmem:[#allocation3 + $0x100] sm:$0xff] %vm3073, %v2946
    %3107 = vst.msk [vmem:[#allocation3 + $0x108] sm:$0xff] %vm3073, %v2948
    %3108 = vst.msk [vmem:[#allocation3 + $0x110] sm:$0xff] %vm3073, %v2950
    %3109 = vst.msk [vmem:[#allocation3 + $0x118] sm:$0xff] %vm3073, %v2952
    %3110 = vst.msk [vmem:[#allocation3 + $0x120] sm:$0xff] %vm3073, %v2954
    %3111 = vst.msk [vmem:[#allocation3 + $0x128] sm:$0xff] %vm3073, %v2956
    %3112 = vst.msk [vmem:[#allocation3 + $0x130] sm:$0xff] %vm3073, %v2958
    %3113 = vst.msk [vmem:[#allocation3 + $0x138] sm:$0xff] %vm3073, %v2960
    %3114 = vst.msk [vmem:[#allocation3 + $0x140] sm:$0xff] %vm3073, %v2962
    %3115 = vst.msk [vmem:[#allocation3 + $0x148] sm:$0xff] %vm3073, %v2964
    %3116 = vst.msk [vmem:[#allocation3 + $0x150] sm:$0xff] %vm3073, %v2966
    %3117 = vst.msk [vmem:[#allocation3 + $0x158] sm:$0xff] %vm3073, %v2968
    %3118 = vst.msk [vmem:[#allocation3 + $0x160] sm:$0xff] %vm3073, %v2970
    %3119 = vst.msk [vmem:[#allocation3 + $0x168] sm:$0xff] %vm3073, %v2972
    %3120 = vst.msk [vmem:[#allocation3 + $0x170] sm:$0xff] %vm3073, %v2974
    %3121 = vst.msk [vmem:[#allocation3 + $0x178] sm:$0xff] %vm3073, %v2976
    %3122 = vst.msk [vmem:[#allocation3 + $0x180] sm:$0xff] %vm3073, %v2978
    %3123 = vst.msk [vmem:[#allocation3 + $0x188] sm:$0xff] %vm3073, %v2980
    %3124 = vst.msk [vmem:[#allocation3 + $0x190] sm:$0xff] %vm3073, %v2982
    %3125 = vst.msk [vmem:[#allocation3 + $0x198] sm:$0xff] %vm3073, %v2984
    %3126 = vst.msk [vmem:[#allocation3 + $0x1a0] sm:$0xff] %vm3073, %v2986
    %3127 = vst.msk [vmem:[#allocation3 + $0x1a8] sm:$0xff] %vm3073, %v2988
    %3128 = vst.msk [vmem:[#allocation3 + $0x1b0] sm:$0xff] %vm3073, %v2990
    %3129 = vst.msk [vmem:[#allocation3 + $0x1b8] sm:$0xff] %vm3073, %v2992
    %3130 = vst.msk [vmem:[#allocation3 + $0x1c0] sm:$0xff] %vm3073, %v2994
    %3131 = vst.msk [vmem:[#allocation3 + $0x1c8] sm:$0xff] %vm3073, %v2996
    %3132 = vst.msk [vmem:[#allocation3 + $0x1d0] sm:$0xff] %vm3073, %v2998
    %3133 = vst.msk [vmem:[#allocation3 + $0x1d8] sm:$0xff] %vm3073, %v3000
    %3134 = vst.msk [vmem:[#allocation3 + $0x1e0] sm:$0xff] %vm3073, %v3002
    %3135 = vst.msk [vmem:[#allocation3 + $0x1e8] sm:$0xff] %vm3073, %v3004
    %3136 = vst.msk [vmem:[#allocation3 + $0x1f0] sm:$0xff] %vm3073, %v3006
    %3137 = vst.msk [vmem:[#allocation3 + $0x1f8] sm:$0xff] %vm3073, %v3008
    %v3138 = vld [vmem:[%s2367 + $0x9] sm:$0xff]
    %v3139 = vld [vmem:[%s2367 + $0x11] sm:$0xff]
    %v3140 = vld [vmem:[%s2367 + $0x29] sm:$0xff]
    %v3141 = vld [vmem:[%s2367 + $0x31] sm:$0xff]
    %v3142 = vld [vmem:[%s2367 + $0x49] sm:$0xff]
    %v3143 = vld [vmem:[%s2367 + $0x51] sm:$0xff]
    %v3144 = vld [vmem:[%s2367 + $0x69] sm:$0xff]
    %v3145 = vld [vmem:[%s2367 + $0x71] sm:$0xff]
    %v3146 = vld [vmem:[%s2367 + $0x89] sm:$0xff]
    %v3147 = vld [vmem:[%s2367 + $0x91] sm:$0xff]
    %v3148 = vld [vmem:[%s2367 + $0xa9] sm:$0xff]
    %v3149 = vld [vmem:[%s2367 + $0xb1] sm:$0xff]
    %v3150 = vld [vmem:[%s2367 + $0xc9] sm:$0xff]
    %v3151 = vld [vmem:[%s2367 + $0xd1] sm:$0xff]
    %v3152 = vld [vmem:[%s2367 + $0xe9] sm:$0xff]
    %v3153 = vld [vmem:[%s2367 + $0xf1] sm:$0xff]
    %v3154 = vld [vmem:[%s2367 + $0x109] sm:$0xff]
    %v3155 = vld [vmem:[%s2367 + $0x111] sm:$0xff]
    %v3156 = vld [vmem:[%s2367 + $0x129] sm:$0xff]
    %v3157 = vld [vmem:[%s2367 + $0x131] sm:$0xff]
    %v3158 = vld [vmem:[%s2367 + $0x149] sm:$0xff]
    %v3159 = vld [vmem:[%s2367 + $0x151] sm:$0xff]
    %v3160 = vld [vmem:[%s2367 + $0x169] sm:$0xff]
    %v3161 = vld [vmem:[%s2367 + $0x171] sm:$0xff]
    %v3162 = vld [vmem:[%s2367 + $0x189] sm:$0xff]
    %v3163 = vld [vmem:[%s2367 + $0x191] sm:$0xff]
    %v3164 = vld [vmem:[%s2367 + $0x1a9] sm:$0xff]
    %v3165 = vld [vmem:[%s2367 + $0x1b1] sm:$0xff]
    %v3166 = vld [vmem:[%s2367 + $0x1c9] sm:$0xff]
    %v3167 = vld [vmem:[%s2367 + $0x1d1] sm:$0xff]
    %v3168 = vld [vmem:[%s2367 + $0x1e9] sm:$0xff]
    %v3169 = vld [vmem:[%s2367 + $0x1f1] sm:$0xff]
    %v3170 = vld [vmem:[%s2367 + $0x249] sm:$0xff]
    %v3171 = vld [vmem:[%s2367 + $0x251] sm:$0xff]
    %v3172 = vld [vmem:[%s2367 + $0x269] sm:$0xff]
    %v3173 = vld [vmem:[%s2367 + $0x271] sm:$0xff]
    %v3174 = vld [vmem:[%s2367 + $0x289] sm:$0xff]
    %v3175 = vld [vmem:[%s2367 + $0x291] sm:$0xff]
    %v3176 = vld [vmem:[%s2367 + $0x2a9] sm:$0xff]
    %v3177 = vld [vmem:[%s2367 + $0x2b1] sm:$0xff]
    %v3178 = vld [vmem:[%s2367 + $0x2c9] sm:$0xff]
    %v3179 = vld [vmem:[%s2367 + $0x2d1] sm:$0xff]
    %v3180 = vld [vmem:[%s2367 + $0x2e9] sm:$0xff]
    %v3181 = vld [vmem:[%s2367 + $0x2f1] sm:$0xff]
    %v3182 = vld [vmem:[%s2367 + $0x309] sm:$0xff]
    %v3183 = vld [vmem:[%s2367 + $0x311] sm:$0xff]
    %v3184 = vld [vmem:[%s2367 + $0x329] sm:$0xff]
    %v3185 = vld [vmem:[%s2367 + $0x331] sm:$0xff]
    %v3186 = vld [vmem:[%s2367 + $0x349] sm:$0xff]
    %v3187 = vld [vmem:[%s2367 + $0x351] sm:$0xff]
    %v3188 = vld [vmem:[%s2367 + $0x369] sm:$0xff]
    %v3189 = vld [vmem:[%s2367 + $0x371] sm:$0xff]
    %v3190 = vld [vmem:[%s2367 + $0x389] sm:$0xff]
    %v3191 = vld [vmem:[%s2367 + $0x391] sm:$0xff]
    %v3192 = vld [vmem:[%s2367 + $0x3a9] sm:$0xff]
    %v3193 = vld [vmem:[%s2367 + $0x3b1] sm:$0xff]
    %v3194 = vld [vmem:[%s2367 + $0x3c9] sm:$0xff]
    %v3195 = vld [vmem:[%s2367 + $0x3d1] sm:$0xff]
    %v3196 = vld [vmem:[%s2367 + $0x3e9] sm:$0xff]
    %v3197 = vld [vmem:[%s2367 + $0x3f1] sm:$0xff]
    %v3198 = vld [vmem:[%s2367 + $0x409] sm:$0xff]
    %v3199 = vld [vmem:[%s2367 + $0x411] sm:$0xff]
    %v3200 = vld [vmem:[%s2367 + $0x429] sm:$0xff]
    %v3201 = vld [vmem:[%s2367 + $0x431] sm:$0xff]
    %3266 = vrot.lane.b32.xlu0 %v3138, 24
    %v3267 = vpop.permute.xlu0 %3266
    %3268 = vrot.lane.b32.xlu0 %v3139, 24
    %v3269 = vpop.permute.xlu0 %3268
    %3270 = vrot.lane.b32.xlu0 %v3140, 24
    %v3271 = vpop.permute.xlu0 %3270
    %3272 = vrot.lane.b32.xlu0 %v3141, 24
    %v3273 = vpop.permute.xlu0 %3272
    %3274 = vrot.lane.b32.xlu0 %v3142, 24
    %v3275 = vpop.permute.xlu0 %3274
    %3276 = vrot.lane.b32.xlu0 %v3143, 24
    %v3277 = vpop.permute.xlu0 %3276
    %3278 = vrot.lane.b32.xlu0 %v3144, 24
    %v3279 = vpop.permute.xlu0 %3278
    %3280 = vrot.lane.b32.xlu0 %v3145, 24
    %v3281 = vpop.permute.xlu0 %3280
    %3282 = vrot.lane.b32.xlu0 %v3146, 24
    %v3283 = vpop.permute.xlu0 %3282
    %3284 = vrot.lane.b32.xlu0 %v3147, 24
    %v3285 = vpop.permute.xlu0 %3284
    %3286 = vrot.lane.b32.xlu0 %v3148, 24
    %v3287 = vpop.permute.xlu0 %3286
    %3288 = vrot.lane.b32.xlu0 %v3149, 24
    %v3289 = vpop.permute.xlu0 %3288
    %3290 = vrot.lane.b32.xlu0 %v3150, 24
    %v3291 = vpop.permute.xlu0 %3290
    %3292 = vrot.lane.b32.xlu0 %v3151, 24
    %v3293 = vpop.permute.xlu0 %3292
    %3294 = vrot.lane.b32.xlu0 %v3152, 24
    %v3295 = vpop.permute.xlu0 %3294
    %3296 = vrot.lane.b32.xlu0 %v3153, 24
    %v3297 = vpop.permute.xlu0 %3296
    %3298 = vrot.lane.b32.xlu0 %v3154, 24
    %v3299 = vpop.permute.xlu0 %3298
    %3300 = vrot.lane.b32.xlu0 %v3155, 24
    %v3301 = vpop.permute.xlu0 %3300
    %3302 = vrot.lane.b32.xlu0 %v3156, 24
    %v3303 = vpop.permute.xlu0 %3302
    %3304 = vrot.lane.b32.xlu0 %v3157, 24
    %v3305 = vpop.permute.xlu0 %3304
    %3306 = vrot.lane.b32.xlu0 %v3158, 24
    %v3307 = vpop.permute.xlu0 %3306
    %3308 = vrot.lane.b32.xlu0 %v3159, 24
    %v3309 = vpop.permute.xlu0 %3308
    %3310 = vrot.lane.b32.xlu0 %v3160, 24
    %v3311 = vpop.permute.xlu0 %3310
    %3312 = vrot.lane.b32.xlu0 %v3161, 24
    %v3313 = vpop.permute.xlu0 %3312
    %3314 = vrot.lane.b32.xlu0 %v3162, 24
    %v3315 = vpop.permute.xlu0 %3314
    %3316 = vrot.lane.b32.xlu0 %v3163, 24
    %v3317 = vpop.permute.xlu0 %3316
    %3318 = vrot.lane.b32.xlu0 %v3164, 24
    %v3319 = vpop.permute.xlu0 %3318
    %3320 = vrot.lane.b32.xlu0 %v3165, 24
    %v3321 = vpop.permute.xlu0 %3320
    %3322 = vrot.lane.b32.xlu0 %v3166, 24
    %v3323 = vpop.permute.xlu0 %3322
    %3324 = vrot.lane.b32.xlu0 %v3167, 24
    %v3325 = vpop.permute.xlu0 %3324
    %3326 = vrot.lane.b32.xlu0 %v3168, 24
    %v3327 = vpop.permute.xlu0 %3326
    %3328 = vrot.lane.b32.xlu0 %v3169, 24
    %v3329 = vpop.permute.xlu0 %3328
    %3330 = vrot.lane.b32.xlu0 %v3170, 24
    %v3331 = vpop.permute.xlu0 %3330
    %3332 = vrot.lane.b32.xlu0 %v3171, 24
    %v3333 = vpop.permute.xlu0 %3332
    %3334 = vrot.lane.b32.xlu0 %v3172, 24
    %v3335 = vpop.permute.xlu0 %3334
    %3336 = vrot.lane.b32.xlu0 %v3173, 24
    %v3337 = vpop.permute.xlu0 %3336
    %3338 = vrot.lane.b32.xlu0 %v3174, 24
    %v3339 = vpop.permute.xlu0 %3338
    %3340 = vrot.lane.b32.xlu0 %v3175, 24
    %v3341 = vpop.permute.xlu0 %3340
    %3342 = vrot.lane.b32.xlu0 %v3176, 24
    %v3343 = vpop.permute.xlu0 %3342
    %3344 = vrot.lane.b32.xlu0 %v3177, 24
    %v3345 = vpop.permute.xlu0 %3344
    %3346 = vrot.lane.b32.xlu0 %v3178, 24
    %v3347 = vpop.permute.xlu0 %3346
    %3348 = vrot.lane.b32.xlu0 %v3179, 24
    %v3349 = vpop.permute.xlu0 %3348
    %3350 = vrot.lane.b32.xlu0 %v3180, 24
    %v3351 = vpop.permute.xlu0 %3350
    %3352 = vrot.lane.b32.xlu0 %v3181, 24
    %v3353 = vpop.permute.xlu0 %3352
    %3354 = vrot.lane.b32.xlu0 %v3182, 24
    %v3355 = vpop.permute.xlu0 %3354
    %3356 = vrot.lane.b32.xlu0 %v3183, 24
    %v3357 = vpop.permute.xlu0 %3356
    %3358 = vrot.lane.b32.xlu0 %v3184, 24
    %v3359 = vpop.permute.xlu0 %3358
    %3360 = vrot.lane.b32.xlu0 %v3185, 24
    %v3361 = vpop.permute.xlu0 %3360
    %3362 = vrot.lane.b32.xlu0 %v3186, 24
    %v3363 = vpop.permute.xlu0 %3362
    %3364 = vrot.lane.b32.xlu0 %v3187, 24
    %v3365 = vpop.permute.xlu0 %3364
    %3366 = vrot.lane.b32.xlu0 %v3188, 24
    %v3367 = vpop.permute.xlu0 %3366
    %3368 = vrot.lane.b32.xlu0 %v3189, 24
    %v3369 = vpop.permute.xlu0 %3368
    %3370 = vrot.lane.b32.xlu0 %v3190, 24
    %v3371 = vpop.permute.xlu0 %3370
    %3372 = vrot.lane.b32.xlu0 %v3191, 24
    %v3373 = vpop.permute.xlu0 %3372
    %3374 = vrot.lane.b32.xlu0 %v3192, 24
    %v3375 = vpop.permute.xlu0 %3374
    %3376 = vrot.lane.b32.xlu0 %v3193, 24
    %v3377 = vpop.permute.xlu0 %3376
    %3378 = vrot.lane.b32.xlu0 %v3194, 24
    %v3379 = vpop.permute.xlu0 %3378
    %3380 = vrot.lane.b32.xlu0 %v3195, 24
    %v3381 = vpop.permute.xlu0 %3380
    %3382 = vrot.lane.b32.xlu0 %v3196, 24
    %v3383 = vpop.permute.xlu0 %3382
    %3384 = vrot.lane.b32.xlu0 %v3197, 24
    %v3385 = vpop.permute.xlu0 %3384
    %3386 = vrot.lane.b32.xlu0 %v3198, 24
    %v3387 = vpop.permute.xlu0 %3386
    %3388 = vrot.lane.b32.xlu0 %v3199, 24
    %v3389 = vpop.permute.xlu0 %3388
    %3390 = vrot.lane.b32.xlu0 %v3200, 24
    %v3391 = vpop.permute.xlu0 %3390
    %3392 = vrot.lane.b32.xlu0 %v3201, 24
    %v3393 = vpop.permute.xlu0 %3392
    %vm3458 = vcmask 220352
    %3459 = vst.msk [vmem:[#allocation3] sm:$0xff] %vm3458, %v3267
    %3460 = vst.msk [vmem:[#allocation3 + $0x8] sm:$0xff] %vm3458, %v3269
    %3461 = vst.msk [vmem:[#allocation3 + $0x10] sm:$0xff] %vm3458, %v3271
    %3462 = vst.msk [vmem:[#allocation3 + $0x18] sm:$0xff] %vm3458, %v3273
    %3463 = vst.msk [vmem:[#allocation3 + $0x20] sm:$0xff] %vm3458, %v3275
    %3464 = vst.msk [vmem:[#allocation3 + $0x28] sm:$0xff] %vm3458, %v3277
    %3465 = vst.msk [vmem:[#allocation3 + $0x30] sm:$0xff] %vm3458, %v3279
    %3466 = vst.msk [vmem:[#allocation3 + $0x38] sm:$0xff] %vm3458, %v3281
    %3467 = vst.msk [vmem:[#allocation3 + $0x40] sm:$0xff] %vm3458, %v3283
    %3468 = vst.msk [vmem:[#allocation3 + $0x48] sm:$0xff] %vm3458, %v3285
    %3469 = vst.msk [vmem:[#allocation3 + $0x50] sm:$0xff] %vm3458, %v3287
    %3470 = vst.msk [vmem:[#allocation3 + $0x58] sm:$0xff] %vm3458, %v3289
    %3471 = vst.msk [vmem:[#allocation3 + $0x60] sm:$0xff] %vm3458, %v3291
    %3472 = vst.msk [vmem:[#allocation3 + $0x68] sm:$0xff] %vm3458, %v3293
    %3473 = vst.msk [vmem:[#allocation3 + $0x70] sm:$0xff] %vm3458, %v3295
    %3474 = vst.msk [vmem:[#allocation3 + $0x78] sm:$0xff] %vm3458, %v3297
    %3475 = vst.msk [vmem:[#allocation3 + $0x80] sm:$0xff] %vm3458, %v3299
    %3476 = vst.msk [vmem:[#allocation3 + $0x88] sm:$0xff] %vm3458, %v3301
    %3477 = vst.msk [vmem:[#allocation3 + $0x90] sm:$0xff] %vm3458, %v3303
    %3478 = vst.msk [vmem:[#allocation3 + $0x98] sm:$0xff] %vm3458, %v3305
    %3479 = vst.msk [vmem:[#allocation3 + $0xa0] sm:$0xff] %vm3458, %v3307
    %3480 = vst.msk [vmem:[#allocation3 + $0xa8] sm:$0xff] %vm3458, %v3309
    %3481 = vst.msk [vmem:[#allocation3 + $0xb0] sm:$0xff] %vm3458, %v3311
    %3482 = vst.msk [vmem:[#allocation3 + $0xb8] sm:$0xff] %vm3458, %v3313
    %3483 = vst.msk [vmem:[#allocation3 + $0xc0] sm:$0xff] %vm3458, %v3315
    %3484 = vst.msk [vmem:[#allocation3 + $0xc8] sm:$0xff] %vm3458, %v3317
    %3485 = vst.msk [vmem:[#allocation3 + $0xd0] sm:$0xff] %vm3458, %v3319
    %3486 = vst.msk [vmem:[#allocation3 + $0xd8] sm:$0xff] %vm3458, %v3321
    %3487 = vst.msk [vmem:[#allocation3 + $0xe0] sm:$0xff] %vm3458, %v3323
    %3488 = vst.msk [vmem:[#allocation3 + $0xe8] sm:$0xff] %vm3458, %v3325
    %3489 = vst.msk [vmem:[#allocation3 + $0xf0] sm:$0xff] %vm3458, %v3327
    %3490 = vst.msk [vmem:[#allocation3 + $0xf8] sm:$0xff] %vm3458, %v3329
    %3491 = vst.msk [vmem:[#allocation3 + $0x100] sm:$0xff] %vm3458, %v3331
    %3492 = vst.msk [vmem:[#allocation3 + $0x108] sm:$0xff] %vm3458, %v3333
    %3493 = vst.msk [vmem:[#allocation3 + $0x110] sm:$0xff] %vm3458, %v3335
    %3494 = vst.msk [vmem:[#allocation3 + $0x118] sm:$0xff] %vm3458, %v3337
    %3495 = vst.msk [vmem:[#allocation3 + $0x120] sm:$0xff] %vm3458, %v3339
    %3496 = vst.msk [vmem:[#allocation3 + $0x128] sm:$0xff] %vm3458, %v3341
    %3497 = vst.msk [vmem:[#allocation3 + $0x130] sm:$0xff] %vm3458, %v3343
    %3498 = vst.msk [vmem:[#allocation3 + $0x138] sm:$0xff] %vm3458, %v3345
    %3499 = vst.msk [vmem:[#allocation3 + $0x140] sm:$0xff] %vm3458, %v3347
    %3500 = vst.msk [vmem:[#allocation3 + $0x148] sm:$0xff] %vm3458, %v3349
    %3501 = vst.msk [vmem:[#allocation3 + $0x150] sm:$0xff] %vm3458, %v3351
    %3502 = vst.msk [vmem:[#allocation3 + $0x158] sm:$0xff] %vm3458, %v3353
    %3503 = vst.msk [vmem:[#allocation3 + $0x160] sm:$0xff] %vm3458, %v3355
    %3504 = vst.msk [vmem:[#allocation3 + $0x168] sm:$0xff] %vm3458, %v3357
    %3505 = vst.msk [vmem:[#allocation3 + $0x170] sm:$0xff] %vm3458, %v3359
    %3506 = vst.msk [vmem:[#allocation3 + $0x178] sm:$0xff] %vm3458, %v3361
    %3507 = vst.msk [vmem:[#allocation3 + $0x180] sm:$0xff] %vm3458, %v3363
    %3508 = vst.msk [vmem:[#allocation3 + $0x188] sm:$0xff] %vm3458, %v3365
    %3509 = vst.msk [vmem:[#allocation3 + $0x190] sm:$0xff] %vm3458, %v3367
    %3510 = vst.msk [vmem:[#allocation3 + $0x198] sm:$0xff] %vm3458, %v3369
    %3511 = vst.msk [vmem:[#allocation3 + $0x1a0] sm:$0xff] %vm3458, %v3371
    %3512 = vst.msk [vmem:[#allocation3 + $0x1a8] sm:$0xff] %vm3458, %v3373
    %3513 = vst.msk [vmem:[#allocation3 + $0x1b0] sm:$0xff] %vm3458, %v3375
    %3514 = vst.msk [vmem:[#allocation3 + $0x1b8] sm:$0xff] %vm3458, %v3377
    %3515 = vst.msk [vmem:[#allocation3 + $0x1c0] sm:$0xff] %vm3458, %v3379
    %3516 = vst.msk [vmem:[#allocation3 + $0x1c8] sm:$0xff] %vm3458, %v3381
    %3517 = vst.msk [vmem:[#allocation3 + $0x1d0] sm:$0xff] %vm3458, %v3383
    %3518 = vst.msk [vmem:[#allocation3 + $0x1d8] sm:$0xff] %vm3458, %v3385
    %3519 = vst.msk [vmem:[#allocation3 + $0x1e0] sm:$0xff] %vm3458, %v3387
    %3520 = vst.msk [vmem:[#allocation3 + $0x1e8] sm:$0xff] %vm3458, %v3389
    %3521 = vst.msk [vmem:[#allocation3 + $0x1f0] sm:$0xff] %vm3458, %v3391
    %3522 = vst.msk [vmem:[#allocation3 + $0x1f8] sm:$0xff] %vm3458, %v3393
    %v3523 = vld [vmem:[#allocation3] sm:$0xff]
    %v3524 = vld [vmem:[#allocation3 + $0x8] sm:$0xff]
    %v3525 = vld [vmem:[#allocation3 + $0x10] sm:$0xff]
    %v3526 = vld [vmem:[#allocation3 + $0x18] sm:$0xff]
    %v3527 = vld [vmem:[#allocation3 + $0x20] sm:$0xff]
    %v3528 = vld [vmem:[#allocation3 + $0x28] sm:$0xff]
    %v3529 = vld [vmem:[#allocation3 + $0x30] sm:$0xff]
    %v3530 = vld [vmem:[#allocation3 + $0x38] sm:$0xff]
    %v3531 = vld [vmem:[#allocation3 + $0x40] sm:$0xff]
    %v3532 = vld [vmem:[#allocation3 + $0x48] sm:$0xff]
    %v3533 = vld [vmem:[#allocation3 + $0x50] sm:$0xff]
    %v3534 = vld [vmem:[#allocation3 + $0x58] sm:$0xff]
    %v3535 = vld [vmem:[#allocation3 + $0x60] sm:$0xff]
    %v3536 = vld [vmem:[#allocation3 + $0x68] sm:$0xff]
    %v3537 = vld [vmem:[#allocation3 + $0x70] sm:$0xff]
    %v3538 = vld [vmem:[#allocation3 + $0x78] sm:$0xff]
    %v3539 = vld [vmem:[#allocation3 + $0x80] sm:$0xff]
    %v3540 = vld [vmem:[#allocation3 + $0x88] sm:$0xff]
    %v3541 = vld [vmem:[#allocation3 + $0x90] sm:$0xff]
    %v3542 = vld [vmem:[#allocation3 + $0x98] sm:$0xff]
    %v3543 = vld [vmem:[#allocation3 + $0xa0] sm:$0xff]
    %v3544 = vld [vmem:[#allocation3 + $0xa8] sm:$0xff]
    %v3545 = vld [vmem:[#allocation3 + $0xb0] sm:$0xff]
    %v3546 = vld [vmem:[#allocation3 + $0xb8] sm:$0xff]
    %v3547 = vld [vmem:[#allocation3 + $0xc0] sm:$0xff]
    %v3548 = vld [vmem:[#allocation3 + $0xc8] sm:$0xff]
    %v3549 = vld [vmem:[#allocation3 + $0xd0] sm:$0xff]
    %v3550 = vld [vmem:[#allocation3 + $0xd8] sm:$0xff]
    %v3551 = vld [vmem:[#allocation3 + $0xe0] sm:$0xff]
    %v3552 = vld [vmem:[#allocation3 + $0xe8] sm:$0xff]
    %v3553 = vld [vmem:[#allocation3 + $0xf0] sm:$0xff]
    %v3554 = vld [vmem:[#allocation3 + $0xf8] sm:$0xff]
    %v3555 = vld [vmem:[#allocation3 + $0x100] sm:$0xff]
    %v3556 = vld [vmem:[#allocation3 + $0x108] sm:$0xff]
    %v3557 = vld [vmem:[#allocation3 + $0x110] sm:$0xff]
    %v3558 = vld [vmem:[#allocation3 + $0x118] sm:$0xff]
    %v3559 = vld [vmem:[#allocation3 + $0x120] sm:$0xff]
    %v3560 = vld [vmem:[#allocation3 + $0x128] sm:$0xff]
    %v3561 = vld [vmem:[#allocation3 + $0x130] sm:$0xff]
    %v3562 = vld [vmem:[#allocation3 + $0x138] sm:$0xff]
    %v3563 = vld [vmem:[#allocation3 + $0x140] sm:$0xff]
    %v3564 = vld [vmem:[#allocation3 + $0x148] sm:$0xff]
    %v3565 = vld [vmem:[#allocation3 + $0x150] sm:$0xff]
    %v3566 = vld [vmem:[#allocation3 + $0x158] sm:$0xff]
    %v3567 = vld [vmem:[#allocation3 + $0x160] sm:$0xff]
    %v3568 = vld [vmem:[#allocation3 + $0x168] sm:$0xff]
    %v3569 = vld [vmem:[#allocation3 + $0x170] sm:$0xff]
    %v3570 = vld [vmem:[#allocation3 + $0x178] sm:$0xff]
    %v3571 = vld [vmem:[#allocation3 + $0x180] sm:$0xff]
    %v3572 = vld [vmem:[#allocation3 + $0x188] sm:$0xff]
    %v3573 = vld [vmem:[#allocation3 + $0x190] sm:$0xff]
    %v3574 = vld [vmem:[#allocation3 + $0x198] sm:$0xff]
    %v3575 = vld [vmem:[#allocation3 + $0x1a0] sm:$0xff]
    %v3576 = vld [vmem:[#allocation3 + $0x1a8] sm:$0xff]
    %v3577 = vld [vmem:[#allocation3 + $0x1b0] sm:$0xff]
    %v3578 = vld [vmem:[#allocation3 + $0x1b8] sm:$0xff]
    %v3579 = vld [vmem:[#allocation3 + $0x1c0] sm:$0xff]
    %v3580 = vld [vmem:[#allocation3 + $0x1c8] sm:$0xff]
    %v3581 = vld [vmem:[#allocation3 + $0x1d0] sm:$0xff]
    %v3582 = vld [vmem:[#allocation3 + $0x1d8] sm:$0xff]
    %v3583 = vld [vmem:[#allocation3 + $0x1e0] sm:$0xff]
    %v3584 = vld [vmem:[#allocation3 + $0x1e8] sm:$0xff]
    %v3585 = vld [vmem:[#allocation3 + $0x1f0] sm:$0xff]
    %v3586 = vld [vmem:[#allocation3 + $0x1f8] sm:$0xff]
    %v3587 = vpack.c.bf16 %v3524, %v3523
    %v3588 = vpack.c.bf16 %v3526, %v3525
    %v3589 = vpack.c.bf16 %v3528, %v3527
    %v3590 = vpack.c.bf16 %v3530, %v3529
    %v3591 = vpack.c.bf16 %v3532, %v3531
    %v3592 = vpack.c.bf16 %v3534, %v3533
    %v3593 = vpack.c.bf16 %v3536, %v3535
    %v3594 = vpack.c.bf16 %v3538, %v3537
    %v3595 = vpack.c.bf16 %v3540, %v3539
    %v3596 = vpack.c.bf16 %v3542, %v3541
    %v3597 = vpack.c.bf16 %v3544, %v3543
    %v3598 = vpack.c.bf16 %v3546, %v3545
    %v3599 = vpack.c.bf16 %v3548, %v3547
    %v3600 = vpack.c.bf16 %v3550, %v3549
    %v3601 = vpack.c.bf16 %v3552, %v3551
    %v3602 = vpack.c.bf16 %v3554, %v3553
    %v3603 = vpack.c.bf16 %v3556, %v3555
    %v3604 = vpack.c.bf16 %v3558, %v3557
    %v3605 = vpack.c.bf16 %v3560, %v3559
    %v3606 = vpack.c.bf16 %v3562, %v3561
    %v3607 = vpack.c.bf16 %v3564, %v3563
    %v3608 = vpack.c.bf16 %v3566, %v3565
    %v3609 = vpack.c.bf16 %v3568, %v3567
    %v3610 = vpack.c.bf16 %v3570, %v3569
    %v3611 = vpack.c.bf16 %v3572, %v3571
    %v3612 = vpack.c.bf16 %v3574, %v3573
    %v3613 = vpack.c.bf16 %v3576, %v3575
    %v3614 = vpack.c.bf16 %v3578, %v3577
    %v3615 = vpack.c.bf16 %v3580, %v3579
    %v3616 = vpack.c.bf16 %v3582, %v3581
    %v3617 = vpack.c.bf16 %v3584, %v3583
    %v3618 = vpack.c.bf16 %v3586, %v3585
    %v3619 = vld [vmem:[%s1] sm:$0xf]
    %v3620 = vld [vmem:[%s1 + $0x4] sm:$0xf]
    %v3621 = vld [vmem:[%s1 + $0x8] sm:$0xf]
    %v3622 = vld [vmem:[%s1 + $0xc] sm:$0x3]
    %v3623 = vld [vmem:[%s2] sm:$0x1]
    %v3625 = vlaneseq
    %v3626 = vshrl.u32 %v3625, 7
    %v3627 = vsub.s32 0, %v3626
    %v3628 = vrot.slane %v3623, %v3627
    %v3634 = vunpack.c.l.b16 %v3619
    %v3635 = vunpack.c.l.b16 %v3620
    %v3636 = vunpack.c.l.b16 %v3621
    %v3637 = vunpack.c.l.b16 %v3622
    %v3638 = vpack.c.b16 %v3635, %v3634
    %v3639 = vpack.c.b16 %v3637, %v3636
    %vm3641 = vcmask 220160
    %v3643 = vsel %vm3641, %v3587, 0
    %v3646 = vsel %vm3641, %v3588, 0
    %v3649 = vsel %vm3641, %v3589, 0
    %v3652 = vsel %vm3641, %v3590, 0
    %v3655 = vsel %vm3641, %v3591, 0
    %v3658 = vsel %vm3641, %v3592, 0
    %v3661 = vsel %vm3641, %v3593, 0
    %v3664 = vsel %vm3641, %v3594, 0
    %v3667 = vsel %vm3641, %v3595, 0
    %v3670 = vsel %vm3641, %v3596, 0
    %v3673 = vsel %vm3641, %v3597, 0
    %v3676 = vsel %vm3641, %v3598, 0
    %v3679 = vsel %vm3641, %v3599, 0
    %v3682 = vsel %vm3641, %v3600, 0
    %v3685 = vsel %vm3641, %v3601, 0
    %v3688 = vsel %vm3641, %v3602, 0
    %v3691 = vsel %vm3641, %v3603, 0
    %v3694 = vsel %vm3641, %v3604, 0
    %v3697 = vsel %vm3641, %v3605, 0
    %v3700 = vsel %vm3641, %v3606, 0
    %v3703 = vsel %vm3641, %v3607, 0
    %v3706 = vsel %vm3641, %v3608, 0
    %v3709 = vsel %vm3641, %v3609, 0
    %v3712 = vsel %vm3641, %v3610, 0
    %v3715 = vsel %vm3641, %v3611, 0
    %v3718 = vsel %vm3641, %v3612, 0
    %v3721 = vsel %vm3641, %v3613, 0
    %v3724 = vsel %vm3641, %v3614, 0
    %v3727 = vsel %vm3641, %v3615, 0
    %v3730 = vsel %vm3641, %v3616, 0
    %v3733 = vsel %vm3641, %v3617, 0
    %v3736 = vsel %vm3641, %v3618, 0
    %vm3738 = vcmask 1044480
    %vm3739 = vcmask 1045504
    %v3740 = vsel %vm3738, 4294967295, 65535
    %v3741 = vsel %vm3739, %v3740, 0
    %v3743 = vand.u32 %v3639, %v3741
    %3745 = vmatprep.subr.bf16.mxu0 0
    %3746 = vmatpush1.bf16.msra.mxu0 0
    %3747 = vmatprep.subr.bf16.mxu0 0
    %3748 = vmatpush1.bf16.msra.mxu0 0
    %3749 = vmatprep.subr.bf16.mxu0 0
    %3750 = vmatpush1.bf16.msra.mxu0 0
    %3751 = vmatprep.subr.bf16.mxu0 0
    %3752 = vmatpush1.bf16.msra.mxu0 0
    %3753 = vmatprep.subr.bf16.mxu0 0
    %3754 = vmatpush1.bf16.msra.mxu0 0
    %3755 = vmatprep.subr.bf16.mxu0 0
    %3756 = vmatpush1.bf16.msra.mxu0 0
    %3757 = vmatprep.subr.bf16.mxu0 0
    %3758 = vmatpush1.bf16.msra.mxu0 %v3743
    %3759 = vmatprep.subr.bf16.mxu0 0
    %3760 = vmatpush1.bf16.msra.mxu0 %v3638
    %3761 = vmatprep.subr.bf16.mxu0 0
    %3762 = vmatpush2.bf16.msra.mxu0 0
    %3763 = vmatprep.subr.bf16.mxu0 0
    %3764 = vmatpush2.bf16.msra.mxu0 0
    %3765 = vmatprep.subr.bf16.mxu0 0
    %3766 = vmatpush2.bf16.msra.mxu0 0
    %3767 = vmatprep.subr.bf16.mxu0 0
    %3768 = vmatpush2.bf16.msra.mxu0 0
    %3769 = vmatprep.subr.bf16.mxu0 0
    %3770 = vmatpush2.bf16.msra.mxu0 0
    %3771 = vmatprep.subr.bf16.mxu0 0
    %3772 = vmatpush2.bf16.msra.mxu0 0
    %3773 = vmatprep.subr.bf16.mxu0 0
    %3774 = vmatpush2.bf16.msra.mxu0 0
    %3775 = vmatprep.subr.bf16.mxu0 0
    %3776 = vmatpush2.bf16.msra.mxu0 0
    %3777 = vmatprep.mubr.bf16.mxu0 0
    %3778 = vmatmul.mubr.bf16.gmra.mxu0 %v3643
    %v3779 = vpop.f32.mrf.mxu0
    %v3780 = vadd.f32 %v3628, %v3779
    %v3781 = vpop.f32.mrf.mxu0
    %v3782 = vpop.f32.mrf.mxu0
    %v3783 = vadd.f32 %v3628, %v3782
    %v3784 = vpop.f32.mrf.mxu0
    %3785 = vmatprep.mubr.bf16.mxu0 0
    %3786 = vmatmul.mubr.bf16.gmra.mxu0 %v3646
    %v3787 = vpop.f32.mrf.mxu0
    %v3788 = vadd.f32 %v3628, %v3787
    %v3789 = vpop.f32.mrf.mxu0
    %v3790 = vpop.f32.mrf.mxu0
    %v3791 = vadd.f32 %v3628, %v3790
    %v3792 = vpop.f32.mrf.mxu0
    %3793 = vmatprep.mubr.bf16.mxu0 0
    %3794 = vmatmul.mubr.bf16.gmra.mxu0 %v3649
    %v3795 = vpop.f32.mrf.mxu0
    %v3796 = vadd.f32 %v3628, %v3795
    %v3797 = vpop.f32.mrf.mxu0
    %v3798 = vpop.f32.mrf.mxu0
    %v3799 = vadd.f32 %v3628, %v3798
    %v3800 = vpop.f32.mrf.mxu0
    %3801 = vmatprep.mubr.bf16.mxu0 0
    %3802 = vmatmul.mubr.bf16.gmra.mxu0 %v3652
    %v3803 = vpop.f32.mrf.mxu0
    %v3804 = vadd.f32 %v3628, %v3803
    %v3805 = vpop.f32.mrf.mxu0
    %v3806 = vpop.f32.mrf.mxu0
    %v3807 = vadd.f32 %v3628, %v3806
    %v3808 = vpop.f32.mrf.mxu0
    %3809 = vmatprep.mubr.bf16.mxu0 0
    %3810 = vmatmul.mubr.bf16.gmra.mxu0 %v3655
    %v3811 = vpop.f32.mrf.mxu0
    %v3812 = vadd.f32 %v3628, %v3811
    %v3813 = vpop.f32.mrf.mxu0
    %v3814 = vpop.f32.mrf.mxu0
    %v3815 = vadd.f32 %v3628, %v3814
    %v3816 = vpop.f32.mrf.mxu0
    %3817 = vmatprep.mubr.bf16.mxu0 0
    %3818 = vmatmul.mubr.bf16.gmra.mxu0 %v3658
    %v3819 = vpop.f32.mrf.mxu0
    %v3820 = vadd.f32 %v3628, %v3819
    %v3821 = vpop.f32.mrf.mxu0
    %v3822 = vpop.f32.mrf.mxu0
    %v3823 = vadd.f32 %v3628, %v3822
    %v3824 = vpop.f32.mrf.mxu0
    %3825 = vmatprep.mubr.bf16.mxu0 0
    %3826 = vmatmul.mubr.bf16.gmra.mxu0 %v3661
    %v3827 = vpop.f32.mrf.mxu0
    %v3828 = vadd.f32 %v3628, %v3827
    %v3829 = vpop.f32.mrf.mxu0
    %v3830 = vpop.f32.mrf.mxu0
    %v3831 = vadd.f32 %v3628, %v3830
    %v3832 = vpop.f32.mrf.mxu0
    %3833 = vmatprep.mubr.bf16.mxu0 0
    %3834 = vmatmul.mubr.bf16.gmra.mxu0 %v3664
    %v3835 = vpop.f32.mrf.mxu0
    %v3836 = vadd.f32 %v3628, %v3835
    %v3837 = vpop.f32.mrf.mxu0
    %v3838 = vpop.f32.mrf.mxu0
    %v3839 = vadd.f32 %v3628, %v3838
    %v3840 = vpop.f32.mrf.mxu0
    %3841 = vmatprep.mubr.bf16.mxu0 0
    %3842 = vmatmul.mubr.bf16.gmra.mxu0 %v3667
    %v3843 = vpop.f32.mrf.mxu0
    %v3844 = vadd.f32 %v3628, %v3843
    %v3845 = vpop.f32.mrf.mxu0
    %v3846 = vpop.f32.mrf.mxu0
    %v3847 = vadd.f32 %v3628, %v3846
    %v3848 = vpop.f32.mrf.mxu0
    %3849 = vmatprep.mubr.bf16.mxu0 0
    %3850 = vmatmul.mubr.bf16.gmra.mxu0 %v3670
    %v3851 = vpop.f32.mrf.mxu0
    %v3852 = vadd.f32 %v3628, %v3851
    %v3853 = vpop.f32.mrf.mxu0
    %v3854 = vpop.f32.mrf.mxu0
    %v3855 = vadd.f32 %v3628, %v3854
    %v3856 = vpop.f32.mrf.mxu0
    %3857 = vmatprep.mubr.bf16.mxu0 0
    %3858 = vmatmul.mubr.bf16.gmra.mxu0 %v3673
    %v3859 = vpop.f32.mrf.mxu0
    %v3860 = vadd.f32 %v3628, %v3859
    %v3861 = vpop.f32.mrf.mxu0
    %v3862 = vpop.f32.mrf.mxu0
    %v3863 = vadd.f32 %v3628, %v3862
    %v3864 = vpop.f32.mrf.mxu0
    %3865 = vmatprep.mubr.bf16.mxu0 0
    %3866 = vmatmul.mubr.bf16.gmra.mxu0 %v3676
    %v3867 = vpop.f32.mrf.mxu0
    %v3868 = vadd.f32 %v3628, %v3867
    %v3869 = vpop.f32.mrf.mxu0
    %v3870 = vpop.f32.mrf.mxu0
    %v3871 = vadd.f32 %v3628, %v3870
    %v3872 = vpop.f32.mrf.mxu0
    %3873 = vmatprep.mubr.bf16.mxu0 0
    %3874 = vmatmul.mubr.bf16.gmra.mxu0 %v3679
    %v3875 = vpop.f32.mrf.mxu0
    %v3876 = vadd.f32 %v3628, %v3875
    %v3877 = vpop.f32.mrf.mxu0
    %v3878 = vpop.f32.mrf.mxu0
    %v3879 = vadd.f32 %v3628, %v3878
    %v3880 = vpop.f32.mrf.mxu0
    %3881 = vmatprep.mubr.bf16.mxu0 0
    %3882 = vmatmul.mubr.bf16.gmra.mxu0 %v3682
    %v3883 = vpop.f32.mrf.mxu0
    %v3884 = vadd.f32 %v3628, %v3883
    %v3885 = vpop.f32.mrf.mxu0
    %v3886 = vpop.f32.mrf.mxu0
    %v3887 = vadd.f32 %v3628, %v3886
    %v3888 = vpop.f32.mrf.mxu0
    %3889 = vmatprep.mubr.bf16.mxu0 0
    %3890 = vmatmul.mubr.bf16.gmra.mxu0 %v3685
    %v3891 = vpop.f32.mrf.mxu0
    %v3892 = vadd.f32 %v3628, %v3891
    %v3893 = vpop.f32.mrf.mxu0
    %v3894 = vpop.f32.mrf.mxu0
    %v3895 = vadd.f32 %v3628, %v3894
    %v3896 = vpop.f32.mrf.mxu0
    %3897 = vmatprep.mubr.bf16.mxu0 0
    %3898 = vmatmul.mubr.bf16.gmra.mxu0 %v3688
    %v3899 = vpop.f32.mrf.mxu0
    %v3900 = vadd.f32 %v3628, %v3899
    %v3901 = vpop.f32.mrf.mxu0
    %v3902 = vpop.f32.mrf.mxu0
    %v3903 = vadd.f32 %v3628, %v3902
    %v3904 = vpop.f32.mrf.mxu0
    %3905 = vmatprep.mubr.bf16.mxu0 0
    %3906 = vmatmul.mubr.bf16.gmra.mxu0 %v3691
    %v3907 = vpop.f32.mrf.mxu0
    %v3908 = vadd.f32 %v3628, %v3907
    %v3909 = vpop.f32.mrf.mxu0
    %v3910 = vpop.f32.mrf.mxu0
    %v3911 = vadd.f32 %v3628, %v3910
    %v3912 = vpop.f32.mrf.mxu0
    %3913 = vmatprep.mubr.bf16.mxu0 0
    %3914 = vmatmul.mubr.bf16.gmra.mxu0 %v3694
    %v3915 = vpop.f32.mrf.mxu0
    %v3916 = vadd.f32 %v3628, %v3915
    %v3917 = vpop.f32.mrf.mxu0
    %v3918 = vpop.f32.mrf.mxu0
    %v3919 = vadd.f32 %v3628, %v3918
    %v3920 = vpop.f32.mrf.mxu0
    %3921 = vmatprep.mubr.bf16.mxu0 0
    %3922 = vmatmul.mubr.bf16.gmra.mxu0 %v3697
    %v3923 = vpop.f32.mrf.mxu0
    %v3924 = vadd.f32 %v3628, %v3923
    %v3925 = vpop.f32.mrf.mxu0
    %v3926 = vpop.f32.mrf.mxu0
    %v3927 = vadd.f32 %v3628, %v3926
    %v3928 = vpop.f32.mrf.mxu0
    %3929 = vmatprep.mubr.bf16.mxu0 0
    %3930 = vmatmul.mubr.bf16.gmra.mxu0 %v3700
    %v3931 = vpop.f32.mrf.mxu0
    %v3932 = vadd.f32 %v3628, %v3931
    %v3933 = vpop.f32.mrf.mxu0
    %v3934 = vpop.f32.mrf.mxu0
    %v3935 = vadd.f32 %v3628, %v3934
    %v3936 = vpop.f32.mrf.mxu0
    %3937 = vmatprep.mubr.bf16.mxu0 0
    %3938 = vmatmul.mubr.bf16.gmra.mxu0 %v3703
    %v3939 = vpop.f32.mrf.mxu0
    %v3940 = vadd.f32 %v3628, %v3939
    %v3941 = vpop.f32.mrf.mxu0
    %v3942 = vpop.f32.mrf.mxu0
    %v3943 = vadd.f32 %v3628, %v3942
    %v3944 = vpop.f32.mrf.mxu0
    %3945 = vmatprep.mubr.bf16.mxu0 0
    %3946 = vmatmul.mubr.bf16.gmra.mxu0 %v3706
    %v3947 = vpop.f32.mrf.mxu0
    %v3948 = vadd.f32 %v3628, %v3947
    %v3949 = vpop.f32.mrf.mxu0
    %v3950 = vpop.f32.mrf.mxu0
    %v3951 = vadd.f32 %v3628, %v3950
    %v3952 = vpop.f32.mrf.mxu0
    %3953 = vmatprep.mubr.bf16.mxu0 0
    %3954 = vmatmul.mubr.bf16.gmra.mxu0 %v3709
    %v3955 = vpop.f32.mrf.mxu0
    %v3956 = vadd.f32 %v3628, %v3955
    %v3957 = vpop.f32.mrf.mxu0
    %v3958 = vpop.f32.mrf.mxu0
    %v3959 = vadd.f32 %v3628, %v3958
    %v3960 = vpop.f32.mrf.mxu0
    %3961 = vmatprep.mubr.bf16.mxu0 0
    %3962 = vmatmul.mubr.bf16.gmra.mxu0 %v3712
    %v3963 = vpop.f32.mrf.mxu0
    %v3964 = vadd.f32 %v3628, %v3963
    %v3965 = vpop.f32.mrf.mxu0
    %v3966 = vpop.f32.mrf.mxu0
    %v3967 = vadd.f32 %v3628, %v3966
    %v3968 = vpop.f32.mrf.mxu0
    %3969 = vmatprep.mubr.bf16.mxu0 0
    %3970 = vmatmul.mubr.bf16.gmra.mxu0 %v3715
    %v3971 = vpop.f32.mrf.mxu0
    %v3972 = vadd.f32 %v3628, %v3971
    %v3973 = vpop.f32.mrf.mxu0
    %v3974 = vpop.f32.mrf.mxu0
    %v3975 = vadd.f32 %v3628, %v3974
    %v3976 = vpop.f32.mrf.mxu0
    %3977 = vmatprep.mubr.bf16.mxu0 0
    %3978 = vmatmul.mubr.bf16.gmra.mxu0 %v3718
    %v3979 = vpop.f32.mrf.mxu0
    %v3980 = vadd.f32 %v3628, %v3979
    %v3981 = vpop.f32.mrf.mxu0
    %v3982 = vpop.f32.mrf.mxu0
    %v3983 = vadd.f32 %v3628, %v3982
    %v3984 = vpop.f32.mrf.mxu0
    %3985 = vmatprep.mubr.bf16.mxu0 0
    %3986 = vmatmul.mubr.bf16.gmra.mxu0 %v3721
    %v3987 = vpop.f32.mrf.mxu0
    %v3988 = vadd.f32 %v3628, %v3987
    %v3989 = vpop.f32.mrf.mxu0
    %v3990 = vpop.f32.mrf.mxu0
    %v3991 = vadd.f32 %v3628, %v3990
    %v3992 = vpop.f32.mrf.mxu0
    %3993 = vmatprep.mubr.bf16.mxu0 0
    %3994 = vmatmul.mubr.bf16.gmra.mxu0 %v3724
    %v3995 = vpop.f32.mrf.mxu0
    %v3996 = vadd.f32 %v3628, %v3995
    %v3997 = vpop.f32.mrf.mxu0
    %v3998 = vpop.f32.mrf.mxu0
    %v3999 = vadd.f32 %v3628, %v3998
    %v4000 = vpop.f32.mrf.mxu0
    %4001 = vmatprep.mubr.bf16.mxu0 0
    %4002 = vmatmul.mubr.bf16.gmra.mxu0 %v3727
    %v4003 = vpop.f32.mrf.mxu0
    %v4004 = vadd.f32 %v3628, %v4003
    %v4005 = vpop.f32.mrf.mxu0
    %v4006 = vpop.f32.mrf.mxu0
    %v4007 = vadd.f32 %v3628, %v4006
    %v4008 = vpop.f32.mrf.mxu0
    %4009 = vmatprep.mubr.bf16.mxu0 0
    %4010 = vmatmul.mubr.bf16.gmra.mxu0 %v3730
    %v4011 = vpop.f32.mrf.mxu0
    %v4012 = vadd.f32 %v3628, %v4011
    %v4013 = vpop.f32.mrf.mxu0
    %v4014 = vpop.f32.mrf.mxu0
    %v4015 = vadd.f32 %v3628, %v4014
    %v4016 = vpop.f32.mrf.mxu0
    %4017 = vmatprep.mubr.bf16.mxu0 0
    %4018 = vmatmul.mubr.bf16.gmra.mxu0 %v3733
    %v4019 = vpop.f32.mrf.mxu0
    %v4020 = vadd.f32 %v3628, %v4019
    %v4021 = vpop.f32.mrf.mxu0
    %v4022 = vpop.f32.mrf.mxu0
    %v4023 = vadd.f32 %v3628, %v4022
    %v4024 = vpop.f32.mrf.mxu0
    %4025 = vmatprep.mubr.bf16.mxu0 0
    %4026 = vmatmul.mubr.bf16.gmra.mxu0 %v3736
    %v4027 = vpop.f32.mrf.mxu0
    %v4028 = vadd.f32 %v3628, %v4027
    %v4029 = vpop.f32.mrf.mxu0
    %v4030 = vpop.f32.mrf.mxu0
    %v4031 = vadd.f32 %v3628, %v4030
    %v4032 = vpop.f32.mrf.mxu0
    %4033 = vdwg.mxu0
    %v4034 = vmax.f32 %v3780, 0.0
    %v4035 = vmax.f32 %v3783, 0.0
    %v4036 = vmax.f32 %v3788, 0.0
    %v4037 = vmax.f32 %v3791, 0.0
    %v4038 = vmax.f32 %v3796, 0.0
    %v4039 = vmax.f32 %v3799, 0.0
    %v4040 = vmax.f32 %v3804, 0.0
    %v4041 = vmax.f32 %v3807, 0.0
    %v4042 = vmax.f32 %v3812, 0.0
    %v4043 = vmax.f32 %v3815, 0.0
    %v4044 = vmax.f32 %v3820, 0.0
    %v4045 = vmax.f32 %v3823, 0.0
    %v4046 = vmax.f32 %v3828, 0.0
    %v4047 = vmax.f32 %v3831, 0.0
    %v4048 = vmax.f32 %v3836, 0.0
    %v4049 = vmax.f32 %v3839, 0.0
    %v4050 = vmax.f32 %v3844, 0.0
    %v4051 = vmax.f32 %v3847, 0.0
    %v4052 = vmax.f32 %v3852, 0.0
    %v4053 = vmax.f32 %v3855, 0.0
    %v4054 = vmax.f32 %v3860, 0.0
    %v4055 = vmax.f32 %v3863, 0.0
    %v4056 = vmax.f32 %v3868, 0.0
    %v4057 = vmax.f32 %v3871, 0.0
    %v4058 = vmax.f32 %v3876, 0.0
    %v4059 = vmax.f32 %v3879, 0.0
    %v4060 = vmax.f32 %v3884, 0.0
    %v4061 = vmax.f32 %v3887, 0.0
    %v4062 = vmax.f32 %v3892, 0.0
    %v4063 = vmax.f32 %v3895, 0.0
    %v4064 = vmax.f32 %v3900, 0.0
    %v4065 = vmax.f32 %v3903, 0.0
    %v4066 = vmax.f32 %v3908, 0.0
    %v4067 = vmax.f32 %v3911, 0.0
    %v4068 = vmax.f32 %v3916, 0.0
    %v4069 = vmax.f32 %v3919, 0.0
    %v4070 = vmax.f32 %v3924, 0.0
    %v4071 = vmax.f32 %v3927, 0.0
    %v4072 = vmax.f32 %v3932, 0.0
    %v4073 = vmax.f32 %v3935, 0.0
    %v4074 = vmax.f32 %v3940, 0.0
    %v4075 = vmax.f32 %v3943, 0.0
    %v4076 = vmax.f32 %v3948, 0.0
    %v4077 = vmax.f32 %v3951, 0.0
    %v4078 = vmax.f32 %v3956, 0.0
    %v4079 = vmax.f32 %v3959, 0.0
    %v4080 = vmax.f32 %v3964, 0.0
    %v4081 = vmax.f32 %v3967, 0.0
    %v4082 = vmax.f32 %v3972, 0.0
    %v4083 = vmax.f32 %v3975, 0.0
    %v4084 = vmax.f32 %v3980, 0.0
    %v4085 = vmax.f32 %v3983, 0.0
    %v4086 = vmax.f32 %v3988, 0.0
    %v4087 = vmax.f32 %v3991, 0.0
    %v4088 = vmax.f32 %v3996, 0.0
    %v4089 = vmax.f32 %v3999, 0.0
    %v4090 = vmax.f32 %v4004, 0.0
    %v4091 = vmax.f32 %v4007, 0.0
    %v4092 = vmax.f32 %v4012, 0.0
    %v4093 = vmax.f32 %v4015, 0.0
    %v4094 = vmax.f32 %v4020, 0.0
    %v4095 = vmax.f32 %v4023, 0.0
    %v4096 = vmax.f32 %v4028, 0.0
    %v4097 = vmax.f32 %v4031, 0.0
    %v4098 = vmax.f32 %v4034, %v4036
    %v4099 = vmax.f32 %v4035, %v4037
    %v4100 = vmax.f32 %v4038, %v4040
    %v4101 = vmax.f32 %v4039, %v4041
    %v4102 = vmax.f32 %v4042, %v4044
    %v4103 = vmax.f32 %v4043, %v4045
    %v4104 = vmax.f32 %v4046, %v4048
    %v4105 = vmax.f32 %v4047, %v4049
    %v4106 = vmax.f32 %v4050, %v4052
    %v4107 = vmax.f32 %v4051, %v4053
    %v4108 = vmax.f32 %v4054, %v4056
    %v4109 = vmax.f32 %v4055, %v4057
    %v4110 = vmax.f32 %v4058, %v4060
    %v4111 = vmax.f32 %v4059, %v4061
    %v4112 = vmax.f32 %v4062, %v4064
    %v4113 = vmax.f32 %v4063, %v4065
    %v4114 = vmax.f32 %v4066, %v4068
    %v4115 = vmax.f32 %v4067, %v4069
    %v4116 = vmax.f32 %v4070, %v4072
    %v4117 = vmax.f32 %v4071, %v4073
    %v4118 = vmax.f32 %v4074, %v4076
    %v4119 = vmax.f32 %v4075, %v4077
    %v4120 = vmax.f32 %v4078, %v4080
    %v4121 = vmax.f32 %v4079, %v4081
    %v4122 = vmax.f32 %v4082, %v4084
    %v4123 = vmax.f32 %v4083, %v4085
    %v4124 = vmax.f32 %v4086, %v4088
    %v4125 = vmax.f32 %v4087, %v4089
    %v4126 = vmax.f32 %v4090, %v4092
    %v4127 = vmax.f32 %v4091, %v4093
    %v4128 = vmax.f32 %v4094, %v4096
    %v4129 = vmax.f32 %v4095, %v4097
    %v4162 = vcombine.high %v4098, %v4098
    %v4164 = vunpack.c.l.s4 1983009808
    %v4165 = vunpack.c.0.s8 %v4164
    %v4166 = vlaneseq
    %v4167 = vshrl.u32 %v4166, 7
    %v4168 = vsub.s32 %v4165, %v4167
    %v4169 = vrot.slane %v4098, %v4168
    %v4171 = vunpack.c.l.s4 1983009808
    %v4172 = vunpack.c.0.s8 %v4171
    %v4173 = vlaneseq
    %v4174 = vshrl.u32 %v4173, 7
    %v4175 = vsub.s32 %v4172, %v4174
    %v4176 = vrot.slane %v4162, %v4175
    %v4177 = vcombine.high %v4169, %v4169
    %v4178 = vcombine.high %v4176, %v4176
    %v4179 = vcombine.high %v4099, %v4099
    %v4181 = vunpack.c.l.s4 1983009808
    %v4182 = vunpack.c.0.s8 %v4181
    %v4183 = vlaneseq
    %v4184 = vshrl.u32 %v4183, 7
    %v4185 = vsub.s32 %v4182, %v4184
    %v4186 = vrot.slane %v4099, %v4185
    %v4188 = vunpack.c.l.s4 1983009808
    %v4189 = vunpack.c.0.s8 %v4188
    %v4190 = vlaneseq
    %v4191 = vshrl.u32 %v4190, 7
    %v4192 = vsub.s32 %v4189, %v4191
    %v4193 = vrot.slane %v4179, %v4192
    %v4194 = vcombine.high %v4186, %v4186
    %v4195 = vcombine.high %v4193, %v4193
    %v4196 = vcombine.high %v4100, %v4100
    %v4198 = vunpack.c.l.s4 1983009808
    %v4199 = vunpack.c.0.s8 %v4198
    %v4200 = vlaneseq
    %v4201 = vshrl.u32 %v4200, 7
    %v4202 = vsub.s32 %v4199, %v4201
    %v4203 = vrot.slane %v4100, %v4202
    %v4205 = vunpack.c.l.s4 1983009808
    %v4206 = vunpack.c.0.s8 %v4205
    %v4207 = vlaneseq
    %v4208 = vshrl.u32 %v4207, 7
    %v4209 = vsub.s32 %v4206, %v4208
    %v4210 = vrot.slane %v4196, %v4209
    %v4211 = vcombine.high %v4203, %v4203
    %v4212 = vcombine.high %v4210, %v4210
    %v4213 = vcombine.high %v4101, %v4101
    %v4215 = vunpack.c.l.s4 1983009808
    %v4216 = vunpack.c.0.s8 %v4215
    %v4217 = vlaneseq
    %v4218 = vshrl.u32 %v4217, 7
    %v4219 = vsub.s32 %v4216, %v4218
    %v4220 = vrot.slane %v4101, %v4219
    %v4222 = vunpack.c.l.s4 1983009808
    %v4223 = vunpack.c.0.s8 %v4222
    %v4224 = vlaneseq
    %v4225 = vshrl.u32 %v4224, 7
    %v4226 = vsub.s32 %v4223, %v4225
    %v4227 = vrot.slane %v4213, %v4226
    %v4228 = vcombine.high %v4220, %v4220
    %v4229 = vcombine.high %v4227, %v4227
    %v4230 = vcombine.high %v4102, %v4102
    %v4232 = vunpack.c.l.s4 1983009808
    %v4233 = vunpack.c.0.s8 %v4232
    %v4234 = vlaneseq
    %v4235 = vshrl.u32 %v4234, 7
    %v4236 = vsub.s32 %v4233, %v4235
    %v4237 = vrot.slane %v4102, %v4236
    %v4239 = vunpack.c.l.s4 1983009808
    %v4240 = vunpack.c.0.s8 %v4239
    %v4241 = vlaneseq
    %v4242 = vshrl.u32 %v4241, 7
    %v4243 = vsub.s32 %v4240, %v4242
    %v4244 = vrot.slane %v4230, %v4243
    %v4245 = vcombine.high %v4237, %v4237
    %v4246 = vcombine.high %v4244, %v4244
    %v4247 = vcombine.high %v4103, %v4103
    %v4249 = vunpack.c.l.s4 1983009808
    %v4250 = vunpack.c.0.s8 %v4249
    %v4251 = vlaneseq
    %v4252 = vshrl.u32 %v4251, 7
    %v4253 = vsub.s32 %v4250, %v4252
    %v4254 = vrot.slane %v4103, %v4253
    %v4256 = vunpack.c.l.s4 1983009808
    %v4257 = vunpack.c.0.s8 %v4256
    %v4258 = vlaneseq
    %v4259 = vshrl.u32 %v4258, 7
    %v4260 = vsub.s32 %v4257, %v4259
    %v4261 = vrot.slane %v4247, %v4260
    %v4262 = vcombine.high %v4254, %v4254
    %v4263 = vcombine.high %v4261, %v4261
    %v4264 = vcombine.high %v4104, %v4104
    %v4266 = vunpack.c.l.s4 1983009808
    %v4267 = vunpack.c.0.s8 %v4266
    %v4268 = vlaneseq
    %v4269 = vshrl.u32 %v4268, 7
    %v4270 = vsub.s32 %v4267, %v4269
    %v4271 = vrot.slane %v4104, %v4270
    %v4273 = vunpack.c.l.s4 1983009808
    %v4274 = vunpack.c.0.s8 %v4273
    %v4275 = vlaneseq
    %v4276 = vshrl.u32 %v4275, 7
    %v4277 = vsub.s32 %v4274, %v4276
    %v4278 = vrot.slane %v4264, %v4277
    %v4279 = vcombine.high %v4271, %v4271
    %v4280 = vcombine.high %v4278, %v4278
    %v4281 = vcombine.high %v4105, %v4105
    %v4283 = vunpack.c.l.s4 1983009808
    %v4284 = vunpack.c.0.s8 %v4283
    %v4285 = vlaneseq
    %v4286 = vshrl.u32 %v4285, 7
    %v4287 = vsub.s32 %v4284, %v4286
    %v4288 = vrot.slane %v4105, %v4287
    %v4290 = vunpack.c.l.s4 1983009808
    %v4291 = vunpack.c.0.s8 %v4290
    %v4292 = vlaneseq
    %v4293 = vshrl.u32 %v4292, 7
    %v4294 = vsub.s32 %v4291, %v4293
    %v4295 = vrot.slane %v4281, %v4294
    %v4296 = vcombine.high %v4288, %v4288
    %v4297 = vcombine.high %v4295, %v4295
    %v4298 = vcombine.high %v4106, %v4106
    %v4300 = vunpack.c.l.s4 1983009808
    %v4301 = vunpack.c.0.s8 %v4300
    %v4302 = vlaneseq
    %v4303 = vshrl.u32 %v4302, 7
    %v4304 = vsub.s32 %v4301, %v4303
    %v4305 = vrot.slane %v4106, %v4304
    %v4307 = vunpack.c.l.s4 1983009808
    %v4308 = vunpack.c.0.s8 %v4307
    %v4309 = vlaneseq
    %v4310 = vshrl.u32 %v4309, 7
    %v4311 = vsub.s32 %v4308, %v4310
    %v4312 = vrot.slane %v4298, %v4311
    %v4313 = vcombine.high %v4305, %v4305
    %v4314 = vcombine.high %v4312, %v4312
    %v4315 = vcombine.high %v4107, %v4107
    %v4317 = vunpack.c.l.s4 1983009808
    %v4318 = vunpack.c.0.s8 %v4317
    %v4319 = vlaneseq
    %v4320 = vshrl.u32 %v4319, 7
    %v4321 = vsub.s32 %v4318, %v4320
    %v4322 = vrot.slane %v4107, %v4321
    %v4324 = vunpack.c.l.s4 1983009808
    %v4325 = vunpack.c.0.s8 %v4324
    %v4326 = vlaneseq
    %v4327 = vshrl.u32 %v4326, 7
    %v4328 = vsub.s32 %v4325, %v4327
    %v4329 = vrot.slane %v4315, %v4328
    %v4330 = vcombine.high %v4322, %v4322
    %v4331 = vcombine.high %v4329, %v4329
    %v4332 = vcombine.high %v4108, %v4108
    %v4334 = vunpack.c.l.s4 1983009808
    %v4335 = vunpack.c.0.s8 %v4334
    %v4336 = vlaneseq
    %v4337 = vshrl.u32 %v4336, 7
    %v4338 = vsub.s32 %v4335, %v4337
    %v4339 = vrot.slane %v4108, %v4338
    %v4341 = vunpack.c.l.s4 1983009808
    %v4342 = vunpack.c.0.s8 %v4341
    %v4343 = vlaneseq
    %v4344 = vshrl.u32 %v4343, 7
    %v4345 = vsub.s32 %v4342, %v4344
    %v4346 = vrot.slane %v4332, %v4345
    %v4347 = vcombine.high %v4339, %v4339
    %v4348 = vcombine.high %v4346, %v4346
    %v4349 = vcombine.high %v4109, %v4109
    %v4351 = vunpack.c.l.s4 1983009808
    %v4352 = vunpack.c.0.s8 %v4351
    %v4353 = vlaneseq
    %v4354 = vshrl.u32 %v4353, 7
    %v4355 = vsub.s32 %v4352, %v4354
    %v4356 = vrot.slane %v4109, %v4355
    %v4358 = vunpack.c.l.s4 1983009808
    %v4359 = vunpack.c.0.s8 %v4358
    %v4360 = vlaneseq
    %v4361 = vshrl.u32 %v4360, 7
    %v4362 = vsub.s32 %v4359, %v4361
    %v4363 = vrot.slane %v4349, %v4362
    %v4364 = vcombine.high %v4356, %v4356
    %v4365 = vcombine.high %v4363, %v4363
    %v4366 = vcombine.high %v4110, %v4110
    %v4368 = vunpack.c.l.s4 1983009808
    %v4369 = vunpack.c.0.s8 %v4368
    %v4370 = vlaneseq
    %v4371 = vshrl.u32 %v4370, 7
    %v4372 = vsub.s32 %v4369, %v4371
    %v4373 = vrot.slane %v4110, %v4372
    %v4375 = vunpack.c.l.s4 1983009808
    %v4376 = vunpack.c.0.s8 %v4375
    %v4377 = vlaneseq
    %v4378 = vshrl.u32 %v4377, 7
    %v4379 = vsub.s32 %v4376, %v4378
    %v4380 = vrot.slane %v4366, %v4379
    %v4381 = vcombine.high %v4373, %v4373
    %v4382 = vcombine.high %v4380, %v4380
    %v4383 = vcombine.high %v4111, %v4111
    %v4385 = vunpack.c.l.s4 1983009808
    %v4386 = vunpack.c.0.s8 %v4385
    %v4387 = vlaneseq
    %v4388 = vshrl.u32 %v4387, 7
    %v4389 = vsub.s32 %v4386, %v4388
    %v4390 = vrot.slane %v4111, %v4389
    %v4392 = vunpack.c.l.s4 1983009808
    %v4393 = vunpack.c.0.s8 %v4392
    %v4394 = vlaneseq
    %v4395 = vshrl.u32 %v4394, 7
    %v4396 = vsub.s32 %v4393, %v4395
    %v4397 = vrot.slane %v4383, %v4396
    %v4398 = vcombine.high %v4390, %v4390
    %v4399 = vcombine.high %v4397, %v4397
    %v4400 = vcombine.high %v4112, %v4112
    %v4402 = vunpack.c.l.s4 1983009808
    %v4403 = vunpack.c.0.s8 %v4402
    %v4404 = vlaneseq
    %v4405 = vshrl.u32 %v4404, 7
    %v4406 = vsub.s32 %v4403, %v4405
    %v4407 = vrot.slane %v4112, %v4406
    %v4409 = vunpack.c.l.s4 1983009808
    %v4410 = vunpack.c.0.s8 %v4409
    %v4411 = vlaneseq
    %v4412 = vshrl.u32 %v4411, 7
    %v4413 = vsub.s32 %v4410, %v4412
    %v4414 = vrot.slane %v4400, %v4413
    %v4415 = vcombine.high %v4407, %v4407
    %v4416 = vcombine.high %v4414, %v4414
    %v4417 = vcombine.high %v4113, %v4113
    %v4419 = vunpack.c.l.s4 1983009808
    %v4420 = vunpack.c.0.s8 %v4419
    %v4421 = vlaneseq
    %v4422 = vshrl.u32 %v4421, 7
    %v4423 = vsub.s32 %v4420, %v4422
    %v4424 = vrot.slane %v4113, %v4423
    %v4426 = vunpack.c.l.s4 1983009808
    %v4427 = vunpack.c.0.s8 %v4426
    %v4428 = vlaneseq
    %v4429 = vshrl.u32 %v4428, 7
    %v4430 = vsub.s32 %v4427, %v4429
    %v4431 = vrot.slane %v4417, %v4430
    %v4432 = vcombine.high %v4424, %v4424
    %v4433 = vcombine.high %v4431, %v4431
    %v4434 = vcombine.high %v4114, %v4114
    %v4436 = vunpack.c.l.s4 1983009808
    %v4437 = vunpack.c.0.s8 %v4436
    %v4438 = vlaneseq
    %v4439 = vshrl.u32 %v4438, 7
    %v4440 = vsub.s32 %v4437, %v4439
    %v4441 = vrot.slane %v4114, %v4440
    %v4443 = vunpack.c.l.s4 1983009808
    %v4444 = vunpack.c.0.s8 %v4443
    %v4445 = vlaneseq
    %v4446 = vshrl.u32 %v4445, 7
    %v4447 = vsub.s32 %v4444, %v4446
    %v4448 = vrot.slane %v4434, %v4447
    %v4449 = vcombine.high %v4441, %v4441
    %v4450 = vcombine.high %v4448, %v4448
    %v4451 = vcombine.high %v4115, %v4115
    %v4453 = vunpack.c.l.s4 1983009808
    %v4454 = vunpack.c.0.s8 %v4453
    %v4455 = vlaneseq
    %v4456 = vshrl.u32 %v4455, 7
    %v4457 = vsub.s32 %v4454, %v4456
    %v4458 = vrot.slane %v4115, %v4457
    %v4460 = vunpack.c.l.s4 1983009808
    %v4461 = vunpack.c.0.s8 %v4460
    %v4462 = vlaneseq
    %v4463 = vshrl.u32 %v4462, 7
    %v4464 = vsub.s32 %v4461, %v4463
    %v4465 = vrot.slane %v4451, %v4464
    %v4466 = vcombine.high %v4458, %v4458
    %v4467 = vcombine.high %v4465, %v4465
    %v4468 = vcombine.high %v4116, %v4116
    %v4470 = vunpack.c.l.s4 1983009808
    %v4471 = vunpack.c.0.s8 %v4470
    %v4472 = vlaneseq
    %v4473 = vshrl.u32 %v4472, 7
    %v4474 = vsub.s32 %v4471, %v4473
    %v4475 = vrot.slane %v4116, %v4474
    %v4477 = vunpack.c.l.s4 1983009808
    %v4478 = vunpack.c.0.s8 %v4477
    %v4479 = vlaneseq
    %v4480 = vshrl.u32 %v4479, 7
    %v4481 = vsub.s32 %v4478, %v4480
    %v4482 = vrot.slane %v4468, %v4481
    %v4483 = vcombine.high %v4475, %v4475
    %v4484 = vcombine.high %v4482, %v4482
    %v4485 = vcombine.high %v4117, %v4117
    %v4487 = vunpack.c.l.s4 1983009808
    %v4488 = vunpack.c.0.s8 %v4487
    %v4489 = vlaneseq
    %v4490 = vshrl.u32 %v4489, 7
    %v4491 = vsub.s32 %v4488, %v4490
    %v4492 = vrot.slane %v4117, %v4491
    %v4494 = vunpack.c.l.s4 1983009808
    %v4495 = vunpack.c.0.s8 %v4494
    %v4496 = vlaneseq
    %v4497 = vshrl.u32 %v4496, 7
    %v4498 = vsub.s32 %v4495, %v4497
    %v4499 = vrot.slane %v4485, %v4498
    %v4500 = vcombine.high %v4492, %v4492
    %v4501 = vcombine.high %v4499, %v4499
    %v4502 = vcombine.high %v4118, %v4118
    %v4504 = vunpack.c.l.s4 1983009808
    %v4505 = vunpack.c.0.s8 %v4504
    %v4506 = vlaneseq
    %v4507 = vshrl.u32 %v4506, 7
    %v4508 = vsub.s32 %v4505, %v4507
    %v4509 = vrot.slane %v4118, %v4508
    %v4511 = vunpack.c.l.s4 1983009808
    %v4512 = vunpack.c.0.s8 %v4511
    %v4513 = vlaneseq
    %v4514 = vshrl.u32 %v4513, 7
    %v4515 = vsub.s32 %v4512, %v4514
    %v4516 = vrot.slane %v4502, %v4515
    %v4517 = vcombine.high %v4509, %v4509
    %v4518 = vcombine.high %v4516, %v4516
    %v4519 = vcombine.high %v4119, %v4119
    %v4521 = vunpack.c.l.s4 1983009808
    %v4522 = vunpack.c.0.s8 %v4521
    %v4523 = vlaneseq
    %v4524 = vshrl.u32 %v4523, 7
    %v4525 = vsub.s32 %v4522, %v4524
    %v4526 = vrot.slane %v4119, %v4525
    %v4528 = vunpack.c.l.s4 1983009808
    %v4529 = vunpack.c.0.s8 %v4528
    %v4530 = vlaneseq
    %v4531 = vshrl.u32 %v4530, 7
    %v4532 = vsub.s32 %v4529, %v4531
    %v4533 = vrot.slane %v4519, %v4532
    %v4534 = vcombine.high %v4526, %v4526
    %v4535 = vcombine.high %v4533, %v4533
    %v4536 = vcombine.high %v4120, %v4120
    %v4538 = vunpack.c.l.s4 1983009808
    %v4539 = vunpack.c.0.s8 %v4538
    %v4540 = vlaneseq
    %v4541 = vshrl.u32 %v4540, 7
    %v4542 = vsub.s32 %v4539, %v4541
    %v4543 = vrot.slane %v4120, %v4542
    %v4545 = vunpack.c.l.s4 1983009808
    %v4546 = vunpack.c.0.s8 %v4545
    %v4547 = vlaneseq
    %v4548 = vshrl.u32 %v4547, 7
    %v4549 = vsub.s32 %v4546, %v4548
    %v4550 = vrot.slane %v4536, %v4549
    %v4551 = vcombine.high %v4543, %v4543
    %v4552 = vcombine.high %v4550, %v4550
    %v4553 = vcombine.high %v4121, %v4121
    %v4555 = vunpack.c.l.s4 1983009808
    %v4556 = vunpack.c.0.s8 %v4555
    %v4557 = vlaneseq
    %v4558 = vshrl.u32 %v4557, 7
    %v4559 = vsub.s32 %v4556, %v4558
    %v4560 = vrot.slane %v4121, %v4559
    %v4562 = vunpack.c.l.s4 1983009808
    %v4563 = vunpack.c.0.s8 %v4562
    %v4564 = vlaneseq
    %v4565 = vshrl.u32 %v4564, 7
    %v4566 = vsub.s32 %v4563, %v4565
    %v4567 = vrot.slane %v4553, %v4566
    %v4568 = vcombine.high %v4560, %v4560
    %v4569 = vcombine.high %v4567, %v4567
    %v4570 = vcombine.high %v4122, %v4122
    %v4572 = vunpack.c.l.s4 1983009808
    %v4573 = vunpack.c.0.s8 %v4572
    %v4574 = vlaneseq
    %v4575 = vshrl.u32 %v4574, 7
    %v4576 = vsub.s32 %v4573, %v4575
    %v4577 = vrot.slane %v4122, %v4576
    %v4579 = vunpack.c.l.s4 1983009808
    %v4580 = vunpack.c.0.s8 %v4579
    %v4581 = vlaneseq
    %v4582 = vshrl.u32 %v4581, 7
    %v4583 = vsub.s32 %v4580, %v4582
    %v4584 = vrot.slane %v4570, %v4583
    %v4585 = vcombine.high %v4577, %v4577
    %v4586 = vcombine.high %v4584, %v4584
    %v4587 = vcombine.high %v4123, %v4123
    %v4589 = vunpack.c.l.s4 1983009808
    %v4590 = vunpack.c.0.s8 %v4589
    %v4591 = vlaneseq
    %v4592 = vshrl.u32 %v4591, 7
    %v4593 = vsub.s32 %v4590, %v4592
    %v4594 = vrot.slane %v4123, %v4593
    %v4596 = vunpack.c.l.s4 1983009808
    %v4597 = vunpack.c.0.s8 %v4596
    %v4598 = vlaneseq
    %v4599 = vshrl.u32 %v4598, 7
    %v4600 = vsub.s32 %v4597, %v4599
    %v4601 = vrot.slane %v4587, %v4600
    %v4602 = vcombine.high %v4594, %v4594
    %v4603 = vcombine.high %v4601, %v4601
    %v4604 = vcombine.high %v4124, %v4124
    %v4606 = vunpack.c.l.s4 1983009808
    %v4607 = vunpack.c.0.s8 %v4606
    %v4608 = vlaneseq
    %v4609 = vshrl.u32 %v4608, 7
    %v4610 = vsub.s32 %v4607, %v4609
    %v4611 = vrot.slane %v4124, %v4610
    %v4613 = vunpack.c.l.s4 1983009808
    %v4614 = vunpack.c.0.s8 %v4613
    %v4615 = vlaneseq
    %v4616 = vshrl.u32 %v4615, 7
    %v4617 = vsub.s32 %v4614, %v4616
    %v4618 = vrot.slane %v4604, %v4617
    %v4619 = vcombine.high %v4611, %v4611
    %v4620 = vcombine.high %v4618, %v4618
    %v4621 = vcombine.high %v4125, %v4125
    %v4623 = vunpack.c.l.s4 1983009808
    %v4624 = vunpack.c.0.s8 %v4623
    %v4625 = vlaneseq
    %v4626 = vshrl.u32 %v4625, 7
    %v4627 = vsub.s32 %v4624, %v4626
    %v4628 = vrot.slane %v4125, %v4627
    %v4630 = vunpack.c.l.s4 1983009808
    %v4631 = vunpack.c.0.s8 %v4630
    %v4632 = vlaneseq
    %v4633 = vshrl.u32 %v4632, 7
    %v4634 = vsub.s32 %v4631, %v4633
    %v4635 = vrot.slane %v4621, %v4634
    %v4636 = vcombine.high %v4628, %v4628
    %v4637 = vcombine.high %v4635, %v4635
    %v4638 = vcombine.high %v4126, %v4126
    %v4640 = vunpack.c.l.s4 1983009808
    %v4641 = vunpack.c.0.s8 %v4640
    %v4642 = vlaneseq
    %v4643 = vshrl.u32 %v4642, 7
    %v4644 = vsub.s32 %v4641, %v4643
    %v4645 = vrot.slane %v4126, %v4644
    %v4647 = vunpack.c.l.s4 1983009808
    %v4648 = vunpack.c.0.s8 %v4647
    %v4649 = vlaneseq
    %v4650 = vshrl.u32 %v4649, 7
    %v4651 = vsub.s32 %v4648, %v4650
    %v4652 = vrot.slane %v4638, %v4651
    %v4653 = vcombine.high %v4645, %v4645
    %v4654 = vcombine.high %v4652, %v4652
    %v4655 = vcombine.high %v4127, %v4127
    %v4657 = vunpack.c.l.s4 1983009808
    %v4658 = vunpack.c.0.s8 %v4657
    %v4659 = vlaneseq
    %v4660 = vshrl.u32 %v4659, 7
    %v4661 = vsub.s32 %v4658, %v4660
    %v4662 = vrot.slane %v4127, %v4661
    %v4664 = vunpack.c.l.s4 1983009808
    %v4665 = vunpack.c.0.s8 %v4664
    %v4666 = vlaneseq
    %v4667 = vshrl.u32 %v4666, 7
    %v4668 = vsub.s32 %v4665, %v4667
    %v4669 = vrot.slane %v4655, %v4668
    %v4670 = vcombine.high %v4662, %v4662
    %v4671 = vcombine.high %v4669, %v4669
    %v4672 = vcombine.high %v4128, %v4128
    %v4674 = vunpack.c.l.s4 1983009808
    %v4675 = vunpack.c.0.s8 %v4674
    %v4676 = vlaneseq
    %v4677 = vshrl.u32 %v4676, 7
    %v4678 = vsub.s32 %v4675, %v4677
    %v4679 = vrot.slane %v4128, %v4678
    %v4681 = vunpack.c.l.s4 1983009808
    %v4682 = vunpack.c.0.s8 %v4681
    %v4683 = vlaneseq
    %v4684 = vshrl.u32 %v4683, 7
    %v4685 = vsub.s32 %v4682, %v4684
    %v4686 = vrot.slane %v4672, %v4685
    %v4687 = vcombine.high %v4679, %v4679
    %v4688 = vcombine.high %v4686, %v4686
    %v4689 = vcombine.high %v4129, %v4129
    %v4691 = vunpack.c.l.s4 1983009808
    %v4692 = vunpack.c.0.s8 %v4691
    %v4693 = vlaneseq
    %v4694 = vshrl.u32 %v4693, 7
    %v4695 = vsub.s32 %v4692, %v4694
    %v4696 = vrot.slane %v4129, %v4695
    %v4698 = vunpack.c.l.s4 1983009808
    %v4699 = vunpack.c.0.s8 %v4698
    %v4700 = vlaneseq
    %v4701 = vshrl.u32 %v4700, 7
    %v4702 = vsub.s32 %v4699, %v4701
    %v4703 = vrot.slane %v4689, %v4702
    %v4704 = vcombine.high %v4696, %v4696
    %v4705 = vcombine.high %v4703, %v4703
    %v4834 = vrot.slane %v4169, 7
    %v4835 = vrot.slane %v4834, 2
    %v4836 = vrot.slane %v4177, 7
    %v4837 = vrot.slane %v4836, 2
    %v4838 = vrot.slane %v4176, 7
    %v4839 = vrot.slane %v4838, 2
    %v4840 = vrot.slane %v4178, 7
    %v4841 = vrot.slane %v4840, 2
    %v4842 = vrot.slane %v4186, 7
    %v4843 = vrot.slane %v4842, 2
    %v4844 = vrot.slane %v4194, 7
    %v4845 = vrot.slane %v4844, 2
    %v4846 = vrot.slane %v4193, 7
    %v4847 = vrot.slane %v4846, 2
    %v4848 = vrot.slane %v4195, 7
    %v4849 = vrot.slane %v4848, 2
    %v4850 = vrot.slane %v4203, 7
    %v4851 = vrot.slane %v4850, 2
    %v4852 = vrot.slane %v4211, 7
    %v4853 = vrot.slane %v4852, 2
    %v4854 = vrot.slane %v4210, 7
    %v4855 = vrot.slane %v4854, 2
    %v4856 = vrot.slane %v4212, 7
    %v4857 = vrot.slane %v4856, 2
    %v4858 = vrot.slane %v4220, 7
    %v4859 = vrot.slane %v4858, 2
    %v4860 = vrot.slane %v4228, 7
    %v4861 = vrot.slane %v4860, 2
    %v4862 = vrot.slane %v4227, 7
    %v4863 = vrot.slane %v4862, 2
    %v4864 = vrot.slane %v4229, 7
    %v4865 = vrot.slane %v4864, 2
    %v4866 = vrot.slane %v4237, 7
    %v4867 = vrot.slane %v4866, 2
    %v4868 = vrot.slane %v4245, 7
    %v4869 = vrot.slane %v4868, 2
    %v4870 = vrot.slane %v4244, 7
    %v4871 = vrot.slane %v4870, 2
    %v4872 = vrot.slane %v4246, 7
    %v4873 = vrot.slane %v4872, 2
    %v4874 = vrot.slane %v4254, 7
    %v4875 = vrot.slane %v4874, 2
    %v4876 = vrot.slane %v4262, 7
    %v4877 = vrot.slane %v4876, 2
    %v4878 = vrot.slane %v4261, 7
    %v4879 = vrot.slane %v4878, 2
    %v4880 = vrot.slane %v4263, 7
    %v4881 = vrot.slane %v4880, 2
    %v4882 = vrot.slane %v4271, 7
    %v4883 = vrot.slane %v4882, 2
    %v4884 = vrot.slane %v4279, 7
    %v4885 = vrot.slane %v4884, 2
    %v4886 = vrot.slane %v4278, 7
    %v4887 = vrot.slane %v4886, 2
    %v4888 = vrot.slane %v4280, 7
    %v4889 = vrot.slane %v4888, 2
    %v4890 = vrot.slane %v4288, 7
    %v4891 = vrot.slane %v4890, 2
    %v4892 = vrot.slane %v4296, 7
    %v4893 = vrot.slane %v4892, 2
    %v4894 = vrot.slane %v4295, 7
    %v4895 = vrot.slane %v4894, 2
    %v4896 = vrot.slane %v4297, 7
    %v4897 = vrot.slane %v4896, 2
    %v4898 = vrot.slane %v4305, 7
    %v4899 = vrot.slane %v4898, 2
    %v4900 = vrot.slane %v4313, 7
    %v4901 = vrot.slane %v4900, 2
    %v4902 = vrot.slane %v4312, 7
    %v4903 = vrot.slane %v4902, 2
    %v4904 = vrot.slane %v4314, 7
    %v4905 = vrot.slane %v4904, 2
    %v4906 = vrot.slane %v4322, 7
    %v4907 = vrot.slane %v4906, 2
    %v4908 = vrot.slane %v4330, 7
    %v4909 = vrot.slane %v4908, 2
    %v4910 = vrot.slane %v4329, 7
    %v4911 = vrot.slane %v4910, 2
    %v4912 = vrot.slane %v4331, 7
    %v4913 = vrot.slane %v4912, 2
    %v4914 = vrot.slane %v4339, 7
    %v4915 = vrot.slane %v4914, 2
    %v4916 = vrot.slane %v4347, 7
    %v4917 = vrot.slane %v4916, 2
    %v4918 = vrot.slane %v4346, 7
    %v4919 = vrot.slane %v4918, 2
    %v4920 = vrot.slane %v4348, 7
    %v4921 = vrot.slane %v4920, 2
    %v4922 = vrot.slane %v4356, 7
    %v4923 = vrot.slane %v4922, 2
    %v4924 = vrot.slane %v4364, 7
    %v4925 = vrot.slane %v4924, 2
    %v4926 = vrot.slane %v4363, 7
    %v4927 = vrot.slane %v4926, 2
    %v4928 = vrot.slane %v4365, 7
    %v4929 = vrot.slane %v4928, 2
    %v4930 = vrot.slane %v4373, 7
    %v4931 = vrot.slane %v4930, 2
    %v4932 = vrot.slane %v4381, 7
    %v4933 = vrot.slane %v4932, 2
    %v4934 = vrot.slane %v4380, 7
    %v4935 = vrot.slane %v4934, 2
    %v4936 = vrot.slane %v4382, 7
    %v4937 = vrot.slane %v4936, 2
    %v4938 = vrot.slane %v4390, 7
    %v4939 = vrot.slane %v4938, 2
    %v4940 = vrot.slane %v4398, 7
    %v4941 = vrot.slane %v4940, 2
    %v4942 = vrot.slane %v4397, 7
    %v4943 = vrot.slane %v4942, 2
    %v4944 = vrot.slane %v4399, 7
    %v4945 = vrot.slane %v4944, 2
    %v4946 = vrot.slane %v4407, 7
    %v4947 = vrot.slane %v4946, 2
    %v4948 = vrot.slane %v4415, 7
    %v4949 = vrot.slane %v4948, 2
    %v4950 = vrot.slane %v4414, 7
    %v4951 = vrot.slane %v4950, 2
    %v4952 = vrot.slane %v4416, 7
    %v4953 = vrot.slane %v4952, 2
    %v4954 = vrot.slane %v4424, 7
    %v4955 = vrot.slane %v4954, 2
    %v4956 = vrot.slane %v4432, 7
    %v4957 = vrot.slane %v4956, 2
    %v4958 = vrot.slane %v4431, 7
    %v4959 = vrot.slane %v4958, 2
    %v4960 = vrot.slane %v4433, 7
    %v4961 = vrot.slane %v4960, 2
    %v4962 = vrot.slane %v4441, 7
    %v4963 = vrot.slane %v4962, 2
    %v4964 = vrot.slane %v4449, 7
    %v4965 = vrot.slane %v4964, 2
    %v4966 = vrot.slane %v4448, 7
    %v4967 = vrot.slane %v4966, 2
    %v4968 = vrot.slane %v4450, 7
    %v4969 = vrot.slane %v4968, 2
    %v4970 = vrot.slane %v4458, 7
    %v4971 = vrot.slane %v4970, 2
    %v4972 = vrot.slane %v4466, 7
    %v4973 = vrot.slane %v4972, 2
    %v4974 = vrot.slane %v4465, 7
    %v4975 = vrot.slane %v4974, 2
    %v4976 = vrot.slane %v4467, 7
    %v4977 = vrot.slane %v4976, 2
    %v4978 = vrot.slane %v4475, 7
    %v4979 = vrot.slane %v4978, 2
    %v4980 = vrot.slane %v4483, 7
    %v4981 = vrot.slane %v4980, 2
    %v4982 = vrot.slane %v4482, 7
    %v4983 = vrot.slane %v4982, 2
    %v4984 = vrot.slane %v4484, 7
    %v4985 = vrot.slane %v4984, 2
    %v4986 = vrot.slane %v4492, 7
    %v4987 = vrot.slane %v4986, 2
    %v4988 = vrot.slane %v4500, 7
    %v4989 = vrot.slane %v4988, 2
    %v4990 = vrot.slane %v4499, 7
    %v4991 = vrot.slane %v4990, 2
    %v4992 = vrot.slane %v4501, 7
    %v4993 = vrot.slane %v4992, 2
    %v4994 = vrot.slane %v4509, 7
    %v4995 = vrot.slane %v4994, 2
    %v4996 = vrot.slane %v4517, 7
    %v4997 = vrot.slane %v4996, 2
    %v4998 = vrot.slane %v4516, 7
    %v4999 = vrot.slane %v4998, 2
    %v5000 = vrot.slane %v4518, 7
    %v5001 = vrot.slane %v5000, 2
    %v5002 = vrot.slane %v4526, 7
    %v5003 = vrot.slane %v5002, 2
    %v5004 = vrot.slane %v4534, 7
    %v5005 = vrot.slane %v5004, 2
    %v5006 = vrot.slane %v4533, 7
    %v5007 = vrot.slane %v5006, 2
    %v5008 = vrot.slane %v4535, 7
    %v5009 = vrot.slane %v5008, 2
    %v5010 = vrot.slane %v4543, 7
    %v5011 = vrot.slane %v5010, 2
    %v5012 = vrot.slane %v4551, 7
    %v5013 = vrot.slane %v5012, 2
    %v5014 = vrot.slane %v4550, 7
    %v5015 = vrot.slane %v5014, 2
    %v5016 = vrot.slane %v4552, 7
    %v5017 = vrot.slane %v5016, 2
    %v5018 = vrot.slane %v4560, 7
    %v5019 = vrot.slane %v5018, 2
    %v5020 = vrot.slane %v4568, 7
    %v5021 = vrot.slane %v5020, 2
    %v5022 = vrot.slane %v4567, 7
    %v5023 = vrot.slane %v5022, 2
    %v5024 = vrot.slane %v4569, 7
    %v5025 = vrot.slane %v5024, 2
    %v5026 = vrot.slane %v4577, 7
    %v5027 = vrot.slane %v5026, 2
    %v5028 = vrot.slane %v4585, 7
    %v5029 = vrot.slane %v5028, 2
    %v5030 = vrot.slane %v4584, 7
    %v5031 = vrot.slane %v5030, 2
    %v5032 = vrot.slane %v4586, 7
    %v5033 = vrot.slane %v5032, 2
    %v5034 = vrot.slane %v4594, 7
    %v5035 = vrot.slane %v5034, 2
    %v5036 = vrot.slane %v4602, 7
    %v5037 = vrot.slane %v5036, 2
    %v5038 = vrot.slane %v4601, 7
    %v5039 = vrot.slane %v5038, 2
    %v5040 = vrot.slane %v4603, 7
    %v5041 = vrot.slane %v5040, 2
    %v5042 = vrot.slane %v4611, 7
    %v5043 = vrot.slane %v5042, 2
    %v5044 = vrot.slane %v4619, 7
    %v5045 = vrot.slane %v5044, 2
    %v5046 = vrot.slane %v4618, 7
    %v5047 = vrot.slane %v5046, 2
    %v5048 = vrot.slane %v4620, 7
    %v5049 = vrot.slane %v5048, 2
    %v5050 = vrot.slane %v4628, 7
    %v5051 = vrot.slane %v5050, 2
    %v5052 = vrot.slane %v4636, 7
    %v5053 = vrot.slane %v5052, 2
    %v5054 = vrot.slane %v4635, 7
    %v5055 = vrot.slane %v5054, 2
    %v5056 = vrot.slane %v4637, 7
    %v5057 = vrot.slane %v5056, 2
    %v5058 = vrot.slane %v4645, 7
    %v5059 = vrot.slane %v5058, 2
    %v5060 = vrot.slane %v4653, 7
    %v5061 = vrot.slane %v5060, 2
    %v5062 = vrot.slane %v4652, 7
    %v5063 = vrot.slane %v5062, 2
    %v5064 = vrot.slane %v4654, 7
    %v5065 = vrot.slane %v5064, 2
    %v5066 = vrot.slane %v4662, 7
    %v5067 = vrot.slane %v5066, 2
    %v5068 = vrot.slane %v4670, 7
    %v5069 = vrot.slane %v5068, 2
    %v5070 = vrot.slane %v4669, 7
    %v5071 = vrot.slane %v5070, 2
    %v5072 = vrot.slane %v4671, 7
    %v5073 = vrot.slane %v5072, 2
    %v5074 = vrot.slane %v4679, 7
    %v5075 = vrot.slane %v5074, 2
    %v5076 = vrot.slane %v4687, 7
    %v5077 = vrot.slane %v5076, 2
    %v5078 = vrot.slane %v4686, 7
    %v5079 = vrot.slane %v5078, 2
    %v5080 = vrot.slane %v4688, 7
    %v5081 = vrot.slane %v5080, 2
    %v5082 = vrot.slane %v4696, 7
    %v5083 = vrot.slane %v5082, 2
    %v5084 = vrot.slane %v4704, 7
    %v5085 = vrot.slane %v5084, 2
    %v5086 = vrot.slane %v4703, 7
    %v5087 = vrot.slane %v5086, 2
    %v5088 = vrot.slane %v4705, 7
    %v5089 = vrot.slane %v5088, 2
    %v5218 = vmax.f32 %v4169, %v4835
    %v5219 = vmax.f32 %v4177, %v4837
    %v5220 = vmax.f32 %v4176, %v4839
    %v5221 = vmax.f32 %v4178, %v4841
    %v5222 = vmax.f32 %v4186, %v4843
    %v5223 = vmax.f32 %v4194, %v4845
    %v5224 = vmax.f32 %v4193, %v4847
    %v5225 = vmax.f32 %v4195, %v4849
    %v5226 = vmax.f32 %v4203, %v4851
    %v5227 = vmax.f32 %v4211, %v4853
    %v5228 = vmax.f32 %v4210, %v4855
    %v5229 = vmax.f32 %v4212, %v4857
    %v5230 = vmax.f32 %v4220, %v4859
    %v5231 = vmax.f32 %v4228, %v4861
    %v5232 = vmax.f32 %v4227, %v4863
    %v5233 = vmax.f32 %v4229, %v4865
    %v5234 = vmax.f32 %v4237, %v4867
    %v5235 = vmax.f32 %v4245, %v4869
    %v5236 = vmax.f32 %v4244, %v4871
    %v5237 = vmax.f32 %v4246, %v4873
    %v5238 = vmax.f32 %v4254, %v4875
    %v5239 = vmax.f32 %v4262, %v4877
    %v5240 = vmax.f32 %v4261, %v4879
    %v5241 = vmax.f32 %v4263, %v4881
    %v5242 = vmax.f32 %v4271, %v4883
    %v5243 = vmax.f32 %v4279, %v4885
    %v5244 = vmax.f32 %v4278, %v4887
    %v5245 = vmax.f32 %v4280, %v4889
    %v5246 = vmax.f32 %v4288, %v4891
    %v5247 = vmax.f32 %v4296, %v4893
    %v5248 = vmax.f32 %v4295, %v4895
    %v5249 = vmax.f32 %v4297, %v4897
    %v5250 = vmax.f32 %v4305, %v4899
    %v5251 = vmax.f32 %v4313, %v4901
    %v5252 = vmax.f32 %v4312, %v4903
    %v5253 = vmax.f32 %v4314, %v4905
    %v5254 = vmax.f32 %v4322, %v4907
    %v5255 = vmax.f32 %v4330, %v4909
    %v5256 = vmax.f32 %v4329, %v4911
    %v5257 = vmax.f32 %v4331, %v4913
    %v5258 = vmax.f32 %v4339, %v4915
    %v5259 = vmax.f32 %v4347, %v4917
    %v5260 = vmax.f32 %v4346, %v4919
    %v5261 = vmax.f32 %v4348, %v4921
    %v5262 = vmax.f32 %v4356, %v4923
    %v5263 = vmax.f32 %v4364, %v4925
    %v5264 = vmax.f32 %v4363, %v4927
    %v5265 = vmax.f32 %v4365, %v4929
    %v5266 = vmax.f32 %v4373, %v4931
    %v5267 = vmax.f32 %v4381, %v4933
    %v5268 = vmax.f32 %v4380, %v4935
    %v5269 = vmax.f32 %v4382, %v4937
    %v5270 = vmax.f32 %v4390, %v4939
    %v5271 = vmax.f32 %v4398, %v4941
    %v5272 = vmax.f32 %v4397, %v4943
    %v5273 = vmax.f32 %v4399, %v4945
    %v5274 = vmax.f32 %v4407, %v4947
    %v5275 = vmax.f32 %v4415, %v4949
    %v5276 = vmax.f32 %v4414, %v4951
    %v5277 = vmax.f32 %v4416, %v4953
    %v5278 = vmax.f32 %v4424, %v4955
    %v5279 = vmax.f32 %v4432, %v4957
    %v5280 = vmax.f32 %v4431, %v4959
    %v5281 = vmax.f32 %v4433, %v4961
    %v5282 = vmax.f32 %v4441, %v4963
    %v5283 = vmax.f32 %v4449, %v4965
    %v5284 = vmax.f32 %v4448, %v4967
    %v5285 = vmax.f32 %v4450, %v4969
    %v5286 = vmax.f32 %v4458, %v4971
    %v5287 = vmax.f32 %v4466, %v4973
    %v5288 = vmax.f32 %v4465, %v4975
    %v5289 = vmax.f32 %v4467, %v4977
    %v5290 = vmax.f32 %v4475, %v4979
    %v5291 = vmax.f32 %v4483, %v4981
    %v5292 = vmax.f32 %v4482, %v4983
    %v5293 = vmax.f32 %v4484, %v4985
    %v5294 = vmax.f32 %v4492, %v4987
    %v5295 = vmax.f32 %v4500, %v4989
    %v5296 = vmax.f32 %v4499, %v4991
    %v5297 = vmax.f32 %v4501, %v4993
    %v5298 = vmax.f32 %v4509, %v4995
    %v5299 = vmax.f32 %v4517, %v4997
    %v5300 = vmax.f32 %v4516, %v4999
    %v5301 = vmax.f32 %v4518, %v5001
    %v5302 = vmax.f32 %v4526, %v5003
    %v5303 = vmax.f32 %v4534, %v5005
    %v5304 = vmax.f32 %v4533, %v5007
    %v5305 = vmax.f32 %v4535, %v5009
    %v5306 = vmax.f32 %v4543, %v5011
    %v5307 = vmax.f32 %v4551, %v5013
    %v5308 = vmax.f32 %v4550, %v5015
    %v5309 = vmax.f32 %v4552, %v5017
    %v5310 = vmax.f32 %v4560, %v5019
    %v5311 = vmax.f32 %v4568, %v5021
    %v5312 = vmax.f32 %v4567, %v5023
    %v5313 = vmax.f32 %v4569, %v5025
    %v5314 = vmax.f32 %v4577, %v5027
    %v5315 = vmax.f32 %v4585, %v5029
    %v5316 = vmax.f32 %v4584, %v5031
    %v5317 = vmax.f32 %v4586, %v5033
    %v5318 = vmax.f32 %v4594, %v5035
    %v5319 = vmax.f32 %v4602, %v5037
    %v5320 = vmax.f32 %v4601, %v5039
    %v5321 = vmax.f32 %v4603, %v5041
    %v5322 = vmax.f32 %v4611, %v5043
    %v5323 = vmax.f32 %v4619, %v5045
    %v5324 = vmax.f32 %v4618, %v5047
    %v5325 = vmax.f32 %v4620, %v5049
    %v5326 = vmax.f32 %v4628, %v5051
    %v5327 = vmax.f32 %v4636, %v5053
    %v5328 = vmax.f32 %v4635, %v5055
    %v5329 = vmax.f32 %v4637, %v5057
    %v5330 = vmax.f32 %v4645, %v5059
    %v5331 = vmax.f32 %v4653, %v5061
    %v5332 = vmax.f32 %v4652, %v5063
    %v5333 = vmax.f32 %v4654, %v5065
    %v5334 = vmax.f32 %v4662, %v5067
    %v5335 = vmax.f32 %v4670, %v5069
    %v5336 = vmax.f32 %v4669, %v5071
    %v5337 = vmax.f32 %v4671, %v5073
    %v5338 = vmax.f32 %v4679, %v5075
    %v5339 = vmax.f32 %v4687, %v5077
    %v5340 = vmax.f32 %v4686, %v5079
    %v5341 = vmax.f32 %v4688, %v5081
    %v5342 = vmax.f32 %v4696, %v5083
    %v5343 = vmax.f32 %v4704, %v5085
    %v5344 = vmax.f32 %v4703, %v5087
    %v5345 = vmax.f32 %v4705, %v5089
    %vm5346 = vcmask 64512
    %5347 = vst.msk [vmem:[#allocation4] sm:$0xff] %vm5346, 0.0
    %5348 = vst.msk [vmem:[#allocation4 + $0x8] sm:$0xff] %vm5346, 0.0
    %5349 = vst.msk [vmem:[#allocation4 + $0x10] sm:$0xff] %vm5346, 0.0
    %5350 = vst.msk [vmem:[#allocation4 + $0x18] sm:$0xff] %vm5346, 0.0
    %5351 = vst.msk [vmem:[#allocation4 + $0x20] sm:$0xff] %vm5346, 0.0
    %5352 = vst.msk [vmem:[#allocation4 + $0x28] sm:$0xff] %vm5346, 0.0
    %5353 = vst.msk [vmem:[#allocation4 + $0x30] sm:$0xff] %vm5346, 0.0
    %5354 = vst.msk [vmem:[#allocation4 + $0x38] sm:$0xff] %vm5346, 0.0
    %5355 = vst.msk [vmem:[#allocation4 + $0x40] sm:$0xff] %vm5346, 0.0
    %5356 = vst.msk [vmem:[#allocation4 + $0x48] sm:$0xff] %vm5346, 0.0
    %5357 = vst.msk [vmem:[#allocation4 + $0x50] sm:$0xff] %vm5346, 0.0
    %5358 = vst.msk [vmem:[#allocation4 + $0x58] sm:$0xff] %vm5346, 0.0
    %5359 = vst.msk [vmem:[#allocation4 + $0x60] sm:$0xff] %vm5346, 0.0
    %5360 = vst.msk [vmem:[#allocation4 + $0x68] sm:$0xff] %vm5346, 0.0
    %5361 = vst.msk [vmem:[#allocation4 + $0x70] sm:$0xff] %vm5346, 0.0
    %5362 = vst.msk [vmem:[#allocation4 + $0x78] sm:$0xff] %vm5346, 0.0
    %5363 = vst.msk [vmem:[#allocation4 + $0x80] sm:$0xff] %vm5346, 0.0
    %5364 = vst.msk [vmem:[#allocation4 + $0x88] sm:$0xff] %vm5346, 0.0
    %5365 = vst.msk [vmem:[#allocation4 + $0x90] sm:$0xff] %vm5346, 0.0
    %5366 = vst.msk [vmem:[#allocation4 + $0x98] sm:$0xff] %vm5346, 0.0
    %5367 = vst.msk [vmem:[#allocation4 + $0xa0] sm:$0xff] %vm5346, 0.0
    %5368 = vst.msk [vmem:[#allocation4 + $0xa8] sm:$0xff] %vm5346, 0.0
    %5369 = vst.msk [vmem:[#allocation4 + $0xb0] sm:$0xff] %vm5346, 0.0
    %5370 = vst.msk [vmem:[#allocation4 + $0xb8] sm:$0xff] %vm5346, 0.0
    %5371 = vst.msk [vmem:[#allocation4 + $0xc0] sm:$0xff] %vm5346, 0.0
    %5372 = vst.msk [vmem:[#allocation4 + $0xc8] sm:$0xff] %vm5346, 0.0
    %5373 = vst.msk [vmem:[#allocation4 + $0xd0] sm:$0xff] %vm5346, 0.0
    %5374 = vst.msk [vmem:[#allocation4 + $0xd8] sm:$0xff] %vm5346, 0.0
    %5375 = vst.msk [vmem:[#allocation4 + $0xe0] sm:$0xff] %vm5346, 0.0
    %5376 = vst.msk [vmem:[#allocation4 + $0xe8] sm:$0xff] %vm5346, 0.0
    %5377 = vst.msk [vmem:[#allocation4 + $0xf0] sm:$0xff] %vm5346, 0.0
    %5378 = vst.msk [vmem:[#allocation4 + $0xf8] sm:$0xff] %vm5346, 0.0
    %5379 = vst.msk [vmem:[#allocation4 + $0x100] sm:$0xff] %vm5346, 0.0
    %5380 = vst.msk [vmem:[#allocation4 + $0x108] sm:$0xff] %vm5346, 0.0
    %5381 = vst.msk [vmem:[#allocation4 + $0x110] sm:$0xff] %vm5346, 0.0
    %5382 = vst.msk [vmem:[#allocation4 + $0x118] sm:$0xff] %vm5346, 0.0
    %5383 = vst.msk [vmem:[#allocation4 + $0x120] sm:$0xff] %vm5346, 0.0
    %5384 = vst.msk [vmem:[#allocation4 + $0x128] sm:$0xff] %vm5346, 0.0
    %5385 = vst.msk [vmem:[#allocation4 + $0x130] sm:$0xff] %vm5346, 0.0
    %5386 = vst.msk [vmem:[#allocation4 + $0x138] sm:$0xff] %vm5346, 0.0
    %5387 = vst.msk [vmem:[#allocation4 + $0x140] sm:$0xff] %vm5346, 0.0
    %5388 = vst.msk [vmem:[#allocation4 + $0x148] sm:$0xff] %vm5346, 0.0
    %5389 = vst.msk [vmem:[#allocation4 + $0x150] sm:$0xff] %vm5346, 0.0
    %5390 = vst.msk [vmem:[#allocation4 + $0x158] sm:$0xff] %vm5346, 0.0
    %5391 = vst.msk [vmem:[#allocation4 + $0x160] sm:$0xff] %vm5346, 0.0
    %5392 = vst.msk [vmem:[#allocation4 + $0x168] sm:$0xff] %vm5346, 0.0
    %5393 = vst.msk [vmem:[#allocation4 + $0x170] sm:$0xff] %vm5346, 0.0
    %5394 = vst.msk [vmem:[#allocation4 + $0x178] sm:$0xff] %vm5346, 0.0
    %5395 = vst.msk [vmem:[#allocation4 + $0x180] sm:$0xff] %vm5346, 0.0
    %5396 = vst.msk [vmem:[#allocation4 + $0x188] sm:$0xff] %vm5346, 0.0
    %5397 = vst.msk [vmem:[#allocation4 + $0x190] sm:$0xff] %vm5346, 0.0
    %5398 = vst.msk [vmem:[#allocation4 + $0x198] sm:$0xff] %vm5346, 0.0
    %5399 = vst.msk [vmem:[#allocation4 + $0x1a0] sm:$0xff] %vm5346, 0.0
    %5400 = vst.msk [vmem:[#allocation4 + $0x1a8] sm:$0xff] %vm5346, 0.0
    %5401 = vst.msk [vmem:[#allocation4 + $0x1b0] sm:$0xff] %vm5346, 0.0
    %5402 = vst.msk [vmem:[#allocation4 + $0x1b8] sm:$0xff] %vm5346, 0.0
    %5403 = vst.msk [vmem:[#allocation4 + $0x1c0] sm:$0xff] %vm5346, 0.0
    %5404 = vst.msk [vmem:[#allocation4 + $0x1c8] sm:$0xff] %vm5346, 0.0
    %5405 = vst.msk [vmem:[#allocation4 + $0x1d0] sm:$0xff] %vm5346, 0.0
    %5406 = vst.msk [vmem:[#allocation4 + $0x1d8] sm:$0xff] %vm5346, 0.0
    %v5535 = vlaneseq
    %v5536 = vshrl.u32 %v5535, 7
    %v5537 = vsub.s32 0, %v5536
    %v5538 = vrot.slane %v5218, %v5537
    %v5539 = vlaneseq
    %v5540 = vshrl.u32 %v5539, 7
    %v5541 = vsub.s32 0, %v5540
    %v5542 = vrot.slane %v5219, %v5541
    %v5543 = vlaneseq
    %v5544 = vshrl.u32 %v5543, 7
    %v5545 = vsub.s32 0, %v5544
    %v5546 = vrot.slane %v5220, %v5545
    %v5547 = vlaneseq
    %v5548 = vshrl.u32 %v5547, 7
    %v5549 = vsub.s32 0, %v5548
    %v5550 = vrot.slane %v5221, %v5549
    %v5551 = vlaneseq
    %v5552 = vshrl.u32 %v5551, 7
    %v5553 = vsub.s32 0, %v5552
    %v5554 = vrot.slane %v5222, %v5553
    %v5555 = vlaneseq
    %v5556 = vshrl.u32 %v5555, 7
    %v5557 = vsub.s32 0, %v5556
    %v5558 = vrot.slane %v5223, %v5557
    %v5559 = vlaneseq
    %v5560 = vshrl.u32 %v5559, 7
    %v5561 = vsub.s32 0, %v5560
    %v5562 = vrot.slane %v5224, %v5561
    %v5563 = vlaneseq
    %v5564 = vshrl.u32 %v5563, 7
    %v5565 = vsub.s32 0, %v5564
    %v5566 = vrot.slane %v5225, %v5565
    %v5567 = vlaneseq
    %v5568 = vshrl.u32 %v5567, 7
    %v5569 = vsub.s32 0, %v5568
    %v5570 = vrot.slane %v5226, %v5569
    %v5571 = vlaneseq
    %v5572 = vshrl.u32 %v5571, 7
    %v5573 = vsub.s32 0, %v5572
    %v5574 = vrot.slane %v5227, %v5573
    %v5575 = vlaneseq
    %v5576 = vshrl.u32 %v5575, 7
    %v5577 = vsub.s32 0, %v5576
    %v5578 = vrot.slane %v5228, %v5577
    %v5579 = vlaneseq
    %v5580 = vshrl.u32 %v5579, 7
    %v5581 = vsub.s32 0, %v5580
    %v5582 = vrot.slane %v5229, %v5581
    %v5583 = vlaneseq
    %v5584 = vshrl.u32 %v5583, 7
    %v5585 = vsub.s32 0, %v5584
    %v5586 = vrot.slane %v5230, %v5585
    %v5587 = vlaneseq
    %v5588 = vshrl.u32 %v5587, 7
    %v5589 = vsub.s32 0, %v5588
    %v5590 = vrot.slane %v5231, %v5589
    %v5591 = vlaneseq
    %v5592 = vshrl.u32 %v5591, 7
    %v5593 = vsub.s32 0, %v5592
    %v5594 = vrot.slane %v5232, %v5593
    %v5595 = vlaneseq
    %v5596 = vshrl.u32 %v5595, 7
    %v5597 = vsub.s32 0, %v5596
    %v5598 = vrot.slane %v5233, %v5597
    %v5599 = vlaneseq
    %v5600 = vshrl.u32 %v5599, 7
    %v5601 = vsub.s32 0, %v5600
    %v5602 = vrot.slane %v5234, %v5601
    %v5603 = vlaneseq
    %v5604 = vshrl.u32 %v5603, 7
    %v5605 = vsub.s32 0, %v5604
    %v5606 = vrot.slane %v5235, %v5605
    %v5607 = vlaneseq
    %v5608 = vshrl.u32 %v5607, 7
    %v5609 = vsub.s32 0, %v5608
    %v5610 = vrot.slane %v5236, %v5609
    %v5611 = vlaneseq
    %v5612 = vshrl.u32 %v5611, 7
    %v5613 = vsub.s32 0, %v5612
    %v5614 = vrot.slane %v5237, %v5613
    %v5615 = vlaneseq
    %v5616 = vshrl.u32 %v5615, 7
    %v5617 = vsub.s32 0, %v5616
    %v5618 = vrot.slane %v5238, %v5617
    %v5619 = vlaneseq
    %v5620 = vshrl.u32 %v5619, 7
    %v5621 = vsub.s32 0, %v5620
    %v5622 = vrot.slane %v5239, %v5621
    %v5623 = vlaneseq
    %v5624 = vshrl.u32 %v5623, 7
    %v5625 = vsub.s32 0, %v5624
    %v5626 = vrot.slane %v5240, %v5625
    %v5627 = vlaneseq
    %v5628 = vshrl.u32 %v5627, 7
    %v5629 = vsub.s32 0, %v5628
    %v5630 = vrot.slane %v5241, %v5629
    %v5631 = vlaneseq
    %v5632 = vshrl.u32 %v5631, 7
    %v5633 = vsub.s32 0, %v5632
    %v5634 = vrot.slane %v5242, %v5633
    %v5635 = vlaneseq
    %v5636 = vshrl.u32 %v5635, 7
    %v5637 = vsub.s32 0, %v5636
    %v5638 = vrot.slane %v5243, %v5637
    %v5639 = vlaneseq
    %v5640 = vshrl.u32 %v5639, 7
    %v5641 = vsub.s32 0, %v5640
    %v5642 = vrot.slane %v5244, %v5641
    %v5643 = vlaneseq
    %v5644 = vshrl.u32 %v5643, 7
    %v5645 = vsub.s32 0, %v5644
    %v5646 = vrot.slane %v5245, %v5645
    %v5647 = vlaneseq
    %v5648 = vshrl.u32 %v5647, 7
    %v5649 = vsub.s32 0, %v5648
    %v5650 = vrot.slane %v5246, %v5649
    %v5651 = vlaneseq
    %v5652 = vshrl.u32 %v5651, 7
    %v5653 = vsub.s32 0, %v5652
    %v5654 = vrot.slane %v5247, %v5653
    %v5655 = vlaneseq
    %v5656 = vshrl.u32 %v5655, 7
    %v5657 = vsub.s32 0, %v5656
    %v5658 = vrot.slane %v5248, %v5657
    %v5659 = vlaneseq
    %v5660 = vshrl.u32 %v5659, 7
    %v5661 = vsub.s32 0, %v5660
    %v5662 = vrot.slane %v5249, %v5661
    %v5663 = vlaneseq
    %v5664 = vshrl.u32 %v5663, 7
    %v5665 = vsub.s32 0, %v5664
    %v5666 = vrot.slane %v5250, %v5665
    %v5667 = vlaneseq
    %v5668 = vshrl.u32 %v5667, 7
    %v5669 = vsub.s32 0, %v5668
    %v5670 = vrot.slane %v5251, %v5669
    %v5671 = vlaneseq
    %v5672 = vshrl.u32 %v5671, 7
    %v5673 = vsub.s32 0, %v5672
    %v5674 = vrot.slane %v5252, %v5673
    %v5675 = vlaneseq
    %v5676 = vshrl.u32 %v5675, 7
    %v5677 = vsub.s32 0, %v5676
    %v5678 = vrot.slane %v5253, %v5677
    %v5679 = vlaneseq
    %v5680 = vshrl.u32 %v5679, 7
    %v5681 = vsub.s32 0, %v5680
    %v5682 = vrot.slane %v5254, %v5681
    %v5683 = vlaneseq
    %v5684 = vshrl.u32 %v5683, 7
    %v5685 = vsub.s32 0, %v5684
    %v5686 = vrot.slane %v5255, %v5685
    %v5687 = vlaneseq
    %v5688 = vshrl.u32 %v5687, 7
    %v5689 = vsub.s32 0, %v5688
    %v5690 = vrot.slane %v5256, %v5689
    %v5691 = vlaneseq
    %v5692 = vshrl.u32 %v5691, 7
    %v5693 = vsub.s32 0, %v5692
    %v5694 = vrot.slane %v5257, %v5693
    %v5695 = vlaneseq
    %v5696 = vshrl.u32 %v5695, 7
    %v5697 = vsub.s32 0, %v5696
    %v5698 = vrot.slane %v5258, %v5697
    %v5699 = vlaneseq
    %v5700 = vshrl.u32 %v5699, 7
    %v5701 = vsub.s32 0, %v5700
    %v5702 = vrot.slane %v5259, %v5701
    %v5703 = vlaneseq
    %v5704 = vshrl.u32 %v5703, 7
    %v5705 = vsub.s32 0, %v5704
    %v5706 = vrot.slane %v5260, %v5705
    %v5707 = vlaneseq
    %v5708 = vshrl.u32 %v5707, 7
    %v5709 = vsub.s32 0, %v5708
    %v5710 = vrot.slane %v5261, %v5709
    %v5711 = vlaneseq
    %v5712 = vshrl.u32 %v5711, 7
    %v5713 = vsub.s32 0, %v5712
    %v5714 = vrot.slane %v5262, %v5713
    %v5715 = vlaneseq
    %v5716 = vshrl.u32 %v5715, 7
    %v5717 = vsub.s32 0, %v5716
    %v5718 = vrot.slane %v5263, %v5717
    %v5719 = vlaneseq
    %v5720 = vshrl.u32 %v5719, 7
    %v5721 = vsub.s32 0, %v5720
    %v5722 = vrot.slane %v5264, %v5721
    %v5723 = vlaneseq
    %v5724 = vshrl.u32 %v5723, 7
    %v5725 = vsub.s32 0, %v5724
    %v5726 = vrot.slane %v5265, %v5725
    %v5727 = vlaneseq
    %v5728 = vshrl.u32 %v5727, 7
    %v5729 = vsub.s32 0, %v5728
    %v5730 = vrot.slane %v5266, %v5729
    %v5731 = vlaneseq
    %v5732 = vshrl.u32 %v5731, 7
    %v5733 = vsub.s32 0, %v5732
    %v5734 = vrot.slane %v5267, %v5733
    %v5735 = vlaneseq
    %v5736 = vshrl.u32 %v5735, 7
    %v5737 = vsub.s32 0, %v5736
    %v5738 = vrot.slane %v5268, %v5737
    %v5739 = vlaneseq
    %v5740 = vshrl.u32 %v5739, 7
    %v5741 = vsub.s32 0, %v5740
    %v5742 = vrot.slane %v5269, %v5741
    %v5743 = vlaneseq
    %v5744 = vshrl.u32 %v5743, 7
    %v5745 = vsub.s32 0, %v5744
    %v5746 = vrot.slane %v5270, %v5745
    %v5747 = vlaneseq
    %v5748 = vshrl.u32 %v5747, 7
    %v5749 = vsub.s32 0, %v5748
    %v5750 = vrot.slane %v5271, %v5749
    %v5751 = vlaneseq
    %v5752 = vshrl.u32 %v5751, 7
    %v5753 = vsub.s32 0, %v5752
    %v5754 = vrot.slane %v5272, %v5753
    %v5755 = vlaneseq
    %v5756 = vshrl.u32 %v5755, 7
    %v5757 = vsub.s32 0, %v5756
    %v5758 = vrot.slane %v5273, %v5757
    %v5759 = vlaneseq
    %v5760 = vshrl.u32 %v5759, 7
    %v5761 = vsub.s32 0, %v5760
    %v5762 = vrot.slane %v5274, %v5761
    %v5763 = vlaneseq
    %v5764 = vshrl.u32 %v5763, 7
    %v5765 = vsub.s32 0, %v5764
    %v5766 = vrot.slane %v5275, %v5765
    %v5767 = vlaneseq
    %v5768 = vshrl.u32 %v5767, 7
    %v5769 = vsub.s32 0, %v5768
    %v5770 = vrot.slane %v5276, %v5769
    %v5771 = vlaneseq
    %v5772 = vshrl.u32 %v5771, 7
    %v5773 = vsub.s32 0, %v5772
    %v5774 = vrot.slane %v5277, %v5773
    %v5775 = vlaneseq
    %v5776 = vshrl.u32 %v5775, 7
    %v5777 = vsub.s32 0, %v5776
    %v5778 = vrot.slane %v5278, %v5777
    %v5779 = vlaneseq
    %v5780 = vshrl.u32 %v5779, 7
    %v5781 = vsub.s32 0, %v5780
    %v5782 = vrot.slane %v5279, %v5781
    %v5783 = vlaneseq
    %v5784 = vshrl.u32 %v5783, 7
    %v5785 = vsub.s32 0, %v5784
    %v5786 = vrot.slane %v5280, %v5785
    %v5787 = vlaneseq
    %v5788 = vshrl.u32 %v5787, 7
    %v5789 = vsub.s32 0, %v5788
    %v5790 = vrot.slane %v5281, %v5789
    %v5791 = vlaneseq
    %v5792 = vshrl.u32 %v5791, 7
    %v5793 = vsub.s32 0, %v5792
    %v5794 = vrot.slane %v5282, %v5793
    %v5795 = vlaneseq
    %v5796 = vshrl.u32 %v5795, 7
    %v5797 = vsub.s32 0, %v5796
    %v5798 = vrot.slane %v5283, %v5797
    %v5799 = vlaneseq
    %v5800 = vshrl.u32 %v5799, 7
    %v5801 = vsub.s32 0, %v5800
    %v5802 = vrot.slane %v5284, %v5801
    %v5803 = vlaneseq
    %v5804 = vshrl.u32 %v5803, 7
    %v5805 = vsub.s32 0, %v5804
    %v5806 = vrot.slane %v5285, %v5805
    %v5807 = vlaneseq
    %v5808 = vshrl.u32 %v5807, 7
    %v5809 = vsub.s32 0, %v5808
    %v5810 = vrot.slane %v5286, %v5809
    %v5811 = vlaneseq
    %v5812 = vshrl.u32 %v5811, 7
    %v5813 = vsub.s32 0, %v5812
    %v5814 = vrot.slane %v5287, %v5813
    %v5815 = vlaneseq
    %v5816 = vshrl.u32 %v5815, 7
    %v5817 = vsub.s32 0, %v5816
    %v5818 = vrot.slane %v5288, %v5817
    %v5819 = vlaneseq
    %v5820 = vshrl.u32 %v5819, 7
    %v5821 = vsub.s32 0, %v5820
    %v5822 = vrot.slane %v5289, %v5821
    %v5823 = vlaneseq
    %v5824 = vshrl.u32 %v5823, 7
    %v5825 = vsub.s32 0, %v5824
    %v5826 = vrot.slane %v5290, %v5825
    %v5827 = vlaneseq
    %v5828 = vshrl.u32 %v5827, 7
    %v5829 = vsub.s32 0, %v5828
    %v5830 = vrot.slane %v5291, %v5829
    %v5831 = vlaneseq
    %v5832 = vshrl.u32 %v5831, 7
    %v5833 = vsub.s32 0, %v5832
    %v5834 = vrot.slane %v5292, %v5833
    %v5835 = vlaneseq
    %v5836 = vshrl.u32 %v5835, 7
    %v5837 = vsub.s32 0, %v5836
    %v5838 = vrot.slane %v5293, %v5837
    %v5839 = vlaneseq
    %v5840 = vshrl.u32 %v5839, 7
    %v5841 = vsub.s32 0, %v5840
    %v5842 = vrot.slane %v5294, %v5841
    %v5843 = vlaneseq
    %v5844 = vshrl.u32 %v5843, 7
    %v5845 = vsub.s32 0, %v5844
    %v5846 = vrot.slane %v5295, %v5845
    %v5847 = vlaneseq
    %v5848 = vshrl.u32 %v5847, 7
    %v5849 = vsub.s32 0, %v5848
    %v5850 = vrot.slane %v5296, %v5849
    %v5851 = vlaneseq
    %v5852 = vshrl.u32 %v5851, 7
    %v5853 = vsub.s32 0, %v5852
    %v5854 = vrot.slane %v5297, %v5853
    %v5855 = vlaneseq
    %v5856 = vshrl.u32 %v5855, 7
    %v5857 = vsub.s32 0, %v5856
    %v5858 = vrot.slane %v5298, %v5857
    %v5859 = vlaneseq
    %v5860 = vshrl.u32 %v5859, 7
    %v5861 = vsub.s32 0, %v5860
    %v5862 = vrot.slane %v5299, %v5861
    %v5863 = vlaneseq
    %v5864 = vshrl.u32 %v5863, 7
    %v5865 = vsub.s32 0, %v5864
    %v5866 = vrot.slane %v5300, %v5865
    %v5867 = vlaneseq
    %v5868 = vshrl.u32 %v5867, 7
    %v5869 = vsub.s32 0, %v5868
    %v5870 = vrot.slane %v5301, %v5869
    %v5871 = vlaneseq
    %v5872 = vshrl.u32 %v5871, 7
    %v5873 = vsub.s32 0, %v5872
    %v5874 = vrot.slane %v5302, %v5873
    %v5875 = vlaneseq
    %v5876 = vshrl.u32 %v5875, 7
    %v5877 = vsub.s32 0, %v5876
    %v5878 = vrot.slane %v5303, %v5877
    %v5879 = vlaneseq
    %v5880 = vshrl.u32 %v5879, 7
    %v5881 = vsub.s32 0, %v5880
    %v5882 = vrot.slane %v5304, %v5881
    %v5883 = vlaneseq
    %v5884 = vshrl.u32 %v5883, 7
    %v5885 = vsub.s32 0, %v5884
    %v5886 = vrot.slane %v5305, %v5885
    %v5887 = vlaneseq
    %v5888 = vshrl.u32 %v5887, 7
    %v5889 = vsub.s32 0, %v5888
    %v5890 = vrot.slane %v5306, %v5889
    %v5891 = vlaneseq
    %v5892 = vshrl.u32 %v5891, 7
    %v5893 = vsub.s32 0, %v5892
    %v5894 = vrot.slane %v5307, %v5893
    %v5895 = vlaneseq
    %v5896 = vshrl.u32 %v5895, 7
    %v5897 = vsub.s32 0, %v5896
    %v5898 = vrot.slane %v5308, %v5897
    %v5899 = vlaneseq
    %v5900 = vshrl.u32 %v5899, 7
    %v5901 = vsub.s32 0, %v5900
    %v5902 = vrot.slane %v5309, %v5901
    %v5903 = vlaneseq
    %v5904 = vshrl.u32 %v5903, 7
    %v5905 = vsub.s32 0, %v5904
    %v5906 = vrot.slane %v5310, %v5905
    %v5907 = vlaneseq
    %v5908 = vshrl.u32 %v5907, 7
    %v5909 = vsub.s32 0, %v5908
    %v5910 = vrot.slane %v5311, %v5909
    %v5911 = vlaneseq
    %v5912 = vshrl.u32 %v5911, 7
    %v5913 = vsub.s32 0, %v5912
    %v5914 = vrot.slane %v5312, %v5913
    %v5915 = vlaneseq
    %v5916 = vshrl.u32 %v5915, 7
    %v5917 = vsub.s32 0, %v5916
    %v5918 = vrot.slane %v5313, %v5917
    %v5919 = vlaneseq
    %v5920 = vshrl.u32 %v5919, 7
    %v5921 = vsub.s32 0, %v5920
    %v5922 = vrot.slane %v5314, %v5921
    %v5923 = vlaneseq
    %v5924 = vshrl.u32 %v5923, 7
    %v5925 = vsub.s32 0, %v5924
    %v5926 = vrot.slane %v5315, %v5925
    %v5927 = vlaneseq
    %v5928 = vshrl.u32 %v5927, 7
    %v5929 = vsub.s32 0, %v5928
    %v5930 = vrot.slane %v5316, %v5929
    %v5931 = vlaneseq
    %v5932 = vshrl.u32 %v5931, 7
    %v5933 = vsub.s32 0, %v5932
    %v5934 = vrot.slane %v5317, %v5933
    %v5935 = vlaneseq
    %v5936 = vshrl.u32 %v5935, 7
    %v5937 = vsub.s32 0, %v5936
    %v5938 = vrot.slane %v5318, %v5937
    %v5939 = vlaneseq
    %v5940 = vshrl.u32 %v5939, 7
    %v5941 = vsub.s32 0, %v5940
    %v5942 = vrot.slane %v5319, %v5941
    %v5943 = vlaneseq
    %v5944 = vshrl.u32 %v5943, 7
    %v5945 = vsub.s32 0, %v5944
    %v5946 = vrot.slane %v5320, %v5945
    %v5947 = vlaneseq
    %v5948 = vshrl.u32 %v5947, 7
    %v5949 = vsub.s32 0, %v5948
    %v5950 = vrot.slane %v5321, %v5949
    %v5951 = vlaneseq
    %v5952 = vshrl.u32 %v5951, 7
    %v5953 = vsub.s32 0, %v5952
    %v5954 = vrot.slane %v5322, %v5953
    %v5955 = vlaneseq
    %v5956 = vshrl.u32 %v5955, 7
    %v5957 = vsub.s32 0, %v5956
    %v5958 = vrot.slane %v5323, %v5957
    %v5959 = vlaneseq
    %v5960 = vshrl.u32 %v5959, 7
    %v5961 = vsub.s32 0, %v5960
    %v5962 = vrot.slane %v5324, %v5961
    %v5963 = vlaneseq
    %v5964 = vshrl.u32 %v5963, 7
    %v5965 = vsub.s32 0, %v5964
    %v5966 = vrot.slane %v5325, %v5965
    %v5967 = vlaneseq
    %v5968 = vshrl.u32 %v5967, 7
    %v5969 = vsub.s32 0, %v5968
    %v5970 = vrot.slane %v5326, %v5969
    %v5971 = vlaneseq
    %v5972 = vshrl.u32 %v5971, 7
    %v5973 = vsub.s32 0, %v5972
    %v5974 = vrot.slane %v5327, %v5973
    %v5975 = vlaneseq
    %v5976 = vshrl.u32 %v5975, 7
    %v5977 = vsub.s32 0, %v5976
    %v5978 = vrot.slane %v5328, %v5977
    %v5979 = vlaneseq
    %v5980 = vshrl.u32 %v5979, 7
    %v5981 = vsub.s32 0, %v5980
    %v5982 = vrot.slane %v5329, %v5981
    %v5983 = vlaneseq
    %v5984 = vshrl.u32 %v5983, 7
    %v5985 = vsub.s32 0, %v5984
    %v5986 = vrot.slane %v5330, %v5985
    %v5987 = vlaneseq
    %v5988 = vshrl.u32 %v5987, 7
    %v5989 = vsub.s32 0, %v5988
    %v5990 = vrot.slane %v5331, %v5989
    %v5991 = vlaneseq
    %v5992 = vshrl.u32 %v5991, 7
    %v5993 = vsub.s32 0, %v5992
    %v5994 = vrot.slane %v5332, %v5993
    %v5995 = vlaneseq
    %v5996 = vshrl.u32 %v5995, 7
    %v5997 = vsub.s32 0, %v5996
    %v5998 = vrot.slane %v5333, %v5997
    %v5999 = vlaneseq
    %v6000 = vshrl.u32 %v5999, 7
    %v6001 = vsub.s32 0, %v6000
    %v6002 = vrot.slane %v5334, %v6001
    %v6003 = vlaneseq
    %v6004 = vshrl.u32 %v6003, 7
    %v6005 = vsub.s32 0, %v6004
    %v6006 = vrot.slane %v5335, %v6005
    %v6007 = vlaneseq
    %v6008 = vshrl.u32 %v6007, 7
    %v6009 = vsub.s32 0, %v6008
    %v6010 = vrot.slane %v5336, %v6009
    %v6011 = vlaneseq
    %v6012 = vshrl.u32 %v6011, 7
    %v6013 = vsub.s32 0, %v6012
    %v6014 = vrot.slane %v5337, %v6013
    %v6015 = vlaneseq
    %v6016 = vshrl.u32 %v6015, 7
    %v6017 = vsub.s32 0, %v6016
    %v6018 = vrot.slane %v5338, %v6017
    %v6019 = vlaneseq
    %v6020 = vshrl.u32 %v6019, 7
    %v6021 = vsub.s32 0, %v6020
    %v6022 = vrot.slane %v5339, %v6021
    %v6023 = vlaneseq
    %v6024 = vshrl.u32 %v6023, 7
    %v6025 = vsub.s32 0, %v6024
    %v6026 = vrot.slane %v5340, %v6025
    %v6027 = vlaneseq
    %v6028 = vshrl.u32 %v6027, 7
    %v6029 = vsub.s32 0, %v6028
    %v6030 = vrot.slane %v5341, %v6029
    %v6031 = vlaneseq
    %v6032 = vshrl.u32 %v6031, 7
    %v6033 = vsub.s32 0, %v6032
    %v6034 = vrot.slane %v5342, %v6033
    %v6035 = vlaneseq
    %v6036 = vshrl.u32 %v6035, 7
    %v6037 = vsub.s32 0, %v6036
    %v6038 = vrot.slane %v5343, %v6037
    %v6039 = vlaneseq
    %v6040 = vshrl.u32 %v6039, 7
    %v6041 = vsub.s32 0, %v6040
    %v6042 = vrot.slane %v5344, %v6041
    %v6043 = vlaneseq
    %v6044 = vshrl.u32 %v6043, 7
    %v6045 = vsub.s32 0, %v6044
    %v6046 = vrot.slane %v5345, %v6045
    %vm6047 = vcmask 1041409
    %v6048 = vsel %vm6047, %v5542, %v5538
    %vm6049 = vcmask 1042434
    %v6050 = vsel %vm6049, %v5546, %v6048
    %vm6051 = vcmask 1043459
    %v6052 = vsel %vm6051, %v5550, %v6050
    %vm6053 = vcmask 1044484
    %v6054 = vsel %vm6053, %v5554, %v6052
    %vm6055 = vcmask 1045509
    %v6056 = vsel %vm6055, %v5558, %v6054
    %vm6057 = vcmask 1046534
    %v6058 = vsel %vm6057, %v5562, %v6056
    %vm6059 = vcmask 1047559
    %v6060 = vsel %vm6059, %v5566, %v6058
    %v6061 = vsel %vm6047, %v5574, %v5570
    %v6062 = vsel %vm6049, %v5578, %v6061
    %v6063 = vsel %vm6051, %v5582, %v6062
    %v6064 = vsel %vm6053, %v5586, %v6063
    %v6065 = vsel %vm6055, %v5590, %v6064
    %v6066 = vsel %vm6057, %v5594, %v6065
    %v6067 = vsel %vm6059, %v5598, %v6066
    %v6068 = vsel %vm6047, %v5606, %v5602
    %v6069 = vsel %vm6049, %v5610, %v6068
    %v6070 = vsel %vm6051, %v5614, %v6069
    %v6071 = vsel %vm6053, %v5618, %v6070
    %v6072 = vsel %vm6055, %v5622, %v6071
    %v6073 = vsel %vm6057, %v5626, %v6072
    %v6074 = vsel %vm6059, %v5630, %v6073
    %v6075 = vsel %vm6047, %v5638, %v5634
    %v6076 = vsel %vm6049, %v5642, %v6075
    %v6077 = vsel %vm6051, %v5646, %v6076
    %v6078 = vsel %vm6053, %v5650, %v6077
    %v6079 = vsel %vm6055, %v5654, %v6078
    %v6080 = vsel %vm6057, %v5658, %v6079
    %v6081 = vsel %vm6059, %v5662, %v6080
    %v6082 = vsel %vm6047, %v5670, %v5666
    %v6083 = vsel %vm6049, %v5674, %v6082
    %v6084 = vsel %vm6051, %v5678, %v6083
    %v6085 = vsel %vm6053, %v5682, %v6084
    %v6086 = vsel %vm6055, %v5686, %v6085
    %v6087 = vsel %vm6057, %v5690, %v6086
    %v6088 = vsel %vm6059, %v5694, %v6087
    %v6089 = vsel %vm6047, %v5702, %v5698
    %v6090 = vsel %vm6049, %v5706, %v6089
    %v6091 = vsel %vm6051, %v5710, %v6090
    %v6092 = vsel %vm6053, %v5714, %v6091
    %v6093 = vsel %vm6055, %v5718, %v6092
    %v6094 = vsel %vm6057, %v5722, %v6093
    %v6095 = vsel %vm6059, %v5726, %v6094
    %v6096 = vsel %vm6047, %v5734, %v5730
    %v6097 = vsel %vm6049, %v5738, %v6096
    %v6098 = vsel %vm6051, %v5742, %v6097
    %v6099 = vsel %vm6053, %v5746, %v6098
    %v6100 = vsel %vm6055, %v5750, %v6099
    %v6101 = vsel %vm6057, %v5754, %v6100
    %v6102 = vsel %vm6059, %v5758, %v6101
    %v6103 = vsel %vm6047, %v5766, %v5762
    %v6104 = vsel %vm6049, %v5770, %v6103
    %v6105 = vsel %vm6051, %v5774, %v6104
    %v6106 = vsel %vm6053, %v5778, %v6105
    %v6107 = vsel %vm6055, %v5782, %v6106
    %v6108 = vsel %vm6057, %v5786, %v6107
    %v6109 = vsel %vm6059, %v5790, %v6108
    %v6110 = vsel %vm6047, %v5798, %v5794
    %v6111 = vsel %vm6049, %v5802, %v6110
    %v6112 = vsel %vm6051, %v5806, %v6111
    %v6113 = vsel %vm6053, %v5810, %v6112
    %v6114 = vsel %vm6055, %v5814, %v6113
    %v6115 = vsel %vm6057, %v5818, %v6114
    %v6116 = vsel %vm6059, %v5822, %v6115
    %v6117 = vsel %vm6047, %v5830, %v5826
    %v6118 = vsel %vm6049, %v5834, %v6117
    %v6119 = vsel %vm6051, %v5838, %v6118
    %v6120 = vsel %vm6053, %v5842, %v6119
    %v6121 = vsel %vm6055, %v5846, %v6120
    %v6122 = vsel %vm6057, %v5850, %v6121
    %v6123 = vsel %vm6059, %v5854, %v6122
    %v6124 = vsel %vm6047, %v5862, %v5858
    %v6125 = vsel %vm6049, %v5866, %v6124
    %v6126 = vsel %vm6051, %v5870, %v6125
    %v6127 = vsel %vm6053, %v5874, %v6126
    %v6128 = vsel %vm6055, %v5878, %v6127
    %v6129 = vsel %vm6057, %v5882, %v6128
    %v6130 = vsel %vm6059, %v5886, %v6129
    %v6131 = vsel %vm6047, %v5894, %v5890
    %v6132 = vsel %vm6049, %v5898, %v6131
    %v6133 = vsel %vm6051, %v5902, %v6132
    %v6134 = vsel %vm6053, %v5906, %v6133
    %v6135 = vsel %vm6055, %v5910, %v6134
    %v6136 = vsel %vm6057, %v5914, %v6135
    %v6137 = vsel %vm6059, %v5918, %v6136
    %v6138 = vsel %vm6047, %v5926, %v5922
    %v6139 = vsel %vm6049, %v5930, %v6138
    %v6140 = vsel %vm6051, %v5934, %v6139
    %v6141 = vsel %vm6053, %v5938, %v6140
    %v6142 = vsel %vm6055, %v5942, %v6141
    %v6143 = vsel %vm6057, %v5946, %v6142
    %v6144 = vsel %vm6059, %v5950, %v6143
    %v6145 = vsel %vm6047, %v5958, %v5954
    %v6146 = vsel %vm6049, %v5962, %v6145
    %v6147 = vsel %vm6051, %v5966, %v6146
    %v6148 = vsel %vm6053, %v5970, %v6147
    %v6149 = vsel %vm6055, %v5974, %v6148
    %v6150 = vsel %vm6057, %v5978, %v6149
    %v6151 = vsel %vm6059, %v5982, %v6150
    %v6152 = vsel %vm6047, %v5990, %v5986
    %v6153 = vsel %vm6049, %v5994, %v6152
    %v6154 = vsel %vm6051, %v5998, %v6153
    %v6155 = vsel %vm6053, %v6002, %v6154
    %v6156 = vsel %vm6055, %v6006, %v6155
    %v6157 = vsel %vm6057, %v6010, %v6156
    %v6158 = vsel %vm6059, %v6014, %v6157
    %v6159 = vsel %vm6047, %v6022, %v6018
    %v6160 = vsel %vm6049, %v6026, %v6159
    %v6161 = vsel %vm6051, %v6030, %v6160
    %v6162 = vsel %vm6053, %v6034, %v6161
    %v6163 = vsel %vm6055, %v6038, %v6162
    %v6164 = vsel %vm6057, %v6042, %v6163
    %v6165 = vsel %vm6059, %v6046, %v6164
    %s6182 = scalar_lea.vmem [#allocation4], 24
    %6183 = vst.msk [vmem:[%s6182 + $0x8] sm:$0xff] %vm5346, %v6060
    %6184 = vst.msk [vmem:[%s6182 + $0x20] sm:$0xff] %vm5346, %v6067
    %6185 = vst.msk [vmem:[%s6182 + $0x38] sm:$0xff] %vm5346, %v6074
    %6186 = vst.msk [vmem:[%s6182 + $0x50] sm:$0xff] %vm5346, %v6081
    %6187 = vst.msk [vmem:[%s6182 + $0x68] sm:$0xff] %vm5346, %v6088
    %6188 = vst.msk [vmem:[%s6182 + $0x80] sm:$0xff] %vm5346, %v6095
    %6189 = vst.msk [vmem:[%s6182 + $0x98] sm:$0xff] %vm5346, %v6102
    %6190 = vst.msk [vmem:[%s6182 + $0xb0] sm:$0xff] %vm5346, %v6109
    %6191 = vst.msk [vmem:[%s6182 + $0xf8] sm:$0xff] %vm5346, %v6116
    %6192 = vst.msk [vmem:[%s6182 + $0x110] sm:$0xff] %vm5346, %v6123
    %6193 = vst.msk [vmem:[%s6182 + $0x128] sm:$0xff] %vm5346, %v6130
    %6194 = vst.msk [vmem:[%s6182 + $0x140] sm:$0xff] %vm5346, %v6137
    %6195 = vst.msk [vmem:[%s6182 + $0x158] sm:$0xff] %vm5346, %v6144
    %6196 = vst.msk [vmem:[%s6182 + $0x170] sm:$0xff] %vm5346, %v6151
    %6197 = vst.msk [vmem:[%s6182 + $0x188] sm:$0xff] %vm5346, %v6158
    %6198 = vst.msk [vmem:[%s6182 + $0x1a0] sm:$0xff] %vm5346, %v6165
    %v6199 = vld [vmem:[#allocation4 + $0x7] sm:$0xff]
    %v6200 = vld [vmem:[#allocation4 + $0x1f] sm:$0xff]
    %v6201 = vld [vmem:[#allocation4 + $0x37] sm:$0xff]
    %v6202 = vld [vmem:[#allocation4 + $0x4f] sm:$0xff]
    %v6203 = vld [vmem:[#allocation4 + $0x67] sm:$0xff]
    %v6204 = vld [vmem:[#allocation4 + $0x7f] sm:$0xff]
    %v6205 = vld [vmem:[#allocation4 + $0x97] sm:$0xff]
    %v6206 = vld [vmem:[#allocation4 + $0xaf] sm:$0xff]
    %v6207 = vld [vmem:[#allocation4 + $0xf7] sm:$0xff]
    %v6208 = vld [vmem:[#allocation4 + $0x10f] sm:$0xff]
    %v6209 = vld [vmem:[#allocation4 + $0x127] sm:$0xff]
    %v6210 = vld [vmem:[#allocation4 + $0x13f] sm:$0xff]
    %v6211 = vld [vmem:[#allocation4 + $0x157] sm:$0xff]
    %v6212 = vld [vmem:[#allocation4 + $0x16f] sm:$0xff]
    %v6213 = vld [vmem:[#allocation4 + $0x187] sm:$0xff]
    %v6214 = vld [vmem:[#allocation4 + $0x19f] sm:$0xff]
    %6215 = vst.msk [vmem:[#allocation5] sm:$0xff] %vm5346, %v6199
    %6216 = vst.msk [vmem:[#allocation5 + $0x8] sm:$0xff] %vm5346, %v6200
    %6217 = vst.msk [vmem:[#allocation5 + $0x10] sm:$0xff] %vm5346, %v6201
    %6218 = vst.msk [vmem:[#allocation5 + $0x18] sm:$0xff] %vm5346, %v6202
    %6219 = vst.msk [vmem:[#allocation5 + $0x20] sm:$0xff] %vm5346, %v6203
    %6220 = vst.msk [vmem:[#allocation5 + $0x28] sm:$0xff] %vm5346, %v6204
    %6221 = vst.msk [vmem:[#allocation5 + $0x30] sm:$0xff] %vm5346, %v6205
    %6222 = vst.msk [vmem:[#allocation5 + $0x38] sm:$0xff] %vm5346, %v6206
    %6223 = vst.msk [vmem:[#allocation5 + $0x40] sm:$0xff] %vm5346, %v6207
    %6224 = vst.msk [vmem:[#allocation5 + $0x48] sm:$0xff] %vm5346, %v6208
    %6225 = vst.msk [vmem:[#allocation5 + $0x50] sm:$0xff] %vm5346, %v6209
    %6226 = vst.msk [vmem:[#allocation5 + $0x58] sm:$0xff] %vm5346, %v6210
    %6227 = vst.msk [vmem:[#allocation5 + $0x60] sm:$0xff] %vm5346, %v6211
    %6228 = vst.msk [vmem:[#allocation5 + $0x68] sm:$0xff] %vm5346, %v6212
    %6229 = vst.msk [vmem:[#allocation5 + $0x70] sm:$0xff] %vm5346, %v6213
    %6230 = vst.msk [vmem:[#allocation5 + $0x78] sm:$0xff] %vm5346, %v6214
    %v6231 = vld [vmem:[#allocation4 + $0x8] sm:$0xff]
    %v6232 = vld [vmem:[#allocation4 + $0x20] sm:$0xff]
    %v6233 = vld [vmem:[#allocation4 + $0x38] sm:$0xff]
    %v6234 = vld [vmem:[#allocation4 + $0x50] sm:$0xff]
    %v6235 = vld [vmem:[#allocation4 + $0x68] sm:$0xff]
    %v6236 = vld [vmem:[#allocation4 + $0x80] sm:$0xff]
    %v6237 = vld [vmem:[#allocation4 + $0x98] sm:$0xff]
    %v6238 = vld [vmem:[#allocation4 + $0xb0] sm:$0xff]
    %v6239 = vld [vmem:[#allocation4 + $0xf8] sm:$0xff]
    %v6240 = vld [vmem:[#allocation4 + $0x110] sm:$0xff]
    %v6241 = vld [vmem:[#allocation4 + $0x128] sm:$0xff]
    %v6242 = vld [vmem:[#allocation4 + $0x140] sm:$0xff]
    %v6243 = vld [vmem:[#allocation4 + $0x158] sm:$0xff]
    %v6244 = vld [vmem:[#allocation4 + $0x170] sm:$0xff]
    %v6245 = vld [vmem:[#allocation4 + $0x188] sm:$0xff]
    %v6246 = vld [vmem:[#allocation4 + $0x1a0] sm:$0xff]
    %6263 = vrot.lane.b32.xlu0 %v6231, 8
    %v6264 = vpop.permute.xlu0 %6263
    %6265 = vrot.lane.b32.xlu0 %v6232, 8
    %v6266 = vpop.permute.xlu0 %6265
    %6267 = vrot.lane.b32.xlu0 %v6233, 8
    %v6268 = vpop.permute.xlu0 %6267
    %6269 = vrot.lane.b32.xlu0 %v6234, 8
    %v6270 = vpop.permute.xlu0 %6269
    %6271 = vrot.lane.b32.xlu0 %v6235, 8
    %v6272 = vpop.permute.xlu0 %6271
    %6273 = vrot.lane.b32.xlu0 %v6236, 8
    %v6274 = vpop.permute.xlu0 %6273
    %6275 = vrot.lane.b32.xlu0 %v6237, 8
    %v6276 = vpop.permute.xlu0 %6275
    %6277 = vrot.lane.b32.xlu0 %v6238, 8
    %v6278 = vpop.permute.xlu0 %6277
    %6279 = vrot.lane.b32.xlu0 %v6239, 8
    %v6280 = vpop.permute.xlu0 %6279
    %6281 = vrot.lane.b32.xlu0 %v6240, 8
    %v6282 = vpop.permute.xlu0 %6281
    %6283 = vrot.lane.b32.xlu0 %v6241, 8
    %v6284 = vpop.permute.xlu0 %6283
    %6285 = vrot.lane.b32.xlu0 %v6242, 8
    %v6286 = vpop.permute.xlu0 %6285
    %6287 = vrot.lane.b32.xlu0 %v6243, 8
    %v6288 = vpop.permute.xlu0 %6287
    %6289 = vrot.lane.b32.xlu0 %v6244, 8
    %v6290 = vpop.permute.xlu0 %6289
    %6291 = vrot.lane.b32.xlu0 %v6245, 8
    %v6292 = vpop.permute.xlu0 %6291
    %6293 = vrot.lane.b32.xlu0 %v6246, 8
    %v6294 = vpop.permute.xlu0 %6293
    %vm6311 = vcmask 130112
    %6312 = vst.msk [vmem:[#allocation5] sm:$0xff] %vm6311, %v6264
    %6313 = vst.msk [vmem:[#allocation5 + $0x8] sm:$0xff] %vm6311, %v6266
    %6314 = vst.msk [vmem:[#allocation5 + $0x10] sm:$0xff] %vm6311, %v6268
    %6315 = vst.msk [vmem:[#allocation5 + $0x18] sm:$0xff] %vm6311, %v6270
    %6316 = vst.msk [vmem:[#allocation5 + $0x20] sm:$0xff] %vm6311, %v6272
    %6317 = vst.msk [vmem:[#allocation5 + $0x28] sm:$0xff] %vm6311, %v6274
    %6318 = vst.msk [vmem:[#allocation5 + $0x30] sm:$0xff] %vm6311, %v6276
    %6319 = vst.msk [vmem:[#allocation5 + $0x38] sm:$0xff] %vm6311, %v6278
    %6320 = vst.msk [vmem:[#allocation5 + $0x40] sm:$0xff] %vm6311, %v6280
    %6321 = vst.msk [vmem:[#allocation5 + $0x48] sm:$0xff] %vm6311, %v6282
    %6322 = vst.msk [vmem:[#allocation5 + $0x50] sm:$0xff] %vm6311, %v6284
    %6323 = vst.msk [vmem:[#allocation5 + $0x58] sm:$0xff] %vm6311, %v6286
    %6324 = vst.msk [vmem:[#allocation5 + $0x60] sm:$0xff] %vm6311, %v6288
    %6325 = vst.msk [vmem:[#allocation5 + $0x68] sm:$0xff] %vm6311, %v6290
    %6326 = vst.msk [vmem:[#allocation5 + $0x70] sm:$0xff] %vm6311, %v6292
    %6327 = vst.msk [vmem:[#allocation5 + $0x78] sm:$0xff] %vm6311, %v6294
    %v6328 = vld [vmem:[#allocation4 + $0x9] sm:$0xff]
    %v6329 = vld [vmem:[#allocation4 + $0x21] sm:$0xff]
    %v6330 = vld [vmem:[#allocation4 + $0x39] sm:$0xff]
    %v6331 = vld [vmem:[#allocation4 + $0x51] sm:$0xff]
    %v6332 = vld [vmem:[#allocation4 + $0x69] sm:$0xff]
    %v6333 = vld [vmem:[#allocation4 + $0x81] sm:$0xff]
    %v6334 = vld [vmem:[#allocation4 + $0x99] sm:$0xff]
    %v6335 = vld [vmem:[#allocation4 + $0xb1] sm:$0xff]
    %v6336 = vld [vmem:[#allocation4 + $0xf9] sm:$0xff]
    %v6337 = vld [vmem:[#allocation4 + $0x111] sm:$0xff]
    %v6338 = vld [vmem:[#allocation4 + $0x129] sm:$0xff]
    %v6339 = vld [vmem:[#allocation4 + $0x141] sm:$0xff]
    %v6340 = vld [vmem:[#allocation4 + $0x159] sm:$0xff]
    %v6341 = vld [vmem:[#allocation4 + $0x171] sm:$0xff]
    %v6342 = vld [vmem:[#allocation4 + $0x189] sm:$0xff]
    %v6343 = vld [vmem:[#allocation4 + $0x1a1] sm:$0xff]
    %6360 = vrot.lane.b32.xlu0 %v6328, 16
    %v6361 = vpop.permute.xlu0 %6360
    %6362 = vrot.lane.b32.xlu0 %v6329, 16
    %v6363 = vpop.permute.xlu0 %6362
    %6364 = vrot.lane.b32.xlu0 %v6330, 16
    %v6365 = vpop.permute.xlu0 %6364
    %6366 = vrot.lane.b32.xlu0 %v6331, 16
    %v6367 = vpop.permute.xlu0 %6366
    %6368 = vrot.lane.b32.xlu0 %v6332, 16
    %v6369 = vpop.permute.xlu0 %6368
    %6370 = vrot.lane.b32.xlu0 %v6333, 16
    %v6371 = vpop.permute.xlu0 %6370
    %6372 = vrot.lane.b32.xlu0 %v6334, 16
    %v6373 = vpop.permute.xlu0 %6372
    %6374 = vrot.lane.b32.xlu0 %v6335, 16
    %v6375 = vpop.permute.xlu0 %6374
    %6376 = vrot.lane.b32.xlu0 %v6336, 16
    %v6377 = vpop.permute.xlu0 %6376
    %6378 = vrot.lane.b32.xlu0 %v6337, 16
    %v6379 = vpop.permute.xlu0 %6378
    %6380 = vrot.lane.b32.xlu0 %v6338, 16
    %v6381 = vpop.permute.xlu0 %6380
    %6382 = vrot.lane.b32.xlu0 %v6339, 16
    %v6383 = vpop.permute.xlu0 %6382
    %6384 = vrot.lane.b32.xlu0 %v6340, 16
    %v6385 = vpop.permute.xlu0 %6384
    %6386 = vrot.lane.b32.xlu0 %v6341, 16
    %v6387 = vpop.permute.xlu0 %6386
    %6388 = vrot.lane.b32.xlu0 %v6342, 16
    %v6389 = vpop.permute.xlu0 %6388
    %6390 = vrot.lane.b32.xlu0 %v6343, 16
    %v6391 = vpop.permute.xlu0 %6390
    %vm6408 = vcmask 195712
    %6409 = vst.msk [vmem:[#allocation5] sm:$0xff] %vm6408, %v6361
    %6410 = vst.msk [vmem:[#allocation5 + $0x8] sm:$0xff] %vm6408, %v6363
    %6411 = vst.msk [vmem:[#allocation5 + $0x10] sm:$0xff] %vm6408, %v6365
    %6412 = vst.msk [vmem:[#allocation5 + $0x18] sm:$0xff] %vm6408, %v6367
    %6413 = vst.msk [vmem:[#allocation5 + $0x20] sm:$0xff] %vm6408, %v6369
    %6414 = vst.msk [vmem:[#allocation5 + $0x28] sm:$0xff] %vm6408, %v6371
    %6415 = vst.msk [vmem:[#allocation5 + $0x30] sm:$0xff] %vm6408, %v6373
    %6416 = vst.msk [vmem:[#allocation5 + $0x38] sm:$0xff] %vm6408, %v6375
    %6417 = vst.msk [vmem:[#allocation5 + $0x40] sm:$0xff] %vm6408, %v6377
    %6418 = vst.msk [vmem:[#allocation5 + $0x48] sm:$0xff] %vm6408, %v6379
    %6419 = vst.msk [vmem:[#allocation5 + $0x50] sm:$0xff] %vm6408, %v6381
    %6420 = vst.msk [vmem:[#allocation5 + $0x58] sm:$0xff] %vm6408, %v6383
    %6421 = vst.msk [vmem:[#allocation5 + $0x60] sm:$0xff] %vm6408, %v6385
    %6422 = vst.msk [vmem:[#allocation5 + $0x68] sm:$0xff] %vm6408, %v6387
    %6423 = vst.msk [vmem:[#allocation5 + $0x70] sm:$0xff] %vm6408, %v6389
    %6424 = vst.msk [vmem:[#allocation5 + $0x78] sm:$0xff] %vm6408, %v6391
    %v6425 = vld [vmem:[%s6182 + $0x7] sm:$0xff]
    %v6426 = vld [vmem:[%s6182 + $0x1f] sm:$0xff]
    %v6427 = vld [vmem:[%s6182 + $0x37] sm:$0xff]
    %v6428 = vld [vmem:[%s6182 + $0x4f] sm:$0xff]
    %v6429 = vld [vmem:[%s6182 + $0x67] sm:$0xff]
    %v6430 = vld [vmem:[%s6182 + $0x7f] sm:$0xff]
    %v6431 = vld [vmem:[%s6182 + $0x97] sm:$0xff]
    %v6432 = vld [vmem:[%s6182 + $0xaf] sm:$0xff]
    %v6433 = vld [vmem:[%s6182 + $0xf7] sm:$0xff]
    %v6434 = vld [vmem:[%s6182 + $0x10f] sm:$0xff]
    %v6435 = vld [vmem:[%s6182 + $0x127] sm:$0xff]
    %v6436 = vld [vmem:[%s6182 + $0x13f] sm:$0xff]
    %v6437 = vld [vmem:[%s6182 + $0x157] sm:$0xff]
    %v6438 = vld [vmem:[%s6182 + $0x16f] sm:$0xff]
    %v6439 = vld [vmem:[%s6182 + $0x187] sm:$0xff]
    %v6440 = vld [vmem:[%s6182 + $0x19f] sm:$0xff]
    %6457 = vrot.lane.b32.xlu0 %v6425, 24
    %v6458 = vpop.permute.xlu0 %6457
    %6459 = vrot.lane.b32.xlu0 %v6426, 24
    %v6460 = vpop.permute.xlu0 %6459
    %6461 = vrot.lane.b32.xlu0 %v6427, 24
    %v6462 = vpop.permute.xlu0 %6461
    %6463 = vrot.lane.b32.xlu0 %v6428, 24
    %v6464 = vpop.permute.xlu0 %6463
    %6465 = vrot.lane.b32.xlu0 %v6429, 24
    %v6466 = vpop.permute.xlu0 %6465
    %6467 = vrot.lane.b32.xlu0 %v6430, 24
    %v6468 = vpop.permute.xlu0 %6467
    %6469 = vrot.lane.b32.xlu0 %v6431, 24
    %v6470 = vpop.permute.xlu0 %6469
    %6471 = vrot.lane.b32.xlu0 %v6432, 24
    %v6472 = vpop.permute.xlu0 %6471
    %6473 = vrot.lane.b32.xlu0 %v6433, 24
    %v6474 = vpop.permute.xlu0 %6473
    %6475 = vrot.lane.b32.xlu0 %v6434, 24
    %v6476 = vpop.permute.xlu0 %6475
    %6477 = vrot.lane.b32.xlu0 %v6435, 24
    %v6478 = vpop.permute.xlu0 %6477
    %6479 = vrot.lane.b32.xlu0 %v6436, 24
    %v6480 = vpop.permute.xlu0 %6479
    %6481 = vrot.lane.b32.xlu0 %v6437, 24
    %v6482 = vpop.permute.xlu0 %6481
    %6483 = vrot.lane.b32.xlu0 %v6438, 24
    %v6484 = vpop.permute.xlu0 %6483
    %6485 = vrot.lane.b32.xlu0 %v6439, 24
    %v6486 = vpop.permute.xlu0 %6485
    %6487 = vrot.lane.b32.xlu0 %v6440, 24
    %v6488 = vpop.permute.xlu0 %6487
    %vm6505 = vcmask 261312
    %6506 = vst.msk [vmem:[#allocation5] sm:$0xff] %vm6505, %v6458
    %6507 = vst.msk [vmem:[#allocation5 + $0x8] sm:$0xff] %vm6505, %v6460
    %6508 = vst.msk [vmem:[#allocation5 + $0x10] sm:$0xff] %vm6505, %v6462
    %6509 = vst.msk [vmem:[#allocation5 + $0x18] sm:$0xff] %vm6505, %v6464
    %6510 = vst.msk [vmem:[#allocation5 + $0x20] sm:$0xff] %vm6505, %v6466
    %6511 = vst.msk [vmem:[#allocation5 + $0x28] sm:$0xff] %vm6505, %v6468
    %6512 = vst.msk [vmem:[#allocation5 + $0x30] sm:$0xff] %vm6505, %v6470
    %6513 = vst.msk [vmem:[#allocation5 + $0x38] sm:$0xff] %vm6505, %v6472
    %6514 = vst.msk [vmem:[#allocation5 + $0x40] sm:$0xff] %vm6505, %v6474
    %6515 = vst.msk [vmem:[#allocation5 + $0x48] sm:$0xff] %vm6505, %v6476
    %6516 = vst.msk [vmem:[#allocation5 + $0x50] sm:$0xff] %vm6505, %v6478
    %6517 = vst.msk [vmem:[#allocation5 + $0x58] sm:$0xff] %vm6505, %v6480
    %6518 = vst.msk [vmem:[#allocation5 + $0x60] sm:$0xff] %vm6505, %v6482
    %6519 = vst.msk [vmem:[#allocation5 + $0x68] sm:$0xff] %vm6505, %v6484
    %6520 = vst.msk [vmem:[#allocation5 + $0x70] sm:$0xff] %vm6505, %v6486
    %6521 = vst.msk [vmem:[#allocation5 + $0x78] sm:$0xff] %vm6505, %v6488
    %v6522 = vld [vmem:[%s6182 + $0x8] sm:$0xff]
    %v6523 = vld [vmem:[%s6182 + $0x20] sm:$0xff]
    %v6524 = vld [vmem:[%s6182 + $0x38] sm:$0xff]
    %v6525 = vld [vmem:[%s6182 + $0x50] sm:$0xff]
    %v6526 = vld [vmem:[%s6182 + $0x68] sm:$0xff]
    %v6527 = vld [vmem:[%s6182 + $0x80] sm:$0xff]
    %v6528 = vld [vmem:[%s6182 + $0x98] sm:$0xff]
    %v6529 = vld [vmem:[%s6182 + $0xb0] sm:$0xff]
    %v6530 = vld [vmem:[%s6182 + $0xf8] sm:$0xff]
    %v6531 = vld [vmem:[%s6182 + $0x110] sm:$0xff]
    %v6532 = vld [vmem:[%s6182 + $0x128] sm:$0xff]
    %v6533 = vld [vmem:[%s6182 + $0x140] sm:$0xff]
    %v6534 = vld [vmem:[%s6182 + $0x158] sm:$0xff]
    %v6535 = vld [vmem:[%s6182 + $0x170] sm:$0xff]
    %v6536 = vld [vmem:[%s6182 + $0x188] sm:$0xff]
    %v6537 = vld [vmem:[%s6182 + $0x1a0] sm:$0xff]
    %6554 = vrot.lane.b32.xlu0 %v6522, 32
    %v6555 = vpop.permute.xlu0 %6554
    %6556 = vrot.lane.b32.xlu0 %v6523, 32
    %v6557 = vpop.permute.xlu0 %6556
    %6558 = vrot.lane.b32.xlu0 %v6524, 32
    %v6559 = vpop.permute.xlu0 %6558
    %6560 = vrot.lane.b32.xlu0 %v6525, 32
    %v6561 = vpop.permute.xlu0 %6560
    %6562 = vrot.lane.b32.xlu0 %v6526, 32
    %v6563 = vpop.permute.xlu0 %6562
    %6564 = vrot.lane.b32.xlu0 %v6527, 32
    %v6565 = vpop.permute.xlu0 %6564
    %6566 = vrot.lane.b32.xlu0 %v6528, 32
    %v6567 = vpop.permute.xlu0 %6566
    %6568 = vrot.lane.b32.xlu0 %v6529, 32
    %v6569 = vpop.permute.xlu0 %6568
    %6570 = vrot.lane.b32.xlu0 %v6530, 32
    %v6571 = vpop.permute.xlu0 %6570
    %6572 = vrot.lane.b32.xlu0 %v6531, 32
    %v6573 = vpop.permute.xlu0 %6572
    %6574 = vrot.lane.b32.xlu0 %v6532, 32
    %v6575 = vpop.permute.xlu0 %6574
    %6576 = vrot.lane.b32.xlu0 %v6533, 32
    %v6577 = vpop.permute.xlu0 %6576
    %6578 = vrot.lane.b32.xlu0 %v6534, 32
    %v6579 = vpop.permute.xlu0 %6578
    %6580 = vrot.lane.b32.xlu0 %v6535, 32
    %v6581 = vpop.permute.xlu0 %6580
    %6582 = vrot.lane.b32.xlu0 %v6536, 32
    %v6583 = vpop.permute.xlu0 %6582
    %6584 = vrot.lane.b32.xlu0 %v6537, 32
    %v6585 = vpop.permute.xlu0 %6584
    %vm6602 = vcmask 326912
    %6603 = vst.msk [vmem:[#allocation5] sm:$0xff] %vm6602, %v6555
    %6604 = vst.msk [vmem:[#allocation5 + $0x8] sm:$0xff] %vm6602, %v6557
    %6605 = vst.msk [vmem:[#allocation5 + $0x10] sm:$0xff] %vm6602, %v6559
    %6606 = vst.msk [vmem:[#allocation5 + $0x18] sm:$0xff] %vm6602, %v6561
    %6607 = vst.msk [vmem:[#allocation5 + $0x20] sm:$0xff] %vm6602, %v6563
    %6608 = vst.msk [vmem:[#allocation5 + $0x28] sm:$0xff] %vm6602, %v6565
    %6609 = vst.msk [vmem:[#allocation5 + $0x30] sm:$0xff] %vm6602, %v6567
    %6610 = vst.msk [vmem:[#allocation5 + $0x38] sm:$0xff] %vm6602, %v6569
    %6611 = vst.msk [vmem:[#allocation5 + $0x40] sm:$0xff] %vm6602, %v6571
    %6612 = vst.msk [vmem:[#allocation5 + $0x48] sm:$0xff] %vm6602, %v6573
    %6613 = vst.msk [vmem:[#allocation5 + $0x50] sm:$0xff] %vm6602, %v6575
    %6614 = vst.msk [vmem:[#allocation5 + $0x58] sm:$0xff] %vm6602, %v6577
    %6615 = vst.msk [vmem:[#allocation5 + $0x60] sm:$0xff] %vm6602, %v6579
    %6616 = vst.msk [vmem:[#allocation5 + $0x68] sm:$0xff] %vm6602, %v6581
    %6617 = vst.msk [vmem:[#allocation5 + $0x70] sm:$0xff] %vm6602, %v6583
    %6618 = vst.msk [vmem:[#allocation5 + $0x78] sm:$0xff] %vm6602, %v6585
    %v6619 = vld [vmem:[%s6182 + $0x9] sm:$0xff]
    %v6620 = vld [vmem:[%s6182 + $0x21] sm:$0xff]
    %v6621 = vld [vmem:[%s6182 + $0x39] sm:$0xff]
    %v6622 = vld [vmem:[%s6182 + $0x51] sm:$0xff]
    %v6623 = vld [vmem:[%s6182 + $0x69] sm:$0xff]
    %v6624 = vld [vmem:[%s6182 + $0x81] sm:$0xff]
    %v6625 = vld [vmem:[%s6182 + $0x99] sm:$0xff]
    %v6626 = vld [vmem:[%s6182 + $0xb1] sm:$0xff]
    %v6627 = vld [vmem:[%s6182 + $0xf9] sm:$0xff]
    %v6628 = vld [vmem:[%s6182 + $0x111] sm:$0xff]
    %v6629 = vld [vmem:[%s6182 + $0x129] sm:$0xff]
    %v6630 = vld [vmem:[%s6182 + $0x141] sm:$0xff]
    %v6631 = vld [vmem:[%s6182 + $0x159] sm:$0xff]
    %v6632 = vld [vmem:[%s6182 + $0x171] sm:$0xff]
    %v6633 = vld [vmem:[%s6182 + $0x189] sm:$0xff]
    %v6634 = vld [vmem:[%s6182 + $0x1a1] sm:$0xff]
    %6651 = vrot.lane.b32.xlu0 %v6619, 40
    %v6652 = vpop.permute.xlu0 %6651
    %6653 = vrot.lane.b32.xlu0 %v6620, 40
    %v6654 = vpop.permute.xlu0 %6653
    %6655 = vrot.lane.b32.xlu0 %v6621, 40
    %v6656 = vpop.permute.xlu0 %6655
    %6657 = vrot.lane.b32.xlu0 %v6622, 40
    %v6658 = vpop.permute.xlu0 %6657
    %6659 = vrot.lane.b32.xlu0 %v6623, 40
    %v6660 = vpop.permute.xlu0 %6659
    %6661 = vrot.lane.b32.xlu0 %v6624, 40
    %v6662 = vpop.permute.xlu0 %6661
    %6663 = vrot.lane.b32.xlu0 %v6625, 40
    %v6664 = vpop.permute.xlu0 %6663
    %6665 = vrot.lane.b32.xlu0 %v6626, 40
    %v6666 = vpop.permute.xlu0 %6665
    %6667 = vrot.lane.b32.xlu0 %v6627, 40
    %v6668 = vpop.permute.xlu0 %6667
    %6669 = vrot.lane.b32.xlu0 %v6628, 40
    %v6670 = vpop.permute.xlu0 %6669
    %6671 = vrot.lane.b32.xlu0 %v6629, 40
    %v6672 = vpop.permute.xlu0 %6671
    %6673 = vrot.lane.b32.xlu0 %v6630, 40
    %v6674 = vpop.permute.xlu0 %6673
    %6675 = vrot.lane.b32.xlu0 %v6631, 40
    %v6676 = vpop.permute.xlu0 %6675
    %6677 = vrot.lane.b32.xlu0 %v6632, 40
    %v6678 = vpop.permute.xlu0 %6677
    %6679 = vrot.lane.b32.xlu0 %v6633, 40
    %v6680 = vpop.permute.xlu0 %6679
    %6681 = vrot.lane.b32.xlu0 %v6634, 40
    %v6682 = vpop.permute.xlu0 %6681
    %vm6699 = vcmask 392512
    %6700 = vst.msk [vmem:[#allocation5] sm:$0xff] %vm6699, %v6652
    %6701 = vst.msk [vmem:[#allocation5 + $0x8] sm:$0xff] %vm6699, %v6654
    %6702 = vst.msk [vmem:[#allocation5 + $0x10] sm:$0xff] %vm6699, %v6656
    %6703 = vst.msk [vmem:[#allocation5 + $0x18] sm:$0xff] %vm6699, %v6658
    %6704 = vst.msk [vmem:[#allocation5 + $0x20] sm:$0xff] %vm6699, %v6660
    %6705 = vst.msk [vmem:[#allocation5 + $0x28] sm:$0xff] %vm6699, %v6662
    %6706 = vst.msk [vmem:[#allocation5 + $0x30] sm:$0xff] %vm6699, %v6664
    %6707 = vst.msk [vmem:[#allocation5 + $0x38] sm:$0xff] %vm6699, %v6666
    %6708 = vst.msk [vmem:[#allocation5 + $0x40] sm:$0xff] %vm6699, %v6668
    %6709 = vst.msk [vmem:[#allocation5 + $0x48] sm:$0xff] %vm6699, %v6670
    %6710 = vst.msk [vmem:[#allocation5 + $0x50] sm:$0xff] %vm6699, %v6672
    %6711 = vst.msk [vmem:[#allocation5 + $0x58] sm:$0xff] %vm6699, %v6674
    %6712 = vst.msk [vmem:[#allocation5 + $0x60] sm:$0xff] %vm6699, %v6676
    %6713 = vst.msk [vmem:[#allocation5 + $0x68] sm:$0xff] %vm6699, %v6678
    %6714 = vst.msk [vmem:[#allocation5 + $0x70] sm:$0xff] %vm6699, %v6680
    %6715 = vst.msk [vmem:[#allocation5 + $0x78] sm:$0xff] %vm6699, %v6682
    %s6716 = scalar_lea.vmem [#allocation4], 48
    %v6717 = vld [vmem:[%s6716 + $0x7] sm:$0xff]
    %v6718 = vld [vmem:[%s6716 + $0x1f] sm:$0xff]
    %v6719 = vld [vmem:[%s6716 + $0x37] sm:$0xff]
    %v6720 = vld [vmem:[%s6716 + $0x4f] sm:$0xff]
    %v6721 = vld [vmem:[%s6716 + $0x67] sm:$0xff]
    %v6722 = vld [vmem:[%s6716 + $0x7f] sm:$0xff]
    %v6723 = vld [vmem:[%s6716 + $0x97] sm:$0xff]
    %v6724 = vld [vmem:[%s6716 + $0xaf] sm:$0xff]
    %v6725 = vld [vmem:[%s6716 + $0xf7] sm:$0xff]
    %v6726 = vld [vmem:[%s6716 + $0x10f] sm:$0xff]
    %v6727 = vld [vmem:[%s6716 + $0x127] sm:$0xff]
    %v6728 = vld [vmem:[%s6716 + $0x13f] sm:$0xff]
    %v6729 = vld [vmem:[%s6716 + $0x157] sm:$0xff]
    %v6730 = vld [vmem:[%s6716 + $0x16f] sm:$0xff]
    %v6731 = vld [vmem:[%s6716 + $0x187] sm:$0xff]
    %v6732 = vld [vmem:[%s6716 + $0x19f] sm:$0xff]
    %6749 = vrot.lane.b32.xlu0 %v6717, 48
    %v6750 = vpop.permute.xlu0 %6749
    %6751 = vrot.lane.b32.xlu0 %v6718, 48
    %v6752 = vpop.permute.xlu0 %6751
    %6753 = vrot.lane.b32.xlu0 %v6719, 48
    %v6754 = vpop.permute.xlu0 %6753
    %6755 = vrot.lane.b32.xlu0 %v6720, 48
    %v6756 = vpop.permute.xlu0 %6755
    %6757 = vrot.lane.b32.xlu0 %v6721, 48
    %v6758 = vpop.permute.xlu0 %6757
    %6759 = vrot.lane.b32.xlu0 %v6722, 48
    %v6760 = vpop.permute.xlu0 %6759
    %6761 = vrot.lane.b32.xlu0 %v6723, 48
    %v6762 = vpop.permute.xlu0 %6761
    %6763 = vrot.lane.b32.xlu0 %v6724, 48
    %v6764 = vpop.permute.xlu0 %6763
    %6765 = vrot.lane.b32.xlu0 %v6725, 48
    %v6766 = vpop.permute.xlu0 %6765
    %6767 = vrot.lane.b32.xlu0 %v6726, 48
    %v6768 = vpop.permute.xlu0 %6767
    %6769 = vrot.lane.b32.xlu0 %v6727, 48
    %v6770 = vpop.permute.xlu0 %6769
    %6771 = vrot.lane.b32.xlu0 %v6728, 48
    %v6772 = vpop.permute.xlu0 %6771
    %6773 = vrot.lane.b32.xlu0 %v6729, 48
    %v6774 = vpop.permute.xlu0 %6773
    %6775 = vrot.lane.b32.xlu0 %v6730, 48
    %v6776 = vpop.permute.xlu0 %6775
    %6777 = vrot.lane.b32.xlu0 %v6731, 48
    %v6778 = vpop.permute.xlu0 %6777
    %6779 = vrot.lane.b32.xlu0 %v6732, 48
    %v6780 = vpop.permute.xlu0 %6779
    %vm6797 = vcmask 458112
    %6798 = vst.msk [vmem:[#allocation5] sm:$0xff] %vm6797, %v6750
    %6799 = vst.msk [vmem:[#allocation5 + $0x8] sm:$0xff] %vm6797, %v6752
    %6800 = vst.msk [vmem:[#allocation5 + $0x10] sm:$0xff] %vm6797, %v6754
    %6801 = vst.msk [vmem:[#allocation5 + $0x18] sm:$0xff] %vm6797, %v6756
    %6802 = vst.msk [vmem:[#allocation5 + $0x20] sm:$0xff] %vm6797, %v6758
    %6803 = vst.msk [vmem:[#allocation5 + $0x28] sm:$0xff] %vm6797, %v6760
    %6804 = vst.msk [vmem:[#allocation5 + $0x30] sm:$0xff] %vm6797, %v6762
    %6805 = vst.msk [vmem:[#allocation5 + $0x38] sm:$0xff] %vm6797, %v6764
    %6806 = vst.msk [vmem:[#allocation5 + $0x40] sm:$0xff] %vm6797, %v6766
    %6807 = vst.msk [vmem:[#allocation5 + $0x48] sm:$0xff] %vm6797, %v6768
    %6808 = vst.msk [vmem:[#allocation5 + $0x50] sm:$0xff] %vm6797, %v6770
    %6809 = vst.msk [vmem:[#allocation5 + $0x58] sm:$0xff] %vm6797, %v6772
    %6810 = vst.msk [vmem:[#allocation5 + $0x60] sm:$0xff] %vm6797, %v6774
    %6811 = vst.msk [vmem:[#allocation5 + $0x68] sm:$0xff] %vm6797, %v6776
    %6812 = vst.msk [vmem:[#allocation5 + $0x70] sm:$0xff] %vm6797, %v6778
    %6813 = vst.msk [vmem:[#allocation5 + $0x78] sm:$0xff] %vm6797, %v6780
    %v6814 = vld [vmem:[%s6716 + $0x8] sm:$0xff]
    %v6815 = vld [vmem:[%s6716 + $0x20] sm:$0xff]
    %v6816 = vld [vmem:[%s6716 + $0x38] sm:$0xff]
    %v6817 = vld [vmem:[%s6716 + $0x50] sm:$0xff]
    %v6818 = vld [vmem:[%s6716 + $0x68] sm:$0xff]
    %v6819 = vld [vmem:[%s6716 + $0x80] sm:$0xff]
    %v6820 = vld [vmem:[%s6716 + $0x98] sm:$0xff]
    %v6821 = vld [vmem:[%s6716 + $0xb0] sm:$0xff]
    %v6822 = vld [vmem:[%s6716 + $0xf8] sm:$0xff]
    %v6823 = vld [vmem:[%s6716 + $0x110] sm:$0xff]
    %v6824 = vld [vmem:[%s6716 + $0x128] sm:$0xff]
    %v6825 = vld [vmem:[%s6716 + $0x140] sm:$0xff]
    %v6826 = vld [vmem:[%s6716 + $0x158] sm:$0xff]
    %v6827 = vld [vmem:[%s6716 + $0x170] sm:$0xff]
    %v6828 = vld [vmem:[%s6716 + $0x188] sm:$0xff]
    %v6829 = vld [vmem:[%s6716 + $0x1a0] sm:$0xff]
    %6846 = vrot.lane.b32.xlu0 %v6814, 56
    %v6847 = vpop.permute.xlu0 %6846
    %6848 = vrot.lane.b32.xlu0 %v6815, 56
    %v6849 = vpop.permute.xlu0 %6848
    %6850 = vrot.lane.b32.xlu0 %v6816, 56
    %v6851 = vpop.permute.xlu0 %6850
    %6852 = vrot.lane.b32.xlu0 %v6817, 56
    %v6853 = vpop.permute.xlu0 %6852
    %6854 = vrot.lane.b32.xlu0 %v6818, 56
    %v6855 = vpop.permute.xlu0 %6854
    %6856 = vrot.lane.b32.xlu0 %v6819, 56
    %v6857 = vpop.permute.xlu0 %6856
    %6858 = vrot.lane.b32.xlu0 %v6820, 56
    %v6859 = vpop.permute.xlu0 %6858
    %6860 = vrot.lane.b32.xlu0 %v6821, 56
    %v6861 = vpop.permute.xlu0 %6860
    %6862 = vrot.lane.b32.xlu0 %v6822, 56
    %v6863 = vpop.permute.xlu0 %6862
    %6864 = vrot.lane.b32.xlu0 %v6823, 56
    %v6865 = vpop.permute.xlu0 %6864
    %6866 = vrot.lane.b32.xlu0 %v6824, 56
    %v6867 = vpop.permute.xlu0 %6866
    %6868 = vrot.lane.b32.xlu0 %v6825, 56
    %v6869 = vpop.permute.xlu0 %6868
    %6870 = vrot.lane.b32.xlu0 %v6826, 56
    %v6871 = vpop.permute.xlu0 %6870
    %6872 = vrot.lane.b32.xlu0 %v6827, 56
    %v6873 = vpop.permute.xlu0 %6872
    %6874 = vrot.lane.b32.xlu0 %v6828, 56
    %v6875 = vpop.permute.xlu0 %6874
    %6876 = vrot.lane.b32.xlu0 %v6829, 56
    %v6877 = vpop.permute.xlu0 %6876
    %vm6894 = vcmask 523712
    %6895 = vst.msk [vmem:[#allocation5] sm:$0xff] %vm6894, %v6847
    %6896 = vst.msk [vmem:[#allocation5 + $0x8] sm:$0xff] %vm6894, %v6849
    %6897 = vst.msk [vmem:[#allocation5 + $0x10] sm:$0xff] %vm6894, %v6851
    %6898 = vst.msk [vmem:[#allocation5 + $0x18] sm:$0xff] %vm6894, %v6853
    %6899 = vst.msk [vmem:[#allocation5 + $0x20] sm:$0xff] %vm6894, %v6855
    %6900 = vst.msk [vmem:[#allocation5 + $0x28] sm:$0xff] %vm6894, %v6857
    %6901 = vst.msk [vmem:[#allocation5 + $0x30] sm:$0xff] %vm6894, %v6859
    %6902 = vst.msk [vmem:[#allocation5 + $0x38] sm:$0xff] %vm6894, %v6861
    %6903 = vst.msk [vmem:[#allocation5 + $0x40] sm:$0xff] %vm6894, %v6863
    %6904 = vst.msk [vmem:[#allocation5 + $0x48] sm:$0xff] %vm6894, %v6865
    %6905 = vst.msk [vmem:[#allocation5 + $0x50] sm:$0xff] %vm6894, %v6867
    %6906 = vst.msk [vmem:[#allocation5 + $0x58] sm:$0xff] %vm6894, %v6869
    %6907 = vst.msk [vmem:[#allocation5 + $0x60] sm:$0xff] %vm6894, %v6871
    %6908 = vst.msk [vmem:[#allocation5 + $0x68] sm:$0xff] %vm6894, %v6873
    %6909 = vst.msk [vmem:[#allocation5 + $0x70] sm:$0xff] %vm6894, %v6875
    %6910 = vst.msk [vmem:[#allocation5 + $0x78] sm:$0xff] %vm6894, %v6877
    %v6911 = vld [vmem:[%s6716 + $0x9] sm:$0xff]
    %v6912 = vld [vmem:[%s6716 + $0x21] sm:$0xff]
    %v6913 = vld [vmem:[%s6716 + $0x39] sm:$0xff]
    %v6914 = vld [vmem:[%s6716 + $0x51] sm:$0xff]
    %v6915 = vld [vmem:[%s6716 + $0x69] sm:$0xff]
    %v6916 = vld [vmem:[%s6716 + $0x81] sm:$0xff]
    %v6917 = vld [vmem:[%s6716 + $0x99] sm:$0xff]
    %v6918 = vld [vmem:[%s6716 + $0xb1] sm:$0xff]
    %v6919 = vld [vmem:[%s6716 + $0xf9] sm:$0xff]
    %v6920 = vld [vmem:[%s6716 + $0x111] sm:$0xff]
    %v6921 = vld [vmem:[%s6716 + $0x129] sm:$0xff]
    %v6922 = vld [vmem:[%s6716 + $0x141] sm:$0xff]
    %v6923 = vld [vmem:[%s6716 + $0x159] sm:$0xff]
    %v6924 = vld [vmem:[%s6716 + $0x171] sm:$0xff]
    %v6925 = vld [vmem:[%s6716 + $0x189] sm:$0xff]
    %v6926 = vld [vmem:[%s6716 + $0x1a1] sm:$0xff]
    %6943 = vrot.lane.b32.xlu0 %v6911, 64
    %v6944 = vpop.permute.xlu0 %6943
    %6945 = vrot.lane.b32.xlu0 %v6912, 64
    %v6946 = vpop.permute.xlu0 %6945
    %6947 = vrot.lane.b32.xlu0 %v6913, 64
    %v6948 = vpop.permute.xlu0 %6947
    %6949 = vrot.lane.b32.xlu0 %v6914, 64
    %v6950 = vpop.permute.xlu0 %6949
    %6951 = vrot.lane.b32.xlu0 %v6915, 64
    %v6952 = vpop.permute.xlu0 %6951
    %6953 = vrot.lane.b32.xlu0 %v6916, 64
    %v6954 = vpop.permute.xlu0 %6953
    %6955 = vrot.lane.b32.xlu0 %v6917, 64
    %v6956 = vpop.permute.xlu0 %6955
    %6957 = vrot.lane.b32.xlu0 %v6918, 64
    %v6958 = vpop.permute.xlu0 %6957
    %6959 = vrot.lane.b32.xlu0 %v6919, 64
    %v6960 = vpop.permute.xlu0 %6959
    %6961 = vrot.lane.b32.xlu0 %v6920, 64
    %v6962 = vpop.permute.xlu0 %6961
    %6963 = vrot.lane.b32.xlu0 %v6921, 64
    %v6964 = vpop.permute.xlu0 %6963
    %6965 = vrot.lane.b32.xlu0 %v6922, 64
    %v6966 = vpop.permute.xlu0 %6965
    %6967 = vrot.lane.b32.xlu0 %v6923, 64
    %v6968 = vpop.permute.xlu0 %6967
    %6969 = vrot.lane.b32.xlu0 %v6924, 64
    %v6970 = vpop.permute.xlu0 %6969
    %6971 = vrot.lane.b32.xlu0 %v6925, 64
    %v6972 = vpop.permute.xlu0 %6971
    %6973 = vrot.lane.b32.xlu0 %v6926, 64
    %v6974 = vpop.permute.xlu0 %6973
    %vm6991 = vcmask 589312
    %6992 = vst.msk [vmem:[#allocation5] sm:$0xff] %vm6991, %v6944
    %6993 = vst.msk [vmem:[#allocation5 + $0x8] sm:$0xff] %vm6991, %v6946
    %6994 = vst.msk [vmem:[#allocation5 + $0x10] sm:$0xff] %vm6991, %v6948
    %6995 = vst.msk [vmem:[#allocation5 + $0x18] sm:$0xff] %vm6991, %v6950
    %6996 = vst.msk [vmem:[#allocation5 + $0x20] sm:$0xff] %vm6991, %v6952
    %6997 = vst.msk [vmem:[#allocation5 + $0x28] sm:$0xff] %vm6991, %v6954
    %6998 = vst.msk [vmem:[#allocation5 + $0x30] sm:$0xff] %vm6991, %v6956
    %6999 = vst.msk [vmem:[#allocation5 + $0x38] sm:$0xff] %vm6991, %v6958
    %7000 = vst.msk [vmem:[#allocation5 + $0x40] sm:$0xff] %vm6991, %v6960
    %7001 = vst.msk [vmem:[#allocation5 + $0x48] sm:$0xff] %vm6991, %v6962
    %7002 = vst.msk [vmem:[#allocation5 + $0x50] sm:$0xff] %vm6991, %v6964
    %7003 = vst.msk [vmem:[#allocation5 + $0x58] sm:$0xff] %vm6991, %v6966
    %7004 = vst.msk [vmem:[#allocation5 + $0x60] sm:$0xff] %vm6991, %v6968
    %7005 = vst.msk [vmem:[#allocation5 + $0x68] sm:$0xff] %vm6991, %v6970
    %7006 = vst.msk [vmem:[#allocation5 + $0x70] sm:$0xff] %vm6991, %v6972
    %7007 = vst.msk [vmem:[#allocation5 + $0x78] sm:$0xff] %vm6991, %v6974
    %v7008 = vld [vmem:[#allocation5] sm:$0xff]
    %v7009 = vld [vmem:[#allocation5 + $0x8] sm:$0xff]
    %v7010 = vld [vmem:[#allocation5 + $0x10] sm:$0xff]
    %v7011 = vld [vmem:[#allocation5 + $0x18] sm:$0xff]
    %v7012 = vld [vmem:[#allocation5 + $0x20] sm:$0xff]
    %v7013 = vld [vmem:[#allocation5 + $0x28] sm:$0xff]
    %v7014 = vld [vmem:[#allocation5 + $0x30] sm:$0xff]
    %v7015 = vld [vmem:[#allocation5 + $0x38] sm:$0xff]
    %v7016 = vld [vmem:[#allocation5 + $0x40] sm:$0xff]
    %v7017 = vld [vmem:[#allocation5 + $0x48] sm:$0xff]
    %v7018 = vld [vmem:[#allocation5 + $0x50] sm:$0xff]
    %v7019 = vld [vmem:[#allocation5 + $0x58] sm:$0xff]
    %v7020 = vld [vmem:[#allocation5 + $0x60] sm:$0xff]
    %v7021 = vld [vmem:[#allocation5 + $0x68] sm:$0xff]
    %v7022 = vld [vmem:[#allocation5 + $0x70] sm:$0xff]
    %v7023 = vld [vmem:[#allocation5 + $0x78] sm:$0xff]
    %v7024 = vpack.c.bf16 %v7009, %v7008
    %v7025 = vpack.c.bf16 %v7011, %v7010
    %v7026 = vpack.c.bf16 %v7013, %v7012
    %v7027 = vpack.c.bf16 %v7015, %v7014
    %v7028 = vpack.c.bf16 %v7017, %v7016
    %v7029 = vpack.c.bf16 %v7019, %v7018
    %v7030 = vpack.c.bf16 %v7021, %v7020
    %v7031 = vpack.c.bf16 %v7023, %v7022
    %v7032 = vld [vmem:[%s3] sm:$0xf]
    %v7033 = vld [vmem:[%s3 + $0x4] sm:$0xf]
    %v7034 = vld [vmem:[%s3 + $0x8] sm:$0xf]
    %v7035 = vld [vmem:[%s3 + $0xc] sm:$0xf]
    %v7036 = vld [vmem:[%s3 + $0x10] sm:$0xf]
    %v7037 = vld [vmem:[%s3 + $0x14] sm:$0xf]
    %v7038 = vld [vmem:[%s3 + $0x18] sm:$0xf]
    %v7039 = vld [vmem:[%s3 + $0x1c] sm:$0xf]
    %v7040 = vld [vmem:[%s3 + $0x20] sm:$0xf]
    %v7041 = vld [vmem:[%s4] sm:$0x1]
    %v7043 = vlaneseq
    %v7044 = vshrl.u32 %v7043, 7
    %v7045 = vsub.s32 0, %v7044
    %v7046 = vrot.slane %v7041, %v7045
    %v7057 = vunpack.c.l.b16 %v7032
    %v7058 = vunpack.c.l.b16 %v7033
    %v7059 = vunpack.c.l.b16 %v7034
    %v7060 = vunpack.c.l.b16 %v7035
    %v7061 = vunpack.c.l.b16 %v7036
    %v7062 = vunpack.c.l.b16 %v7037
    %v7063 = vunpack.c.l.b16 %v7038
    %v7064 = vunpack.c.l.b16 %v7039
    %v7065 = vunpack.c.l.b16 %v7040
    %v7066 = vpack.c.b16 %v7058, %v7057
    %v7067 = vpack.c.b16 %v7060, %v7059
    %v7068 = vpack.c.b16 %v7062, %v7061
    %v7069 = vpack.c.b16 %v7064, %v7063
    %v7070 = vpack.c.b16 %v7065, %v7065
    %vm7075 = vcmask 588800
    %v7077 = vsel %vm7075, %v7024, 0
    %v7080 = vsel %vm7075, %v7025, 0
    %v7083 = vsel %vm7075, %v7026, 0
    %v7086 = vsel %vm7075, %v7027, 0
    %v7089 = vsel %vm7075, %v7028, 0
    %v7092 = vsel %vm7075, %v7029, 0
    %v7095 = vsel %vm7075, %v7030, 0
    %v7098 = vsel %vm7075, %v7031, 0
    %vm7100 = vcmask 1043456
    %v7102 = vsel %vm7100, %v7070, 0
    %7104 = vmatprep.subr.bf16.mxu0 0
    %7105 = vmatpush1.bf16.msra.mxu0 0
    %7106 = vmatprep.subr.bf16.mxu0 0
    %7107 = vmatpush1.bf16.msra.mxu0 0
    %7108 = vmatprep.subr.bf16.mxu0 0
    %7109 = vmatpush1.bf16.msra.mxu0 0
    %7110 = vmatprep.subr.bf16.mxu0 0
    %7111 = vmatpush1.bf16.msra.mxu0 %v7102
    %7112 = vmatprep.subr.bf16.mxu0 0
    %7113 = vmatpush1.bf16.msra.mxu0 %v7069
    %7114 = vmatprep.subr.bf16.mxu0 0
    %7115 = vmatpush1.bf16.msra.mxu0 %v7068
    %7116 = vmatprep.subr.bf16.mxu0 0
    %7117 = vmatpush1.bf16.msra.mxu0 %v7067
    %7118 = vmatprep.subr.bf16.mxu0 0
    %7119 = vmatpush1.bf16.msra.mxu0 %v7066
    %7120 = vmatprep.subr.bf16.mxu0 0
    %7121 = vmatpush2.bf16.msra.mxu0 0
    %7122 = vmatprep.subr.bf16.mxu0 0
    %7123 = vmatpush2.bf16.msra.mxu0 0
    %7124 = vmatprep.subr.bf16.mxu0 0
    %7125 = vmatpush2.bf16.msra.mxu0 0
    %7126 = vmatprep.subr.bf16.mxu0 0
    %7127 = vmatpush2.bf16.msra.mxu0 0
    %7128 = vmatprep.subr.bf16.mxu0 0
    %7129 = vmatpush2.bf16.msra.mxu0 0
    %7130 = vmatprep.subr.bf16.mxu0 0
    %7131 = vmatpush2.bf16.msra.mxu0 0
    %7132 = vmatprep.subr.bf16.mxu0 0
    %7133 = vmatpush2.bf16.msra.mxu0 0
    %7134 = vmatprep.subr.bf16.mxu0 0
    %7135 = vmatpush2.bf16.msra.mxu0 0
    %7136 = vmatprep.mubr.bf16.mxu0 0
    %7137 = vmatmul.mubr.bf16.gmra.mxu0 %v7077
    %v7138 = vpop.f32.mrf.mxu0
    %v7139 = vadd.f32 %v7046, %v7138
    %v7140 = vpop.f32.mrf.mxu0
    %v7141 = vpop.f32.mrf.mxu0
    %v7142 = vadd.f32 %v7046, %v7141
    %v7143 = vpop.f32.mrf.mxu0
    %7144 = vmatprep.mubr.bf16.mxu0 0
    %7145 = vmatmul.mubr.bf16.gmra.mxu0 %v7080
    %v7146 = vpop.f32.mrf.mxu0
    %v7147 = vadd.f32 %v7046, %v7146
    %v7148 = vpop.f32.mrf.mxu0
    %v7149 = vpop.f32.mrf.mxu0
    %v7150 = vadd.f32 %v7046, %v7149
    %v7151 = vpop.f32.mrf.mxu0
    %7152 = vmatprep.mubr.bf16.mxu0 0
    %7153 = vmatmul.mubr.bf16.gmra.mxu0 %v7083
    %v7154 = vpop.f32.mrf.mxu0
    %v7155 = vadd.f32 %v7046, %v7154
    %v7156 = vpop.f32.mrf.mxu0
    %v7157 = vpop.f32.mrf.mxu0
    %v7158 = vadd.f32 %v7046, %v7157
    %v7159 = vpop.f32.mrf.mxu0
    %7160 = vmatprep.mubr.bf16.mxu0 0
    %7161 = vmatmul.mubr.bf16.gmra.mxu0 %v7086
    %v7162 = vpop.f32.mrf.mxu0
    %v7163 = vadd.f32 %v7046, %v7162
    %v7164 = vpop.f32.mrf.mxu0
    %v7165 = vpop.f32.mrf.mxu0
    %v7166 = vadd.f32 %v7046, %v7165
    %v7167 = vpop.f32.mrf.mxu0
    %7168 = vmatprep.mubr.bf16.mxu0 0
    %7169 = vmatmul.mubr.bf16.gmra.mxu0 %v7089
    %v7170 = vpop.f32.mrf.mxu0
    %v7171 = vadd.f32 %v7046, %v7170
    %v7172 = vpop.f32.mrf.mxu0
    %v7173 = vpop.f32.mrf.mxu0
    %v7174 = vadd.f32 %v7046, %v7173
    %v7175 = vpop.f32.mrf.mxu0
    %7176 = vmatprep.mubr.bf16.mxu0 0
    %7177 = vmatmul.mubr.bf16.gmra.mxu0 %v7092
    %v7178 = vpop.f32.mrf.mxu0
    %v7179 = vadd.f32 %v7046, %v7178
    %v7180 = vpop.f32.mrf.mxu0
    %v7181 = vpop.f32.mrf.mxu0
    %v7182 = vadd.f32 %v7046, %v7181
    %v7183 = vpop.f32.mrf.mxu0
    %7184 = vmatprep.mubr.bf16.mxu0 0
    %7185 = vmatmul.mubr.bf16.gmra.mxu0 %v7095
    %v7186 = vpop.f32.mrf.mxu0
    %v7187 = vadd.f32 %v7046, %v7186
    %v7188 = vpop.f32.mrf.mxu0
    %v7189 = vpop.f32.mrf.mxu0
    %v7190 = vadd.f32 %v7046, %v7189
    %v7191 = vpop.f32.mrf.mxu0
    %7192 = vmatprep.mubr.bf16.mxu0 0
    %7193 = vmatmul.mubr.bf16.gmra.mxu0 %v7098
    %v7194 = vpop.f32.mrf.mxu0
    %v7195 = vadd.f32 %v7046, %v7194
    %v7196 = vpop.f32.mrf.mxu0
    %v7197 = vpop.f32.mrf.mxu0
    %v7198 = vadd.f32 %v7046, %v7197
    %v7199 = vpop.f32.mrf.mxu0
    %7200 = vdwg.mxu0
    %v7201 = vmax.f32 %v7139, 0.0
    %v7202 = vmax.f32 %v7142, 0.0
    %v7203 = vmax.f32 %v7147, 0.0
    %v7204 = vmax.f32 %v7150, 0.0
    %v7205 = vmax.f32 %v7155, 0.0
    %v7206 = vmax.f32 %v7158, 0.0
    %v7207 = vmax.f32 %v7163, 0.0
    %v7208 = vmax.f32 %v7166, 0.0
    %v7209 = vmax.f32 %v7171, 0.0
    %v7210 = vmax.f32 %v7174, 0.0
    %v7211 = vmax.f32 %v7179, 0.0
    %v7212 = vmax.f32 %v7182, 0.0
    %v7213 = vmax.f32 %v7187, 0.0
    %v7214 = vmax.f32 %v7190, 0.0
    %v7215 = vmax.f32 %v7195, 0.0
    %v7216 = vmax.f32 %v7198, 0.0
    %v7217 = vmax.f32 %v7201, %v7202
    %v7218 = vmax.f32 %v7203, %v7204
    %v7219 = vmax.f32 %v7205, %v7206
    %v7220 = vmax.f32 %v7207, %v7208
    %v7221 = vmax.f32 %v7209, %v7210
    %v7222 = vmax.f32 %v7211, %v7212
    %v7223 = vmax.f32 %v7213, %v7214
    %v7224 = vmax.f32 %v7215, %v7216
    %v7233 = vcombine.high %v7217, %v7217
    %v7235 = vunpack.c.l.s4 1983009808
    %v7236 = vunpack.c.0.s8 %v7235
    %v7237 = vlaneseq
    %v7238 = vshrl.u32 %v7237, 7
    %v7239 = vsub.s32 %v7236, %v7238
    %v7240 = vrot.slane %v7217, %v7239
    %v7242 = vunpack.c.l.s4 1983009808
    %v7243 = vunpack.c.0.s8 %v7242
    %v7244 = vlaneseq
    %v7245 = vshrl.u32 %v7244, 7
    %v7246 = vsub.s32 %v7243, %v7245
    %v7247 = vrot.slane %v7233, %v7246
    %v7248 = vcombine.high %v7240, %v7240
    %v7249 = vcombine.high %v7247, %v7247
    %v7250 = vcombine.high %v7218, %v7218
    %v7252 = vunpack.c.l.s4 1983009808
    %v7253 = vunpack.c.0.s8 %v7252
    %v7254 = vlaneseq
    %v7255 = vshrl.u32 %v7254, 7
    %v7256 = vsub.s32 %v7253, %v7255
    %v7257 = vrot.slane %v7218, %v7256
    %v7259 = vunpack.c.l.s4 1983009808
    %v7260 = vunpack.c.0.s8 %v7259
    %v7261 = vlaneseq
    %v7262 = vshrl.u32 %v7261, 7
    %v7263 = vsub.s32 %v7260, %v7262
    %v7264 = vrot.slane %v7250, %v7263
    %v7265 = vcombine.high %v7257, %v7257
    %v7266 = vcombine.high %v7264, %v7264
    %v7267 = vcombine.high %v7219, %v7219
    %v7269 = vunpack.c.l.s4 1983009808
    %v7270 = vunpack.c.0.s8 %v7269
    %v7271 = vlaneseq
    %v7272 = vshrl.u32 %v7271, 7
    %v7273 = vsub.s32 %v7270, %v7272
    %v7274 = vrot.slane %v7219, %v7273
    %v7276 = vunpack.c.l.s4 1983009808
    %v7277 = vunpack.c.0.s8 %v7276
    %v7278 = vlaneseq
    %v7279 = vshrl.u32 %v7278, 7
    %v7280 = vsub.s32 %v7277, %v7279
    %v7281 = vrot.slane %v7267, %v7280
    %v7282 = vcombine.high %v7274, %v7274
    %v7283 = vcombine.high %v7281, %v7281
    %v7284 = vcombine.high %v7220, %v7220
    %v7286 = vunpack.c.l.s4 1983009808
    %v7287 = vunpack.c.0.s8 %v7286
    %v7288 = vlaneseq
    %v7289 = vshrl.u32 %v7288, 7
    %v7290 = vsub.s32 %v7287, %v7289
    %v7291 = vrot.slane %v7220, %v7290
    %v7293 = vunpack.c.l.s4 1983009808
    %v7294 = vunpack.c.0.s8 %v7293
    %v7295 = vlaneseq
    %v7296 = vshrl.u32 %v7295, 7
    %v7297 = vsub.s32 %v7294, %v7296
    %v7298 = vrot.slane %v7284, %v7297
    %v7299 = vcombine.high %v7291, %v7291
    %v7300 = vcombine.high %v7298, %v7298
    %v7301 = vcombine.high %v7221, %v7221
    %v7303 = vunpack.c.l.s4 1983009808
    %v7304 = vunpack.c.0.s8 %v7303
    %v7305 = vlaneseq
    %v7306 = vshrl.u32 %v7305, 7
    %v7307 = vsub.s32 %v7304, %v7306
    %v7308 = vrot.slane %v7221, %v7307
    %v7310 = vunpack.c.l.s4 1983009808
    %v7311 = vunpack.c.0.s8 %v7310
    %v7312 = vlaneseq
    %v7313 = vshrl.u32 %v7312, 7
    %v7314 = vsub.s32 %v7311, %v7313
    %v7315 = vrot.slane %v7301, %v7314
    %v7316 = vcombine.high %v7308, %v7308
    %v7317 = vcombine.high %v7315, %v7315
    %v7318 = vcombine.high %v7222, %v7222
    %v7320 = vunpack.c.l.s4 1983009808
    %v7321 = vunpack.c.0.s8 %v7320
    %v7322 = vlaneseq
    %v7323 = vshrl.u32 %v7322, 7
    %v7324 = vsub.s32 %v7321, %v7323
    %v7325 = vrot.slane %v7222, %v7324
    %v7327 = vunpack.c.l.s4 1983009808
    %v7328 = vunpack.c.0.s8 %v7327
    %v7329 = vlaneseq
    %v7330 = vshrl.u32 %v7329, 7
    %v7331 = vsub.s32 %v7328, %v7330
    %v7332 = vrot.slane %v7318, %v7331
    %v7333 = vcombine.high %v7325, %v7325
    %v7334 = vcombine.high %v7332, %v7332
    %v7335 = vcombine.high %v7223, %v7223
    %v7337 = vunpack.c.l.s4 1983009808
    %v7338 = vunpack.c.0.s8 %v7337
    %v7339 = vlaneseq
    %v7340 = vshrl.u32 %v7339, 7
    %v7341 = vsub.s32 %v7338, %v7340
    %v7342 = vrot.slane %v7223, %v7341
    %v7344 = vunpack.c.l.s4 1983009808
    %v7345 = vunpack.c.0.s8 %v7344
    %v7346 = vlaneseq
    %v7347 = vshrl.u32 %v7346, 7
    %v7348 = vsub.s32 %v7345, %v7347
    %v7349 = vrot.slane %v7335, %v7348
    %v7350 = vcombine.high %v7342, %v7342
    %v7351 = vcombine.high %v7349, %v7349
    %v7352 = vcombine.high %v7224, %v7224
    %v7354 = vunpack.c.l.s4 1983009808
    %v7355 = vunpack.c.0.s8 %v7354
    %v7356 = vlaneseq
    %v7357 = vshrl.u32 %v7356, 7
    %v7358 = vsub.s32 %v7355, %v7357
    %v7359 = vrot.slane %v7224, %v7358
    %v7361 = vunpack.c.l.s4 1983009808
    %v7362 = vunpack.c.0.s8 %v7361
    %v7363 = vlaneseq
    %v7364 = vshrl.u32 %v7363, 7
    %v7365 = vsub.s32 %v7362, %v7364
    %v7366 = vrot.slane %v7352, %v7365
    %v7367 = vcombine.high %v7359, %v7359
    %v7368 = vcombine.high %v7366, %v7366
    %v7401 = vrot.slane %v7240, 7
    %v7402 = vrot.slane %v7401, 2
    %v7403 = vrot.slane %v7248, 7
    %v7404 = vrot.slane %v7403, 2
    %v7405 = vrot.slane %v7247, 7
    %v7406 = vrot.slane %v7405, 2
    %v7407 = vrot.slane %v7249, 7
    %v7408 = vrot.slane %v7407, 2
    %v7409 = vrot.slane %v7257, 7
    %v7410 = vrot.slane %v7409, 2
    %v7411 = vrot.slane %v7265, 7
    %v7412 = vrot.slane %v7411, 2
    %v7413 = vrot.slane %v7264, 7
    %v7414 = vrot.slane %v7413, 2
    %v7415 = vrot.slane %v7266, 7
    %v7416 = vrot.slane %v7415, 2
    %v7417 = vrot.slane %v7274, 7
    %v7418 = vrot.slane %v7417, 2
    %v7419 = vrot.slane %v7282, 7
    %v7420 = vrot.slane %v7419, 2
    %v7421 = vrot.slane %v7281, 7
    %v7422 = vrot.slane %v7421, 2
    %v7423 = vrot.slane %v7283, 7
    %v7424 = vrot.slane %v7423, 2
    %v7425 = vrot.slane %v7291, 7
    %v7426 = vrot.slane %v7425, 2
    %v7427 = vrot.slane %v7299, 7
    %v7428 = vrot.slane %v7427, 2
    %v7429 = vrot.slane %v7298, 7
    %v7430 = vrot.slane %v7429, 2
    %v7431 = vrot.slane %v7300, 7
    %v7432 = vrot.slane %v7431, 2
    %v7433 = vrot.slane %v7308, 7
    %v7434 = vrot.slane %v7433, 2
    %v7435 = vrot.slane %v7316, 7
    %v7436 = vrot.slane %v7435, 2
    %v7437 = vrot.slane %v7315, 7
    %v7438 = vrot.slane %v7437, 2
    %v7439 = vrot.slane %v7317, 7
    %v7440 = vrot.slane %v7439, 2
    %v7441 = vrot.slane %v7325, 7
    %v7442 = vrot.slane %v7441, 2
    %v7443 = vrot.slane %v7333, 7
    %v7444 = vrot.slane %v7443, 2
    %v7445 = vrot.slane %v7332, 7
    %v7446 = vrot.slane %v7445, 2
    %v7447 = vrot.slane %v7334, 7
    %v7448 = vrot.slane %v7447, 2
    %v7449 = vrot.slane %v7342, 7
    %v7450 = vrot.slane %v7449, 2
    %v7451 = vrot.slane %v7350, 7
    %v7452 = vrot.slane %v7451, 2
    %v7453 = vrot.slane %v7349, 7
    %v7454 = vrot.slane %v7453, 2
    %v7455 = vrot.slane %v7351, 7
    %v7456 = vrot.slane %v7455, 2
    %v7457 = vrot.slane %v7359, 7
    %v7458 = vrot.slane %v7457, 2
    %v7459 = vrot.slane %v7367, 7
    %v7460 = vrot.slane %v7459, 2
    %v7461 = vrot.slane %v7366, 7
    %v7462 = vrot.slane %v7461, 2
    %v7463 = vrot.slane %v7368, 7
    %v7464 = vrot.slane %v7463, 2
    %v7497 = vmax.f32 %v7240, %v7402
    %v7498 = vmax.f32 %v7248, %v7404
    %v7499 = vmax.f32 %v7247, %v7406
    %v7500 = vmax.f32 %v7249, %v7408
    %v7501 = vmax.f32 %v7257, %v7410
    %v7502 = vmax.f32 %v7265, %v7412
    %v7503 = vmax.f32 %v7264, %v7414
    %v7504 = vmax.f32 %v7266, %v7416
    %v7505 = vmax.f32 %v7274, %v7418
    %v7506 = vmax.f32 %v7282, %v7420
    %v7507 = vmax.f32 %v7281, %v7422
    %v7508 = vmax.f32 %v7283, %v7424
    %v7509 = vmax.f32 %v7291, %v7426
    %v7510 = vmax.f32 %v7299, %v7428
    %v7511 = vmax.f32 %v7298, %v7430
    %v7512 = vmax.f32 %v7300, %v7432
    %v7513 = vmax.f32 %v7308, %v7434
    %v7514 = vmax.f32 %v7316, %v7436
    %v7515 = vmax.f32 %v7315, %v7438
    %v7516 = vmax.f32 %v7317, %v7440
    %v7517 = vmax.f32 %v7325, %v7442
    %v7518 = vmax.f32 %v7333, %v7444
    %v7519 = vmax.f32 %v7332, %v7446
    %v7520 = vmax.f32 %v7334, %v7448
    %v7521 = vmax.f32 %v7342, %v7450
    %v7522 = vmax.f32 %v7350, %v7452
    %v7523 = vmax.f32 %v7349, %v7454
    %v7524 = vmax.f32 %v7351, %v7456
    %v7525 = vmax.f32 %v7359, %v7458
    %v7526 = vmax.f32 %v7367, %v7460
    %v7527 = vmax.f32 %v7366, %v7462
    %v7528 = vmax.f32 %v7368, %v7464
    %v7531 = vsel %vm6053, %v7497, %v7497
    %v7532 = vsel %vm6057, %v7497, %v7531
    %v7533 = vrot.slane %v7513, 7
    %v7534 = vsel %vm6047, %v7533, %v7532
    %v7535 = vsel %vm6051, %v7533, %v7534
    %v7536 = vsel %vm6055, %v7533, %v7535
    %v7537 = vsel %vm6059, %v7533, %v7536
    %vm7539 = vcmask 123904
    %7540 = vst.msk [vmem:[#allocation6] sm:$0x3] %vm7539, %v7537
    %v7543 = vsel %vm6053, %v7498, %v7498
    %v7544 = vsel %vm6057, %v7498, %v7543
    %v7545 = vrot.slane %v7514, 7
    %v7546 = vsel %vm6047, %v7545, %v7544
    %v7547 = vsel %vm6051, %v7545, %v7546
    %v7548 = vsel %vm6055, %v7545, %v7547
    %v7549 = vsel %vm6059, %v7545, %v7548
    %7550 = vrot.lane.b32.xlu0 %v7549, 16
    %v7551 = vpop.permute.xlu0 %7550
    %vm7553 = vcmask 255104
    %7554 = vst.msk [vmem:[#allocation6] sm:$0x3] %vm7553, %v7551
    %v7557 = vsel %vm6053, %v7499, %v7499
    %v7558 = vsel %vm6057, %v7499, %v7557
    %v7559 = vrot.slane %v7515, 7
    %v7560 = vsel %vm6047, %v7559, %v7558
    %v7561 = vsel %vm6051, %v7559, %v7560
    %v7562 = vsel %vm6055, %v7559, %v7561
    %v7563 = vsel %vm6059, %v7559, %v7562
    %7564 = vrot.lane.b32.xlu0 %v7563, 32
    %v7565 = vpop.permute.xlu0 %7564
    %vm7567 = vcmask 386304
    %7568 = vst.msk [vmem:[#allocation6] sm:$0x3] %vm7567, %v7565
    %v7571 = vsel %vm6053, %v7500, %v7500
    %v7572 = vsel %vm6057, %v7500, %v7571
    %v7573 = vrot.slane %v7516, 7
    %v7574 = vsel %vm6047, %v7573, %v7572
    %v7575 = vsel %vm6051, %v7573, %v7574
    %v7576 = vsel %vm6055, %v7573, %v7575
    %v7577 = vsel %vm6059, %v7573, %v7576
    %7578 = vrot.lane.b32.xlu0 %v7577, 48
    %v7579 = vpop.permute.xlu0 %7578
    %vm7581 = vcmask 517504
    %7582 = vst.msk [vmem:[#allocation6] sm:$0x3] %vm7581, %v7579
    %v7585 = vsel %vm6053, %v7501, %v7501
    %v7586 = vsel %vm6057, %v7501, %v7585
    %v7587 = vrot.slane %v7517, 7
    %v7588 = vsel %vm6047, %v7587, %v7586
    %v7589 = vsel %vm6051, %v7587, %v7588
    %v7590 = vsel %vm6055, %v7587, %v7589
    %v7591 = vsel %vm6059, %v7587, %v7590
    %7592 = vrot.lane.b32.xlu0 %v7591, 64
    %v7593 = vpop.permute.xlu0 %7592
    %vm7595 = vcmask 648704
    %7596 = vst.msk [vmem:[#allocation6] sm:$0x3] %vm7595, %v7593
    %v7599 = vsel %vm6053, %v7502, %v7502
    %v7600 = vsel %vm6057, %v7502, %v7599
    %v7601 = vrot.slane %v7518, 7
    %v7602 = vsel %vm6047, %v7601, %v7600
    %v7603 = vsel %vm6051, %v7601, %v7602
    %v7604 = vsel %vm6055, %v7601, %v7603
    %v7605 = vsel %vm6059, %v7601, %v7604
    %7606 = vrot.lane.b32.xlu0 %v7605, 80
    %v7607 = vpop.permute.xlu0 %7606
    %vm7609 = vcmask 779904
    %7610 = vst.msk [vmem:[#allocation6] sm:$0x3] %vm7609, %v7607
    %v7613 = vsel %vm6053, %v7503, %v7503
    %v7614 = vsel %vm6057, %v7503, %v7613
    %v7615 = vrot.slane %v7519, 7
    %v7616 = vsel %vm6047, %v7615, %v7614
    %v7617 = vsel %vm6051, %v7615, %v7616
    %v7618 = vsel %vm6055, %v7615, %v7617
    %v7619 = vsel %vm6059, %v7615, %v7618
    %7620 = vrot.lane.b32.xlu0 %v7619, 96
    %v7621 = vpop.permute.xlu0 %7620
    %vm7623 = vcmask 911104
    %7624 = vst.msk [vmem:[#allocation6] sm:$0x3] %vm7623, %v7621
    %v7627 = vsel %vm6053, %v7504, %v7504
    %v7628 = vsel %vm6057, %v7504, %v7627
    %v7629 = vrot.slane %v7520, 7
    %v7630 = vsel %vm6047, %v7629, %v7628
    %v7631 = vsel %vm6051, %v7629, %v7630
    %v7632 = vsel %vm6055, %v7629, %v7631
    %v7633 = vsel %vm6059, %v7629, %v7632
    %7634 = vrot.lane.b32.xlu0 %v7633, 112
    %v7635 = vpop.permute.xlu0 %7634
    %vm7637 = vcmask 1042304
    %7638 = vst.msk [vmem:[#allocation6] sm:$0x3] %vm7637, %v7635
    %v7641 = vsel %vm6053, %v7505, %v7505
    %v7642 = vsel %vm6057, %v7505, %v7641
    %v7643 = vrot.slane %v7521, 7
    %v7644 = vsel %vm6047, %v7643, %v7642
    %v7645 = vsel %vm6051, %v7643, %v7644
    %v7646 = vsel %vm6055, %v7643, %v7645
    %v7647 = vsel %vm6059, %v7643, %v7646
    %7649 = vst.msk [vmem:[#allocation6 + $0x2] sm:$0x3] %vm7539, %v7647
    %v7652 = vsel %vm6053, %v7506, %v7506
    %v7653 = vsel %vm6057, %v7506, %v7652
    %v7654 = vrot.slane %v7522, 7
    %v7655 = vsel %vm6047, %v7654, %v7653
    %v7656 = vsel %vm6051, %v7654, %v7655
    %v7657 = vsel %vm6055, %v7654, %v7656
    %v7658 = vsel %vm6059, %v7654, %v7657
    %7659 = vrot.lane.b32.xlu0 %v7658, 16
    %v7660 = vpop.permute.xlu0 %7659
    %7662 = vst.msk [vmem:[#allocation6 + $0x2] sm:$0x3] %vm7553, %v7660
    %v7665 = vsel %vm6053, %v7507, %v7507
    %v7666 = vsel %vm6057, %v7507, %v7665
    %v7667 = vrot.slane %v7523, 7
    %v7668 = vsel %vm6047, %v7667, %v7666
    %v7669 = vsel %vm6051, %v7667, %v7668
    %v7670 = vsel %vm6055, %v7667, %v7669
    %v7671 = vsel %vm6059, %v7667, %v7670
    %7672 = vrot.lane.b32.xlu0 %v7671, 32
    %v7673 = vpop.permute.xlu0 %7672
    %7675 = vst.msk [vmem:[#allocation6 + $0x2] sm:$0x3] %vm7567, %v7673
    %v7678 = vsel %vm6053, %v7508, %v7508
    %v7679 = vsel %vm6057, %v7508, %v7678
    %v7680 = vrot.slane %v7524, 7
    %v7681 = vsel %vm6047, %v7680, %v7679
    %v7682 = vsel %vm6051, %v7680, %v7681
    %v7683 = vsel %vm6055, %v7680, %v7682
    %v7684 = vsel %vm6059, %v7680, %v7683
    %7685 = vrot.lane.b32.xlu0 %v7684, 48
    %v7686 = vpop.permute.xlu0 %7685
    %7688 = vst.msk [vmem:[#allocation6 + $0x2] sm:$0x3] %vm7581, %v7686
    %v7691 = vsel %vm6053, %v7509, %v7509
    %v7692 = vsel %vm6057, %v7509, %v7691
    %v7693 = vrot.slane %v7525, 7
    %v7694 = vsel %vm6047, %v7693, %v7692
    %v7695 = vsel %vm6051, %v7693, %v7694
    %v7696 = vsel %vm6055, %v7693, %v7695
    %v7697 = vsel %vm6059, %v7693, %v7696
    %7698 = vrot.lane.b32.xlu0 %v7697, 64
    %v7699 = vpop.permute.xlu0 %7698
    %7701 = vst.msk [vmem:[#allocation6 + $0x2] sm:$0x3] %vm7595, %v7699
    %v7704 = vsel %vm6053, %v7510, %v7510
    %v7705 = vsel %vm6057, %v7510, %v7704
    %v7706 = vrot.slane %v7526, 7
    %v7707 = vsel %vm6047, %v7706, %v7705
    %v7708 = vsel %vm6051, %v7706, %v7707
    %v7709 = vsel %vm6055, %v7706, %v7708
    %v7710 = vsel %vm6059, %v7706, %v7709
    %7711 = vrot.lane.b32.xlu0 %v7710, 80
    %v7712 = vpop.permute.xlu0 %7711
    %7714 = vst.msk [vmem:[#allocation6 + $0x2] sm:$0x3] %vm7609, %v7712
    %v7717 = vsel %vm6053, %v7511, %v7511
    %v7718 = vsel %vm6057, %v7511, %v7717
    %v7719 = vrot.slane %v7527, 7
    %v7720 = vsel %vm6047, %v7719, %v7718
    %v7721 = vsel %vm6051, %v7719, %v7720
    %v7722 = vsel %vm6055, %v7719, %v7721
    %v7723 = vsel %vm6059, %v7719, %v7722
    %7724 = vrot.lane.b32.xlu0 %v7723, 96
    %v7725 = vpop.permute.xlu0 %7724
    %7727 = vst.msk [vmem:[#allocation6 + $0x2] sm:$0x3] %vm7623, %v7725
    %v7730 = vsel %vm6053, %v7512, %v7512
    %v7731 = vsel %vm6057, %v7512, %v7730
    %v7732 = vrot.slane %v7528, 7
    %v7733 = vsel %vm6047, %v7732, %v7731
    %v7734 = vsel %vm6051, %v7732, %v7733
    %v7735 = vsel %vm6055, %v7732, %v7734
    %v7736 = vsel %vm6059, %v7732, %v7735
    %7737 = vrot.lane.b32.xlu0 %v7736, 112
    %v7738 = vpop.permute.xlu0 %7737
    %7740 = vst.msk [vmem:[#allocation6 + $0x2] sm:$0x3] %vm7637, %v7738
    %v7741 = vld [vmem:[#allocation6] sm:$0xf]
    %v7744 = vunpack.c.l.s4 1983009808
    %v7745 = vunpack.c.0.s8 %v7744
    %v7746 = vlaneseq
    %v7747 = vshrl.u32 %v7746, 7
    %v7748 = vsub.s32 %v7745, %v7747
    %v7749 = vrot.slane %v7741, %v7748
    %v7750 = vcombine.high %v7749, %v7749
    %v7753 = vpack.c.bf16 %v7749, %v7749
    %v7754 = vpack.c.bf16 %v7750, %v7750
    %v7755 = vld [vmem:[%s5] sm:$0xf]
    %v7756 = vld [vmem:[%s5 + $0x4] sm:$0xf]
    %v7757 = vld [vmem:[%s5 + $0x8] sm:$0xf]
    %v7758 = vld [vmem:[%s5 + $0xc] sm:$0xf]
    %v7759 = vld [vmem:[%s5 + $0x10] sm:$0xf]
    %v7760 = vld [vmem:[%s5 + $0x14] sm:$0xf]
    %v7761 = vld [vmem:[%s5 + $0x18] sm:$0xf]
    %v7762 = vld [vmem:[%s5 + $0x1c] sm:$0xf]
    %v7763 = vld [vmem:[%s5 + $0x20] sm:$0xf]
    %v7764 = vld [vmem:[%s5 + $0x24] sm:$0xf]
    %v7765 = vld [vmem:[%s5 + $0x28] sm:$0xf]
    %v7766 = vld [vmem:[%s5 + $0x2c] sm:$0xf]
    %v7767 = vld [vmem:[%s5 + $0x30] sm:$0xf]
    %v7768 = vld [vmem:[%s5 + $0x34] sm:$0xf]
    %v7769 = vld [vmem:[%s5 + $0x38] sm:$0xf]
    %v7770 = vld [vmem:[%s5 + $0x3c] sm:$0xf]
    %v7771 = vld [vmem:[%s5 + $0x40] sm:$0xf]
    %v7772 = vld [vmem:[%s5 + $0x44] sm:$0xf]
    %v7773 = vld [vmem:[%s5 + $0x48] sm:$0xf]
    %v7774 = vld [vmem:[%s5 + $0x4c] sm:$0xf]
    %v7775 = vld [vmem:[%s5 + $0x50] sm:$0xf]
    %v7776 = vld [vmem:[%s5 + $0x54] sm:$0xf]
    %v7777 = vld [vmem:[%s5 + $0x58] sm:$0xf]
    %v7778 = vld [vmem:[%s5 + $0x5c] sm:$0xf]
    %v7779 = vld [vmem:[%s5 + $0x60] sm:$0xf]
    %v7780 = vld [vmem:[%s5 + $0x64] sm:$0xf]
    %v7781 = vld [vmem:[%s5 + $0x68] sm:$0xf]
    %v7782 = vld [vmem:[%s5 + $0x6c] sm:$0xf]
    %v7783 = vld [vmem:[%s5 + $0x70] sm:$0xf]
    %v7784 = vld [vmem:[%s5 + $0x74] sm:$0xf]
    %v7785 = vld [vmem:[%s5 + $0x78] sm:$0xf]
    %v7786 = vld [vmem:[%s5 + $0x7c] sm:$0xf]
    %v7787 = vld [vmem:[%s6] sm:$0x1]
    %v7789 = vlaneseq
    %v7790 = vshrl.u32 %v7789, 7
    %v7791 = vsub.s32 0, %v7790
    %v7792 = vrot.slane %v7787, %v7791
    %v7826 = vunpack.c.l.b16 %v7755
    %v7827 = vunpack.c.l.b16 %v7756
    %v7828 = vunpack.c.l.b16 %v7757
    %v7829 = vunpack.c.l.b16 %v7758
    %v7830 = vunpack.c.l.b16 %v7759
    %v7831 = vunpack.c.l.b16 %v7760
    %v7832 = vunpack.c.l.b16 %v7761
    %v7833 = vunpack.c.l.b16 %v7762
    %v7834 = vunpack.c.l.b16 %v7763
    %v7835 = vunpack.c.l.b16 %v7764
    %v7836 = vunpack.c.l.b16 %v7765
    %v7837 = vunpack.c.l.b16 %v7766
    %v7838 = vunpack.c.l.b16 %v7767
    %v7839 = vunpack.c.l.b16 %v7768
    %v7840 = vunpack.c.l.b16 %v7769
    %v7841 = vunpack.c.l.b16 %v7770
    %v7842 = vunpack.c.l.b16 %v7771
    %v7843 = vunpack.c.l.b16 %v7772
    %v7844 = vunpack.c.l.b16 %v7773
    %v7845 = vunpack.c.l.b16 %v7774
    %v7846 = vunpack.c.l.b16 %v7775
    %v7847 = vunpack.c.l.b16 %v7776
    %v7848 = vunpack.c.l.b16 %v7777
    %v7849 = vunpack.c.l.b16 %v7778
    %v7850 = vunpack.c.l.b16 %v7779
    %v7851 = vunpack.c.l.b16 %v7780
    %v7852 = vunpack.c.l.b16 %v7781
    %v7853 = vunpack.c.l.b16 %v7782
    %v7854 = vunpack.c.l.b16 %v7783
    %v7855 = vunpack.c.l.b16 %v7784
    %v7856 = vunpack.c.l.b16 %v7785
    %v7857 = vunpack.c.l.b16 %v7786
    %v7858 = vpack.c.b16 %v7827, %v7826
    %v7859 = vpack.c.b16 %v7829, %v7828
    %v7860 = vpack.c.b16 %v7831, %v7830
    %v7861 = vpack.c.b16 %v7833, %v7832
    %v7862 = vpack.c.b16 %v7835, %v7834
    %v7863 = vpack.c.b16 %v7837, %v7836
    %v7864 = vpack.c.b16 %v7839, %v7838
    %v7865 = vpack.c.b16 %v7841, %v7840
    %v7866 = vpack.c.b16 %v7843, %v7842
    %v7867 = vpack.c.b16 %v7845, %v7844
    %v7868 = vpack.c.b16 %v7847, %v7846
    %v7869 = vpack.c.b16 %v7849, %v7848
    %v7870 = vpack.c.b16 %v7851, %v7850
    %v7871 = vpack.c.b16 %v7853, %v7852
    %v7872 = vpack.c.b16 %v7855, %v7854
    %v7873 = vpack.c.b16 %v7857, %v7856
    %7890 = vmatprep.subr.bf16.mxu0 0
    %7891 = vmatpush1.bf16.msra.mxu0 %v7865
    %7892 = vmatprep.subr.bf16.mxu0 0
    %7893 = vmatpush1.bf16.msra.mxu0 %v7864
    %7894 = vmatprep.subr.bf16.mxu0 0
    %7895 = vmatpush1.bf16.msra.mxu0 %v7863
    %7896 = vmatprep.subr.bf16.mxu0 0
    %7897 = vmatpush1.bf16.msra.mxu0 %v7862
    %7898 = vmatprep.subr.bf16.mxu0 0
    %7899 = vmatpush1.bf16.msra.mxu0 %v7861
    %7900 = vmatprep.subr.bf16.mxu0 0
    %7901 = vmatpush1.bf16.msra.mxu0 %v7860
    %7902 = vmatprep.subr.bf16.mxu0 0
    %7903 = vmatpush1.bf16.msra.mxu0 %v7859
    %7904 = vmatprep.subr.bf16.mxu0 0
    %7905 = vmatpush1.bf16.msra.mxu0 %v7858
    %7906 = vmatprep.subr.bf16.mxu0 0
    %7907 = vmatpush2.bf16.msra.mxu0 %v7873
    %7908 = vmatprep.subr.bf16.mxu0 0
    %7909 = vmatpush2.bf16.msra.mxu0 %v7872
    %7910 = vmatprep.subr.bf16.mxu0 0
    %7911 = vmatpush2.bf16.msra.mxu0 %v7871
    %7912 = vmatprep.subr.bf16.mxu0 0
    %7913 = vmatpush2.bf16.msra.mxu0 %v7870
    %7914 = vmatprep.subr.bf16.mxu0 0
    %7915 = vmatpush2.bf16.msra.mxu0 %v7869
    %7916 = vmatprep.subr.bf16.mxu0 0
    %7917 = vmatpush2.bf16.msra.mxu0 %v7868
    %7918 = vmatprep.subr.bf16.mxu0 0
    %7919 = vmatpush2.bf16.msra.mxu0 %v7867
    %7920 = vmatprep.subr.bf16.mxu0 0
    %7921 = vmatpush2.bf16.msra.mxu0 %v7866
    %7922 = vmatprep.mubr.bf16.mxu0 %v7754
    %7923 = vmatmul.mubr.bf16.gmra.mxu0 %v7753
    %v7924 = vpop.f32.mrf.mxu0
    %v7925 = vadd.f32 %v7792, %v7924
    %v7926 = vpop.f32.mrf.mxu0
    %v7927 = vpop.f32.mrf.mxu0
    %v7928 = vpop.f32.mrf.mxu0
    %7929 = vdwg.mxu0
    %v7930 = vmax.f32 %v7925, 0.0
    %v7931 = vpack.c.bf16 %v7930, %v7930
    %v7932 = vld [vmem:[%s7] sm:$0xf]
    %v7933 = vld [vmem:[%s7 + $0x4] sm:$0xf]
    %v7934 = vld [vmem:[%s7 + $0x8] sm:$0xf]
    %v7935 = vld [vmem:[%s7 + $0xc] sm:$0xf]
    %v7936 = vld [vmem:[%s8] sm:$0x1]
    %v7938 = vlaneseq
    %v7939 = vshrl.u32 %v7938, 7
    %v7940 = vsub.s32 0, %v7939
    %v7941 = vrot.slane %v7936, %v7940
    %v7947 = vunpack.c.l.b16 %v7932
    %v7948 = vunpack.c.l.b16 %v7933
    %v7949 = vunpack.c.l.b16 %v7934
    %v7950 = vunpack.c.l.b16 %v7935
    %v7951 = vpack.c.b16 %v7948, %v7947
    %v7952 = vpack.c.b16 %v7950, %v7949
    %vm7955 = vcmask 261120
    %v7957 = vsel %vm7955, %v7931, 0
    %7959 = vmatprep.subr.bf16.mxu0 0
    %7960 = vmatpush1.bf16.msra.mxu0 0
    %7961 = vmatprep.subr.bf16.mxu0 0
    %7962 = vmatpush1.bf16.msra.mxu0 0
    %7963 = vmatprep.subr.bf16.mxu0 0
    %7964 = vmatpush1.bf16.msra.mxu0 0
    %7965 = vmatprep.subr.bf16.mxu0 0
    %7966 = vmatpush1.bf16.msra.mxu0 0
    %7967 = vmatprep.subr.bf16.mxu0 0
    %7968 = vmatpush1.bf16.msra.mxu0 0
    %7969 = vmatprep.subr.bf16.mxu0 0
    %7970 = vmatpush1.bf16.msra.mxu0 0
    %7971 = vmatprep.subr.bf16.mxu0 0
    %7972 = vmatpush1.bf16.msra.mxu0 %v7952
    %7973 = vmatprep.subr.bf16.mxu0 0
    %7974 = vmatpush1.bf16.msra.mxu0 %v7951
    %7975 = vmatprep.subr.bf16.mxu0 0
    %7976 = vmatpush2.bf16.msra.mxu0 0
    %7977 = vmatprep.subr.bf16.mxu0 0
    %7978 = vmatpush2.bf16.msra.mxu0 0
    %7979 = vmatprep.subr.bf16.mxu0 0
    %7980 = vmatpush2.bf16.msra.mxu0 0
    %7981 = vmatprep.subr.bf16.mxu0 0
    %7982 = vmatpush2.bf16.msra.mxu0 0
    %7983 = vmatprep.subr.bf16.mxu0 0
    %7984 = vmatpush2.bf16.msra.mxu0 0
    %7985 = vmatprep.subr.bf16.mxu0 0
    %7986 = vmatpush2.bf16.msra.mxu0 0
    %7987 = vmatprep.subr.bf16.mxu0 0
    %7988 = vmatpush2.bf16.msra.mxu0 0
    %7989 = vmatprep.subr.bf16.mxu0 0
    %7990 = vmatpush2.bf16.msra.mxu0 0
    %7991 = vmatprep.mubr.bf16.mxu0 0
    %7992 = vmatmul.mubr.bf16.gmra.mxu0 %v7957
    %v7993 = vpop.f32.mrf.mxu0
    %v7994 = vadd.f32 %v7941, %v7993
    %v7995 = vpop.f32.mrf.mxu0
    %v7996 = vpop.f32.mrf.mxu0
    %v7997 = vpop.f32.mrf.mxu0
    %7998 = vdwg.mxu0
    %v7999 = vmax.f32 %v7994, 0.0
    %v8000 = vpack.c.bf16 %v7999, %v7999
    %v8001 = vld [vmem:[%s9] sm:$0xf]
    %v8002 = vld [vmem:[%s9 + $0x4] sm:$0xf]
    %v8003 = vld [vmem:[%s9 + $0x8] sm:$0xf]
    %v8004 = vld [vmem:[%s9 + $0xc] sm:$0xf]
    %v8005 = vld [vmem:[%s10] sm:$0x1]
    %v8007 = vlaneseq
    %v8008 = vshrl.u32 %v8007, 7
    %v8009 = vsub.s32 0, %v8008
    %v8010 = vrot.slane %v8005, %v8009
    %v8016 = vunpack.c.l.b16 %v8001
    %v8017 = vunpack.c.l.b16 %v8002
    %v8018 = vunpack.c.l.b16 %v8003
    %v8019 = vunpack.c.l.b16 %v8004
    %v8020 = vpack.c.b16 %v8017, %v8016
    %v8021 = vpack.c.b16 %v8019, %v8018
    %v8025 = vsel %vm7955, %v8000, 0
    %8027 = vmatprep.subr.bf16.mxu0 0
    %8028 = vmatpush1.bf16.msra.mxu0 0
    %8029 = vmatprep.subr.bf16.mxu0 0
    %8030 = vmatpush1.bf16.msra.mxu0 0
    %8031 = vmatprep.subr.bf16.mxu0 0
    %8032 = vmatpush1.bf16.msra.mxu0 0
    %8033 = vmatprep.subr.bf16.mxu0 0
    %8034 = vmatpush1.bf16.msra.mxu0 0
    %8035 = vmatprep.subr.bf16.mxu0 0
    %8036 = vmatpush1.bf16.msra.mxu0 0
    %8037 = vmatprep.subr.bf16.mxu0 0
    %8038 = vmatpush1.bf16.msra.mxu0 0
    %8039 = vmatprep.subr.bf16.mxu0 0
    %8040 = vmatpush1.bf16.msra.mxu0 %v8021
    %8041 = vmatprep.subr.bf16.mxu0 0
    %8042 = vmatpush1.bf16.msra.mxu0 %v8020
    %8043 = vmatprep.subr.bf16.mxu0 0
    %8044 = vmatpush2.bf16.msra.mxu0 0
    %8045 = vmatprep.subr.bf16.mxu0 0
    %8046 = vmatpush2.bf16.msra.mxu0 0
    %8047 = vmatprep.subr.bf16.mxu0 0
    %8048 = vmatpush2.bf16.msra.mxu0 0
    %8049 = vmatprep.subr.bf16.mxu0 0
    %8050 = vmatpush2.bf16.msra.mxu0 0
    %8051 = vmatprep.subr.bf16.mxu0 0
    %8052 = vmatpush2.bf16.msra.mxu0 0
    %8053 = vmatprep.subr.bf16.mxu0 0
    %8054 = vmatpush2.bf16.msra.mxu0 0
    %8055 = vmatprep.subr.bf16.mxu0 0
    %8056 = vmatpush2.bf16.msra.mxu0 0
    %8057 = vmatprep.subr.bf16.mxu0 0
    %8058 = vmatpush2.bf16.msra.mxu0 0
    %8059 = vmatprep.mubr.bf16.mxu0 0
    %8060 = vmatmul.mubr.bf16.gmra.mxu0 %v8025
    %v8061 = vpop.f32.mrf.mxu0
    %v8062 = vadd.f32 %v8010, %v8061
    %v8063 = vpop.f32.mrf.mxu0
    %v8064 = vpop.f32.mrf.mxu0
    %v8065 = vpop.f32.mrf.mxu0
    %8066 = vdwg.mxu0
    %v8067 = vtanh.pop %v8062
    %8068 = vst.msk [vmem:[#allocation7] sm:$0x3] %vm7539, %v8067
    // Predicated region
    $region46: #{vggfc_forward.1} parent=1 // pred_check
      _
    $region47: #{vggfc_forward.1} parent=1 // pred_check_branch
      %8070 = sbr.rel (0) target = $region49
    $region48: #{vggfc_forward.1} parent=1 // pred_region
      %s8072 = ssub.s32 32, 32
      %8073 = vsyncadd [#allocation8], %s8072
      %s8075 = sshll.u32 [#allocation7], 4
      %s8076 = int_to_ptr.vmem [resolvable:$true] %s8075
      %8078 = dma.vmem_to_hbm [thread:$0]  %s8076, 32, %s11, [#allocation8]
    $region49: #{vggfc_forward.1} parent=1 // pred_fallthru
      _
    // Predicated region
    $region50: #{vggfc_forward.1} parent=1 // pred_check
      _
    $region51: #{vggfc_forward.1} parent=1 // pred_check_branch
      %8080 = sbr.rel (0) target = $region53
    $region52: #{vggfc_forward.1} parent=1 // pred_region
      %8081 = dma.done [#allocation8], 32
    $region53: #{vggfc_forward.1} parent=1 // pred_fallthru
      _
    %8082 = vsyncpa [#allocation8], 1

</llo_original>
